<compile_context>
chip_gen: v7x
topology: tpu7x:2x2x1
jax: 0.10.0
libtpu: 0.0.40
codegen_flags: <defaults>
</compile_context>

<pallas_src>
import math

import jax
import jax.numpy as jnp
from jax import lax
from jax.experimental import pallas as pl
from jax.experimental.pallas import tpu as pltpu

IN_CH = 16
THRESHOLD = 0.5
BN_EPS = 1e-5
MAX_TILE_S = 8192                      # lanes per block (512 KiB/block @ C=16 f32)
VMEM_LIMIT = 32 * 1024 * 1024          # safe on v5e/v6e/v7x, ample for our blocks


def _pick_tile_s(S, max_tile=MAX_TILE_S):
    """Largest multiple of 128 that divides S and is <= max_tile."""
    if S % 128 != 0:
        raise ValueError(f"d*h*w must be a multiple of 128 (got {S})")
    best = 128
    for t in range(128, min(S, max_tile) + 1, 128):
        if S % t == 0:
            best = t
    return best


# ----------------------------- kernel 1 ------------------------------------
def edge_conv_stats_kernel(x1_ref, x2_ref, w_ref, y_ref, psum_ref, pssq_ref):
    """Fused: edge diff (exact x>0 form of sigmoid>0.5), x = diff*x1 + x1,
    1x1x1 conv as (C,C)@(C,TILE_S) on the MXU, and per-tile partial BN stats
    (cross-lane reductions) written as independent per-tile outputs."""
    x1 = x1_ref[0]                                   # (C, TILE_S)
    x2 = x2_ref[0]
    # sigmoid(x) > 0.5  <=>  x > 0 (exact for threshold 0.5); edge in {0,1}
    edge = jnp.logical_xor(x1 > 0.0, x2 > 0.0)
    xin = jnp.where(edge, x1 + x1, x1)               # edge*x1 + x1
    # conv bias dropped: a per-channel constant cancels under BN mean subtraction
    y = jnp.dot(w_ref[...], xin, preferred_element_type=jnp.float32)  # (C, TILE_S)
    y_ref[0] = y
    psum_ref[...] = jnp.sum(y, axis=-1, keepdims=True)[None, None]      # (1,1,C,1)
    pssq_ref[...] = jnp.sum(y * y, axis=-1, keepdims=True)[None, None]  # (1,1,C,1)


# ----------------------------- kernel 2 ------------------------------------
def _erf(x):
    # Abramowitz & Stegun 7.1.26 (|err| < 1.5e-7 ~ f32 eps).  Mosaic has no erf
    # lowering, so the exact (erf-based) nn.GELU is built from this in-kernel
    # approximation of erf.
    p = 0.3275911
    a1, a2, a3, a4, a5 = 0.254829592, -0.284496736, 1.421413741, -1.453152027, 1.061405429
    ax = jnp.abs(x)
    t = 1.0 / (1.0 + p * ax)
    poly = ((((a5 * t + a4) * t + a3) * t + a2) * t + a1) * t
    y = 1.0 - poly * jnp.exp(-ax * ax)
    return jnp.where(x >= 0, y, -y)


def bn_gelu_kernel(y_ref, scale_ref, shift_ref, o_ref):
    """BatchNorm affine (scale/shift folded with batch stats, per-channel on
    sublanes) + exact GELU.  Output aliases the y buffer (in-place)."""
    z = y_ref[0] * scale_ref[...] + shift_ref[...]   # (C, TILE_S)
    o_ref[0] = 0.5 * z * (1.0 + _erf(z * 0.7071067811865475))


# ----------------------------- wrapper -------------------------------------
def dra_forward(x1, x2, conv_w, conv_b, gamma, beta):
    del conv_b  # exact no-op under BN training-mode batch stats (mean cancels it)
    b, c, d, h, w = x1.shape
    S = d * h * w
    M = b * S

    # Free reshapes (no transpose, no HBM pass): native NCDHW -> (b, c, S)
    x1r = x1.reshape(b, c, S)
    x2r = x2.reshape(b, c, S)

    tile_s = _pick_tile_s(S)
    n_s = S // tile_s
    grid = (b, n_s)

    cparams = pltpu.CompilerParams(
        dimension_semantics=("parallel", "parallel"),
        vmem_limit_bytes=VMEM_LIMIT,
    )

    y, psum, pssq = pl.pallas_call(
        edge_conv_stats_kernel,
        out_shape=(jax.ShapeDtypeStruct((b, c, S), jnp.float32),
                   jax.ShapeDtypeStruct((b, n_s, c, 1), jnp.float32),
                   jax.ShapeDtypeStruct((b, n_s, c, 1), jnp.float32)),
        grid_spec=pltpu.PrefetchScalarGridSpec(
            num_scalar_prefetch=0,
            grid=grid,
            in_specs=[pl.BlockSpec((1, c, tile_s), lambda i, j: (i, 0, j)),
                      pl.BlockSpec((1, c, tile_s), lambda i, j: (i, 0, j)),
                      pl.BlockSpec((c, c), lambda i, j: (0, 0))],
            out_specs=(pl.BlockSpec((1, c, tile_s), lambda i, j: (i, 0, j)),
                       pl.BlockSpec((1, 1, c, 1), lambda i, j: (i, j, 0, 0)),
                       pl.BlockSpec((1, 1, c, 1), lambda i, j: (i, j, 0, 0))),
        ),
        compiler_params=cparams,
    )(x1r, x2r, conv_w)

    # BatchNorm (training mode) batch statistics from per-tile partials,
    # combined with Chan's parallel-variance formula (avoids E[y^2]-E[y]^2
    # cancellation for large M).  Tiny arrays -> plain XLA.
    ts_sum = psum.reshape(b * n_s, c)
    ts_ssq = pssq.reshape(b * n_s, c)
    n_t = float(tile_s)
    mean = jnp.sum(ts_sum, axis=0) / M                              # (c,)
    tile_mean = ts_sum / n_t
    m2_within = jnp.maximum(ts_ssq - ts_sum * ts_sum / n_t, 0.0)
    m2_between = n_t * jnp.sum((tile_mean - mean[None, :]) ** 2, axis=0)
    var = (jnp.sum(m2_within, axis=0) + m2_between) / M             # biased
    inv_std = lax.rsqrt(var + BN_EPS)
    scale = (gamma * inv_std).reshape(c, 1)
    shift = (beta - mean * gamma * inv_std).reshape(c, 1)

    out = pl.pallas_call(
        bn_gelu_kernel,
        out_shape=jax.ShapeDtypeStruct((b, c, S), jnp.float32),
        grid_spec=pltpu.PrefetchScalarGridSpec(
            num_scalar_prefetch=0,
            grid=grid,
            in_specs=[pl.BlockSpec((1, c, tile_s), lambda i, j: (i, 0, j)),
                      pl.BlockSpec((c, 1), lambda i, j: (0, 0)),
                      pl.BlockSpec((c, 1), lambda i, j: (0, 0))],
            out_specs=pl.BlockSpec((1, c, tile_s), lambda i, j: (i, 0, j)),
        ),
        input_output_aliases={0: 0},   # overwrite the dead intermediate y in place
        compiler_params=cparams,
    )(y, scale, shift)

    return out.reshape(b, c, d, h, w)


# ----------------------------- pure-JAX reference ---------------------------
def dra_reference(x1, x2, conv_w, conv_b, gamma, beta):
    m1 = (jax.nn.sigmoid(x1) > THRESHOLD).astype(jnp.float32)
    m2 = (jax.nn.sigmoid(x2) > THRESHOLD).astype(jnp.float32)
    xin = jnp.abs(m1 - m2) * x1 + x1
    y = jnp.einsum('bcdhw,oc->bodhw', xin, conv_w) + conv_b[None, :, None, None, None]
    mean = jnp.mean(y, axis=(0, 2, 3, 4), keepdims=True)
    var = jnp.var(y, axis=(0, 2, 3, 4), keepdims=True)
    yn = (y - mean) / jnp.sqrt(var + BN_EPS)
    yn = yn * gamma[None, :, None, None, None] + beta[None, :, None, None, None]
    return jax.nn.gelu(yn, approximate=False)


if __name__ == "__main__":
    key = jax.random.PRNGKey(0)
    k1, k2, kw, kb, kg, kbe = jax.random.split(key, 6)
    b, c, d, h, w = 2, IN_CH, 16, 32, 32        # S = d*h*w = 16384 -> grid (2, 2)

    x1 = jax.random.normal(k1, (b, c, d, h, w), jnp.float32)
    x2 = jax.random.normal(k2, (b, c, d, h, w), jnp.float32)

    # add_learn[0] = Conv3d(c, c, kernel_size=1): weight (c, c, 1, 1, 1) -> (c, c), bias (c,)
    conv_w = jax.random.normal(kw, (c, c), jnp.float32) * (1.0 / math.sqrt(c))
    conv_b = jax.random.normal(kb, (c,), jnp.float32) * 0.05
    # add_learn[1] = BatchNorm3d(c): deterministic (non-trivial) affine params
    gamma = 1.0 + 0.1 * jax.random.normal(kg, (c,), jnp.float32)
    beta = 0.1 * jax.random.normal(kbe, (c,), jnp.float32)

    fwd = jax.jit(dra_forward)
    out = jax.block_until_ready(fwd(x1, x2, conv_w, conv_b, gamma, beta))
    assert out.shape == (b, c, d, h, w)

    ref = dra_reference(x1, x2, conv_w, conv_b, gamma, beta)
    err = float(jnp.max(jnp.abs(out - ref)))
    assert err < 1e-4, f"max abs error {err}"

    print("KERNEL_OK")
</pallas_src>

<mosaic_0001>
module attributes {stable_mosaic.version = 11 : i64} {
  func.func @edge_conv_stats_kernel(%arg0: i32, %arg1: i32, %arg2: memref<1x16x8192xf32, #tpu.memory_space<vmem>>, %arg3: memref<1x16x8192xf32, #tpu.memory_space<vmem>>, %arg4: memref<16x16xf32, #tpu.memory_space<vmem>>, %arg5: memref<1x16x8192xf32, #tpu.memory_space<vmem>>, %arg6: memref<1x1x16x1xf32, #tpu.memory_space<vmem>>, %arg7: memref<1x1x16x1xf32, #tpu.memory_space<vmem>>) attributes {dimension_semantics = [#tpu.dimension_semantics<parallel>, #tpu.dimension_semantics<parallel>], iteration_bounds = array<i64: 2, 2>, scalar_prefetch = 0 : i64, scratch_operands = 0 : i64, tpu.core_type = #tpu.core_type<tc>, window_params = [{transform_indices = @transform_0, window_bounds = array<i64: 1, 16, 8192>}, {transform_indices = @transform_1, window_bounds = array<i64: 1, 16, 8192>}, {pipeline_mode = #tpu.pipeline_mode<synchronous>, transform_indices = @transform_2, window_bounds = array<i64: 16, 16>}, {transform_indices = @transform_3, window_bounds = array<i64: 1, 16, 8192>}, {transform_indices = @transform_4, window_bounds = array<i64: 1, 1, 16, 1>}, {transform_indices = @transform_5, window_bounds = array<i64: 1, 1, 16, 1>}]} {
    %c0 = arith.constant 0 : index
    %c0_0 = arith.constant 0 : index
    %c0_1 = arith.constant 0 : index
    %0 = vector.load %arg2[%c0, %c0_0, %c0_1] : memref<1x16x8192xf32, #tpu.memory_space<vmem>>, vector<1x16x8192xf32>
    %1 = vector.shape_cast %0 : vector<1x16x8192xf32> to vector<16x8192xf32>
    %c0_2 = arith.constant 0 : index
    %c0_3 = arith.constant 0 : index
    %c0_4 = arith.constant 0 : index
    %2 = vector.load %arg3[%c0_2, %c0_3, %c0_4] : memref<1x16x8192xf32, #tpu.memory_space<vmem>>, vector<1x16x8192xf32>
    %3 = vector.shape_cast %2 : vector<1x16x8192xf32> to vector<16x8192xf32>
    %cst = arith.constant 0.000000e+00 : f32
    %4 = vector.broadcast %cst : f32 to vector<16x8192xf32>
    %5 = arith.cmpf ogt, %1, %4 : vector<16x8192xf32>
    %cst_5 = arith.constant 0.000000e+00 : f32
    %6 = vector.broadcast %cst_5 : f32 to vector<16x8192xf32>
    %7 = arith.cmpf ogt, %3, %6 : vector<16x8192xf32>
    %8 = arith.xori %5, %7 : vector<16x8192xi1>
    %9 = arith.addf %1, %1 : vector<16x8192xf32>
    %10 = arith.select %8, %9, %1 : vector<16x8192xi1>, vector<16x8192xf32>
    %c0_6 = arith.constant 0 : index
    %c0_7 = arith.constant 0 : index
    %11 = vector.load %arg4[%c0_6, %c0_7] : memref<16x16xf32, #tpu.memory_space<vmem>>, vector<16x16xf32>
    %cst_8 = arith.constant dense<0.000000e+00> : vector<16x8192xf32>
    %12 = tpu.matmul %11, %10, %cst_8 {dimension_numbers = #tpu.dot_dimension_numbers<[1], [0], [0], [1], [0, 0, 1, 1], [], []>} : vector<16x16xf32>, vector<16x8192xf32>, vector<16x8192xf32> -> vector<16x8192xf32>
    %c0_9 = arith.constant 0 : index
    %c0_10 = arith.constant 0 : index
    %c0_11 = arith.constant 0 : index
    %13 = vector.load %arg5[%c0_9, %c0_10, %c0_11] : memref<1x16x8192xf32, #tpu.memory_space<vmem>>, vector<1x16x8192xf32>
    %14 = vector.shape_cast %13 : vector<1x16x8192xf32> to vector<16x8192xf32>
    %15 = vector.shape_cast %12 : vector<16x8192xf32> to vector<1x16x8192xf32>
    tpu.vector_store %arg5[%c0_9, %c0_10, %c0_11], %15 {strides = array<i32>} : memref<1x16x8192xf32, #tpu.memory_space<vmem>>, vector<1x16x8192xf32>,
    %cst_12 = arith.constant dense<0.000000e+00> : vector<16xf32>
    %16 = vector.multi_reduction <add>, %12, %cst_12 [1] : vector<16x8192xf32> to vector<16xf32>
    %17 = vector.shape_cast %16 : vector<16xf32> to vector<16x1xf32>
    %18 = vector.shape_cast %17 : vector<16x1xf32> to vector<1x1x16x1xf32>
    %c0_13 = arith.constant 0 : index
    %c0_14 = arith.constant 0 : index
    %c0_15 = arith.constant 0 : index
    %c0_16 = arith.constant 0 : index
    %19 = vector.load %arg6[%c0_13, %c0_14, %c0_15, %c0_16] : memref<1x1x16x1xf32, #tpu.memory_space<vmem>>, vector<1x1x16x1xf32>
    tpu.vector_store %arg6[%c0_13, %c0_14, %c0_15, %c0_16], %18 {strides = array<i32>} : memref<1x1x16x1xf32, #tpu.memory_space<vmem>>, vector<1x1x16x1xf32>,
    %20 = arith.mulf %12, %12 : vector<16x8192xf32>
    %cst_17 = arith.constant dense<0.000000e+00> : vector<16xf32>
    %21 = vector.multi_reduction <add>, %20, %cst_17 [1] : vector<16x8192xf32> to vector<16xf32>
    %22 = vector.shape_cast %21 : vector<16xf32> to vector<16x1xf32>
    %23 = vector.shape_cast %22 : vector<16x1xf32> to vector<1x1x16x1xf32>
    %c0_18 = arith.constant 0 : index
    %c0_19 = arith.constant 0 : index
    %c0_20 = arith.constant 0 : index
    %c0_21 = arith.constant 0 : index
    %24 = vector.load %arg7[%c0_18, %c0_19, %c0_20, %c0_21] : memref<1x1x16x1xf32, #tpu.memory_space<vmem>>, vector<1x1x16x1xf32>
    tpu.vector_store %arg7[%c0_18, %c0_19, %c0_20, %c0_21], %23 {strides = array<i32>} : memref<1x1x16x1xf32, #tpu.memory_space<vmem>>, vector<1x1x16x1xf32>,
    return
  }
  func.func @transform_0(%arg0: i32, %arg1: i32) -> (i32, i32, i32) {
    %c0_i32 = arith.constant 0 : i32
    %c0_i32_0 = arith.constant 0 : i32
    return %arg0, %c0_i32, %arg1 : i32, i32, i32
  }
  func.func @transform_1(%arg0: i32, %arg1: i32) -> (i32, i32, i32) {
    %c0_i32 = arith.constant 0 : i32
    %c0_i32_0 = arith.constant 0 : i32
    return %arg0, %c0_i32, %arg1 : i32, i32, i32
  }
  func.func @transform_2(%arg0: i32, %arg1: i32) -> (i32, i32) {
    %c0_i32 = arith.constant 0 : i32
    %c0_i32_0 = arith.constant 0 : i32
    %c0_i32_1 = arith.constant 0 : i32
    return %c0_i32, %c0_i32_0 : i32, i32
  }
  func.func @transform_3(%arg0: i32, %arg1: i32) -> (i32, i32, i32) {
    %c0_i32 = arith.constant 0 : i32
    %c0_i32_0 = arith.constant 0 : i32
    return %arg0, %c0_i32, %arg1 : i32, i32, i32
  }
  func.func @transform_4(%arg0: i32, %arg1: i32) -> (i32, i32, i32, i32) {
    %c0_i32 = arith.constant 0 : i32
    %c0_i32_0 = arith.constant 0 : i32
    %c0_i32_1 = arith.constant 0 : i32
    return %arg0, %arg1, %c0_i32, %c0_i32_0 : i32, i32, i32, i32
  }
  func.func @transform_5(%arg0: i32, %arg1: i32) -> (i32, i32, i32, i32) {
    %c0_i32 = arith.constant 0 : i32
    %c0_i32_0 = arith.constant 0 : i32
    %c0_i32_1 = arith.constant 0 : i32
    return %arg0, %arg1, %c0_i32, %c0_i32_0 : i32, i32, i32, i32
  }
}

module attributes {stable_mosaic.version = 11 : i64} {
  func.func @bn_gelu_kernel(%arg0: i32, %arg1: i32, %arg2: memref<1x16x8192xf32, #tpu.memory_space<vmem>>, %arg3: memref<16x1xf32, #tpu.memory_space<vmem>>, %arg4: memref<16x1xf32, #tpu.memory_space<vmem>>, %arg5: memref<1x16x8192xf32, #tpu.memory_space<vmem>>) attributes {dimension_semantics = [#tpu.dimension_semantics<parallel>, #tpu.dimension_semantics<parallel>], iteration_bounds = array<i64: 2, 2>, scalar_prefetch = 0 : i64, scratch_operands = 0 : i64, tpu.core_type = #tpu.core_type<tc>, window_params = [{transform_indices = @transform_0, window_bounds = array<i64: 1, 16, 8192>}, {pipeline_mode = #tpu.pipeline_mode<synchronous>, transform_indices = @transform_1, window_bounds = array<i64: 16, 1>}, {pipeline_mode = #tpu.pipeline_mode<synchronous>, transform_indices = @transform_2, window_bounds = array<i64: 16, 1>}, {transform_indices = @transform_3, window_bounds = array<i64: 1, 16, 8192>}]} {
    %c0 = arith.constant 0 : index
    %c0_0 = arith.constant 0 : index
    %c0_1 = arith.constant 0 : index
    %0 = vector.load %arg2[%c0, %c0_0, %c0_1] : memref<1x16x8192xf32, #tpu.memory_space<vmem>>, vector<1x16x8192xf32>
    %1 = vector.shape_cast %0 : vector<1x16x8192xf32> to vector<16x8192xf32>
    %c0_2 = arith.constant 0 : index
    %c0_3 = arith.constant 0 : index
    %2 = vector.load %arg3[%c0_2, %c0_3] : memref<16x1xf32, #tpu.memory_space<vmem>>, vector<16x1xf32>
    %3 = vector.broadcast %2 : vector<16x1xf32> to vector<16x8192xf32>
    %4 = arith.mulf %1, %3 : vector<16x8192xf32>
    %c0_4 = arith.constant 0 : index
    %c0_5 = arith.constant 0 : index
    %5 = vector.load %arg4[%c0_4, %c0_5] : memref<16x1xf32, #tpu.memory_space<vmem>>, vector<16x1xf32>
    %6 = vector.broadcast %5 : vector<16x1xf32> to vector<16x8192xf32>
    %7 = arith.addf %4, %6 : vector<16x8192xf32>
    %cst = arith.constant 5.000000e-01 : f32
    %8 = vector.broadcast %cst : f32 to vector<16x8192xf32>
    %9 = arith.mulf %8, %7 : vector<16x8192xf32>
    %cst_6 = arith.constant 0.707106769 : f32
    %10 = vector.broadcast %cst_6 : f32 to vector<16x8192xf32>
    %11 = arith.mulf %7, %10 : vector<16x8192xf32>
    %12 = math.absf %11 : vector<16x8192xf32>
    %cst_7 = arith.constant 0.327591091 : f32
    %13 = vector.broadcast %cst_7 : f32 to vector<16x8192xf32>
    %14 = arith.mulf %13, %12 : vector<16x8192xf32>
    %cst_8 = arith.constant 1.000000e+00 : f32
    %15 = vector.broadcast %cst_8 : f32 to vector<16x8192xf32>
    %16 = arith.addf %15, %14 : vector<16x8192xf32>
    %cst_9 = arith.constant 1.000000e+00 : f32
    %17 = vector.broadcast %cst_9 : f32 to vector<16x8192xf32>
    %18 = arith.divf %17, %16 : vector<16x8192xf32>
    %cst_10 = arith.constant 1.06140542 : f32
    %19 = vector.broadcast %cst_10 : f32 to vector<16x8192xf32>
    %20 = arith.mulf %19, %18 : vector<16x8192xf32>
    %cst_11 = arith.constant -1.45315206 : f32
    %21 = vector.broadcast %cst_11 : f32 to vector<16x8192xf32>
    %22 = arith.addf %20, %21 : vector<16x8192xf32>
    %23 = arith.mulf %22, %18 : vector<16x8192xf32>
    %cst_12 = arith.constant 1.42141378 : f32
    %24 = vector.broadcast %cst_12 : f32 to vector<16x8192xf32>
    %25 = arith.addf %23, %24 : vector<16x8192xf32>
    %26 = arith.mulf %25, %18 : vector<16x8192xf32>
    %cst_13 = arith.constant -0.284496725 : f32
    %27 = vector.broadcast %cst_13 : f32 to vector<16x8192xf32>
    %28 = arith.addf %26, %27 : vector<16x8192xf32>
    %29 = arith.mulf %28, %18 : vector<16x8192xf32>
    %cst_14 = arith.constant 0.254829586 : f32
    %30 = vector.broadcast %cst_14 : f32 to vector<16x8192xf32>
    %31 = arith.addf %29, %30 : vector<16x8192xf32>
    %32 = arith.mulf %31, %18 : vector<16x8192xf32>
    %cst_15 = arith.constant 0.000000e+00 : f32
    %33 = vector.broadcast %cst_15 : f32 to vector<16x8192xf32>
    %34 = arith.subf %33, %12 : vector<16x8192xf32>
    %35 = arith.mulf %34, %12 : vector<16x8192xf32>
    %36 = math.exp %35 : vector<16x8192xf32>
    %37 = arith.mulf %32, %36 : vector<16x8192xf32>
    %cst_16 = arith.constant 1.000000e+00 : f32
    %38 = vector.broadcast %cst_16 : f32 to vector<16x8192xf32>
    %39 = arith.subf %38, %37 : vector<16x8192xf32>
    %cst_17 = arith.constant 0.000000e+00 : f32
    %40 = vector.broadcast %cst_17 : f32 to vector<16x8192xf32>
    %41 = arith.cmpf oge, %11, %40 : vector<16x8192xf32>
    %cst_18 = arith.constant 0.000000e+00 : f32
    %42 = vector.broadcast %cst_18 : f32 to vector<16x8192xf32>
    %43 = arith.subf %42, %39 : vector<16x8192xf32>
    %44 = arith.select %41, %39, %43 : vector<16x8192xi1>, vector<16x8192xf32>
    %cst_19 = arith.constant 1.000000e+00 : f32
    %45 = vector.broadcast %cst_19 : f32 to vector<16x8192xf32>
    %46 = arith.addf %45, %44 : vector<16x8192xf32>
    %47 = arith.mulf %9, %46 : vector<16x8192xf32>
    %c0_20 = arith.constant 0 : index
    %c0_21 = arith.constant 0 : index
    %c0_22 = arith.constant 0 : index
    %48 = vector.load %arg5[%c0_20, %c0_21, %c0_22] : memref<1x16x8192xf32, #tpu.memory_space<vmem>>, vector<1x16x8192xf32>
    %49 = vector.shape_cast %48 : vector<1x16x8192xf32> to vector<16x8192xf32>
    %50 = vector.shape_cast %47 : vector<16x8192xf32> to vector<1x16x8192xf32>
    tpu.vector_store %arg5[%c0_20, %c0_21, %c0_22], %50 {strides = array<i32>} : memref<1x16x8192xf32, #tpu.memory_space<vmem>>, vector<1x16x8192xf32>,
    return
  }
  func.func @transform_0(%arg0: i32, %arg1: i32) -> (i32, i32, i32) {
    %c0_i32 = arith.constant 0 : i32
    %c0_i32_0 = arith.constant 0 : i32
    return %arg0, %c0_i32, %arg1 : i32, i32, i32
  }
  func.func @transform_1(%arg0: i32, %arg1: i32) -> (i32, i32) {
    %c0_i32 = arith.constant 0 : i32
    %c0_i32_0 = arith.constant 0 : i32
    %c0_i32_1 = arith.constant 0 : i32
    return %c0_i32, %c0_i32_0 : i32, i32
  }
  func.func @transform_2(%arg0: i32, %arg1: i32) -> (i32, i32) {
    %c0_i32 = arith.constant 0 : i32
    %c0_i32_0 = arith.constant 0 : i32
    %c0_i32_1 = arith.constant 0 : i32
    return %c0_i32, %c0_i32_0 : i32, i32
  }
  func.func @transform_3(%arg0: i32, %arg1: i32) -> (i32, i32, i32) {
    %c0_i32 = arith.constant 0 : i32
    %c0_i32_0 = arith.constant 0 : i32
    return %arg0, %c0_i32, %arg1 : i32, i32, i32
  }
}

</mosaic_0001>

<llo_original>
// kernel: dra_forward.2
$region0: #{dra_forward.2}
  #allocation0 [shape = 'u32[]', space=smem, size = 0x4, offset = 0x4, fixed_abs, tag = 'smem constant byte address 0x4 - core index']
  #allocation1 [shape = 'u32[144,128]{1,0:T(1,128)}', space=vmem, size = 0x12000, scoped, tag = 'internal scratch']
  %s0 = inlined_call_operand.vmem [shape: f32[2,16,16384], index: 0, kind: input, shape index: {}]
  %s1 = inlined_call_operand.vmem [shape: f32[2,16,16384], index: 1, kind: input, shape index: {}]
  %s2 = inlined_call_operand.vmem [shape: f32[16,16], index: 2, kind: input, shape index: {}]
  %s3 = inlined_call_operand.vmem [shape: f32[2,16,16384], index: 3, kind: output, shape index: {0}]
  %s4 = inlined_call_operand.vmem [shape: f32[2,2,16,1], index: 4, kind: output, shape index: {1}]
  %s5 = inlined_call_operand.vmem [shape: f32[2,2,16,1], index: 5, kind: output, shape index: {2}]
  %6 = xla_tuple %s3, %s4, %s5
  %s7 = sld [smem:[#allocation0]]
  $region126: #{dra_forward.2} parent=0
    _
  %s9 = ssub.s32 1, %s7
  %s10 = scalar_select 0, %s9, %s7
  $region1: #{dra_forward.2} parent=0
    #allocation2 [shape = 'u8[1048576]{0}', space=vmem, size = 0x100000, scoped, tag = 'input window, operand 0']
    #allocation3 [shape = 'u8[1048576]{0}', space=vmem, size = 0x100000, scoped, tag = 'input window, operand 1']
    #allocation4 [shape = 'u8[1048576]{0}', space=vmem, size = 0x100000, scoped, tag = 'output window, operand 0']
    loop: start=0, step=1, limit=6
    $region2: #{dra_forward.2} parent=1 // loop_pre_header
      _
    $region3: #{dra_forward.2} parent=1 // loop_header
      %s12 = sphi 0, %s16
      %p13 = scmp.ge.s32.totalorder %s12, 6
      %s19 = sphi 0, %s31
      %s20 = sphi 0, %s27
      %s21 = sphi 0, %s19
      %s22 = sphi 0, %s20
      %s23 = sphi 0, %s21
      %s24 = sphi 0, %s22
      %s36 = sphi 0, %s38
      %s39 = sphi 0, %s36
      %s40 = sphi 0, %s39
      %s56 = sphi 0, %s40
      %s64 = sphi 0, %s66
      %s67 = sphi 0, %s64
      %s68 = sphi 0, %s67
      %s84 = sphi 0, %s68
      %s88 = sphi 0, %s88
      %s90 = sphi 0, %s88
      %s91 = sphi 0, %s90
      %s105 = sphi 0, %s91
      %s113 = sphi 0, %s115
      %s116 = sphi 0, %s113
      %s117 = sphi 0, %s116
      %s133 = sphi 0, %s117
      %s141 = sphi 0, %s143
      %s144 = sphi 0, %s141
      %s145 = sphi 0, %s144
      %s161 = sphi 0, %s145
      %s169 = sphi 0, %s171
      %s172 = sphi 0, %s169
      %s173 = sphi 0, %s172
      %s189 = sphi 0, %s173
    $region4: #{dra_forward.2} parent=1 // loop_header_branch
      %15 = sbr.rel (%p13) target = $region8
    $region5: #{dra_forward.2} parent=1 // loop_body
      %s17 = ssub.s32 %s12, 1
      %s18 = ssub.s32 %s12, 2
      %s25 = sadd.s32 1, %s20
      %p26 = scmp.ge.s32.totalorder %s25, 2
      %s27 = scalar_select %p26, 0, %s25
      %s28 = sadd.s32 1, %s19
      %s29 = scalar_select %p26, %s28, %s19
      %p30 = scmp.ge.s32.totalorder %s29, 2
      %s31 = scalar_select %p30, 0, %s29
      %s32 = ssub.s32 %s19, %s31
      %s33 = ssub.s32 %s20, %s27
      %s34 = sor.u32 %s32, %s33
      %p35 = scmp.eq.s32.totalorder %s34, 0
      %s37 = sadd.s32 %s36, 1
      %s38 = scalar_select %p35, %s36, %s37
      %p41 = pneg %p35
      %p42 = scmp.eq.s32.totalorder %s12, 3
      %p43 = por %p41, %p42
      %p44 = scmp.ne.s32.totalorder %s36, %s39
      %p45 = scmp.eq.s32.totalorder %s12, 0
      %p46 = por %p44, %p45
      %p47 = scmp.ne.s32.totalorder %s36, %s39
      %p48 = scmp.eq.s32.totalorder %s17, 3
      %p49 = por %p47, %p48
      %p50 = scmp.ne.s32.totalorder %s39, %s40
      %p51 = scmp.eq.s32.totalorder %s17, 0
      %p52 = por %p50, %p51
      %p53 = scmp.ne.s32.totalorder %s39, %s40
      %p54 = scmp.eq.s32.totalorder %s18, 3
      %p55 = por %p53, %p54
      %p57 = scmp.ne.s32.totalorder %s40, %s56
      %p58 = scmp.eq.s32.totalorder %s18, 0
      %p59 = por %p57, %p58
      %s60 = ssub.s32 %s19, %s31
      %s61 = ssub.s32 %s20, %s27
      %s62 = sor.u32 %s60, %s61
      %p63 = scmp.eq.s32.totalorder %s62, 0
      %s65 = sadd.s32 %s64, 1
      %s66 = scalar_select %p63, %s64, %s65
      %p69 = pneg %p63
      %p70 = scmp.eq.s32.totalorder %s12, 3
      %p71 = por %p69, %p70
      %p72 = scmp.ne.s32.totalorder %s64, %s67
      %p73 = scmp.eq.s32.totalorder %s12, 0
      %p74 = por %p72, %p73
      %p75 = scmp.ne.s32.totalorder %s64, %s67
      %p76 = scmp.eq.s32.totalorder %s17, 3
      %p77 = por %p75, %p76
      %p78 = scmp.ne.s32.totalorder %s67, %s68
      %p79 = scmp.eq.s32.totalorder %s17, 0
      %p80 = por %p78, %p79
      %p81 = scmp.ne.s32.totalorder %s67, %s68
      %p82 = scmp.eq.s32.totalorder %s18, 3
      %p83 = por %p81, %p82
      %p85 = scmp.ne.s32.totalorder %s68, %s84
      %p86 = scmp.eq.s32.totalorder %s18, 0
      %p87 = por %p85, %p86
      %s89 = sadd.s32 %s88, 1
      %p92 = scmp.eq.s32.totalorder %s12, 3
      %p93 = scmp.ne.s32.totalorder %s88, %s90
      %p94 = scmp.eq.s32.totalorder %s12, 0
      %p95 = por %p93, %p94
      %p96 = scmp.ne.s32.totalorder %s88, %s90
      %p97 = scmp.eq.s32.totalorder %s17, 3
      %p98 = por %p96, %p97
      %p99 = scmp.ne.s32.totalorder %s90, %s91
      %p100 = scmp.eq.s32.totalorder %s17, 0
      %p101 = por %p99, %p100
      %p102 = scmp.ne.s32.totalorder %s90, %s91
      %p103 = scmp.eq.s32.totalorder %s18, 3
      %p104 = por %p102, %p103
      %p106 = scmp.ne.s32.totalorder %s91, %s105
      %p107 = scmp.eq.s32.totalorder %s18, 0
      %p108 = por %p106, %p107
      %s109 = ssub.s32 %s19, %s31
      %s110 = ssub.s32 %s20, %s27
      %s111 = sor.u32 %s109, %s110
      %p112 = scmp.eq.s32.totalorder %s111, 0
      %s114 = sadd.s32 %s113, 1
      %s115 = scalar_select %p112, %s113, %s114
      %p118 = pneg %p112
      %p119 = scmp.eq.s32.totalorder %s12, 3
      %p120 = por %p118, %p119
      %p121 = scmp.ne.s32.totalorder %s113, %s116
      %p122 = scmp.eq.s32.totalorder %s12, 0
      %p123 = por %p121, %p122
      %p124 = scmp.ne.s32.totalorder %s113, %s116
      %p125 = scmp.eq.s32.totalorder %s17, 3
      %p126 = por %p124, %p125
      %p127 = scmp.ne.s32.totalorder %s116, %s117
      %p128 = scmp.eq.s32.totalorder %s17, 0
      %p129 = por %p127, %p128
      %p130 = scmp.ne.s32.totalorder %s116, %s117
      %p131 = scmp.eq.s32.totalorder %s18, 3
      %p132 = por %p130, %p131
      %p134 = scmp.ne.s32.totalorder %s117, %s133
      %p135 = scmp.eq.s32.totalorder %s18, 0
      %p136 = por %p134, %p135
      %s137 = ssub.s32 %s19, %s31
      %s138 = ssub.s32 %s20, %s27
      %s139 = sor.u32 %s137, %s138
      %p140 = scmp.eq.s32.totalorder %s139, 0
      %s142 = sadd.s32 %s141, 1
      %s143 = scalar_select %p140, %s141, %s142
      %p146 = pneg %p140
      %p147 = scmp.eq.s32.totalorder %s12, 3
      %p148 = por %p146, %p147
      %p149 = scmp.ne.s32.totalorder %s141, %s144
      %p150 = scmp.eq.s32.totalorder %s12, 0
      %p151 = por %p149, %p150
      %p152 = scmp.ne.s32.totalorder %s141, %s144
      %p153 = scmp.eq.s32.totalorder %s17, 3
      %p154 = por %p152, %p153
      %p155 = scmp.ne.s32.totalorder %s144, %s145
      %p156 = scmp.eq.s32.totalorder %s17, 0
      %p157 = por %p155, %p156
      %p158 = scmp.ne.s32.totalorder %s144, %s145
      %p159 = scmp.eq.s32.totalorder %s18, 3
      %p160 = por %p158, %p159
      %p162 = scmp.ne.s32.totalorder %s145, %s161
      %p163 = scmp.eq.s32.totalorder %s18, 0
      %p164 = por %p162, %p163
      %s165 = ssub.s32 %s19, %s31
      %s166 = ssub.s32 %s20, %s27
      %s167 = sor.u32 %s165, %s166
      %p168 = scmp.eq.s32.totalorder %s167, 0
      %s170 = sadd.s32 %s169, 1
      %s171 = scalar_select %p168, %s169, %s170
      %p174 = pneg %p168
      %p175 = scmp.eq.s32.totalorder %s12, 3
      %p176 = por %p174, %p175
      %p177 = scmp.ne.s32.totalorder %s169, %s172
      %p178 = scmp.eq.s32.totalorder %s12, 0
      %p179 = por %p177, %p178
      %p180 = scmp.ne.s32.totalorder %s169, %s172
      %p181 = scmp.eq.s32.totalorder %s17, 3
      %p182 = por %p180, %p181
      %p183 = scmp.ne.s32.totalorder %s172, %s173
      %p184 = scmp.eq.s32.totalorder %s17, 0
      %p185 = por %p183, %p184
      %p186 = scmp.ne.s32.totalorder %s172, %s173
      %p187 = scmp.eq.s32.totalorder %s18, 3
      %p188 = por %p186, %p187
      %p190 = scmp.ne.s32.totalorder %s173, %s189
      %p191 = scmp.eq.s32.totalorder %s18, 0
      %p192 = por %p190, %p191
      %p193 = scmp.le.s32.totalorder 1, %s12
      %p194 = scmp.lt.s32.totalorder %s12, 5
      %p195 = pnand %p193, %p194
      %p196 = pneg %p195
      // Predicated region
      $region9: #{dra_forward.2} parent=5 // pred_check
        _
      $region10: #{dra_forward.2} parent=5 // pred_check_branch
        %198 = sbr.rel (%p195) target = $region12
      $region11: #{dra_forward.2} parent=5 // pred_region
        %s199 = ssub.s32 %s12, 1
        // Predicated region
        $region13: #{dra_forward.2} parent=11 // pred_check
          %p200 = pneg %p101
        $region14: #{dra_forward.2} parent=11 // pred_check_branch
          %202 = sbr.rel (%p200) target = $region16
        $region15: #{dra_forward.2} parent=11 // pred_region
          _
        $region16: #{dra_forward.2} parent=11 // pred_fallthru
          _
      $region12: #{dra_forward.2} parent=5 // pred_fallthru
        _
      %p203 = scmp.lt.s32.totalorder %s12, 4
      // Predicated region
      $region17: #{dra_forward.2} parent=5 // pred_check
        %p204 = pneg %p203
      $region18: #{dra_forward.2} parent=5 // pred_check_branch
        %206 = sbr.rel (%p204) target = $region20
      $region19: #{dra_forward.2} parent=5 // pred_region
        // Predicated region
        $region21: #{dra_forward.2} parent=19 // pred_check
          %p207 = pneg %p46
        $region22: #{dra_forward.2} parent=19 // pred_check_branch
          %209 = sbr.rel (%p207) target = $region24
        $region23: #{dra_forward.2} parent=19 // pred_region
          %s210 = sand.u32 %s36, 1
          %s211 = sand.u32 %s36, 1
          %s212 = smul.addr %s211, 1024
          %s213 = scalar_lea.vmem [#allocation2], %s212
          %s214 = smul.u32 64, %s20
          %s215 = smul.addr %s19, 256
          %s216 = sadd.s32 %s214, %s215
          %s217 = smul.addr %s216, 8
          %s218 = scalar_lea.vmem %s0, %s217
          // Predicated region
          $region25: #{dra_forward.2} parent=23 // pred_check
            _
          $region26: #{dra_forward.2} parent=23 // pred_check_branch
            %220 = sbr.rel (0) target = $region28
          $region27: #{dra_forward.2} parent=23 // pred_region
            // Predicated region
            $region29: #{dra_forward.2} parent=27 // pred_check
              _
            $region30: #{dra_forward.2} parent=27 // pred_check_branch
              %222 = sbr.rel (0) target = $region32
            $region31: #{dra_forward.2} parent=27 // pred_region
              loop: start=0, step=1, limit=1
              $region33: #{dra_forward.2} parent=31 // loop_pre_header
                _
              $region34: #{dra_forward.2} parent=31 // loop_header
                %s224 = sphi 0, %s228
                %p225 = scmp.ge.s32.totalorder %s224, 1
                %s229 = sphi %s218, %s218
                %s230 = sphi %s213, %s213
              $region35: #{dra_forward.2} parent=31 // loop_header_branch
                %227 = sbr.rel (%p225) target = $region39
              $region36: #{dra_forward.2} parent=31 // loop_body
                %v231 = vld [vmem:[%s229] sm:$0xff]
                %232 = vst [vmem:[%s230] sm:$0xff] %v231
                %v233 = vld [vmem:[%s229 + $0x8] sm:$0xff]
                %234 = vst [vmem:[%s230 + $0x8] sm:$0xff] %v233
                %v235 = vld [vmem:[%s229 + $0x10] sm:$0xff]
                %236 = vst [vmem:[%s230 + $0x10] sm:$0xff] %v235
                %v237 = vld [vmem:[%s229 + $0x18] sm:$0xff]
                %238 = vst [vmem:[%s230 + $0x18] sm:$0xff] %v237
                %v239 = vld [vmem:[%s229 + $0x20] sm:$0xff]
                %240 = vst [vmem:[%s230 + $0x20] sm:$0xff] %v239
                %v241 = vld [vmem:[%s229 + $0x28] sm:$0xff]
                %242 = vst [vmem:[%s230 + $0x28] sm:$0xff] %v241
                %v243 = vld [vmem:[%s229 + $0x30] sm:$0xff]
                %244 = vst [vmem:[%s230 + $0x30] sm:$0xff] %v243
                %v245 = vld [vmem:[%s229 + $0x38] sm:$0xff]
                %246 = vst [vmem:[%s230 + $0x38] sm:$0xff] %v245
                %v247 = vld [vmem:[%s229 + $0x40] sm:$0xff]
                %248 = vst [vmem:[%s230 + $0x40] sm:$0xff] %v247
                %v249 = vld [vmem:[%s229 + $0x48] sm:$0xff]
                %250 = vst [vmem:[%s230 + $0x48] sm:$0xff] %v249
                %v251 = vld [vmem:[%s229 + $0x50] sm:$0xff]
                %252 = vst [vmem:[%s230 + $0x50] sm:$0xff] %v251
                %v253 = vld [vmem:[%s229 + $0x58] sm:$0xff]
                %254 = vst [vmem:[%s230 + $0x58] sm:$0xff] %v253
                %v255 = vld [vmem:[%s229 + $0x60] sm:$0xff]
                %256 = vst [vmem:[%s230 + $0x60] sm:$0xff] %v255
                %v257 = vld [vmem:[%s229 + $0x68] sm:$0xff]
                %258 = vst [vmem:[%s230 + $0x68] sm:$0xff] %v257
                %v259 = vld [vmem:[%s229 + $0x70] sm:$0xff]
                %260 = vst [vmem:[%s230 + $0x70] sm:$0xff] %v259
                %v261 = vld [vmem:[%s229 + $0x78] sm:$0xff]
                %262 = vst [vmem:[%s230 + $0x78] sm:$0xff] %v261
                %v263 = vld [vmem:[%s229 + $0x80] sm:$0xff]
                %264 = vst [vmem:[%s230 + $0x80] sm:$0xff] %v263
                %v265 = vld [vmem:[%s229 + $0x88] sm:$0xff]
                %266 = vst [vmem:[%s230 + $0x88] sm:$0xff] %v265
                %v267 = vld [vmem:[%s229 + $0x90] sm:$0xff]
                %268 = vst [vmem:[%s230 + $0x90] sm:$0xff] %v267
                %v269 = vld [vmem:[%s229 + $0x98] sm:$0xff]
                %270 = vst [vmem:[%s230 + $0x98] sm:$0xff] %v269
                %v271 = vld [vmem:[%s229 + $0xa0] sm:$0xff]
                %272 = vst [vmem:[%s230 + $0xa0] sm:$0xff] %v271
                %v273 = vld [vmem:[%s229 + $0xa8] sm:$0xff]
                %274 = vst [vmem:[%s230 + $0xa8] sm:$0xff] %v273
                %v275 = vld [vmem:[%s229 + $0xb0] sm:$0xff]
                %276 = vst [vmem:[%s230 + $0xb0] sm:$0xff] %v275
                %v277 = vld [vmem:[%s229 + $0xb8] sm:$0xff]
                %278 = vst [vmem:[%s230 + $0xb8] sm:$0xff] %v277
                %v279 = vld [vmem:[%s229 + $0xc0] sm:$0xff]
                %280 = vst [vmem:[%s230 + $0xc0] sm:$0xff] %v279
                %v281 = vld [vmem:[%s229 + $0xc8] sm:$0xff]
                %282 = vst [vmem:[%s230 + $0xc8] sm:$0xff] %v281
                %v283 = vld [vmem:[%s229 + $0xd0] sm:$0xff]
                %284 = vst [vmem:[%s230 + $0xd0] sm:$0xff] %v283
                %v285 = vld [vmem:[%s229 + $0xd8] sm:$0xff]
                %286 = vst [vmem:[%s230 + $0xd8] sm:$0xff] %v285
                %v287 = vld [vmem:[%s229 + $0xe0] sm:$0xff]
                %288 = vst [vmem:[%s230 + $0xe0] sm:$0xff] %v287
                %v289 = vld [vmem:[%s229 + $0xe8] sm:$0xff]
                %290 = vst [vmem:[%s230 + $0xe8] sm:$0xff] %v289
                %v291 = vld [vmem:[%s229 + $0xf0] sm:$0xff]
                %292 = vst [vmem:[%s230 + $0xf0] sm:$0xff] %v291
                %v293 = vld [vmem:[%s229 + $0xf8] sm:$0xff]
                %294 = vst [vmem:[%s230 + $0xf8] sm:$0xff] %v293
                %v295 = vld [vmem:[%s229 + $0x100] sm:$0xff]
                %296 = vst [vmem:[%s230 + $0x100] sm:$0xff] %v295
                %v297 = vld [vmem:[%s229 + $0x108] sm:$0xff]
                %298 = vst [vmem:[%s230 + $0x108] sm:$0xff] %v297
                %v299 = vld [vmem:[%s229 + $0x110] sm:$0xff]
                %300 = vst [vmem:[%s230 + $0x110] sm:$0xff] %v299
                %v301 = vld [vmem:[%s229 + $0x118] sm:$0xff]
                %302 = vst [vmem:[%s230 + $0x118] sm:$0xff] %v301
                %v303 = vld [vmem:[%s229 + $0x120] sm:$0xff]
                %304 = vst [vmem:[%s230 + $0x120] sm:$0xff] %v303
                %v305 = vld [vmem:[%s229 + $0x128] sm:$0xff]
                %306 = vst [vmem:[%s230 + $0x128] sm:$0xff] %v305
                %v307 = vld [vmem:[%s229 + $0x130] sm:$0xff]
                %308 = vst [vmem:[%s230 + $0x130] sm:$0xff] %v307
                %v309 = vld [vmem:[%s229 + $0x138] sm:$0xff]
                %310 = vst [vmem:[%s230 + $0x138] sm:$0xff] %v309
                %v311 = vld [vmem:[%s229 + $0x140] sm:$0xff]
                %312 = vst [vmem:[%s230 + $0x140] sm:$0xff] %v311
                %v313 = vld [vmem:[%s229 + $0x148] sm:$0xff]
                %314 = vst [vmem:[%s230 + $0x148] sm:$0xff] %v313
                %v315 = vld [vmem:[%s229 + $0x150] sm:$0xff]
                %316 = vst [vmem:[%s230 + $0x150] sm:$0xff] %v315
                %v317 = vld [vmem:[%s229 + $0x158] sm:$0xff]
                %318 = vst [vmem:[%s230 + $0x158] sm:$0xff] %v317
                %v319 = vld [vmem:[%s229 + $0x160] sm:$0xff]
                %320 = vst [vmem:[%s230 + $0x160] sm:$0xff] %v319
                %v321 = vld [vmem:[%s229 + $0x168] sm:$0xff]
                %322 = vst [vmem:[%s230 + $0x168] sm:$0xff] %v321
                %v323 = vld [vmem:[%s229 + $0x170] sm:$0xff]
                %324 = vst [vmem:[%s230 + $0x170] sm:$0xff] %v323
                %v325 = vld [vmem:[%s229 + $0x178] sm:$0xff]
                %326 = vst [vmem:[%s230 + $0x178] sm:$0xff] %v325
                %v327 = vld [vmem:[%s229 + $0x180] sm:$0xff]
                %328 = vst [vmem:[%s230 + $0x180] sm:$0xff] %v327
                %v329 = vld [vmem:[%s229 + $0x188] sm:$0xff]
                %330 = vst [vmem:[%s230 + $0x188] sm:$0xff] %v329
                %v331 = vld [vmem:[%s229 + $0x190] sm:$0xff]
                %332 = vst [vmem:[%s230 + $0x190] sm:$0xff] %v331
                %v333 = vld [vmem:[%s229 + $0x198] sm:$0xff]
                %334 = vst [vmem:[%s230 + $0x198] sm:$0xff] %v333
                %v335 = vld [vmem:[%s229 + $0x1a0] sm:$0xff]
                %336 = vst [vmem:[%s230 + $0x1a0] sm:$0xff] %v335
                %v337 = vld [vmem:[%s229 + $0x1a8] sm:$0xff]
                %338 = vst [vmem:[%s230 + $0x1a8] sm:$0xff] %v337
                %v339 = vld [vmem:[%s229 + $0x1b0] sm:$0xff]
                %340 = vst [vmem:[%s230 + $0x1b0] sm:$0xff] %v339
                %v341 = vld [vmem:[%s229 + $0x1b8] sm:$0xff]
                %342 = vst [vmem:[%s230 + $0x1b8] sm:$0xff] %v341
                %v343 = vld [vmem:[%s229 + $0x1c0] sm:$0xff]
                %344 = vst [vmem:[%s230 + $0x1c0] sm:$0xff] %v343
                %v345 = vld [vmem:[%s229 + $0x1c8] sm:$0xff]
                %346 = vst [vmem:[%s230 + $0x1c8] sm:$0xff] %v345
                %v347 = vld [vmem:[%s229 + $0x1d0] sm:$0xff]
                %348 = vst [vmem:[%s230 + $0x1d0] sm:$0xff] %v347
                %v349 = vld [vmem:[%s229 + $0x1d8] sm:$0xff]
                %350 = vst [vmem:[%s230 + $0x1d8] sm:$0xff] %v349
                %v351 = vld [vmem:[%s229 + $0x1e0] sm:$0xff]
                %352 = vst [vmem:[%s230 + $0x1e0] sm:$0xff] %v351
                %v353 = vld [vmem:[%s229 + $0x1e8] sm:$0xff]
                %354 = vst [vmem:[%s230 + $0x1e8] sm:$0xff] %v353
                %v355 = vld [vmem:[%s229 + $0x1f0] sm:$0xff]
                %356 = vst [vmem:[%s230 + $0x1f0] sm:$0xff] %v355
                %v357 = vld [vmem:[%s229 + $0x1f8] sm:$0xff]
                %358 = vst [vmem:[%s230 + $0x1f8] sm:$0xff] %v357
                %v359 = vld [vmem:[%s229 + $0x400] sm:$0xff]
                %360 = vst [vmem:[%s230 + $0x200] sm:$0xff] %v359
                %v361 = vld [vmem:[%s229 + $0x408] sm:$0xff]
                %362 = vst [vmem:[%s230 + $0x208] sm:$0xff] %v361
                %v363 = vld [vmem:[%s229 + $0x410] sm:$0xff]
                %364 = vst [vmem:[%s230 + $0x210] sm:$0xff] %v363
                %v365 = vld [vmem:[%s229 + $0x418] sm:$0xff]
                %366 = vst [vmem:[%s230 + $0x218] sm:$0xff] %v365
                %v367 = vld [vmem:[%s229 + $0x420] sm:$0xff]
                %368 = vst [vmem:[%s230 + $0x220] sm:$0xff] %v367
                %v369 = vld [vmem:[%s229 + $0x428] sm:$0xff]
                %370 = vst [vmem:[%s230 + $0x228] sm:$0xff] %v369
                %v371 = vld [vmem:[%s229 + $0x430] sm:$0xff]
                %372 = vst [vmem:[%s230 + $0x230] sm:$0xff] %v371
                %v373 = vld [vmem:[%s229 + $0x438] sm:$0xff]
                %374 = vst [vmem:[%s230 + $0x238] sm:$0xff] %v373
                %v375 = vld [vmem:[%s229 + $0x440] sm:$0xff]
                %376 = vst [vmem:[%s230 + $0x240] sm:$0xff] %v375
                %v377 = vld [vmem:[%s229 + $0x448] sm:$0xff]
                %378 = vst [vmem:[%s230 + $0x248] sm:$0xff] %v377
                %v379 = vld [vmem:[%s229 + $0x450] sm:$0xff]
                %380 = vst [vmem:[%s230 + $0x250] sm:$0xff] %v379
                %v381 = vld [vmem:[%s229 + $0x458] sm:$0xff]
                %382 = vst [vmem:[%s230 + $0x258] sm:$0xff] %v381
                %v383 = vld [vmem:[%s229 + $0x460] sm:$0xff]
                %384 = vst [vmem:[%s230 + $0x260] sm:$0xff] %v383
                %v385 = vld [vmem:[%s229 + $0x468] sm:$0xff]
                %386 = vst [vmem:[%s230 + $0x268] sm:$0xff] %v385
                %v387 = vld [vmem:[%s229 + $0x470] sm:$0xff]
                %388 = vst [vmem:[%s230 + $0x270] sm:$0xff] %v387
                %v389 = vld [vmem:[%s229 + $0x478] sm:$0xff]
                %390 = vst [vmem:[%s230 + $0x278] sm:$0xff] %v389
                %v391 = vld [vmem:[%s229 + $0x480] sm:$0xff]
                %392 = vst [vmem:[%s230 + $0x280] sm:$0xff] %v391
                %v393 = vld [vmem:[%s229 + $0x488] sm:$0xff]
                %394 = vst [vmem:[%s230 + $0x288] sm:$0xff] %v393
                %v395 = vld [vmem:[%s229 + $0x490] sm:$0xff]
                %396 = vst [vmem:[%s230 + $0x290] sm:$0xff] %v395
                %v397 = vld [vmem:[%s229 + $0x498] sm:$0xff]
                %398 = vst [vmem:[%s230 + $0x298] sm:$0xff] %v397
                %v399 = vld [vmem:[%s229 + $0x4a0] sm:$0xff]
                %400 = vst [vmem:[%s230 + $0x2a0] sm:$0xff] %v399
                %v401 = vld [vmem:[%s229 + $0x4a8] sm:$0xff]
                %402 = vst [vmem:[%s230 + $0x2a8] sm:$0xff] %v401
                %v403 = vld [vmem:[%s229 + $0x4b0] sm:$0xff]
                %404 = vst [vmem:[%s230 + $0x2b0] sm:$0xff] %v403
                %v405 = vld [vmem:[%s229 + $0x4b8] sm:$0xff]
                %406 = vst [vmem:[%s230 + $0x2b8] sm:$0xff] %v405
                %v407 = vld [vmem:[%s229 + $0x4c0] sm:$0xff]
                %408 = vst [vmem:[%s230 + $0x2c0] sm:$0xff] %v407
                %v409 = vld [vmem:[%s229 + $0x4c8] sm:$0xff]
                %410 = vst [vmem:[%s230 + $0x2c8] sm:$0xff] %v409
                %v411 = vld [vmem:[%s229 + $0x4d0] sm:$0xff]
                %412 = vst [vmem:[%s230 + $0x2d0] sm:$0xff] %v411
                %v413 = vld [vmem:[%s229 + $0x4d8] sm:$0xff]
                %414 = vst [vmem:[%s230 + $0x2d8] sm:$0xff] %v413
                %v415 = vld [vmem:[%s229 + $0x4e0] sm:$0xff]
                %416 = vst [vmem:[%s230 + $0x2e0] sm:$0xff] %v415
                %v417 = vld [vmem:[%s229 + $0x4e8] sm:$0xff]
                %418 = vst [vmem:[%s230 + $0x2e8] sm:$0xff] %v417
                %v419 = vld [vmem:[%s229 + $0x4f0] sm:$0xff]
                %420 = vst [vmem:[%s230 + $0x2f0] sm:$0xff] %v419
                %v421 = vld [vmem:[%s229 + $0x4f8] sm:$0xff]
                %422 = vst [vmem:[%s230 + $0x2f8] sm:$0xff] %v421
                %v423 = vld [vmem:[%s229 + $0x500] sm:$0xff]
                %424 = vst [vmem:[%s230 + $0x300] sm:$0xff] %v423
                %v425 = vld [vmem:[%s229 + $0x508] sm:$0xff]
                %426 = vst [vmem:[%s230 + $0x308] sm:$0xff] %v425
                %v427 = vld [vmem:[%s229 + $0x510] sm:$0xff]
                %428 = vst [vmem:[%s230 + $0x310] sm:$0xff] %v427
                %v429 = vld [vmem:[%s229 + $0x518] sm:$0xff]
                %430 = vst [vmem:[%s230 + $0x318] sm:$0xff] %v429
                %v431 = vld [vmem:[%s229 + $0x520] sm:$0xff]
                %432 = vst [vmem:[%s230 + $0x320] sm:$0xff] %v431
                %v433 = vld [vmem:[%s229 + $0x528] sm:$0xff]
                %434 = vst [vmem:[%s230 + $0x328] sm:$0xff] %v433
                %v435 = vld [vmem:[%s229 + $0x530] sm:$0xff]
                %436 = vst [vmem:[%s230 + $0x330] sm:$0xff] %v435
                %v437 = vld [vmem:[%s229 + $0x538] sm:$0xff]
                %438 = vst [vmem:[%s230 + $0x338] sm:$0xff] %v437
                %v439 = vld [vmem:[%s229 + $0x540] sm:$0xff]
                %440 = vst [vmem:[%s230 + $0x340] sm:$0xff] %v439
                %v441 = vld [vmem:[%s229 + $0x548] sm:$0xff]
                %442 = vst [vmem:[%s230 + $0x348] sm:$0xff] %v441
                %v443 = vld [vmem:[%s229 + $0x550] sm:$0xff]
                %444 = vst [vmem:[%s230 + $0x350] sm:$0xff] %v443
                %v445 = vld [vmem:[%s229 + $0x558] sm:$0xff]
                %446 = vst [vmem:[%s230 + $0x358] sm:$0xff] %v445
                %v447 = vld [vmem:[%s229 + $0x560] sm:$0xff]
                %448 = vst [vmem:[%s230 + $0x360] sm:$0xff] %v447
                %v449 = vld [vmem:[%s229 + $0x568] sm:$0xff]
                %450 = vst [vmem:[%s230 + $0x368] sm:$0xff] %v449
                %v451 = vld [vmem:[%s229 + $0x570] sm:$0xff]
                %452 = vst [vmem:[%s230 + $0x370] sm:$0xff] %v451
                %v453 = vld [vmem:[%s229 + $0x578] sm:$0xff]
                %454 = vst [vmem:[%s230 + $0x378] sm:$0xff] %v453
                %v455 = vld [vmem:[%s229 + $0x580] sm:$0xff]
                %456 = vst [vmem:[%s230 + $0x380] sm:$0xff] %v455
                %v457 = vld [vmem:[%s229 + $0x588] sm:$0xff]
                %458 = vst [vmem:[%s230 + $0x388] sm:$0xff] %v457
                %v459 = vld [vmem:[%s229 + $0x590] sm:$0xff]
                %460 = vst [vmem:[%s230 + $0x390] sm:$0xff] %v459
                %v461 = vld [vmem:[%s229 + $0x598] sm:$0xff]
                %462 = vst [vmem:[%s230 + $0x398] sm:$0xff] %v461
                %v463 = vld [vmem:[%s229 + $0x5a0] sm:$0xff]
                %464 = vst [vmem:[%s230 + $0x3a0] sm:$0xff] %v463
                %v465 = vld [vmem:[%s229 + $0x5a8] sm:$0xff]
                %466 = vst [vmem:[%s230 + $0x3a8] sm:$0xff] %v465
                %v467 = vld [vmem:[%s229 + $0x5b0] sm:$0xff]
                %468 = vst [vmem:[%s230 + $0x3b0] sm:$0xff] %v467
                %v469 = vld [vmem:[%s229 + $0x5b8] sm:$0xff]
                %470 = vst [vmem:[%s230 + $0x3b8] sm:$0xff] %v469
                %v471 = vld [vmem:[%s229 + $0x5c0] sm:$0xff]
                %472 = vst [vmem:[%s230 + $0x3c0] sm:$0xff] %v471
                %v473 = vld [vmem:[%s229 + $0x5c8] sm:$0xff]
                %474 = vst [vmem:[%s230 + $0x3c8] sm:$0xff] %v473
                %v475 = vld [vmem:[%s229 + $0x5d0] sm:$0xff]
                %476 = vst [vmem:[%s230 + $0x3d0] sm:$0xff] %v475
                %v477 = vld [vmem:[%s229 + $0x5d8] sm:$0xff]
                %478 = vst [vmem:[%s230 + $0x3d8] sm:$0xff] %v477
                %v479 = vld [vmem:[%s229 + $0x5e0] sm:$0xff]
                %480 = vst [vmem:[%s230 + $0x3e0] sm:$0xff] %v479
                %v481 = vld [vmem:[%s229 + $0x5e8] sm:$0xff]
                %482 = vst [vmem:[%s230 + $0x3e8] sm:$0xff] %v481
                %v483 = vld [vmem:[%s229 + $0x5f0] sm:$0xff]
                %484 = vst [vmem:[%s230 + $0x3f0] sm:$0xff] %v483
                %v485 = vld [vmem:[%s229 + $0x5f8] sm:$0xff]
                %486 = vst [vmem:[%s230 + $0x3f8] sm:$0xff] %v485
              $region37: #{dra_forward.2} parent=31 // loop_footer
                %s228 = sadd.s32 1, %s224
              $region38: #{dra_forward.2} parent=31 // loop_footer_branch
                %223 = sbr.rel target = $region34
              $region39: #{dra_forward.2} parent=31 // loop_exit
                _
            $region32: #{dra_forward.2} parent=27 // pred_fallthru
              _
            // Predicated region
            $region40: #{dra_forward.2} parent=27 // pred_check
              _
            $region41: #{dra_forward.2} parent=27 // pred_check_branch
              %488 = sbr.rel target = $region43
            $region42: #{dra_forward.2} parent=27 // pred_region
              _
            $region43: #{dra_forward.2} parent=27 // pred_fallthru
              _
          $region28: #{dra_forward.2} parent=23 // pred_fallthru
            _
          %489 = vnop
        $region24: #{dra_forward.2} parent=19 // pred_fallthru
          _
        // Predicated region
        $region44: #{dra_forward.2} parent=19 // pred_check
          %p490 = pneg %p74
        $region45: #{dra_forward.2} parent=19 // pred_check_branch
          %492 = sbr.rel (%p490) target = $region47
        $region46: #{dra_forward.2} parent=19 // pred_region
          %s493 = sand.u32 %s64, 1
          %s494 = sand.u32 %s64, 1
          %s495 = smul.addr %s494, 1024
          %s496 = scalar_lea.vmem [#allocation3], %s495
          %s497 = smul.u32 64, %s20
          %s498 = smul.addr %s19, 256
          %s499 = sadd.s32 %s497, %s498
          %s500 = smul.addr %s499, 8
          %s501 = scalar_lea.vmem %s1, %s500
          // Predicated region
          $region48: #{dra_forward.2} parent=46 // pred_check
            _
          $region49: #{dra_forward.2} parent=46 // pred_check_branch
            %503 = sbr.rel (0) target = $region51
          $region50: #{dra_forward.2} parent=46 // pred_region
            // Predicated region
            $region52: #{dra_forward.2} parent=50 // pred_check
              _
            $region53: #{dra_forward.2} parent=50 // pred_check_branch
              %505 = sbr.rel (0) target = $region55
            $region54: #{dra_forward.2} parent=50 // pred_region
              loop: start=0, step=1, limit=1
              $region56: #{dra_forward.2} parent=54 // loop_pre_header
                _
              $region57: #{dra_forward.2} parent=54 // loop_header
                %s507 = sphi 0, %s511
                %p508 = scmp.ge.s32.totalorder %s507, 1
                %s512 = sphi %s501, %s501
                %s513 = sphi %s496, %s496
              $region58: #{dra_forward.2} parent=54 // loop_header_branch
                %510 = sbr.rel (%p508) target = $region62
              $region59: #{dra_forward.2} parent=54 // loop_body
                %v514 = vld [vmem:[%s512] sm:$0xff]
                %515 = vst [vmem:[%s513] sm:$0xff] %v514
                %v516 = vld [vmem:[%s512 + $0x8] sm:$0xff]
                %517 = vst [vmem:[%s513 + $0x8] sm:$0xff] %v516
                %v518 = vld [vmem:[%s512 + $0x10] sm:$0xff]
                %519 = vst [vmem:[%s513 + $0x10] sm:$0xff] %v518
                %v520 = vld [vmem:[%s512 + $0x18] sm:$0xff]
                %521 = vst [vmem:[%s513 + $0x18] sm:$0xff] %v520
                %v522 = vld [vmem:[%s512 + $0x20] sm:$0xff]
                %523 = vst [vmem:[%s513 + $0x20] sm:$0xff] %v522
                %v524 = vld [vmem:[%s512 + $0x28] sm:$0xff]
                %525 = vst [vmem:[%s513 + $0x28] sm:$0xff] %v524
                %v526 = vld [vmem:[%s512 + $0x30] sm:$0xff]
                %527 = vst [vmem:[%s513 + $0x30] sm:$0xff] %v526
                %v528 = vld [vmem:[%s512 + $0x38] sm:$0xff]
                %529 = vst [vmem:[%s513 + $0x38] sm:$0xff] %v528
                %v530 = vld [vmem:[%s512 + $0x40] sm:$0xff]
                %531 = vst [vmem:[%s513 + $0x40] sm:$0xff] %v530
                %v532 = vld [vmem:[%s512 + $0x48] sm:$0xff]
                %533 = vst [vmem:[%s513 + $0x48] sm:$0xff] %v532
                %v534 = vld [vmem:[%s512 + $0x50] sm:$0xff]
                %535 = vst [vmem:[%s513 + $0x50] sm:$0xff] %v534
                %v536 = vld [vmem:[%s512 + $0x58] sm:$0xff]
                %537 = vst [vmem:[%s513 + $0x58] sm:$0xff] %v536
                %v538 = vld [vmem:[%s512 + $0x60] sm:$0xff]
                %539 = vst [vmem:[%s513 + $0x60] sm:$0xff] %v538
                %v540 = vld [vmem:[%s512 + $0x68] sm:$0xff]
                %541 = vst [vmem:[%s513 + $0x68] sm:$0xff] %v540
                %v542 = vld [vmem:[%s512 + $0x70] sm:$0xff]
                %543 = vst [vmem:[%s513 + $0x70] sm:$0xff] %v542
                %v544 = vld [vmem:[%s512 + $0x78] sm:$0xff]
                %545 = vst [vmem:[%s513 + $0x78] sm:$0xff] %v544
                %v546 = vld [vmem:[%s512 + $0x80] sm:$0xff]
                %547 = vst [vmem:[%s513 + $0x80] sm:$0xff] %v546
                %v548 = vld [vmem:[%s512 + $0x88] sm:$0xff]
                %549 = vst [vmem:[%s513 + $0x88] sm:$0xff] %v548
                %v550 = vld [vmem:[%s512 + $0x90] sm:$0xff]
                %551 = vst [vmem:[%s513 + $0x90] sm:$0xff] %v550
                %v552 = vld [vmem:[%s512 + $0x98] sm:$0xff]
                %553 = vst [vmem:[%s513 + $0x98] sm:$0xff] %v552
                %v554 = vld [vmem:[%s512 + $0xa0] sm:$0xff]
                %555 = vst [vmem:[%s513 + $0xa0] sm:$0xff] %v554
                %v556 = vld [vmem:[%s512 + $0xa8] sm:$0xff]
                %557 = vst [vmem:[%s513 + $0xa8] sm:$0xff] %v556
                %v558 = vld [vmem:[%s512 + $0xb0] sm:$0xff]
                %559 = vst [vmem:[%s513 + $0xb0] sm:$0xff] %v558
                %v560 = vld [vmem:[%s512 + $0xb8] sm:$0xff]
                %561 = vst [vmem:[%s513 + $0xb8] sm:$0xff] %v560
                %v562 = vld [vmem:[%s512 + $0xc0] sm:$0xff]
                %563 = vst [vmem:[%s513 + $0xc0] sm:$0xff] %v562
                %v564 = vld [vmem:[%s512 + $0xc8] sm:$0xff]
                %565 = vst [vmem:[%s513 + $0xc8] sm:$0xff] %v564
                %v566 = vld [vmem:[%s512 + $0xd0] sm:$0xff]
                %567 = vst [vmem:[%s513 + $0xd0] sm:$0xff] %v566
                %v568 = vld [vmem:[%s512 + $0xd8] sm:$0xff]
                %569 = vst [vmem:[%s513 + $0xd8] sm:$0xff] %v568
                %v570 = vld [vmem:[%s512 + $0xe0] sm:$0xff]
                %571 = vst [vmem:[%s513 + $0xe0] sm:$0xff] %v570
                %v572 = vld [vmem:[%s512 + $0xe8] sm:$0xff]
                %573 = vst [vmem:[%s513 + $0xe8] sm:$0xff] %v572
                %v574 = vld [vmem:[%s512 + $0xf0] sm:$0xff]
                %575 = vst [vmem:[%s513 + $0xf0] sm:$0xff] %v574
                %v576 = vld [vmem:[%s512 + $0xf8] sm:$0xff]
                %577 = vst [vmem:[%s513 + $0xf8] sm:$0xff] %v576
                %v578 = vld [vmem:[%s512 + $0x100] sm:$0xff]
                %579 = vst [vmem:[%s513 + $0x100] sm:$0xff] %v578
                %v580 = vld [vmem:[%s512 + $0x108] sm:$0xff]
                %581 = vst [vmem:[%s513 + $0x108] sm:$0xff] %v580
                %v582 = vld [vmem:[%s512 + $0x110] sm:$0xff]
                %583 = vst [vmem:[%s513 + $0x110] sm:$0xff] %v582
                %v584 = vld [vmem:[%s512 + $0x118] sm:$0xff]
                %585 = vst [vmem:[%s513 + $0x118] sm:$0xff] %v584
                %v586 = vld [vmem:[%s512 + $0x120] sm:$0xff]
                %587 = vst [vmem:[%s513 + $0x120] sm:$0xff] %v586
                %v588 = vld [vmem:[%s512 + $0x128] sm:$0xff]
                %589 = vst [vmem:[%s513 + $0x128] sm:$0xff] %v588
                %v590 = vld [vmem:[%s512 + $0x130] sm:$0xff]
                %591 = vst [vmem:[%s513 + $0x130] sm:$0xff] %v590
                %v592 = vld [vmem:[%s512 + $0x138] sm:$0xff]
                %593 = vst [vmem:[%s513 + $0x138] sm:$0xff] %v592
                %v594 = vld [vmem:[%s512 + $0x140] sm:$0xff]
                %595 = vst [vmem:[%s513 + $0x140] sm:$0xff] %v594
                %v596 = vld [vmem:[%s512 + $0x148] sm:$0xff]
                %597 = vst [vmem:[%s513 + $0x148] sm:$0xff] %v596
                %v598 = vld [vmem:[%s512 + $0x150] sm:$0xff]
                %599 = vst [vmem:[%s513 + $0x150] sm:$0xff] %v598
                %v600 = vld [vmem:[%s512 + $0x158] sm:$0xff]
                %601 = vst [vmem:[%s513 + $0x158] sm:$0xff] %v600
                %v602 = vld [vmem:[%s512 + $0x160] sm:$0xff]
                %603 = vst [vmem:[%s513 + $0x160] sm:$0xff] %v602
                %v604 = vld [vmem:[%s512 + $0x168] sm:$0xff]
                %605 = vst [vmem:[%s513 + $0x168] sm:$0xff] %v604
                %v606 = vld [vmem:[%s512 + $0x170] sm:$0xff]
                %607 = vst [vmem:[%s513 + $0x170] sm:$0xff] %v606
                %v608 = vld [vmem:[%s512 + $0x178] sm:$0xff]
                %609 = vst [vmem:[%s513 + $0x178] sm:$0xff] %v608
                %v610 = vld [vmem:[%s512 + $0x180] sm:$0xff]
                %611 = vst [vmem:[%s513 + $0x180] sm:$0xff] %v610
                %v612 = vld [vmem:[%s512 + $0x188] sm:$0xff]
                %613 = vst [vmem:[%s513 + $0x188] sm:$0xff] %v612
                %v614 = vld [vmem:[%s512 + $0x190] sm:$0xff]
                %615 = vst [vmem:[%s513 + $0x190] sm:$0xff] %v614
                %v616 = vld [vmem:[%s512 + $0x198] sm:$0xff]
                %617 = vst [vmem:[%s513 + $0x198] sm:$0xff] %v616
                %v618 = vld [vmem:[%s512 + $0x1a0] sm:$0xff]
                %619 = vst [vmem:[%s513 + $0x1a0] sm:$0xff] %v618
                %v620 = vld [vmem:[%s512 + $0x1a8] sm:$0xff]
                %621 = vst [vmem:[%s513 + $0x1a8] sm:$0xff] %v620
                %v622 = vld [vmem:[%s512 + $0x1b0] sm:$0xff]
                %623 = vst [vmem:[%s513 + $0x1b0] sm:$0xff] %v622
                %v624 = vld [vmem:[%s512 + $0x1b8] sm:$0xff]
                %625 = vst [vmem:[%s513 + $0x1b8] sm:$0xff] %v624
                %v626 = vld [vmem:[%s512 + $0x1c0] sm:$0xff]
                %627 = vst [vmem:[%s513 + $0x1c0] sm:$0xff] %v626
                %v628 = vld [vmem:[%s512 + $0x1c8] sm:$0xff]
                %629 = vst [vmem:[%s513 + $0x1c8] sm:$0xff] %v628
                %v630 = vld [vmem:[%s512 + $0x1d0] sm:$0xff]
                %631 = vst [vmem:[%s513 + $0x1d0] sm:$0xff] %v630
                %v632 = vld [vmem:[%s512 + $0x1d8] sm:$0xff]
                %633 = vst [vmem:[%s513 + $0x1d8] sm:$0xff] %v632
                %v634 = vld [vmem:[%s512 + $0x1e0] sm:$0xff]
                %635 = vst [vmem:[%s513 + $0x1e0] sm:$0xff] %v634
                %v636 = vld [vmem:[%s512 + $0x1e8] sm:$0xff]
                %637 = vst [vmem:[%s513 + $0x1e8] sm:$0xff] %v636
                %v638 = vld [vmem:[%s512 + $0x1f0] sm:$0xff]
                %639 = vst [vmem:[%s513 + $0x1f0] sm:$0xff] %v638
                %v640 = vld [vmem:[%s512 + $0x1f8] sm:$0xff]
                %641 = vst [vmem:[%s513 + $0x1f8] sm:$0xff] %v640
                %v642 = vld [vmem:[%s512 + $0x400] sm:$0xff]
                %643 = vst [vmem:[%s513 + $0x200] sm:$0xff] %v642
                %v644 = vld [vmem:[%s512 + $0x408] sm:$0xff]
                %645 = vst [vmem:[%s513 + $0x208] sm:$0xff] %v644
                %v646 = vld [vmem:[%s512 + $0x410] sm:$0xff]
                %647 = vst [vmem:[%s513 + $0x210] sm:$0xff] %v646
                %v648 = vld [vmem:[%s512 + $0x418] sm:$0xff]
                %649 = vst [vmem:[%s513 + $0x218] sm:$0xff] %v648
                %v650 = vld [vmem:[%s512 + $0x420] sm:$0xff]
                %651 = vst [vmem:[%s513 + $0x220] sm:$0xff] %v650
                %v652 = vld [vmem:[%s512 + $0x428] sm:$0xff]
                %653 = vst [vmem:[%s513 + $0x228] sm:$0xff] %v652
                %v654 = vld [vmem:[%s512 + $0x430] sm:$0xff]
                %655 = vst [vmem:[%s513 + $0x230] sm:$0xff] %v654
                %v656 = vld [vmem:[%s512 + $0x438] sm:$0xff]
                %657 = vst [vmem:[%s513 + $0x238] sm:$0xff] %v656
                %v658 = vld [vmem:[%s512 + $0x440] sm:$0xff]
                %659 = vst [vmem:[%s513 + $0x240] sm:$0xff] %v658
                %v660 = vld [vmem:[%s512 + $0x448] sm:$0xff]
                %661 = vst [vmem:[%s513 + $0x248] sm:$0xff] %v660
                %v662 = vld [vmem:[%s512 + $0x450] sm:$0xff]
                %663 = vst [vmem:[%s513 + $0x250] sm:$0xff] %v662
                %v664 = vld [vmem:[%s512 + $0x458] sm:$0xff]
                %665 = vst [vmem:[%s513 + $0x258] sm:$0xff] %v664
                %v666 = vld [vmem:[%s512 + $0x460] sm:$0xff]
                %667 = vst [vmem:[%s513 + $0x260] sm:$0xff] %v666
                %v668 = vld [vmem:[%s512 + $0x468] sm:$0xff]
                %669 = vst [vmem:[%s513 + $0x268] sm:$0xff] %v668
                %v670 = vld [vmem:[%s512 + $0x470] sm:$0xff]
                %671 = vst [vmem:[%s513 + $0x270] sm:$0xff] %v670
                %v672 = vld [vmem:[%s512 + $0x478] sm:$0xff]
                %673 = vst [vmem:[%s513 + $0x278] sm:$0xff] %v672
                %v674 = vld [vmem:[%s512 + $0x480] sm:$0xff]
                %675 = vst [vmem:[%s513 + $0x280] sm:$0xff] %v674
                %v676 = vld [vmem:[%s512 + $0x488] sm:$0xff]
                %677 = vst [vmem:[%s513 + $0x288] sm:$0xff] %v676
                %v678 = vld [vmem:[%s512 + $0x490] sm:$0xff]
                %679 = vst [vmem:[%s513 + $0x290] sm:$0xff] %v678
                %v680 = vld [vmem:[%s512 + $0x498] sm:$0xff]
                %681 = vst [vmem:[%s513 + $0x298] sm:$0xff] %v680
                %v682 = vld [vmem:[%s512 + $0x4a0] sm:$0xff]
                %683 = vst [vmem:[%s513 + $0x2a0] sm:$0xff] %v682
                %v684 = vld [vmem:[%s512 + $0x4a8] sm:$0xff]
                %685 = vst [vmem:[%s513 + $0x2a8] sm:$0xff] %v684
                %v686 = vld [vmem:[%s512 + $0x4b0] sm:$0xff]
                %687 = vst [vmem:[%s513 + $0x2b0] sm:$0xff] %v686
                %v688 = vld [vmem:[%s512 + $0x4b8] sm:$0xff]
                %689 = vst [vmem:[%s513 + $0x2b8] sm:$0xff] %v688
                %v690 = vld [vmem:[%s512 + $0x4c0] sm:$0xff]
                %691 = vst [vmem:[%s513 + $0x2c0] sm:$0xff] %v690
                %v692 = vld [vmem:[%s512 + $0x4c8] sm:$0xff]
                %693 = vst [vmem:[%s513 + $0x2c8] sm:$0xff] %v692
                %v694 = vld [vmem:[%s512 + $0x4d0] sm:$0xff]
                %695 = vst [vmem:[%s513 + $0x2d0] sm:$0xff] %v694
                %v696 = vld [vmem:[%s512 + $0x4d8] sm:$0xff]
                %697 = vst [vmem:[%s513 + $0x2d8] sm:$0xff] %v696
                %v698 = vld [vmem:[%s512 + $0x4e0] sm:$0xff]
                %699 = vst [vmem:[%s513 + $0x2e0] sm:$0xff] %v698
                %v700 = vld [vmem:[%s512 + $0x4e8] sm:$0xff]
                %701 = vst [vmem:[%s513 + $0x2e8] sm:$0xff] %v700
                %v702 = vld [vmem:[%s512 + $0x4f0] sm:$0xff]
                %703 = vst [vmem:[%s513 + $0x2f0] sm:$0xff] %v702
                %v704 = vld [vmem:[%s512 + $0x4f8] sm:$0xff]
                %705 = vst [vmem:[%s513 + $0x2f8] sm:$0xff] %v704
                %v706 = vld [vmem:[%s512 + $0x500] sm:$0xff]
                %707 = vst [vmem:[%s513 + $0x300] sm:$0xff] %v706
                %v708 = vld [vmem:[%s512 + $0x508] sm:$0xff]
                %709 = vst [vmem:[%s513 + $0x308] sm:$0xff] %v708
                %v710 = vld [vmem:[%s512 + $0x510] sm:$0xff]
                %711 = vst [vmem:[%s513 + $0x310] sm:$0xff] %v710
                %v712 = vld [vmem:[%s512 + $0x518] sm:$0xff]
                %713 = vst [vmem:[%s513 + $0x318] sm:$0xff] %v712
                %v714 = vld [vmem:[%s512 + $0x520] sm:$0xff]
                %715 = vst [vmem:[%s513 + $0x320] sm:$0xff] %v714
                %v716 = vld [vmem:[%s512 + $0x528] sm:$0xff]
                %717 = vst [vmem:[%s513 + $0x328] sm:$0xff] %v716
                %v718 = vld [vmem:[%s512 + $0x530] sm:$0xff]
                %719 = vst [vmem:[%s513 + $0x330] sm:$0xff] %v718
                %v720 = vld [vmem:[%s512 + $0x538] sm:$0xff]
                %721 = vst [vmem:[%s513 + $0x338] sm:$0xff] %v720
                %v722 = vld [vmem:[%s512 + $0x540] sm:$0xff]
                %723 = vst [vmem:[%s513 + $0x340] sm:$0xff] %v722
                %v724 = vld [vmem:[%s512 + $0x548] sm:$0xff]
                %725 = vst [vmem:[%s513 + $0x348] sm:$0xff] %v724
                %v726 = vld [vmem:[%s512 + $0x550] sm:$0xff]
                %727 = vst [vmem:[%s513 + $0x350] sm:$0xff] %v726
                %v728 = vld [vmem:[%s512 + $0x558] sm:$0xff]
                %729 = vst [vmem:[%s513 + $0x358] sm:$0xff] %v728
                %v730 = vld [vmem:[%s512 + $0x560] sm:$0xff]
                %731 = vst [vmem:[%s513 + $0x360] sm:$0xff] %v730
                %v732 = vld [vmem:[%s512 + $0x568] sm:$0xff]
                %733 = vst [vmem:[%s513 + $0x368] sm:$0xff] %v732
                %v734 = vld [vmem:[%s512 + $0x570] sm:$0xff]
                %735 = vst [vmem:[%s513 + $0x370] sm:$0xff] %v734
                %v736 = vld [vmem:[%s512 + $0x578] sm:$0xff]
                %737 = vst [vmem:[%s513 + $0x378] sm:$0xff] %v736
                %v738 = vld [vmem:[%s512 + $0x580] sm:$0xff]
                %739 = vst [vmem:[%s513 + $0x380] sm:$0xff] %v738
                %v740 = vld [vmem:[%s512 + $0x588] sm:$0xff]
                %741 = vst [vmem:[%s513 + $0x388] sm:$0xff] %v740
                %v742 = vld [vmem:[%s512 + $0x590] sm:$0xff]
                %743 = vst [vmem:[%s513 + $0x390] sm:$0xff] %v742
                %v744 = vld [vmem:[%s512 + $0x598] sm:$0xff]
                %745 = vst [vmem:[%s513 + $0x398] sm:$0xff] %v744
                %v746 = vld [vmem:[%s512 + $0x5a0] sm:$0xff]
                %747 = vst [vmem:[%s513 + $0x3a0] sm:$0xff] %v746
                %v748 = vld [vmem:[%s512 + $0x5a8] sm:$0xff]
                %749 = vst [vmem:[%s513 + $0x3a8] sm:$0xff] %v748
                %v750 = vld [vmem:[%s512 + $0x5b0] sm:$0xff]
                %751 = vst [vmem:[%s513 + $0x3b0] sm:$0xff] %v750
                %v752 = vld [vmem:[%s512 + $0x5b8] sm:$0xff]
                %753 = vst [vmem:[%s513 + $0x3b8] sm:$0xff] %v752
                %v754 = vld [vmem:[%s512 + $0x5c0] sm:$0xff]
                %755 = vst [vmem:[%s513 + $0x3c0] sm:$0xff] %v754
                %v756 = vld [vmem:[%s512 + $0x5c8] sm:$0xff]
                %757 = vst [vmem:[%s513 + $0x3c8] sm:$0xff] %v756
                %v758 = vld [vmem:[%s512 + $0x5d0] sm:$0xff]
                %759 = vst [vmem:[%s513 + $0x3d0] sm:$0xff] %v758
                %v760 = vld [vmem:[%s512 + $0x5d8] sm:$0xff]
                %761 = vst [vmem:[%s513 + $0x3d8] sm:$0xff] %v760
                %v762 = vld [vmem:[%s512 + $0x5e0] sm:$0xff]
                %763 = vst [vmem:[%s513 + $0x3e0] sm:$0xff] %v762
                %v764 = vld [vmem:[%s512 + $0x5e8] sm:$0xff]
                %765 = vst [vmem:[%s513 + $0x3e8] sm:$0xff] %v764
                %v766 = vld [vmem:[%s512 + $0x5f0] sm:$0xff]
                %767 = vst [vmem:[%s513 + $0x3f0] sm:$0xff] %v766
                %v768 = vld [vmem:[%s512 + $0x5f8] sm:$0xff]
                %769 = vst [vmem:[%s513 + $0x3f8] sm:$0xff] %v768
              $region60: #{dra_forward.2} parent=54 // loop_footer
                %s511 = sadd.s32 1, %s507
              $region61: #{dra_forward.2} parent=54 // loop_footer_branch
                %506 = sbr.rel target = $region57
              $region62: #{dra_forward.2} parent=54 // loop_exit
                _
            $region55: #{dra_forward.2} parent=50 // pred_fallthru
              _
            // Predicated region
            $region63: #{dra_forward.2} parent=50 // pred_check
              _
            $region64: #{dra_forward.2} parent=50 // pred_check_branch
              %771 = sbr.rel target = $region66
            $region65: #{dra_forward.2} parent=50 // pred_region
              _
            $region66: #{dra_forward.2} parent=50 // pred_fallthru
              _
          $region51: #{dra_forward.2} parent=46 // pred_fallthru
            _
          %772 = vnop
        $region47: #{dra_forward.2} parent=19 // pred_fallthru
          _
      $region20: #{dra_forward.2} parent=5 // pred_fallthru
        _
      %p773 = scmp.le.s32.totalorder 1, %s12
      %p774 = scmp.lt.s32.totalorder %s12, 5
      %p775 = pnand %p773, %p774
      %p776 = pneg %p775
      // Predicated region
      $region67: #{dra_forward.2} parent=5 // pred_check
        _
      $region68: #{dra_forward.2} parent=5 // pred_check_branch
        %778 = sbr.rel (%p775) target = $region70
      $region69: #{dra_forward.2} parent=5 // pred_region
        %s779 = ssub.s32 %s12, 1
        %s780 = sand.u32 %s39, 1
        %s781 = sand.u32 %s39, 1
        %s782 = smul.addr %s781, 1024
        %s783 = scalar_lea.vmem [#allocation2], %s782
        // Predicated region
        $region71: #{dra_forward.2} parent=69 // pred_check
          %p784 = pneg %p52
        $region72: #{dra_forward.2} parent=69 // pred_check_branch
          %786 = sbr.rel (%p784) target = $region74
        $region73: #{dra_forward.2} parent=69 // pred_region
          _
        $region74: #{dra_forward.2} parent=69 // pred_fallthru
          _
        %s787 = sand.u32 %s67, 1
        %s788 = sand.u32 %s67, 1
        %s789 = smul.addr %s788, 1024
        %s790 = scalar_lea.vmem [#allocation3], %s789
        // Predicated region
        $region75: #{dra_forward.2} parent=69 // pred_check
          %p791 = pneg %p80
        $region76: #{dra_forward.2} parent=69 // pred_check_branch
          %793 = sbr.rel (%p791) target = $region78
        $region77: #{dra_forward.2} parent=69 // pred_region
          _
        $region78: #{dra_forward.2} parent=69 // pred_fallthru
          _
        %s794 = sand.u32 %s39, 1
        %s795 = sand.u32 %s39, 1
        %s796 = smul.addr %s795, 1024
        %s797 = scalar_lea.vmem [#allocation2], %s796
        %p798 = pneg %p52
        %p799 = pneg %p49
        %s800 = sand.u32 %s67, 1
        %s801 = sand.u32 %s67, 1
        %s802 = smul.addr %s801, 1024
        %s803 = scalar_lea.vmem [#allocation3], %s802
        %p804 = pneg %p80
        %p805 = pneg %p77
        %p806 = pneg %p101
        %p807 = pneg %p98
        %p808 = pneg %p129
        %p809 = pneg %p126
        %s810 = sand.u32 %s116, 1
        %s811 = sand.u32 %s116, 1
        %s812 = smul.addr %s811, 1024
        %s813 = scalar_lea.vmem [#allocation4], %s812
        %p814 = pneg %p157
        %p815 = pneg %p154
        %p816 = scmp.lt.s32.totalorder %s21, 1
        %s817 = scalar_select %p816, %s21, 1
        %p818 = scmp.lt.s32.totalorder %s22, 1
        %s819 = scalar_select %p818, %s22, 1
        %s820 = smul.addr %s819, 2
        %s821 = smul.addr %s817, 4
        %s822 = sadd.s32 %s820, %s821
        %s823 = smul.addr %s822, 8
        %s824 = scalar_lea.vmem %s4, %s823
        %p825 = pneg %p185
        %p826 = pneg %p182
        %p827 = scmp.lt.s32.totalorder %s21, 1
        %s828 = scalar_select %p827, %s21, 1
        %p829 = scmp.lt.s32.totalorder %s22, 1
        %s830 = scalar_select %p829, %s22, 1
        %s831 = smul.addr %s830, 2
        %s832 = smul.addr %s828, 4
        %s833 = sadd.s32 %s831, %s832
        %s834 = smul.addr %s833, 8
        %s835 = scalar_lea.vmem %s5, %s834
        %s836 = smul.u32 64, %s22
        %s837 = smul.u32 64, %s22
        %s838 = smul.u32 64, %s22
        %p839 = scmp.lt.s32.totalorder %s21, 1
        %s840 = scalar_select %p839, %s21, 1
        %p841 = scmp.lt.s32.totalorder %s22, 1
        %s842 = scalar_select %p841, %s22, 1
        %s843 = smul.addr %s842, 2
        %s844 = smul.addr %s840, 4
        %s845 = sadd.s32 %s843, %s844
        %s846 = smul.addr %s845, 8
        %s847 = scalar_lea.vmem %s4, %s846
        %p848 = scmp.lt.s32.totalorder %s21, 1
        %s849 = scalar_select %p848, %s21, 1
        %p850 = scmp.lt.s32.totalorder %s22, 1
        %s851 = scalar_select %p850, %s22, 1
        %s852 = smul.addr %s851, 2
        %s853 = smul.addr %s849, 4
        %s854 = sadd.s32 %s852, %s853
        %s855 = smul.addr %s854, 8
        %s856 = scalar_lea.vmem %s5, %s855
        %v857 = vld [vmem:[%s783] sm:$0xff]
        %v858 = vld [vmem:[%s783 + $0x8] sm:$0xff]
        %v859 = vld [vmem:[%s783 + $0x10] sm:$0xff]
        %v860 = vld [vmem:[%s783 + $0x18] sm:$0xff]
        %v861 = vld [vmem:[%s783 + $0x20] sm:$0xff]
        %v862 = vld [vmem:[%s783 + $0x28] sm:$0xff]
        %v863 = vld [vmem:[%s783 + $0x30] sm:$0xff]
        %v864 = vld [vmem:[%s783 + $0x38] sm:$0xff]
        %v865 = vld [vmem:[%s783 + $0x40] sm:$0xff]
        %v866 = vld [vmem:[%s783 + $0x48] sm:$0xff]
        %v867 = vld [vmem:[%s783 + $0x50] sm:$0xff]
        %v868 = vld [vmem:[%s783 + $0x58] sm:$0xff]
        %v869 = vld [vmem:[%s783 + $0x60] sm:$0xff]
        %v870 = vld [vmem:[%s783 + $0x68] sm:$0xff]
        %v871 = vld [vmem:[%s783 + $0x70] sm:$0xff]
        %v872 = vld [vmem:[%s783 + $0x78] sm:$0xff]
        %v873 = vld [vmem:[%s783 + $0x80] sm:$0xff]
        %v874 = vld [vmem:[%s783 + $0x88] sm:$0xff]
        %v875 = vld [vmem:[%s783 + $0x90] sm:$0xff]
        %v876 = vld [vmem:[%s783 + $0x98] sm:$0xff]
        %v877 = vld [vmem:[%s783 + $0xa0] sm:$0xff]
        %v878 = vld [vmem:[%s783 + $0xa8] sm:$0xff]
        %v879 = vld [vmem:[%s783 + $0xb0] sm:$0xff]
        %v880 = vld [vmem:[%s783 + $0xb8] sm:$0xff]
        %v881 = vld [vmem:[%s783 + $0xc0] sm:$0xff]
        %v882 = vld [vmem:[%s783 + $0xc8] sm:$0xff]
        %v883 = vld [vmem:[%s783 + $0xd0] sm:$0xff]
        %v884 = vld [vmem:[%s783 + $0xd8] sm:$0xff]
        %v885 = vld [vmem:[%s783 + $0xe0] sm:$0xff]
        %v886 = vld [vmem:[%s783 + $0xe8] sm:$0xff]
        %v887 = vld [vmem:[%s783 + $0xf0] sm:$0xff]
        %v888 = vld [vmem:[%s783 + $0xf8] sm:$0xff]
        %v889 = vld [vmem:[%s783 + $0x100] sm:$0xff]
        %v890 = vld [vmem:[%s783 + $0x108] sm:$0xff]
        %v891 = vld [vmem:[%s783 + $0x110] sm:$0xff]
        %v892 = vld [vmem:[%s783 + $0x118] sm:$0xff]
        %v893 = vld [vmem:[%s783 + $0x120] sm:$0xff]
        %v894 = vld [vmem:[%s783 + $0x128] sm:$0xff]
        %v895 = vld [vmem:[%s783 + $0x130] sm:$0xff]
        %v896 = vld [vmem:[%s783 + $0x138] sm:$0xff]
        %v897 = vld [vmem:[%s783 + $0x140] sm:$0xff]
        %v898 = vld [vmem:[%s783 + $0x148] sm:$0xff]
        %v899 = vld [vmem:[%s783 + $0x150] sm:$0xff]
        %v900 = vld [vmem:[%s783 + $0x158] sm:$0xff]
        %v901 = vld [vmem:[%s783 + $0x160] sm:$0xff]
        %v902 = vld [vmem:[%s783 + $0x168] sm:$0xff]
        %v903 = vld [vmem:[%s783 + $0x170] sm:$0xff]
        %v904 = vld [vmem:[%s783 + $0x178] sm:$0xff]
        %v905 = vld [vmem:[%s783 + $0x180] sm:$0xff]
        %v906 = vld [vmem:[%s783 + $0x188] sm:$0xff]
        %v907 = vld [vmem:[%s783 + $0x190] sm:$0xff]
        %v908 = vld [vmem:[%s783 + $0x198] sm:$0xff]
        %v909 = vld [vmem:[%s783 + $0x1a0] sm:$0xff]
        %v910 = vld [vmem:[%s783 + $0x1a8] sm:$0xff]
        %v911 = vld [vmem:[%s783 + $0x1b0] sm:$0xff]
        %v912 = vld [vmem:[%s783 + $0x1b8] sm:$0xff]
        %v913 = vld [vmem:[%s783 + $0x1c0] sm:$0xff]
        %v914 = vld [vmem:[%s783 + $0x1c8] sm:$0xff]
        %v915 = vld [vmem:[%s783 + $0x1d0] sm:$0xff]
        %v916 = vld [vmem:[%s783 + $0x1d8] sm:$0xff]
        %v917 = vld [vmem:[%s783 + $0x1e0] sm:$0xff]
        %v918 = vld [vmem:[%s783 + $0x1e8] sm:$0xff]
        %v919 = vld [vmem:[%s783 + $0x1f0] sm:$0xff]
        %v920 = vld [vmem:[%s783 + $0x1f8] sm:$0xff]
        %v921 = vld [vmem:[%s783 + $0x200] sm:$0xff]
        %v922 = vld [vmem:[%s783 + $0x208] sm:$0xff]
        %v923 = vld [vmem:[%s783 + $0x210] sm:$0xff]
        %v924 = vld [vmem:[%s783 + $0x218] sm:$0xff]
        %v925 = vld [vmem:[%s783 + $0x220] sm:$0xff]
        %v926 = vld [vmem:[%s783 + $0x228] sm:$0xff]
        %v927 = vld [vmem:[%s783 + $0x230] sm:$0xff]
        %v928 = vld [vmem:[%s783 + $0x238] sm:$0xff]
        %v929 = vld [vmem:[%s783 + $0x240] sm:$0xff]
        %v930 = vld [vmem:[%s783 + $0x248] sm:$0xff]
        %v931 = vld [vmem:[%s783 + $0x250] sm:$0xff]
        %v932 = vld [vmem:[%s783 + $0x258] sm:$0xff]
        %v933 = vld [vmem:[%s783 + $0x260] sm:$0xff]
        %v934 = vld [vmem:[%s783 + $0x268] sm:$0xff]
        %v935 = vld [vmem:[%s783 + $0x270] sm:$0xff]
        %v936 = vld [vmem:[%s783 + $0x278] sm:$0xff]
        %v937 = vld [vmem:[%s783 + $0x280] sm:$0xff]
        %v938 = vld [vmem:[%s783 + $0x288] sm:$0xff]
        %v939 = vld [vmem:[%s783 + $0x290] sm:$0xff]
        %v940 = vld [vmem:[%s783 + $0x298] sm:$0xff]
        %v941 = vld [vmem:[%s783 + $0x2a0] sm:$0xff]
        %v942 = vld [vmem:[%s783 + $0x2a8] sm:$0xff]
        %v943 = vld [vmem:[%s783 + $0x2b0] sm:$0xff]
        %v944 = vld [vmem:[%s783 + $0x2b8] sm:$0xff]
        %v945 = vld [vmem:[%s783 + $0x2c0] sm:$0xff]
        %v946 = vld [vmem:[%s783 + $0x2c8] sm:$0xff]
        %v947 = vld [vmem:[%s783 + $0x2d0] sm:$0xff]
        %v948 = vld [vmem:[%s783 + $0x2d8] sm:$0xff]
        %v949 = vld [vmem:[%s783 + $0x2e0] sm:$0xff]
        %v950 = vld [vmem:[%s783 + $0x2e8] sm:$0xff]
        %v951 = vld [vmem:[%s783 + $0x2f0] sm:$0xff]
        %v952 = vld [vmem:[%s783 + $0x2f8] sm:$0xff]
        %v953 = vld [vmem:[%s783 + $0x300] sm:$0xff]
        %v954 = vld [vmem:[%s783 + $0x308] sm:$0xff]
        %v955 = vld [vmem:[%s783 + $0x310] sm:$0xff]
        %v956 = vld [vmem:[%s783 + $0x318] sm:$0xff]
        %v957 = vld [vmem:[%s783 + $0x320] sm:$0xff]
        %v958 = vld [vmem:[%s783 + $0x328] sm:$0xff]
        %v959 = vld [vmem:[%s783 + $0x330] sm:$0xff]
        %v960 = vld [vmem:[%s783 + $0x338] sm:$0xff]
        %v961 = vld [vmem:[%s783 + $0x340] sm:$0xff]
        %v962 = vld [vmem:[%s783 + $0x348] sm:$0xff]
        %v963 = vld [vmem:[%s783 + $0x350] sm:$0xff]
        %v964 = vld [vmem:[%s783 + $0x358] sm:$0xff]
        %v965 = vld [vmem:[%s783 + $0x360] sm:$0xff]
        %v966 = vld [vmem:[%s783 + $0x368] sm:$0xff]
        %v967 = vld [vmem:[%s783 + $0x370] sm:$0xff]
        %v968 = vld [vmem:[%s783 + $0x378] sm:$0xff]
        %v969 = vld [vmem:[%s783 + $0x380] sm:$0xff]
        %v970 = vld [vmem:[%s783 + $0x388] sm:$0xff]
        %v971 = vld [vmem:[%s783 + $0x390] sm:$0xff]
        %v972 = vld [vmem:[%s783 + $0x398] sm:$0xff]
        %v973 = vld [vmem:[%s783 + $0x3a0] sm:$0xff]
        %v974 = vld [vmem:[%s783 + $0x3a8] sm:$0xff]
        %v975 = vld [vmem:[%s783 + $0x3b0] sm:$0xff]
        %v976 = vld [vmem:[%s783 + $0x3b8] sm:$0xff]
        %v977 = vld [vmem:[%s783 + $0x3c0] sm:$0xff]
        %v978 = vld [vmem:[%s783 + $0x3c8] sm:$0xff]
        %v979 = vld [vmem:[%s783 + $0x3d0] sm:$0xff]
        %v980 = vld [vmem:[%s783 + $0x3d8] sm:$0xff]
        %v981 = vld [vmem:[%s783 + $0x3e0] sm:$0xff]
        %v982 = vld [vmem:[%s783 + $0x3e8] sm:$0xff]
        %v983 = vld [vmem:[%s783 + $0x3f0] sm:$0xff]
        %v984 = vld [vmem:[%s783 + $0x3f8] sm:$0xff]
        %v985 = vld [vmem:[%s790] sm:$0xff]
        %v986 = vld [vmem:[%s790 + $0x8] sm:$0xff]
        %v987 = vld [vmem:[%s790 + $0x10] sm:$0xff]
        %v988 = vld [vmem:[%s790 + $0x18] sm:$0xff]
        %v989 = vld [vmem:[%s790 + $0x20] sm:$0xff]
        %v990 = vld [vmem:[%s790 + $0x28] sm:$0xff]
        %v991 = vld [vmem:[%s790 + $0x30] sm:$0xff]
        %v992 = vld [vmem:[%s790 + $0x38] sm:$0xff]
        %v993 = vld [vmem:[%s790 + $0x40] sm:$0xff]
        %v994 = vld [vmem:[%s790 + $0x48] sm:$0xff]
        %v995 = vld [vmem:[%s790 + $0x50] sm:$0xff]
        %v996 = vld [vmem:[%s790 + $0x58] sm:$0xff]
        %v997 = vld [vmem:[%s790 + $0x60] sm:$0xff]
        %v998 = vld [vmem:[%s790 + $0x68] sm:$0xff]
        %v999 = vld [vmem:[%s790 + $0x70] sm:$0xff]
        %v1000 = vld [vmem:[%s790 + $0x78] sm:$0xff]
        %v1001 = vld [vmem:[%s790 + $0x80] sm:$0xff]
        %v1002 = vld [vmem:[%s790 + $0x88] sm:$0xff]
        %v1003 = vld [vmem:[%s790 + $0x90] sm:$0xff]
        %v1004 = vld [vmem:[%s790 + $0x98] sm:$0xff]
        %v1005 = vld [vmem:[%s790 + $0xa0] sm:$0xff]
        %v1006 = vld [vmem:[%s790 + $0xa8] sm:$0xff]
        %v1007 = vld [vmem:[%s790 + $0xb0] sm:$0xff]
        %v1008 = vld [vmem:[%s790 + $0xb8] sm:$0xff]
        %v1009 = vld [vmem:[%s790 + $0xc0] sm:$0xff]
        %v1010 = vld [vmem:[%s790 + $0xc8] sm:$0xff]
        %v1011 = vld [vmem:[%s790 + $0xd0] sm:$0xff]
        %v1012 = vld [vmem:[%s790 + $0xd8] sm:$0xff]
        %v1013 = vld [vmem:[%s790 + $0xe0] sm:$0xff]
        %v1014 = vld [vmem:[%s790 + $0xe8] sm:$0xff]
        %v1015 = vld [vmem:[%s790 + $0xf0] sm:$0xff]
        %v1016 = vld [vmem:[%s790 + $0xf8] sm:$0xff]
        %v1017 = vld [vmem:[%s790 + $0x100] sm:$0xff]
        %v1018 = vld [vmem:[%s790 + $0x108] sm:$0xff]
        %v1019 = vld [vmem:[%s790 + $0x110] sm:$0xff]
        %v1020 = vld [vmem:[%s790 + $0x118] sm:$0xff]
        %v1021 = vld [vmem:[%s790 + $0x120] sm:$0xff]
        %v1022 = vld [vmem:[%s790 + $0x128] sm:$0xff]
        %v1023 = vld [vmem:[%s790 + $0x130] sm:$0xff]
        %v1024 = vld [vmem:[%s790 + $0x138] sm:$0xff]
        %v1025 = vld [vmem:[%s790 + $0x140] sm:$0xff]
        %v1026 = vld [vmem:[%s790 + $0x148] sm:$0xff]
        %v1027 = vld [vmem:[%s790 + $0x150] sm:$0xff]
        %v1028 = vld [vmem:[%s790 + $0x158] sm:$0xff]
        %v1029 = vld [vmem:[%s790 + $0x160] sm:$0xff]
        %v1030 = vld [vmem:[%s790 + $0x168] sm:$0xff]
        %v1031 = vld [vmem:[%s790 + $0x170] sm:$0xff]
        %v1032 = vld [vmem:[%s790 + $0x178] sm:$0xff]
        %v1033 = vld [vmem:[%s790 + $0x180] sm:$0xff]
        %v1034 = vld [vmem:[%s790 + $0x188] sm:$0xff]
        %v1035 = vld [vmem:[%s790 + $0x190] sm:$0xff]
        %v1036 = vld [vmem:[%s790 + $0x198] sm:$0xff]
        %v1037 = vld [vmem:[%s790 + $0x1a0] sm:$0xff]
        %v1038 = vld [vmem:[%s790 + $0x1a8] sm:$0xff]
        %v1039 = vld [vmem:[%s790 + $0x1b0] sm:$0xff]
        %v1040 = vld [vmem:[%s790 + $0x1b8] sm:$0xff]
        %v1041 = vld [vmem:[%s790 + $0x1c0] sm:$0xff]
        %v1042 = vld [vmem:[%s790 + $0x1c8] sm:$0xff]
        %v1043 = vld [vmem:[%s790 + $0x1d0] sm:$0xff]
        %v1044 = vld [vmem:[%s790 + $0x1d8] sm:$0xff]
        %v1045 = vld [vmem:[%s790 + $0x1e0] sm:$0xff]
        %v1046 = vld [vmem:[%s790 + $0x1e8] sm:$0xff]
        %v1047 = vld [vmem:[%s790 + $0x1f0] sm:$0xff]
        %v1048 = vld [vmem:[%s790 + $0x1f8] sm:$0xff]
        %v1049 = vld [vmem:[%s790 + $0x200] sm:$0xff]
        %v1050 = vld [vmem:[%s790 + $0x208] sm:$0xff]
        %v1051 = vld [vmem:[%s790 + $0x210] sm:$0xff]
        %v1052 = vld [vmem:[%s790 + $0x218] sm:$0xff]
        %v1053 = vld [vmem:[%s790 + $0x220] sm:$0xff]
        %v1054 = vld [vmem:[%s790 + $0x228] sm:$0xff]
        %v1055 = vld [vmem:[%s790 + $0x230] sm:$0xff]
        %v1056 = vld [vmem:[%s790 + $0x238] sm:$0xff]
        %v1057 = vld [vmem:[%s790 + $0x240] sm:$0xff]
        %v1058 = vld [vmem:[%s790 + $0x248] sm:$0xff]
        %v1059 = vld [vmem:[%s790 + $0x250] sm:$0xff]
        %v1060 = vld [vmem:[%s790 + $0x258] sm:$0xff]
        %v1061 = vld [vmem:[%s790 + $0x260] sm:$0xff]
        %v1062 = vld [vmem:[%s790 + $0x268] sm:$0xff]
        %v1063 = vld [vmem:[%s790 + $0x270] sm:$0xff]
        %v1064 = vld [vmem:[%s790 + $0x278] sm:$0xff]
        %v1065 = vld [vmem:[%s790 + $0x280] sm:$0xff]
        %v1066 = vld [vmem:[%s790 + $0x288] sm:$0xff]
        %v1067 = vld [vmem:[%s790 + $0x290] sm:$0xff]
        %v1068 = vld [vmem:[%s790 + $0x298] sm:$0xff]
        %v1069 = vld [vmem:[%s790 + $0x2a0] sm:$0xff]
        %v1070 = vld [vmem:[%s790 + $0x2a8] sm:$0xff]
        %v1071 = vld [vmem:[%s790 + $0x2b0] sm:$0xff]
        %v1072 = vld [vmem:[%s790 + $0x2b8] sm:$0xff]
        %v1073 = vld [vmem:[%s790 + $0x2c0] sm:$0xff]
        %v1074 = vld [vmem:[%s790 + $0x2c8] sm:$0xff]
        %v1075 = vld [vmem:[%s790 + $0x2d0] sm:$0xff]
        %v1076 = vld [vmem:[%s790 + $0x2d8] sm:$0xff]
        %v1077 = vld [vmem:[%s790 + $0x2e0] sm:$0xff]
        %v1078 = vld [vmem:[%s790 + $0x2e8] sm:$0xff]
        %v1079 = vld [vmem:[%s790 + $0x2f0] sm:$0xff]
        %v1080 = vld [vmem:[%s790 + $0x2f8] sm:$0xff]
        %v1081 = vld [vmem:[%s790 + $0x300] sm:$0xff]
        %v1082 = vld [vmem:[%s790 + $0x308] sm:$0xff]
        %v1083 = vld [vmem:[%s790 + $0x310] sm:$0xff]
        %v1084 = vld [vmem:[%s790 + $0x318] sm:$0xff]
        %v1085 = vld [vmem:[%s790 + $0x320] sm:$0xff]
        %v1086 = vld [vmem:[%s790 + $0x328] sm:$0xff]
        %v1087 = vld [vmem:[%s790 + $0x330] sm:$0xff]
        %v1088 = vld [vmem:[%s790 + $0x338] sm:$0xff]
        %v1089 = vld [vmem:[%s790 + $0x340] sm:$0xff]
        %v1090 = vld [vmem:[%s790 + $0x348] sm:$0xff]
        %v1091 = vld [vmem:[%s790 + $0x350] sm:$0xff]
        %v1092 = vld [vmem:[%s790 + $0x358] sm:$0xff]
        %v1093 = vld [vmem:[%s790 + $0x360] sm:$0xff]
        %v1094 = vld [vmem:[%s790 + $0x368] sm:$0xff]
        %v1095 = vld [vmem:[%s790 + $0x370] sm:$0xff]
        %v1096 = vld [vmem:[%s790 + $0x378] sm:$0xff]
        %v1097 = vld [vmem:[%s790 + $0x380] sm:$0xff]
        %v1098 = vld [vmem:[%s790 + $0x388] sm:$0xff]
        %v1099 = vld [vmem:[%s790 + $0x390] sm:$0xff]
        %v1100 = vld [vmem:[%s790 + $0x398] sm:$0xff]
        %v1101 = vld [vmem:[%s790 + $0x3a0] sm:$0xff]
        %v1102 = vld [vmem:[%s790 + $0x3a8] sm:$0xff]
        %v1103 = vld [vmem:[%s790 + $0x3b0] sm:$0xff]
        %v1104 = vld [vmem:[%s790 + $0x3b8] sm:$0xff]
        %v1105 = vld [vmem:[%s790 + $0x3c0] sm:$0xff]
        %v1106 = vld [vmem:[%s790 + $0x3c8] sm:$0xff]
        %v1107 = vld [vmem:[%s790 + $0x3d0] sm:$0xff]
        %v1108 = vld [vmem:[%s790 + $0x3d8] sm:$0xff]
        %v1109 = vld [vmem:[%s790 + $0x3e0] sm:$0xff]
        %v1110 = vld [vmem:[%s790 + $0x3e8] sm:$0xff]
        %v1111 = vld [vmem:[%s790 + $0x3f0] sm:$0xff]
        %v1112 = vld [vmem:[%s790 + $0x3f8] sm:$0xff]
        %vm1113 = vcmp.gt.f32.partialorder %v857, 0.0
        %vm1114 = vcmp.gt.f32.partialorder %v858, 0.0
        %vm1115 = vcmp.gt.f32.partialorder %v859, 0.0
        %vm1116 = vcmp.gt.f32.partialorder %v860, 0.0
        %vm1117 = vcmp.gt.f32.partialorder %v861, 0.0
        %vm1118 = vcmp.gt.f32.partialorder %v862, 0.0
        %vm1119 = vcmp.gt.f32.partialorder %v863, 0.0
        %vm1120 = vcmp.gt.f32.partialorder %v864, 0.0
        %vm1121 = vcmp.gt.f32.partialorder %v865, 0.0
        %vm1122 = vcmp.gt.f32.partialorder %v866, 0.0
        %vm1123 = vcmp.gt.f32.partialorder %v867, 0.0
        %vm1124 = vcmp.gt.f32.partialorder %v868, 0.0
        %vm1125 = vcmp.gt.f32.partialorder %v869, 0.0
        %vm1126 = vcmp.gt.f32.partialorder %v870, 0.0
        %vm1127 = vcmp.gt.f32.partialorder %v871, 0.0
        %vm1128 = vcmp.gt.f32.partialorder %v872, 0.0
        %vm1129 = vcmp.gt.f32.partialorder %v873, 0.0
        %vm1130 = vcmp.gt.f32.partialorder %v874, 0.0
        %vm1131 = vcmp.gt.f32.partialorder %v875, 0.0
        %vm1132 = vcmp.gt.f32.partialorder %v876, 0.0
        %vm1133 = vcmp.gt.f32.partialorder %v877, 0.0
        %vm1134 = vcmp.gt.f32.partialorder %v878, 0.0
        %vm1135 = vcmp.gt.f32.partialorder %v879, 0.0
        %vm1136 = vcmp.gt.f32.partialorder %v880, 0.0
        %vm1137 = vcmp.gt.f32.partialorder %v881, 0.0
        %vm1138 = vcmp.gt.f32.partialorder %v882, 0.0
        %vm1139 = vcmp.gt.f32.partialorder %v883, 0.0
        %vm1140 = vcmp.gt.f32.partialorder %v884, 0.0
        %vm1141 = vcmp.gt.f32.partialorder %v885, 0.0
        %vm1142 = vcmp.gt.f32.partialorder %v886, 0.0
        %vm1143 = vcmp.gt.f32.partialorder %v887, 0.0
        %vm1144 = vcmp.gt.f32.partialorder %v888, 0.0
        %vm1145 = vcmp.gt.f32.partialorder %v889, 0.0
        %vm1146 = vcmp.gt.f32.partialorder %v890, 0.0
        %vm1147 = vcmp.gt.f32.partialorder %v891, 0.0
        %vm1148 = vcmp.gt.f32.partialorder %v892, 0.0
        %vm1149 = vcmp.gt.f32.partialorder %v893, 0.0
        %vm1150 = vcmp.gt.f32.partialorder %v894, 0.0
        %vm1151 = vcmp.gt.f32.partialorder %v895, 0.0
        %vm1152 = vcmp.gt.f32.partialorder %v896, 0.0
        %vm1153 = vcmp.gt.f32.partialorder %v897, 0.0
        %vm1154 = vcmp.gt.f32.partialorder %v898, 0.0
        %vm1155 = vcmp.gt.f32.partialorder %v899, 0.0
        %vm1156 = vcmp.gt.f32.partialorder %v900, 0.0
        %vm1157 = vcmp.gt.f32.partialorder %v901, 0.0
        %vm1158 = vcmp.gt.f32.partialorder %v902, 0.0
        %vm1159 = vcmp.gt.f32.partialorder %v903, 0.0
        %vm1160 = vcmp.gt.f32.partialorder %v904, 0.0
        %vm1161 = vcmp.gt.f32.partialorder %v905, 0.0
        %vm1162 = vcmp.gt.f32.partialorder %v906, 0.0
        %vm1163 = vcmp.gt.f32.partialorder %v907, 0.0
        %vm1164 = vcmp.gt.f32.partialorder %v908, 0.0
        %vm1165 = vcmp.gt.f32.partialorder %v909, 0.0
        %vm1166 = vcmp.gt.f32.partialorder %v910, 0.0
        %vm1167 = vcmp.gt.f32.partialorder %v911, 0.0
        %vm1168 = vcmp.gt.f32.partialorder %v912, 0.0
        %vm1169 = vcmp.gt.f32.partialorder %v913, 0.0
        %vm1170 = vcmp.gt.f32.partialorder %v914, 0.0
        %vm1171 = vcmp.gt.f32.partialorder %v915, 0.0
        %vm1172 = vcmp.gt.f32.partialorder %v916, 0.0
        %vm1173 = vcmp.gt.f32.partialorder %v917, 0.0
        %vm1174 = vcmp.gt.f32.partialorder %v918, 0.0
        %vm1175 = vcmp.gt.f32.partialorder %v919, 0.0
        %vm1176 = vcmp.gt.f32.partialorder %v920, 0.0
        %vm1177 = vcmp.gt.f32.partialorder %v921, 0.0
        %vm1178 = vcmp.gt.f32.partialorder %v922, 0.0
        %vm1179 = vcmp.gt.f32.partialorder %v923, 0.0
        %vm1180 = vcmp.gt.f32.partialorder %v924, 0.0
        %vm1181 = vcmp.gt.f32.partialorder %v925, 0.0
        %vm1182 = vcmp.gt.f32.partialorder %v926, 0.0
        %vm1183 = vcmp.gt.f32.partialorder %v927, 0.0
        %vm1184 = vcmp.gt.f32.partialorder %v928, 0.0
        %vm1185 = vcmp.gt.f32.partialorder %v929, 0.0
        %vm1186 = vcmp.gt.f32.partialorder %v930, 0.0
        %vm1187 = vcmp.gt.f32.partialorder %v931, 0.0
        %vm1188 = vcmp.gt.f32.partialorder %v932, 0.0
        %vm1189 = vcmp.gt.f32.partialorder %v933, 0.0
        %vm1190 = vcmp.gt.f32.partialorder %v934, 0.0
        %vm1191 = vcmp.gt.f32.partialorder %v935, 0.0
        %vm1192 = vcmp.gt.f32.partialorder %v936, 0.0
        %vm1193 = vcmp.gt.f32.partialorder %v937, 0.0
        %vm1194 = vcmp.gt.f32.partialorder %v938, 0.0
        %vm1195 = vcmp.gt.f32.partialorder %v939, 0.0
        %vm1196 = vcmp.gt.f32.partialorder %v940, 0.0
        %vm1197 = vcmp.gt.f32.partialorder %v941, 0.0
        %vm1198 = vcmp.gt.f32.partialorder %v942, 0.0
        %vm1199 = vcmp.gt.f32.partialorder %v943, 0.0
        %vm1200 = vcmp.gt.f32.partialorder %v944, 0.0
        %vm1201 = vcmp.gt.f32.partialorder %v945, 0.0
        %vm1202 = vcmp.gt.f32.partialorder %v946, 0.0
        %vm1203 = vcmp.gt.f32.partialorder %v947, 0.0
        %vm1204 = vcmp.gt.f32.partialorder %v948, 0.0
        %vm1205 = vcmp.gt.f32.partialorder %v949, 0.0
        %vm1206 = vcmp.gt.f32.partialorder %v950, 0.0
        %vm1207 = vcmp.gt.f32.partialorder %v951, 0.0
        %vm1208 = vcmp.gt.f32.partialorder %v952, 0.0
        %vm1209 = vcmp.gt.f32.partialorder %v953, 0.0
        %vm1210 = vcmp.gt.f32.partialorder %v954, 0.0
        %vm1211 = vcmp.gt.f32.partialorder %v955, 0.0
        %vm1212 = vcmp.gt.f32.partialorder %v956, 0.0
        %vm1213 = vcmp.gt.f32.partialorder %v957, 0.0
        %vm1214 = vcmp.gt.f32.partialorder %v958, 0.0
        %vm1215 = vcmp.gt.f32.partialorder %v959, 0.0
        %vm1216 = vcmp.gt.f32.partialorder %v960, 0.0
        %vm1217 = vcmp.gt.f32.partialorder %v961, 0.0
        %vm1218 = vcmp.gt.f32.partialorder %v962, 0.0
        %vm1219 = vcmp.gt.f32.partialorder %v963, 0.0
        %vm1220 = vcmp.gt.f32.partialorder %v964, 0.0
        %vm1221 = vcmp.gt.f32.partialorder %v965, 0.0
        %vm1222 = vcmp.gt.f32.partialorder %v966, 0.0
        %vm1223 = vcmp.gt.f32.partialorder %v967, 0.0
        %vm1224 = vcmp.gt.f32.partialorder %v968, 0.0
        %vm1225 = vcmp.gt.f32.partialorder %v969, 0.0
        %vm1226 = vcmp.gt.f32.partialorder %v970, 0.0
        %vm1227 = vcmp.gt.f32.partialorder %v971, 0.0
        %vm1228 = vcmp.gt.f32.partialorder %v972, 0.0
        %vm1229 = vcmp.gt.f32.partialorder %v973, 0.0
        %vm1230 = vcmp.gt.f32.partialorder %v974, 0.0
        %vm1231 = vcmp.gt.f32.partialorder %v975, 0.0
        %vm1232 = vcmp.gt.f32.partialorder %v976, 0.0
        %vm1233 = vcmp.gt.f32.partialorder %v977, 0.0
        %vm1234 = vcmp.gt.f32.partialorder %v978, 0.0
        %vm1235 = vcmp.gt.f32.partialorder %v979, 0.0
        %vm1236 = vcmp.gt.f32.partialorder %v980, 0.0
        %vm1237 = vcmp.gt.f32.partialorder %v981, 0.0
        %vm1238 = vcmp.gt.f32.partialorder %v982, 0.0
        %vm1239 = vcmp.gt.f32.partialorder %v983, 0.0
        %vm1240 = vcmp.gt.f32.partialorder %v984, 0.0
        %vm1241 = vcmp.gt.f32.partialorder %v985, 0.0
        %vm1242 = vcmp.gt.f32.partialorder %v986, 0.0
        %vm1243 = vcmp.gt.f32.partialorder %v987, 0.0
        %vm1244 = vcmp.gt.f32.partialorder %v988, 0.0
        %vm1245 = vcmp.gt.f32.partialorder %v989, 0.0
        %vm1246 = vcmp.gt.f32.partialorder %v990, 0.0
        %vm1247 = vcmp.gt.f32.partialorder %v991, 0.0
        %vm1248 = vcmp.gt.f32.partialorder %v992, 0.0
        %vm1249 = vcmp.gt.f32.partialorder %v993, 0.0
        %vm1250 = vcmp.gt.f32.partialorder %v994, 0.0
        %vm1251 = vcmp.gt.f32.partialorder %v995, 0.0
        %vm1252 = vcmp.gt.f32.partialorder %v996, 0.0
        %vm1253 = vcmp.gt.f32.partialorder %v997, 0.0
        %vm1254 = vcmp.gt.f32.partialorder %v998, 0.0
        %vm1255 = vcmp.gt.f32.partialorder %v999, 0.0
        %vm1256 = vcmp.gt.f32.partialorder %v1000, 0.0
        %vm1257 = vcmp.gt.f32.partialorder %v1001, 0.0
        %vm1258 = vcmp.gt.f32.partialorder %v1002, 0.0
        %vm1259 = vcmp.gt.f32.partialorder %v1003, 0.0
        %vm1260 = vcmp.gt.f32.partialorder %v1004, 0.0
        %vm1261 = vcmp.gt.f32.partialorder %v1005, 0.0
        %vm1262 = vcmp.gt.f32.partialorder %v1006, 0.0
        %vm1263 = vcmp.gt.f32.partialorder %v1007, 0.0
        %vm1264 = vcmp.gt.f32.partialorder %v1008, 0.0
        %vm1265 = vcmp.gt.f32.partialorder %v1009, 0.0
        %vm1266 = vcmp.gt.f32.partialorder %v1010, 0.0
        %vm1267 = vcmp.gt.f32.partialorder %v1011, 0.0
        %vm1268 = vcmp.gt.f32.partialorder %v1012, 0.0
        %vm1269 = vcmp.gt.f32.partialorder %v1013, 0.0
        %vm1270 = vcmp.gt.f32.partialorder %v1014, 0.0
        %vm1271 = vcmp.gt.f32.partialorder %v1015, 0.0
        %vm1272 = vcmp.gt.f32.partialorder %v1016, 0.0
        %vm1273 = vcmp.gt.f32.partialorder %v1017, 0.0
        %vm1274 = vcmp.gt.f32.partialorder %v1018, 0.0
        %vm1275 = vcmp.gt.f32.partialorder %v1019, 0.0
        %vm1276 = vcmp.gt.f32.partialorder %v1020, 0.0
        %vm1277 = vcmp.gt.f32.partialorder %v1021, 0.0
        %vm1278 = vcmp.gt.f32.partialorder %v1022, 0.0
        %vm1279 = vcmp.gt.f32.partialorder %v1023, 0.0
        %vm1280 = vcmp.gt.f32.partialorder %v1024, 0.0
        %vm1281 = vcmp.gt.f32.partialorder %v1025, 0.0
        %vm1282 = vcmp.gt.f32.partialorder %v1026, 0.0
        %vm1283 = vcmp.gt.f32.partialorder %v1027, 0.0
        %vm1284 = vcmp.gt.f32.partialorder %v1028, 0.0
        %vm1285 = vcmp.gt.f32.partialorder %v1029, 0.0
        %vm1286 = vcmp.gt.f32.partialorder %v1030, 0.0
        %vm1287 = vcmp.gt.f32.partialorder %v1031, 0.0
        %vm1288 = vcmp.gt.f32.partialorder %v1032, 0.0
        %vm1289 = vcmp.gt.f32.partialorder %v1033, 0.0
        %vm1290 = vcmp.gt.f32.partialorder %v1034, 0.0
        %vm1291 = vcmp.gt.f32.partialorder %v1035, 0.0
        %vm1292 = vcmp.gt.f32.partialorder %v1036, 0.0
        %vm1293 = vcmp.gt.f32.partialorder %v1037, 0.0
        %vm1294 = vcmp.gt.f32.partialorder %v1038, 0.0
        %vm1295 = vcmp.gt.f32.partialorder %v1039, 0.0
        %vm1296 = vcmp.gt.f32.partialorder %v1040, 0.0
        %vm1297 = vcmp.gt.f32.partialorder %v1041, 0.0
        %vm1298 = vcmp.gt.f32.partialorder %v1042, 0.0
        %vm1299 = vcmp.gt.f32.partialorder %v1043, 0.0
        %vm1300 = vcmp.gt.f32.partialorder %v1044, 0.0
        %vm1301 = vcmp.gt.f32.partialorder %v1045, 0.0
        %vm1302 = vcmp.gt.f32.partialorder %v1046, 0.0
        %vm1303 = vcmp.gt.f32.partialorder %v1047, 0.0
        %vm1304 = vcmp.gt.f32.partialorder %v1048, 0.0
        %vm1305 = vcmp.gt.f32.partialorder %v1049, 0.0
        %vm1306 = vcmp.gt.f32.partialorder %v1050, 0.0
        %vm1307 = vcmp.gt.f32.partialorder %v1051, 0.0
        %vm1308 = vcmp.gt.f32.partialorder %v1052, 0.0
        %vm1309 = vcmp.gt.f32.partialorder %v1053, 0.0
        %vm1310 = vcmp.gt.f32.partialorder %v1054, 0.0
        %vm1311 = vcmp.gt.f32.partialorder %v1055, 0.0
        %vm1312 = vcmp.gt.f32.partialorder %v1056, 0.0
        %vm1313 = vcmp.gt.f32.partialorder %v1057, 0.0
        %vm1314 = vcmp.gt.f32.partialorder %v1058, 0.0
        %vm1315 = vcmp.gt.f32.partialorder %v1059, 0.0
        %vm1316 = vcmp.gt.f32.partialorder %v1060, 0.0
        %vm1317 = vcmp.gt.f32.partialorder %v1061, 0.0
        %vm1318 = vcmp.gt.f32.partialorder %v1062, 0.0
        %vm1319 = vcmp.gt.f32.partialorder %v1063, 0.0
        %vm1320 = vcmp.gt.f32.partialorder %v1064, 0.0
        %vm1321 = vcmp.gt.f32.partialorder %v1065, 0.0
        %vm1322 = vcmp.gt.f32.partialorder %v1066, 0.0
        %vm1323 = vcmp.gt.f32.partialorder %v1067, 0.0
        %vm1324 = vcmp.gt.f32.partialorder %v1068, 0.0
        %vm1325 = vcmp.gt.f32.partialorder %v1069, 0.0
        %vm1326 = vcmp.gt.f32.partialorder %v1070, 0.0
        %vm1327 = vcmp.gt.f32.partialorder %v1071, 0.0
        %vm1328 = vcmp.gt.f32.partialorder %v1072, 0.0
        %vm1329 = vcmp.gt.f32.partialorder %v1073, 0.0
        %vm1330 = vcmp.gt.f32.partialorder %v1074, 0.0
        %vm1331 = vcmp.gt.f32.partialorder %v1075, 0.0
        %vm1332 = vcmp.gt.f32.partialorder %v1076, 0.0
        %vm1333 = vcmp.gt.f32.partialorder %v1077, 0.0
        %vm1334 = vcmp.gt.f32.partialorder %v1078, 0.0
        %vm1335 = vcmp.gt.f32.partialorder %v1079, 0.0
        %vm1336 = vcmp.gt.f32.partialorder %v1080, 0.0
        %vm1337 = vcmp.gt.f32.partialorder %v1081, 0.0
        %vm1338 = vcmp.gt.f32.partialorder %v1082, 0.0
        %vm1339 = vcmp.gt.f32.partialorder %v1083, 0.0
        %vm1340 = vcmp.gt.f32.partialorder %v1084, 0.0
        %vm1341 = vcmp.gt.f32.partialorder %v1085, 0.0
        %vm1342 = vcmp.gt.f32.partialorder %v1086, 0.0
        %vm1343 = vcmp.gt.f32.partialorder %v1087, 0.0
        %vm1344 = vcmp.gt.f32.partialorder %v1088, 0.0
        %vm1345 = vcmp.gt.f32.partialorder %v1089, 0.0
        %vm1346 = vcmp.gt.f32.partialorder %v1090, 0.0
        %vm1347 = vcmp.gt.f32.partialorder %v1091, 0.0
        %vm1348 = vcmp.gt.f32.partialorder %v1092, 0.0
        %vm1349 = vcmp.gt.f32.partialorder %v1093, 0.0
        %vm1350 = vcmp.gt.f32.partialorder %v1094, 0.0
        %vm1351 = vcmp.gt.f32.partialorder %v1095, 0.0
        %vm1352 = vcmp.gt.f32.partialorder %v1096, 0.0
        %vm1353 = vcmp.gt.f32.partialorder %v1097, 0.0
        %vm1354 = vcmp.gt.f32.partialorder %v1098, 0.0
        %vm1355 = vcmp.gt.f32.partialorder %v1099, 0.0
        %vm1356 = vcmp.gt.f32.partialorder %v1100, 0.0
        %vm1357 = vcmp.gt.f32.partialorder %v1101, 0.0
        %vm1358 = vcmp.gt.f32.partialorder %v1102, 0.0
        %vm1359 = vcmp.gt.f32.partialorder %v1103, 0.0
        %vm1360 = vcmp.gt.f32.partialorder %v1104, 0.0
        %vm1361 = vcmp.gt.f32.partialorder %v1105, 0.0
        %vm1362 = vcmp.gt.f32.partialorder %v1106, 0.0
        %vm1363 = vcmp.gt.f32.partialorder %v1107, 0.0
        %vm1364 = vcmp.gt.f32.partialorder %v1108, 0.0
        %vm1365 = vcmp.gt.f32.partialorder %v1109, 0.0
        %vm1366 = vcmp.gt.f32.partialorder %v1110, 0.0
        %vm1367 = vcmp.gt.f32.partialorder %v1111, 0.0
        %vm1368 = vcmp.gt.f32.partialorder %v1112, 0.0
        %vm1369 = vmxor %vm1113, %vm1241
        %vm1370 = vmxor %vm1114, %vm1242
        %vm1371 = vmxor %vm1115, %vm1243
        %vm1372 = vmxor %vm1116, %vm1244
        %vm1373 = vmxor %vm1117, %vm1245
        %vm1374 = vmxor %vm1118, %vm1246
        %vm1375 = vmxor %vm1119, %vm1247
        %vm1376 = vmxor %vm1120, %vm1248
        %vm1377 = vmxor %vm1121, %vm1249
        %vm1378 = vmxor %vm1122, %vm1250
        %vm1379 = vmxor %vm1123, %vm1251
        %vm1380 = vmxor %vm1124, %vm1252
        %vm1381 = vmxor %vm1125, %vm1253
        %vm1382 = vmxor %vm1126, %vm1254
        %vm1383 = vmxor %vm1127, %vm1255
        %vm1384 = vmxor %vm1128, %vm1256
        %vm1385 = vmxor %vm1129, %vm1257
        %vm1386 = vmxor %vm1130, %vm1258
        %vm1387 = vmxor %vm1131, %vm1259
        %vm1388 = vmxor %vm1132, %vm1260
        %vm1389 = vmxor %vm1133, %vm1261
        %vm1390 = vmxor %vm1134, %vm1262
        %vm1391 = vmxor %vm1135, %vm1263
        %vm1392 = vmxor %vm1136, %vm1264
        %vm1393 = vmxor %vm1137, %vm1265
        %vm1394 = vmxor %vm1138, %vm1266
        %vm1395 = vmxor %vm1139, %vm1267
        %vm1396 = vmxor %vm1140, %vm1268
        %vm1397 = vmxor %vm1141, %vm1269
        %vm1398 = vmxor %vm1142, %vm1270
        %vm1399 = vmxor %vm1143, %vm1271
        %vm1400 = vmxor %vm1144, %vm1272
        %vm1401 = vmxor %vm1145, %vm1273
        %vm1402 = vmxor %vm1146, %vm1274
        %vm1403 = vmxor %vm1147, %vm1275
        %vm1404 = vmxor %vm1148, %vm1276
        %vm1405 = vmxor %vm1149, %vm1277
        %vm1406 = vmxor %vm1150, %vm1278
        %vm1407 = vmxor %vm1151, %vm1279
        %vm1408 = vmxor %vm1152, %vm1280
        %vm1409 = vmxor %vm1153, %vm1281
        %vm1410 = vmxor %vm1154, %vm1282
        %vm1411 = vmxor %vm1155, %vm1283
        %vm1412 = vmxor %vm1156, %vm1284
        %vm1413 = vmxor %vm1157, %vm1285
        %vm1414 = vmxor %vm1158, %vm1286
        %vm1415 = vmxor %vm1159, %vm1287
        %vm1416 = vmxor %vm1160, %vm1288
        %vm1417 = vmxor %vm1161, %vm1289
        %vm1418 = vmxor %vm1162, %vm1290
        %vm1419 = vmxor %vm1163, %vm1291
        %vm1420 = vmxor %vm1164, %vm1292
        %vm1421 = vmxor %vm1165, %vm1293
        %vm1422 = vmxor %vm1166, %vm1294
        %vm1423 = vmxor %vm1167, %vm1295
        %vm1424 = vmxor %vm1168, %vm1296
        %vm1425 = vmxor %vm1169, %vm1297
        %vm1426 = vmxor %vm1170, %vm1298
        %vm1427 = vmxor %vm1171, %vm1299
        %vm1428 = vmxor %vm1172, %vm1300
        %vm1429 = vmxor %vm1173, %vm1301
        %vm1430 = vmxor %vm1174, %vm1302
        %vm1431 = vmxor %vm1175, %vm1303
        %vm1432 = vmxor %vm1176, %vm1304
        %vm1433 = vmxor %vm1177, %vm1305
        %vm1434 = vmxor %vm1178, %vm1306
        %vm1435 = vmxor %vm1179, %vm1307
        %vm1436 = vmxor %vm1180, %vm1308
        %vm1437 = vmxor %vm1181, %vm1309
        %vm1438 = vmxor %vm1182, %vm1310
        %vm1439 = vmxor %vm1183, %vm1311
        %vm1440 = vmxor %vm1184, %vm1312
        %vm1441 = vmxor %vm1185, %vm1313
        %vm1442 = vmxor %vm1186, %vm1314
        %vm1443 = vmxor %vm1187, %vm1315
        %vm1444 = vmxor %vm1188, %vm1316
        %vm1445 = vmxor %vm1189, %vm1317
        %vm1446 = vmxor %vm1190, %vm1318
        %vm1447 = vmxor %vm1191, %vm1319
        %vm1448 = vmxor %vm1192, %vm1320
        %vm1449 = vmxor %vm1193, %vm1321
        %vm1450 = vmxor %vm1194, %vm1322
        %vm1451 = vmxor %vm1195, %vm1323
        %vm1452 = vmxor %vm1196, %vm1324
        %vm1453 = vmxor %vm1197, %vm1325
        %vm1454 = vmxor %vm1198, %vm1326
        %vm1455 = vmxor %vm1199, %vm1327
        %vm1456 = vmxor %vm1200, %vm1328
        %vm1457 = vmxor %vm1201, %vm1329
        %vm1458 = vmxor %vm1202, %vm1330
        %vm1459 = vmxor %vm1203, %vm1331
        %vm1460 = vmxor %vm1204, %vm1332
        %vm1461 = vmxor %vm1205, %vm1333
        %vm1462 = vmxor %vm1206, %vm1334
        %vm1463 = vmxor %vm1207, %vm1335
        %vm1464 = vmxor %vm1208, %vm1336
        %vm1465 = vmxor %vm1209, %vm1337
        %vm1466 = vmxor %vm1210, %vm1338
        %vm1467 = vmxor %vm1211, %vm1339
        %vm1468 = vmxor %vm1212, %vm1340
        %vm1469 = vmxor %vm1213, %vm1341
        %vm1470 = vmxor %vm1214, %vm1342
        %vm1471 = vmxor %vm1215, %vm1343
        %vm1472 = vmxor %vm1216, %vm1344
        %vm1473 = vmxor %vm1217, %vm1345
        %vm1474 = vmxor %vm1218, %vm1346
        %vm1475 = vmxor %vm1219, %vm1347
        %vm1476 = vmxor %vm1220, %vm1348
        %vm1477 = vmxor %vm1221, %vm1349
        %vm1478 = vmxor %vm1222, %vm1350
        %vm1479 = vmxor %vm1223, %vm1351
        %vm1480 = vmxor %vm1224, %vm1352
        %vm1481 = vmxor %vm1225, %vm1353
        %vm1482 = vmxor %vm1226, %vm1354
        %vm1483 = vmxor %vm1227, %vm1355
        %vm1484 = vmxor %vm1228, %vm1356
        %vm1485 = vmxor %vm1229, %vm1357
        %vm1486 = vmxor %vm1230, %vm1358
        %vm1487 = vmxor %vm1231, %vm1359
        %vm1488 = vmxor %vm1232, %vm1360
        %vm1489 = vmxor %vm1233, %vm1361
        %vm1490 = vmxor %vm1234, %vm1362
        %vm1491 = vmxor %vm1235, %vm1363
        %vm1492 = vmxor %vm1236, %vm1364
        %vm1493 = vmxor %vm1237, %vm1365
        %vm1494 = vmxor %vm1238, %vm1366
        %vm1495 = vmxor %vm1239, %vm1367
        %vm1496 = vmxor %vm1240, %vm1368
        %v1497 = vadd.f32 %v857, %v857
        %v1498 = vadd.f32 %v858, %v858
        %v1499 = vadd.f32 %v859, %v859
        %v1500 = vadd.f32 %v860, %v860
        %v1501 = vadd.f32 %v861, %v861
        %v1502 = vadd.f32 %v862, %v862
        %v1503 = vadd.f32 %v863, %v863
        %v1504 = vadd.f32 %v864, %v864
        %v1505 = vadd.f32 %v865, %v865
        %v1506 = vadd.f32 %v866, %v866
        %v1507 = vadd.f32 %v867, %v867
        %v1508 = vadd.f32 %v868, %v868
        %v1509 = vadd.f32 %v869, %v869
        %v1510 = vadd.f32 %v870, %v870
        %v1511 = vadd.f32 %v871, %v871
        %v1512 = vadd.f32 %v872, %v872
        %v1513 = vadd.f32 %v873, %v873
        %v1514 = vadd.f32 %v874, %v874
        %v1515 = vadd.f32 %v875, %v875
        %v1516 = vadd.f32 %v876, %v876
        %v1517 = vadd.f32 %v877, %v877
        %v1518 = vadd.f32 %v878, %v878
        %v1519 = vadd.f32 %v879, %v879
        %v1520 = vadd.f32 %v880, %v880
        %v1521 = vadd.f32 %v881, %v881
        %v1522 = vadd.f32 %v882, %v882
        %v1523 = vadd.f32 %v883, %v883
        %v1524 = vadd.f32 %v884, %v884
        %v1525 = vadd.f32 %v885, %v885
        %v1526 = vadd.f32 %v886, %v886
        %v1527 = vadd.f32 %v887, %v887
        %v1528 = vadd.f32 %v888, %v888
        %v1529 = vadd.f32 %v889, %v889
        %v1530 = vadd.f32 %v890, %v890
        %v1531 = vadd.f32 %v891, %v891
        %v1532 = vadd.f32 %v892, %v892
        %v1533 = vadd.f32 %v893, %v893
        %v1534 = vadd.f32 %v894, %v894
        %v1535 = vadd.f32 %v895, %v895
        %v1536 = vadd.f32 %v896, %v896
        %v1537 = vadd.f32 %v897, %v897
        %v1538 = vadd.f32 %v898, %v898
        %v1539 = vadd.f32 %v899, %v899
        %v1540 = vadd.f32 %v900, %v900
        %v1541 = vadd.f32 %v901, %v901
        %v1542 = vadd.f32 %v902, %v902
        %v1543 = vadd.f32 %v903, %v903
        %v1544 = vadd.f32 %v904, %v904
        %v1545 = vadd.f32 %v905, %v905
        %v1546 = vadd.f32 %v906, %v906
        %v1547 = vadd.f32 %v907, %v907
        %v1548 = vadd.f32 %v908, %v908
        %v1549 = vadd.f32 %v909, %v909
        %v1550 = vadd.f32 %v910, %v910
        %v1551 = vadd.f32 %v911, %v911
        %v1552 = vadd.f32 %v912, %v912
        %v1553 = vadd.f32 %v913, %v913
        %v1554 = vadd.f32 %v914, %v914
        %v1555 = vadd.f32 %v915, %v915
        %v1556 = vadd.f32 %v916, %v916
        %v1557 = vadd.f32 %v917, %v917
        %v1558 = vadd.f32 %v918, %v918
        %v1559 = vadd.f32 %v919, %v919
        %v1560 = vadd.f32 %v920, %v920
        %v1561 = vadd.f32 %v921, %v921
        %v1562 = vadd.f32 %v922, %v922
        %v1563 = vadd.f32 %v923, %v923
        %v1564 = vadd.f32 %v924, %v924
        %v1565 = vadd.f32 %v925, %v925
        %v1566 = vadd.f32 %v926, %v926
        %v1567 = vadd.f32 %v927, %v927
        %v1568 = vadd.f32 %v928, %v928
        %v1569 = vadd.f32 %v929, %v929
        %v1570 = vadd.f32 %v930, %v930
        %v1571 = vadd.f32 %v931, %v931
        %v1572 = vadd.f32 %v932, %v932
        %v1573 = vadd.f32 %v933, %v933
        %v1574 = vadd.f32 %v934, %v934
        %v1575 = vadd.f32 %v935, %v935
        %v1576 = vadd.f32 %v936, %v936
        %v1577 = vadd.f32 %v937, %v937
        %v1578 = vadd.f32 %v938, %v938
        %v1579 = vadd.f32 %v939, %v939
        %v1580 = vadd.f32 %v940, %v940
        %v1581 = vadd.f32 %v941, %v941
        %v1582 = vadd.f32 %v942, %v942
        %v1583 = vadd.f32 %v943, %v943
        %v1584 = vadd.f32 %v944, %v944
        %v1585 = vadd.f32 %v945, %v945
        %v1586 = vadd.f32 %v946, %v946
        %v1587 = vadd.f32 %v947, %v947
        %v1588 = vadd.f32 %v948, %v948
        %v1589 = vadd.f32 %v949, %v949
        %v1590 = vadd.f32 %v950, %v950
        %v1591 = vadd.f32 %v951, %v951
        %v1592 = vadd.f32 %v952, %v952
        %v1593 = vadd.f32 %v953, %v953
        %v1594 = vadd.f32 %v954, %v954
        %v1595 = vadd.f32 %v955, %v955
        %v1596 = vadd.f32 %v956, %v956
        %v1597 = vadd.f32 %v957, %v957
        %v1598 = vadd.f32 %v958, %v958
        %v1599 = vadd.f32 %v959, %v959
        %v1600 = vadd.f32 %v960, %v960
        %v1601 = vadd.f32 %v961, %v961
        %v1602 = vadd.f32 %v962, %v962
        %v1603 = vadd.f32 %v963, %v963
        %v1604 = vadd.f32 %v964, %v964
        %v1605 = vadd.f32 %v965, %v965
        %v1606 = vadd.f32 %v966, %v966
        %v1607 = vadd.f32 %v967, %v967
        %v1608 = vadd.f32 %v968, %v968
        %v1609 = vadd.f32 %v969, %v969
        %v1610 = vadd.f32 %v970, %v970
        %v1611 = vadd.f32 %v971, %v971
        %v1612 = vadd.f32 %v972, %v972
        %v1613 = vadd.f32 %v973, %v973
        %v1614 = vadd.f32 %v974, %v974
        %v1615 = vadd.f32 %v975, %v975
        %v1616 = vadd.f32 %v976, %v976
        %v1617 = vadd.f32 %v977, %v977
        %v1618 = vadd.f32 %v978, %v978
        %v1619 = vadd.f32 %v979, %v979
        %v1620 = vadd.f32 %v980, %v980
        %v1621 = vadd.f32 %v981, %v981
        %v1622 = vadd.f32 %v982, %v982
        %v1623 = vadd.f32 %v983, %v983
        %v1624 = vadd.f32 %v984, %v984
        %v1625 = vsel %vm1369, %v1497, %v857
        %v1626 = vsel %vm1370, %v1498, %v858
        %v1627 = vsel %vm1371, %v1499, %v859
        %v1628 = vsel %vm1372, %v1500, %v860
        %v1629 = vsel %vm1373, %v1501, %v861
        %v1630 = vsel %vm1374, %v1502, %v862
        %v1631 = vsel %vm1375, %v1503, %v863
        %v1632 = vsel %vm1376, %v1504, %v864
        %v1633 = vsel %vm1377, %v1505, %v865
        %v1634 = vsel %vm1378, %v1506, %v866
        %v1635 = vsel %vm1379, %v1507, %v867
        %v1636 = vsel %vm1380, %v1508, %v868
        %v1637 = vsel %vm1381, %v1509, %v869
        %v1638 = vsel %vm1382, %v1510, %v870
        %v1639 = vsel %vm1383, %v1511, %v871
        %v1640 = vsel %vm1384, %v1512, %v872
        %v1641 = vsel %vm1385, %v1513, %v873
        %v1642 = vsel %vm1386, %v1514, %v874
        %v1643 = vsel %vm1387, %v1515, %v875
        %v1644 = vsel %vm1388, %v1516, %v876
        %v1645 = vsel %vm1389, %v1517, %v877
        %v1646 = vsel %vm1390, %v1518, %v878
        %v1647 = vsel %vm1391, %v1519, %v879
        %v1648 = vsel %vm1392, %v1520, %v880
        %v1649 = vsel %vm1393, %v1521, %v881
        %v1650 = vsel %vm1394, %v1522, %v882
        %v1651 = vsel %vm1395, %v1523, %v883
        %v1652 = vsel %vm1396, %v1524, %v884
        %v1653 = vsel %vm1397, %v1525, %v885
        %v1654 = vsel %vm1398, %v1526, %v886
        %v1655 = vsel %vm1399, %v1527, %v887
        %v1656 = vsel %vm1400, %v1528, %v888
        %v1657 = vsel %vm1401, %v1529, %v889
        %v1658 = vsel %vm1402, %v1530, %v890
        %v1659 = vsel %vm1403, %v1531, %v891
        %v1660 = vsel %vm1404, %v1532, %v892
        %v1661 = vsel %vm1405, %v1533, %v893
        %v1662 = vsel %vm1406, %v1534, %v894
        %v1663 = vsel %vm1407, %v1535, %v895
        %v1664 = vsel %vm1408, %v1536, %v896
        %v1665 = vsel %vm1409, %v1537, %v897
        %v1666 = vsel %vm1410, %v1538, %v898
        %v1667 = vsel %vm1411, %v1539, %v899
        %v1668 = vsel %vm1412, %v1540, %v900
        %v1669 = vsel %vm1413, %v1541, %v901
        %v1670 = vsel %vm1414, %v1542, %v902
        %v1671 = vsel %vm1415, %v1543, %v903
        %v1672 = vsel %vm1416, %v1544, %v904
        %v1673 = vsel %vm1417, %v1545, %v905
        %v1674 = vsel %vm1418, %v1546, %v906
        %v1675 = vsel %vm1419, %v1547, %v907
        %v1676 = vsel %vm1420, %v1548, %v908
        %v1677 = vsel %vm1421, %v1549, %v909
        %v1678 = vsel %vm1422, %v1550, %v910
        %v1679 = vsel %vm1423, %v1551, %v911
        %v1680 = vsel %vm1424, %v1552, %v912
        %v1681 = vsel %vm1425, %v1553, %v913
        %v1682 = vsel %vm1426, %v1554, %v914
        %v1683 = vsel %vm1427, %v1555, %v915
        %v1684 = vsel %vm1428, %v1556, %v916
        %v1685 = vsel %vm1429, %v1557, %v917
        %v1686 = vsel %vm1430, %v1558, %v918
        %v1687 = vsel %vm1431, %v1559, %v919
        %v1688 = vsel %vm1432, %v1560, %v920
        %v1689 = vsel %vm1433, %v1561, %v921
        %v1690 = vsel %vm1434, %v1562, %v922
        %v1691 = vsel %vm1435, %v1563, %v923
        %v1692 = vsel %vm1436, %v1564, %v924
        %v1693 = vsel %vm1437, %v1565, %v925
        %v1694 = vsel %vm1438, %v1566, %v926
        %v1695 = vsel %vm1439, %v1567, %v927
        %v1696 = vsel %vm1440, %v1568, %v928
        %v1697 = vsel %vm1441, %v1569, %v929
        %v1698 = vsel %vm1442, %v1570, %v930
        %v1699 = vsel %vm1443, %v1571, %v931
        %v1700 = vsel %vm1444, %v1572, %v932
        %v1701 = vsel %vm1445, %v1573, %v933
        %v1702 = vsel %vm1446, %v1574, %v934
        %v1703 = vsel %vm1447, %v1575, %v935
        %v1704 = vsel %vm1448, %v1576, %v936
        %v1705 = vsel %vm1449, %v1577, %v937
        %v1706 = vsel %vm1450, %v1578, %v938
        %v1707 = vsel %vm1451, %v1579, %v939
        %v1708 = vsel %vm1452, %v1580, %v940
        %v1709 = vsel %vm1453, %v1581, %v941
        %v1710 = vsel %vm1454, %v1582, %v942
        %v1711 = vsel %vm1455, %v1583, %v943
        %v1712 = vsel %vm1456, %v1584, %v944
        %v1713 = vsel %vm1457, %v1585, %v945
        %v1714 = vsel %vm1458, %v1586, %v946
        %v1715 = vsel %vm1459, %v1587, %v947
        %v1716 = vsel %vm1460, %v1588, %v948
        %v1717 = vsel %vm1461, %v1589, %v949
        %v1718 = vsel %vm1462, %v1590, %v950
        %v1719 = vsel %vm1463, %v1591, %v951
        %v1720 = vsel %vm1464, %v1592, %v952
        %v1721 = vsel %vm1465, %v1593, %v953
        %v1722 = vsel %vm1466, %v1594, %v954
        %v1723 = vsel %vm1467, %v1595, %v955
        %v1724 = vsel %vm1468, %v1596, %v956
        %v1725 = vsel %vm1469, %v1597, %v957
        %v1726 = vsel %vm1470, %v1598, %v958
        %v1727 = vsel %vm1471, %v1599, %v959
        %v1728 = vsel %vm1472, %v1600, %v960
        %v1729 = vsel %vm1473, %v1601, %v961
        %v1730 = vsel %vm1474, %v1602, %v962
        %v1731 = vsel %vm1475, %v1603, %v963
        %v1732 = vsel %vm1476, %v1604, %v964
        %v1733 = vsel %vm1477, %v1605, %v965
        %v1734 = vsel %vm1478, %v1606, %v966
        %v1735 = vsel %vm1479, %v1607, %v967
        %v1736 = vsel %vm1480, %v1608, %v968
        %v1737 = vsel %vm1481, %v1609, %v969
        %v1738 = vsel %vm1482, %v1610, %v970
        %v1739 = vsel %vm1483, %v1611, %v971
        %v1740 = vsel %vm1484, %v1612, %v972
        %v1741 = vsel %vm1485, %v1613, %v973
        %v1742 = vsel %vm1486, %v1614, %v974
        %v1743 = vsel %vm1487, %v1615, %v975
        %v1744 = vsel %vm1488, %v1616, %v976
        %v1745 = vsel %vm1489, %v1617, %v977
        %v1746 = vsel %vm1490, %v1618, %v978
        %v1747 = vsel %vm1491, %v1619, %v979
        %v1748 = vsel %vm1492, %v1620, %v980
        %v1749 = vsel %vm1493, %v1621, %v981
        %v1750 = vsel %vm1494, %v1622, %v982
        %v1751 = vsel %vm1495, %v1623, %v983
        %v1752 = vsel %vm1496, %v1624, %v984
        %v1753 = vld [vmem:[%s2] sm:$0xff]
        %v1754 = vld [vmem:[%s2 + $0x8] sm:$0xff]
        %vm1755 = vcmask 130048
        %v1757 = vsel %vm1755, %v1753, 0
        %v1760 = vsel %vm1755, %v1754, 0
        %1762 = vmatprep.subr.mxu0 %v1626
        %1763 = vmatpush1.msra.mxu0 %v1625
        %1764 = vmatprep.subr.mxu0 %v1690
        %1765 = vmatpush1.msra.mxu0 %v1689
        %1766 = vmatprep.subr.mxu0 0.0
        %1767 = vmatpush1.msra.mxu0 0.0
        %1768 = vmatprep.subr.mxu0 0.0
        %1769 = vmatpush1.msra.mxu0 0.0
        %1770 = vmatprep.subr.mxu0 0.0
        %1771 = vmatpush1.msra.mxu0 0.0
        %1772 = vmatprep.subr.mxu0 0.0
        %1773 = vmatpush1.msra.mxu0 0.0
        %1774 = vmatprep.subr.mxu0 0.0
        %1775 = vmatpush1.msra.mxu0 0.0
        %1776 = vmatprep.subr.mxu0 0.0
        %1777 = vmatpush1.msra.mxu0 0.0
        %1778 = vmatprep.subr.mxu0 0.0
        %1779 = vmatpush1.msra.mxu0 0.0
        %1780 = vmatprep.subr.mxu0 0.0
        %1781 = vmatpush1.msra.mxu0 0.0
        %1782 = vmatprep.subr.mxu0 0.0
        %1783 = vmatpush1.msra.mxu0 0.0
        %1784 = vmatprep.subr.mxu0 0.0
        %1785 = vmatpush1.msra.mxu0 0.0
        %1786 = vmatprep.subr.mxu0 0.0
        %1787 = vmatpush1.msra.mxu0 0.0
        %1788 = vmatprep.subr.mxu0 0.0
        %1789 = vmatpush1.msra.mxu0 0.0
        %1790 = vmatprep.subr.mxu0 0.0
        %1791 = vmatpush1.msra.mxu0 0.0
        %1792 = vmatprep.subr.mxu0 0.0
        %1793 = vmatpush1.msra.mxu0 0.0
        %1794 = vmatprep.subr.mxu0 0.0
        %1795 = vmatpush1.msra.mxu0 0.0
        %1796 = vmatprep.subr.mxu0 0.0
        %1797 = vmatpush1.msra.mxu0 0.0
        %1798 = vmatprep.subr.mxu0 0.0
        %1799 = vmatpush1.msra.mxu0 0.0
        %1800 = vmatprep.subr.mxu0 0.0
        %1801 = vmatpush1.msra.mxu0 0.0
        %1802 = vmatprep.subr.mxu0 0.0
        %1803 = vmatpush1.msra.mxu0 0.0
        %1804 = vmatprep.subr.mxu0 0.0
        %1805 = vmatpush1.msra.mxu0 0.0
        %1806 = vmatprep.subr.mxu0 0.0
        %1807 = vmatpush1.msra.mxu0 0.0
        %1808 = vmatprep.subr.mxu0 0.0
        %1809 = vmatpush1.msra.mxu0 0.0
        %1810 = vmatprep.subr.mxu0 0.0
        %1811 = vmatpush1.msra.mxu0 0.0
        %1812 = vmatprep.subr.mxu0 0.0
        %1813 = vmatpush1.msra.mxu0 0.0
        %1814 = vmatprep.subr.mxu0 0.0
        %1815 = vmatpush1.msra.mxu0 0.0
        %1816 = vmatprep.subr.mxu0 0.0
        %1817 = vmatpush1.msra.mxu0 0.0
        %1818 = vmatprep.subr.mxu0 0.0
        %1819 = vmatpush1.msra.mxu0 0.0
        %1820 = vmatprep.subr.mxu0 0.0
        %1821 = vmatpush1.msra.mxu0 0.0
        %1822 = vmatprep.subr.mxu0 0.0
        %1823 = vmatpush1.msra.mxu0 0.0
        %1824 = vmatprep.subr.mxu0 0.0
        %1825 = vmatpush1.msra.mxu0 0.0
        %1826 = vmatprep.mubr.f32.mxu0 0.0
        %1827 = vmatmul.mubr.f32.gmra.mrb[0].mxu0 %v1757
        %v1828 = vpop.f32.mrb[0].mxu0
        %v1829 = vadd.f32 0.0, %v1828
        %v1830 = vpop.f32.mrb[0].mxu0
        %v1831 = vadd.f32 0.0, %v1830
        %1832 = vmatprep.mubr.f32.mxu0 0.0
        %1833 = vmatmul.mubr.f32.gmra.mrb[0].mxu0 %v1760
        %v1834 = vpop.f32.mrb[0].mxu0
        %v1835 = vadd.f32 0.0, %v1834
        %v1836 = vpop.f32.mrb[0].mxu0
        %v1837 = vadd.f32 0.0, %v1836
        %1838 = vdwg.mxu0
        %1839 = vmatprep.subr.mxu0 %v1628
        %1840 = vmatpush1.msra.mxu0 %v1627
        %1841 = vmatprep.subr.mxu0 %v1692
        %1842 = vmatpush1.msra.mxu0 %v1691
        %1843 = vmatprep.subr.mxu0 0.0
        %1844 = vmatpush1.msra.mxu0 0.0
        %1845 = vmatprep.subr.mxu0 0.0
        %1846 = vmatpush1.msra.mxu0 0.0
        %1847 = vmatprep.subr.mxu0 0.0
        %1848 = vmatpush1.msra.mxu0 0.0
        %1849 = vmatprep.subr.mxu0 0.0
        %1850 = vmatpush1.msra.mxu0 0.0
        %1851 = vmatprep.subr.mxu0 0.0
        %1852 = vmatpush1.msra.mxu0 0.0
        %1853 = vmatprep.subr.mxu0 0.0
        %1854 = vmatpush1.msra.mxu0 0.0
        %1855 = vmatprep.subr.mxu0 0.0
        %1856 = vmatpush1.msra.mxu0 0.0
        %1857 = vmatprep.subr.mxu0 0.0
        %1858 = vmatpush1.msra.mxu0 0.0
        %1859 = vmatprep.subr.mxu0 0.0
        %1860 = vmatpush1.msra.mxu0 0.0
        %1861 = vmatprep.subr.mxu0 0.0
        %1862 = vmatpush1.msra.mxu0 0.0
        %1863 = vmatprep.subr.mxu0 0.0
        %1864 = vmatpush1.msra.mxu0 0.0
        %1865 = vmatprep.subr.mxu0 0.0
        %1866 = vmatpush1.msra.mxu0 0.0
        %1867 = vmatprep.subr.mxu0 0.0
        %1868 = vmatpush1.msra.mxu0 0.0
        %1869 = vmatprep.subr.mxu0 0.0
        %1870 = vmatpush1.msra.mxu0 0.0
        %1871 = vmatprep.subr.mxu0 0.0
        %1872 = vmatpush1.msra.mxu0 0.0
        %1873 = vmatprep.subr.mxu0 0.0
        %1874 = vmatpush1.msra.mxu0 0.0
        %1875 = vmatprep.subr.mxu0 0.0
        %1876 = vmatpush1.msra.mxu0 0.0
        %1877 = vmatprep.subr.mxu0 0.0
        %1878 = vmatpush1.msra.mxu0 0.0
        %1879 = vmatprep.subr.mxu0 0.0
        %1880 = vmatpush1.msra.mxu0 0.0
        %1881 = vmatprep.subr.mxu0 0.0
        %1882 = vmatpush1.msra.mxu0 0.0
        %1883 = vmatprep.subr.mxu0 0.0
        %1884 = vmatpush1.msra.mxu0 0.0
        %1885 = vmatprep.subr.mxu0 0.0
        %1886 = vmatpush1.msra.mxu0 0.0
        %1887 = vmatprep.subr.mxu0 0.0
        %1888 = vmatpush1.msra.mxu0 0.0
        %1889 = vmatprep.subr.mxu0 0.0
        %1890 = vmatpush1.msra.mxu0 0.0
        %1891 = vmatprep.subr.mxu0 0.0
        %1892 = vmatpush1.msra.mxu0 0.0
        %1893 = vmatprep.subr.mxu0 0.0
        %1894 = vmatpush1.msra.mxu0 0.0
        %1895 = vmatprep.subr.mxu0 0.0
        %1896 = vmatpush1.msra.mxu0 0.0
        %1897 = vmatprep.subr.mxu0 0.0
        %1898 = vmatpush1.msra.mxu0 0.0
        %1899 = vmatprep.subr.mxu0 0.0
        %1900 = vmatpush1.msra.mxu0 0.0
        %1901 = vmatprep.subr.mxu0 0.0
        %1902 = vmatpush1.msra.mxu0 0.0
        %1903 = vmatprep.mubr.f32.mxu0 0.0
        %1904 = vmatmul.mubr.f32.gmra.mrb[0].mxu0 %v1757
        %v1905 = vpop.f32.mrb[0].mxu0
        %v1906 = vadd.f32 0.0, %v1905
        %v1907 = vpop.f32.mrb[0].mxu0
        %v1908 = vadd.f32 0.0, %v1907
        %1909 = vmatprep.mubr.f32.mxu0 0.0
        %1910 = vmatmul.mubr.f32.gmra.mrb[0].mxu0 %v1760
        %v1911 = vpop.f32.mrb[0].mxu0
        %v1912 = vadd.f32 0.0, %v1911
        %v1913 = vpop.f32.mrb[0].mxu0
        %v1914 = vadd.f32 0.0, %v1913
        %1915 = vdwg.mxu0
        %1916 = vmatprep.subr.mxu0 %v1630
        %1917 = vmatpush1.msra.mxu0 %v1629
        %1918 = vmatprep.subr.mxu0 %v1694
        %1919 = vmatpush1.msra.mxu0 %v1693
        %1920 = vmatprep.subr.mxu0 0.0
        %1921 = vmatpush1.msra.mxu0 0.0
        %1922 = vmatprep.subr.mxu0 0.0
        %1923 = vmatpush1.msra.mxu0 0.0
        %1924 = vmatprep.subr.mxu0 0.0
        %1925 = vmatpush1.msra.mxu0 0.0
        %1926 = vmatprep.subr.mxu0 0.0
        %1927 = vmatpush1.msra.mxu0 0.0
        %1928 = vmatprep.subr.mxu0 0.0
        %1929 = vmatpush1.msra.mxu0 0.0
        %1930 = vmatprep.subr.mxu0 0.0
        %1931 = vmatpush1.msra.mxu0 0.0
        %1932 = vmatprep.subr.mxu0 0.0
        %1933 = vmatpush1.msra.mxu0 0.0
        %1934 = vmatprep.subr.mxu0 0.0
        %1935 = vmatpush1.msra.mxu0 0.0
        %1936 = vmatprep.subr.mxu0 0.0
        %1937 = vmatpush1.msra.mxu0 0.0
        %1938 = vmatprep.subr.mxu0 0.0
        %1939 = vmatpush1.msra.mxu0 0.0
        %1940 = vmatprep.subr.mxu0 0.0
        %1941 = vmatpush1.msra.mxu0 0.0
        %1942 = vmatprep.subr.mxu0 0.0
        %1943 = vmatpush1.msra.mxu0 0.0
        %1944 = vmatprep.subr.mxu0 0.0
        %1945 = vmatpush1.msra.mxu0 0.0
        %1946 = vmatprep.subr.mxu0 0.0
        %1947 = vmatpush1.msra.mxu0 0.0
        %1948 = vmatprep.subr.mxu0 0.0
        %1949 = vmatpush1.msra.mxu0 0.0
        %1950 = vmatprep.subr.mxu0 0.0
        %1951 = vmatpush1.msra.mxu0 0.0
        %1952 = vmatprep.subr.mxu0 0.0
        %1953 = vmatpush1.msra.mxu0 0.0
        %1954 = vmatprep.subr.mxu0 0.0
        %1955 = vmatpush1.msra.mxu0 0.0
        %1956 = vmatprep.subr.mxu0 0.0
        %1957 = vmatpush1.msra.mxu0 0.0
        %1958 = vmatprep.subr.mxu0 0.0
        %1959 = vmatpush1.msra.mxu0 0.0
        %1960 = vmatprep.subr.mxu0 0.0
        %1961 = vmatpush1.msra.mxu0 0.0
        %1962 = vmatprep.subr.mxu0 0.0
        %1963 = vmatpush1.msra.mxu0 0.0
        %1964 = vmatprep.subr.mxu0 0.0
        %1965 = vmatpush1.msra.mxu0 0.0
        %1966 = vmatprep.subr.mxu0 0.0
        %1967 = vmatpush1.msra.mxu0 0.0
        %1968 = vmatprep.subr.mxu0 0.0
        %1969 = vmatpush1.msra.mxu0 0.0
        %1970 = vmatprep.subr.mxu0 0.0
        %1971 = vmatpush1.msra.mxu0 0.0
        %1972 = vmatprep.subr.mxu0 0.0
        %1973 = vmatpush1.msra.mxu0 0.0
        %1974 = vmatprep.subr.mxu0 0.0
        %1975 = vmatpush1.msra.mxu0 0.0
        %1976 = vmatprep.subr.mxu0 0.0
        %1977 = vmatpush1.msra.mxu0 0.0
        %1978 = vmatprep.subr.mxu0 0.0
        %1979 = vmatpush1.msra.mxu0 0.0
        %1980 = vmatprep.mubr.f32.mxu0 0.0
        %1981 = vmatmul.mubr.f32.gmra.mrb[0].mxu0 %v1757
        %v1982 = vpop.f32.mrb[0].mxu0
        %v1983 = vadd.f32 0.0, %v1982
        %v1984 = vpop.f32.mrb[0].mxu0
        %v1985 = vadd.f32 0.0, %v1984
        %1986 = vmatprep.mubr.f32.mxu0 0.0
        %1987 = vmatmul.mubr.f32.gmra.mrb[0].mxu0 %v1760
        %v1988 = vpop.f32.mrb[0].mxu0
        %v1989 = vadd.f32 0.0, %v1988
        %v1990 = vpop.f32.mrb[0].mxu0
        %v1991 = vadd.f32 0.0, %v1990
        %1992 = vdwg.mxu0
        %1993 = vmatprep.subr.mxu0 %v1632
        %1994 = vmatpush1.msra.mxu0 %v1631
        %1995 = vmatprep.subr.mxu0 %v1696
        %1996 = vmatpush1.msra.mxu0 %v1695
        %1997 = vmatprep.subr.mxu0 0.0
        %1998 = vmatpush1.msra.mxu0 0.0
        %1999 = vmatprep.subr.mxu0 0.0
        %2000 = vmatpush1.msra.mxu0 0.0
        %2001 = vmatprep.subr.mxu0 0.0
        %2002 = vmatpush1.msra.mxu0 0.0
        %2003 = vmatprep.subr.mxu0 0.0
        %2004 = vmatpush1.msra.mxu0 0.0
        %2005 = vmatprep.subr.mxu0 0.0
        %2006 = vmatpush1.msra.mxu0 0.0
        %2007 = vmatprep.subr.mxu0 0.0
        %2008 = vmatpush1.msra.mxu0 0.0
        %2009 = vmatprep.subr.mxu0 0.0
        %2010 = vmatpush1.msra.mxu0 0.0
        %2011 = vmatprep.subr.mxu0 0.0
        %2012 = vmatpush1.msra.mxu0 0.0
        %2013 = vmatprep.subr.mxu0 0.0
        %2014 = vmatpush1.msra.mxu0 0.0
        %2015 = vmatprep.subr.mxu0 0.0
        %2016 = vmatpush1.msra.mxu0 0.0
        %2017 = vmatprep.subr.mxu0 0.0
        %2018 = vmatpush1.msra.mxu0 0.0
        %2019 = vmatprep.subr.mxu0 0.0
        %2020 = vmatpush1.msra.mxu0 0.0
        %2021 = vmatprep.subr.mxu0 0.0
        %2022 = vmatpush1.msra.mxu0 0.0
        %2023 = vmatprep.subr.mxu0 0.0
        %2024 = vmatpush1.msra.mxu0 0.0
        %2025 = vmatprep.subr.mxu0 0.0
        %2026 = vmatpush1.msra.mxu0 0.0
        %2027 = vmatprep.subr.mxu0 0.0
        %2028 = vmatpush1.msra.mxu0 0.0
        %2029 = vmatprep.subr.mxu0 0.0
        %2030 = vmatpush1.msra.mxu0 0.0
        %2031 = vmatprep.subr.mxu0 0.0
        %2032 = vmatpush1.msra.mxu0 0.0
        %2033 = vmatprep.subr.mxu0 0.0
        %2034 = vmatpush1.msra.mxu0 0.0
        %2035 = vmatprep.subr.mxu0 0.0
        %2036 = vmatpush1.msra.mxu0 0.0
        %2037 = vmatprep.subr.mxu0 0.0
        %2038 = vmatpush1.msra.mxu0 0.0
        %2039 = vmatprep.subr.mxu0 0.0
        %2040 = vmatpush1.msra.mxu0 0.0
        %2041 = vmatprep.subr.mxu0 0.0
        %2042 = vmatpush1.msra.mxu0 0.0
        %2043 = vmatprep.subr.mxu0 0.0
        %2044 = vmatpush1.msra.mxu0 0.0
        %2045 = vmatprep.subr.mxu0 0.0
        %2046 = vmatpush1.msra.mxu0 0.0
        %2047 = vmatprep.subr.mxu0 0.0
        %2048 = vmatpush1.msra.mxu0 0.0
        %2049 = vmatprep.subr.mxu0 0.0
        %2050 = vmatpush1.msra.mxu0 0.0
        %2051 = vmatprep.subr.mxu0 0.0
        %2052 = vmatpush1.msra.mxu0 0.0
        %2053 = vmatprep.subr.mxu0 0.0
        %2054 = vmatpush1.msra.mxu0 0.0
        %2055 = vmatprep.subr.mxu0 0.0
        %2056 = vmatpush1.msra.mxu0 0.0
        %2057 = vmatprep.mubr.f32.mxu0 0.0
        %2058 = vmatmul.mubr.f32.gmra.mrb[0].mxu0 %v1757
        %v2059 = vpop.f32.mrb[0].mxu0
        %v2060 = vadd.f32 0.0, %v2059
        %v2061 = vpop.f32.mrb[0].mxu0
        %v2062 = vadd.f32 0.0, %v2061
        %2063 = vmatprep.mubr.f32.mxu0 0.0
        %2064 = vmatmul.mubr.f32.gmra.mrb[0].mxu0 %v1760
        %v2065 = vpop.f32.mrb[0].mxu0
        %v2066 = vadd.f32 0.0, %v2065
        %v2067 = vpop.f32.mrb[0].mxu0
        %v2068 = vadd.f32 0.0, %v2067
        %2069 = vdwg.mxu0
        %2070 = vmatprep.subr.mxu0 %v1634
        %2071 = vmatpush1.msra.mxu0 %v1633
        %2072 = vmatprep.subr.mxu0 %v1698
        %2073 = vmatpush1.msra.mxu0 %v1697
        %2074 = vmatprep.subr.mxu0 0.0
        %2075 = vmatpush1.msra.mxu0 0.0
        %2076 = vmatprep.subr.mxu0 0.0
        %2077 = vmatpush1.msra.mxu0 0.0
        %2078 = vmatprep.subr.mxu0 0.0
        %2079 = vmatpush1.msra.mxu0 0.0
        %2080 = vmatprep.subr.mxu0 0.0
        %2081 = vmatpush1.msra.mxu0 0.0
        %2082 = vmatprep.subr.mxu0 0.0
        %2083 = vmatpush1.msra.mxu0 0.0
        %2084 = vmatprep.subr.mxu0 0.0
        %2085 = vmatpush1.msra.mxu0 0.0
        %2086 = vmatprep.subr.mxu0 0.0
        %2087 = vmatpush1.msra.mxu0 0.0
        %2088 = vmatprep.subr.mxu0 0.0
        %2089 = vmatpush1.msra.mxu0 0.0
        %2090 = vmatprep.subr.mxu0 0.0
        %2091 = vmatpush1.msra.mxu0 0.0
        %2092 = vmatprep.subr.mxu0 0.0
        %2093 = vmatpush1.msra.mxu0 0.0
        %2094 = vmatprep.subr.mxu0 0.0
        %2095 = vmatpush1.msra.mxu0 0.0
        %2096 = vmatprep.subr.mxu0 0.0
        %2097 = vmatpush1.msra.mxu0 0.0
        %2098 = vmatprep.subr.mxu0 0.0
        %2099 = vmatpush1.msra.mxu0 0.0
        %2100 = vmatprep.subr.mxu0 0.0
        %2101 = vmatpush1.msra.mxu0 0.0
        %2102 = vmatprep.subr.mxu0 0.0
        %2103 = vmatpush1.msra.mxu0 0.0
        %2104 = vmatprep.subr.mxu0 0.0
        %2105 = vmatpush1.msra.mxu0 0.0
        %2106 = vmatprep.subr.mxu0 0.0
        %2107 = vmatpush1.msra.mxu0 0.0
        %2108 = vmatprep.subr.mxu0 0.0
        %2109 = vmatpush1.msra.mxu0 0.0
        %2110 = vmatprep.subr.mxu0 0.0
        %2111 = vmatpush1.msra.mxu0 0.0
        %2112 = vmatprep.subr.mxu0 0.0
        %2113 = vmatpush1.msra.mxu0 0.0
        %2114 = vmatprep.subr.mxu0 0.0
        %2115 = vmatpush1.msra.mxu0 0.0
        %2116 = vmatprep.subr.mxu0 0.0
        %2117 = vmatpush1.msra.mxu0 0.0
        %2118 = vmatprep.subr.mxu0 0.0
        %2119 = vmatpush1.msra.mxu0 0.0
        %2120 = vmatprep.subr.mxu0 0.0
        %2121 = vmatpush1.msra.mxu0 0.0
        %2122 = vmatprep.subr.mxu0 0.0
        %2123 = vmatpush1.msra.mxu0 0.0
        %2124 = vmatprep.subr.mxu0 0.0
        %2125 = vmatpush1.msra.mxu0 0.0
        %2126 = vmatprep.subr.mxu0 0.0
        %2127 = vmatpush1.msra.mxu0 0.0
        %2128 = vmatprep.subr.mxu0 0.0
        %2129 = vmatpush1.msra.mxu0 0.0
        %2130 = vmatprep.subr.mxu0 0.0
        %2131 = vmatpush1.msra.mxu0 0.0
        %2132 = vmatprep.subr.mxu0 0.0
        %2133 = vmatpush1.msra.mxu0 0.0
        %2134 = vmatprep.mubr.f32.mxu0 0.0
        %2135 = vmatmul.mubr.f32.gmra.mrb[0].mxu0 %v1757
        %v2136 = vpop.f32.mrb[0].mxu0
        %v2137 = vadd.f32 0.0, %v2136
        %v2138 = vpop.f32.mrb[0].mxu0
        %v2139 = vadd.f32 0.0, %v2138
        %2140 = vmatprep.mubr.f32.mxu0 0.0
        %2141 = vmatmul.mubr.f32.gmra.mrb[0].mxu0 %v1760
        %v2142 = vpop.f32.mrb[0].mxu0
        %v2143 = vadd.f32 0.0, %v2142
        %v2144 = vpop.f32.mrb[0].mxu0
        %v2145 = vadd.f32 0.0, %v2144
        %2146 = vdwg.mxu0
        %2147 = vmatprep.subr.mxu0 %v1636
        %2148 = vmatpush1.msra.mxu0 %v1635
        %2149 = vmatprep.subr.mxu0 %v1700
        %2150 = vmatpush1.msra.mxu0 %v1699
        %2151 = vmatprep.subr.mxu0 0.0
        %2152 = vmatpush1.msra.mxu0 0.0
        %2153 = vmatprep.subr.mxu0 0.0
        %2154 = vmatpush1.msra.mxu0 0.0
        %2155 = vmatprep.subr.mxu0 0.0
        %2156 = vmatpush1.msra.mxu0 0.0
        %2157 = vmatprep.subr.mxu0 0.0
        %2158 = vmatpush1.msra.mxu0 0.0
        %2159 = vmatprep.subr.mxu0 0.0
        %2160 = vmatpush1.msra.mxu0 0.0
        %2161 = vmatprep.subr.mxu0 0.0
        %2162 = vmatpush1.msra.mxu0 0.0
        %2163 = vmatprep.subr.mxu0 0.0
        %2164 = vmatpush1.msra.mxu0 0.0
        %2165 = vmatprep.subr.mxu0 0.0
        %2166 = vmatpush1.msra.mxu0 0.0
        %2167 = vmatprep.subr.mxu0 0.0
        %2168 = vmatpush1.msra.mxu0 0.0
        %2169 = vmatprep.subr.mxu0 0.0
        %2170 = vmatpush1.msra.mxu0 0.0
        %2171 = vmatprep.subr.mxu0 0.0
        %2172 = vmatpush1.msra.mxu0 0.0
        %2173 = vmatprep.subr.mxu0 0.0
        %2174 = vmatpush1.msra.mxu0 0.0
        %2175 = vmatprep.subr.mxu0 0.0
        %2176 = vmatpush1.msra.mxu0 0.0
        %2177 = vmatprep.subr.mxu0 0.0
        %2178 = vmatpush1.msra.mxu0 0.0
        %2179 = vmatprep.subr.mxu0 0.0
        %2180 = vmatpush1.msra.mxu0 0.0
        %2181 = vmatprep.subr.mxu0 0.0
        %2182 = vmatpush1.msra.mxu0 0.0
        %2183 = vmatprep.subr.mxu0 0.0
        %2184 = vmatpush1.msra.mxu0 0.0
        %2185 = vmatprep.subr.mxu0 0.0
        %2186 = vmatpush1.msra.mxu0 0.0
        %2187 = vmatprep.subr.mxu0 0.0
        %2188 = vmatpush1.msra.mxu0 0.0
        %2189 = vmatprep.subr.mxu0 0.0
        %2190 = vmatpush1.msra.mxu0 0.0
        %2191 = vmatprep.subr.mxu0 0.0
        %2192 = vmatpush1.msra.mxu0 0.0
        %2193 = vmatprep.subr.mxu0 0.0
        %2194 = vmatpush1.msra.mxu0 0.0
        %2195 = vmatprep.subr.mxu0 0.0
        %2196 = vmatpush1.msra.mxu0 0.0
        %2197 = vmatprep.subr.mxu0 0.0
        %2198 = vmatpush1.msra.mxu0 0.0
        %2199 = vmatprep.subr.mxu0 0.0
        %2200 = vmatpush1.msra.mxu0 0.0
        %2201 = vmatprep.subr.mxu0 0.0
        %2202 = vmatpush1.msra.mxu0 0.0
        %2203 = vmatprep.subr.mxu0 0.0
        %2204 = vmatpush1.msra.mxu0 0.0
        %2205 = vmatprep.subr.mxu0 0.0
        %2206 = vmatpush1.msra.mxu0 0.0
        %2207 = vmatprep.subr.mxu0 0.0
        %2208 = vmatpush1.msra.mxu0 0.0
        %2209 = vmatprep.subr.mxu0 0.0
        %2210 = vmatpush1.msra.mxu0 0.0
        %2211 = vmatprep.mubr.f32.mxu0 0.0
        %2212 = vmatmul.mubr.f32.gmra.mrb[0].mxu0 %v1757
        %v2213 = vpop.f32.mrb[0].mxu0
        %v2214 = vadd.f32 0.0, %v2213
        %v2215 = vpop.f32.mrb[0].mxu0
        %v2216 = vadd.f32 0.0, %v2215
        %2217 = vmatprep.mubr.f32.mxu0 0.0
        %2218 = vmatmul.mubr.f32.gmra.mrb[0].mxu0 %v1760
        %v2219 = vpop.f32.mrb[0].mxu0
        %v2220 = vadd.f32 0.0, %v2219
        %v2221 = vpop.f32.mrb[0].mxu0
        %v2222 = vadd.f32 0.0, %v2221
        %2223 = vdwg.mxu0
        %2224 = vmatprep.subr.mxu0 %v1638
        %2225 = vmatpush1.msra.mxu0 %v1637
        %2226 = vmatprep.subr.mxu0 %v1702
        %2227 = vmatpush1.msra.mxu0 %v1701
        %2228 = vmatprep.subr.mxu0 0.0
        %2229 = vmatpush1.msra.mxu0 0.0
        %2230 = vmatprep.subr.mxu0 0.0
        %2231 = vmatpush1.msra.mxu0 0.0
        %2232 = vmatprep.subr.mxu0 0.0
        %2233 = vmatpush1.msra.mxu0 0.0
        %2234 = vmatprep.subr.mxu0 0.0
        %2235 = vmatpush1.msra.mxu0 0.0
        %2236 = vmatprep.subr.mxu0 0.0
        %2237 = vmatpush1.msra.mxu0 0.0
        %2238 = vmatprep.subr.mxu0 0.0
        %2239 = vmatpush1.msra.mxu0 0.0
        %2240 = vmatprep.subr.mxu0 0.0
        %2241 = vmatpush1.msra.mxu0 0.0
        %2242 = vmatprep.subr.mxu0 0.0
        %2243 = vmatpush1.msra.mxu0 0.0
        %2244 = vmatprep.subr.mxu0 0.0
        %2245 = vmatpush1.msra.mxu0 0.0
        %2246 = vmatprep.subr.mxu0 0.0
        %2247 = vmatpush1.msra.mxu0 0.0
        %2248 = vmatprep.subr.mxu0 0.0
        %2249 = vmatpush1.msra.mxu0 0.0
        %2250 = vmatprep.subr.mxu0 0.0
        %2251 = vmatpush1.msra.mxu0 0.0
        %2252 = vmatprep.subr.mxu0 0.0
        %2253 = vmatpush1.msra.mxu0 0.0
        %2254 = vmatprep.subr.mxu0 0.0
        %2255 = vmatpush1.msra.mxu0 0.0
        %2256 = vmatprep.subr.mxu0 0.0
        %2257 = vmatpush1.msra.mxu0 0.0
        %2258 = vmatprep.subr.mxu0 0.0
        %2259 = vmatpush1.msra.mxu0 0.0
        %2260 = vmatprep.subr.mxu0 0.0
        %2261 = vmatpush1.msra.mxu0 0.0
        %2262 = vmatprep.subr.mxu0 0.0
        %2263 = vmatpush1.msra.mxu0 0.0
        %2264 = vmatprep.subr.mxu0 0.0
        %2265 = vmatpush1.msra.mxu0 0.0
        %2266 = vmatprep.subr.mxu0 0.0
        %2267 = vmatpush1.msra.mxu0 0.0
        %2268 = vmatprep.subr.mxu0 0.0
        %2269 = vmatpush1.msra.mxu0 0.0
        %2270 = vmatprep.subr.mxu0 0.0
        %2271 = vmatpush1.msra.mxu0 0.0
        %2272 = vmatprep.subr.mxu0 0.0
        %2273 = vmatpush1.msra.mxu0 0.0
        %2274 = vmatprep.subr.mxu0 0.0
        %2275 = vmatpush1.msra.mxu0 0.0
        %2276 = vmatprep.subr.mxu0 0.0
        %2277 = vmatpush1.msra.mxu0 0.0
        %2278 = vmatprep.subr.mxu0 0.0
        %2279 = vmatpush1.msra.mxu0 0.0
        %2280 = vmatprep.subr.mxu0 0.0
        %2281 = vmatpush1.msra.mxu0 0.0
        %2282 = vmatprep.subr.mxu0 0.0
        %2283 = vmatpush1.msra.mxu0 0.0
        %2284 = vmatprep.subr.mxu0 0.0
        %2285 = vmatpush1.msra.mxu0 0.0
        %2286 = vmatprep.subr.mxu0 0.0
        %2287 = vmatpush1.msra.mxu0 0.0
        %2288 = vmatprep.mubr.f32.mxu0 0.0
        %2289 = vmatmul.mubr.f32.gmra.mrb[0].mxu0 %v1757
        %v2290 = vpop.f32.mrb[0].mxu0
        %v2291 = vadd.f32 0.0, %v2290
        %v2292 = vpop.f32.mrb[0].mxu0
        %v2293 = vadd.f32 0.0, %v2292
        %2294 = vmatprep.mubr.f32.mxu0 0.0
        %2295 = vmatmul.mubr.f32.gmra.mrb[0].mxu0 %v1760
        %v2296 = vpop.f32.mrb[0].mxu0
        %v2297 = vadd.f32 0.0, %v2296
        %v2298 = vpop.f32.mrb[0].mxu0
        %v2299 = vadd.f32 0.0, %v2298
        %2300 = vdwg.mxu0
        %2301 = vmatprep.subr.mxu0 %v1640
        %2302 = vmatpush1.msra.mxu0 %v1639
        %2303 = vmatprep.subr.mxu0 %v1704
        %2304 = vmatpush1.msra.mxu0 %v1703
        %2305 = vmatprep.subr.mxu0 0.0
        %2306 = vmatpush1.msra.mxu0 0.0
        %2307 = vmatprep.subr.mxu0 0.0
        %2308 = vmatpush1.msra.mxu0 0.0
        %2309 = vmatprep.subr.mxu0 0.0
        %2310 = vmatpush1.msra.mxu0 0.0
        %2311 = vmatprep.subr.mxu0 0.0
        %2312 = vmatpush1.msra.mxu0 0.0
        %2313 = vmatprep.subr.mxu0 0.0
        %2314 = vmatpush1.msra.mxu0 0.0
        %2315 = vmatprep.subr.mxu0 0.0
        %2316 = vmatpush1.msra.mxu0 0.0
        %2317 = vmatprep.subr.mxu0 0.0
        %2318 = vmatpush1.msra.mxu0 0.0
        %2319 = vmatprep.subr.mxu0 0.0
        %2320 = vmatpush1.msra.mxu0 0.0
        %2321 = vmatprep.subr.mxu0 0.0
        %2322 = vmatpush1.msra.mxu0 0.0
        %2323 = vmatprep.subr.mxu0 0.0
        %2324 = vmatpush1.msra.mxu0 0.0
        %2325 = vmatprep.subr.mxu0 0.0
        %2326 = vmatpush1.msra.mxu0 0.0
        %2327 = vmatprep.subr.mxu0 0.0
        %2328 = vmatpush1.msra.mxu0 0.0
        %2329 = vmatprep.subr.mxu0 0.0
        %2330 = vmatpush1.msra.mxu0 0.0
        %2331 = vmatprep.subr.mxu0 0.0
        %2332 = vmatpush1.msra.mxu0 0.0
        %2333 = vmatprep.subr.mxu0 0.0
        %2334 = vmatpush1.msra.mxu0 0.0
        %2335 = vmatprep.subr.mxu0 0.0
        %2336 = vmatpush1.msra.mxu0 0.0
        %2337 = vmatprep.subr.mxu0 0.0
        %2338 = vmatpush1.msra.mxu0 0.0
        %2339 = vmatprep.subr.mxu0 0.0
        %2340 = vmatpush1.msra.mxu0 0.0
        %2341 = vmatprep.subr.mxu0 0.0
        %2342 = vmatpush1.msra.mxu0 0.0
        %2343 = vmatprep.subr.mxu0 0.0
        %2344 = vmatpush1.msra.mxu0 0.0
        %2345 = vmatprep.subr.mxu0 0.0
        %2346 = vmatpush1.msra.mxu0 0.0
        %2347 = vmatprep.subr.mxu0 0.0
        %2348 = vmatpush1.msra.mxu0 0.0
        %2349 = vmatprep.subr.mxu0 0.0
        %2350 = vmatpush1.msra.mxu0 0.0
        %2351 = vmatprep.subr.mxu0 0.0
        %2352 = vmatpush1.msra.mxu0 0.0
        %2353 = vmatprep.subr.mxu0 0.0
        %2354 = vmatpush1.msra.mxu0 0.0
        %2355 = vmatprep.subr.mxu0 0.0
        %2356 = vmatpush1.msra.mxu0 0.0
        %2357 = vmatprep.subr.mxu0 0.0
        %2358 = vmatpush1.msra.mxu0 0.0
        %2359 = vmatprep.subr.mxu0 0.0
        %2360 = vmatpush1.msra.mxu0 0.0
        %2361 = vmatprep.subr.mxu0 0.0
        %2362 = vmatpush1.msra.mxu0 0.0
        %2363 = vmatprep.subr.mxu0 0.0
        %2364 = vmatpush1.msra.mxu0 0.0
        %2365 = vmatprep.mubr.f32.mxu0 0.0
        %2366 = vmatmul.mubr.f32.gmra.mrb[0].mxu0 %v1757
        %v2367 = vpop.f32.mrb[0].mxu0
        %v2368 = vadd.f32 0.0, %v2367
        %v2369 = vpop.f32.mrb[0].mxu0
        %v2370 = vadd.f32 0.0, %v2369
        %2371 = vmatprep.mubr.f32.mxu0 0.0
        %2372 = vmatmul.mubr.f32.gmra.mrb[0].mxu0 %v1760
        %v2373 = vpop.f32.mrb[0].mxu0
        %v2374 = vadd.f32 0.0, %v2373
        %v2375 = vpop.f32.mrb[0].mxu0
        %v2376 = vadd.f32 0.0, %v2375
        %2377 = vdwg.mxu0
        %2378 = vmatprep.subr.mxu0 %v1642
        %2379 = vmatpush1.msra.mxu0 %v1641
        %2380 = vmatprep.subr.mxu0 %v1706
        %2381 = vmatpush1.msra.mxu0 %v1705
        %2382 = vmatprep.subr.mxu0 0.0
        %2383 = vmatpush1.msra.mxu0 0.0
        %2384 = vmatprep.subr.mxu0 0.0
        %2385 = vmatpush1.msra.mxu0 0.0
        %2386 = vmatprep.subr.mxu0 0.0
        %2387 = vmatpush1.msra.mxu0 0.0
        %2388 = vmatprep.subr.mxu0 0.0
        %2389 = vmatpush1.msra.mxu0 0.0
        %2390 = vmatprep.subr.mxu0 0.0
        %2391 = vmatpush1.msra.mxu0 0.0
        %2392 = vmatprep.subr.mxu0 0.0
        %2393 = vmatpush1.msra.mxu0 0.0
        %2394 = vmatprep.subr.mxu0 0.0
        %2395 = vmatpush1.msra.mxu0 0.0
        %2396 = vmatprep.subr.mxu0 0.0
        %2397 = vmatpush1.msra.mxu0 0.0
        %2398 = vmatprep.subr.mxu0 0.0
        %2399 = vmatpush1.msra.mxu0 0.0
        %2400 = vmatprep.subr.mxu0 0.0
        %2401 = vmatpush1.msra.mxu0 0.0
        %2402 = vmatprep.subr.mxu0 0.0
        %2403 = vmatpush1.msra.mxu0 0.0
        %2404 = vmatprep.subr.mxu0 0.0
        %2405 = vmatpush1.msra.mxu0 0.0
        %2406 = vmatprep.subr.mxu0 0.0
        %2407 = vmatpush1.msra.mxu0 0.0
        %2408 = vmatprep.subr.mxu0 0.0
        %2409 = vmatpush1.msra.mxu0 0.0
        %2410 = vmatprep.subr.mxu0 0.0
        %2411 = vmatpush1.msra.mxu0 0.0
        %2412 = vmatprep.subr.mxu0 0.0
        %2413 = vmatpush1.msra.mxu0 0.0
        %2414 = vmatprep.subr.mxu0 0.0
        %2415 = vmatpush1.msra.mxu0 0.0
        %2416 = vmatprep.subr.mxu0 0.0
        %2417 = vmatpush1.msra.mxu0 0.0
        %2418 = vmatprep.subr.mxu0 0.0
        %2419 = vmatpush1.msra.mxu0 0.0
        %2420 = vmatprep.subr.mxu0 0.0
        %2421 = vmatpush1.msra.mxu0 0.0
        %2422 = vmatprep.subr.mxu0 0.0
        %2423 = vmatpush1.msra.mxu0 0.0
        %2424 = vmatprep.subr.mxu0 0.0
        %2425 = vmatpush1.msra.mxu0 0.0
        %2426 = vmatprep.subr.mxu0 0.0
        %2427 = vmatpush1.msra.mxu0 0.0
        %2428 = vmatprep.subr.mxu0 0.0
        %2429 = vmatpush1.msra.mxu0 0.0
        %2430 = vmatprep.subr.mxu0 0.0
        %2431 = vmatpush1.msra.mxu0 0.0
        %2432 = vmatprep.subr.mxu0 0.0
        %2433 = vmatpush1.msra.mxu0 0.0
        %2434 = vmatprep.subr.mxu0 0.0
        %2435 = vmatpush1.msra.mxu0 0.0
        %2436 = vmatprep.subr.mxu0 0.0
        %2437 = vmatpush1.msra.mxu0 0.0
        %2438 = vmatprep.subr.mxu0 0.0
        %2439 = vmatpush1.msra.mxu0 0.0
        %2440 = vmatprep.subr.mxu0 0.0
        %2441 = vmatpush1.msra.mxu0 0.0
        %2442 = vmatprep.mubr.f32.mxu0 0.0
        %2443 = vmatmul.mubr.f32.gmra.mrb[0].mxu0 %v1757
        %v2444 = vpop.f32.mrb[0].mxu0
        %v2445 = vadd.f32 0.0, %v2444
        %v2446 = vpop.f32.mrb[0].mxu0
        %v2447 = vadd.f32 0.0, %v2446
        %2448 = vmatprep.mubr.f32.mxu0 0.0
        %2449 = vmatmul.mubr.f32.gmra.mrb[0].mxu0 %v1760
        %v2450 = vpop.f32.mrb[0].mxu0
        %v2451 = vadd.f32 0.0, %v2450
        %v2452 = vpop.f32.mrb[0].mxu0
        %v2453 = vadd.f32 0.0, %v2452
        %2454 = vdwg.mxu0
        %2455 = vmatprep.subr.mxu0 %v1644
        %2456 = vmatpush1.msra.mxu0 %v1643
        %2457 = vmatprep.subr.mxu0 %v1708
        %2458 = vmatpush1.msra.mxu0 %v1707
        %2459 = vmatprep.subr.mxu0 0.0
        %2460 = vmatpush1.msra.mxu0 0.0
        %2461 = vmatprep.subr.mxu0 0.0
        %2462 = vmatpush1.msra.mxu0 0.0
        %2463 = vmatprep.subr.mxu0 0.0
        %2464 = vmatpush1.msra.mxu0 0.0
        %2465 = vmatprep.subr.mxu0 0.0
        %2466 = vmatpush1.msra.mxu0 0.0
        %2467 = vmatprep.subr.mxu0 0.0
        %2468 = vmatpush1.msra.mxu0 0.0
        %2469 = vmatprep.subr.mxu0 0.0
        %2470 = vmatpush1.msra.mxu0 0.0
        %2471 = vmatprep.subr.mxu0 0.0
        %2472 = vmatpush1.msra.mxu0 0.0
        %2473 = vmatprep.subr.mxu0 0.0
        %2474 = vmatpush1.msra.mxu0 0.0
        %2475 = vmatprep.subr.mxu0 0.0
        %2476 = vmatpush1.msra.mxu0 0.0
        %2477 = vmatprep.subr.mxu0 0.0
        %2478 = vmatpush1.msra.mxu0 0.0
        %2479 = vmatprep.subr.mxu0 0.0
        %2480 = vmatpush1.msra.mxu0 0.0
        %2481 = vmatprep.subr.mxu0 0.0
        %2482 = vmatpush1.msra.mxu0 0.0
        %2483 = vmatprep.subr.mxu0 0.0
        %2484 = vmatpush1.msra.mxu0 0.0
        %2485 = vmatprep.subr.mxu0 0.0
        %2486 = vmatpush1.msra.mxu0 0.0
        %2487 = vmatprep.subr.mxu0 0.0
        %2488 = vmatpush1.msra.mxu0 0.0
        %2489 = vmatprep.subr.mxu0 0.0
        %2490 = vmatpush1.msra.mxu0 0.0
        %2491 = vmatprep.subr.mxu0 0.0
        %2492 = vmatpush1.msra.mxu0 0.0
        %2493 = vmatprep.subr.mxu0 0.0
        %2494 = vmatpush1.msra.mxu0 0.0
        %2495 = vmatprep.subr.mxu0 0.0
        %2496 = vmatpush1.msra.mxu0 0.0
        %2497 = vmatprep.subr.mxu0 0.0
        %2498 = vmatpush1.msra.mxu0 0.0
        %2499 = vmatprep.subr.mxu0 0.0
        %2500 = vmatpush1.msra.mxu0 0.0
        %2501 = vmatprep.subr.mxu0 0.0
        %2502 = vmatpush1.msra.mxu0 0.0
        %2503 = vmatprep.subr.mxu0 0.0
        %2504 = vmatpush1.msra.mxu0 0.0
        %2505 = vmatprep.subr.mxu0 0.0
        %2506 = vmatpush1.msra.mxu0 0.0
        %2507 = vmatprep.subr.mxu0 0.0
        %2508 = vmatpush1.msra.mxu0 0.0
        %2509 = vmatprep.subr.mxu0 0.0
        %2510 = vmatpush1.msra.mxu0 0.0
        %2511 = vmatprep.subr.mxu0 0.0
        %2512 = vmatpush1.msra.mxu0 0.0
        %2513 = vmatprep.subr.mxu0 0.0
        %2514 = vmatpush1.msra.mxu0 0.0
        %2515 = vmatprep.subr.mxu0 0.0
        %2516 = vmatpush1.msra.mxu0 0.0
        %2517 = vmatprep.subr.mxu0 0.0
        %2518 = vmatpush1.msra.mxu0 0.0
        %2519 = vmatprep.mubr.f32.mxu0 0.0
        %2520 = vmatmul.mubr.f32.gmra.mrb[0].mxu0 %v1757
        %v2521 = vpop.f32.mrb[0].mxu0
        %v2522 = vadd.f32 0.0, %v2521
        %v2523 = vpop.f32.mrb[0].mxu0
        %v2524 = vadd.f32 0.0, %v2523
        %2525 = vmatprep.mubr.f32.mxu0 0.0
        %2526 = vmatmul.mubr.f32.gmra.mrb[0].mxu0 %v1760
        %v2527 = vpop.f32.mrb[0].mxu0
        %v2528 = vadd.f32 0.0, %v2527
        %v2529 = vpop.f32.mrb[0].mxu0
        %v2530 = vadd.f32 0.0, %v2529
        %2531 = vdwg.mxu0
        %2532 = vmatprep.subr.mxu0 %v1646
        %2533 = vmatpush1.msra.mxu0 %v1645
        %2534 = vmatprep.subr.mxu0 %v1710
        %2535 = vmatpush1.msra.mxu0 %v1709
        %2536 = vmatprep.subr.mxu0 0.0
        %2537 = vmatpush1.msra.mxu0 0.0
        %2538 = vmatprep.subr.mxu0 0.0
        %2539 = vmatpush1.msra.mxu0 0.0
        %2540 = vmatprep.subr.mxu0 0.0
        %2541 = vmatpush1.msra.mxu0 0.0
        %2542 = vmatprep.subr.mxu0 0.0
        %2543 = vmatpush1.msra.mxu0 0.0
        %2544 = vmatprep.subr.mxu0 0.0
        %2545 = vmatpush1.msra.mxu0 0.0
        %2546 = vmatprep.subr.mxu0 0.0
        %2547 = vmatpush1.msra.mxu0 0.0
        %2548 = vmatprep.subr.mxu0 0.0
        %2549 = vmatpush1.msra.mxu0 0.0
        %2550 = vmatprep.subr.mxu0 0.0
        %2551 = vmatpush1.msra.mxu0 0.0
        %2552 = vmatprep.subr.mxu0 0.0
        %2553 = vmatpush1.msra.mxu0 0.0
        %2554 = vmatprep.subr.mxu0 0.0
        %2555 = vmatpush1.msra.mxu0 0.0
        %2556 = vmatprep.subr.mxu0 0.0
        %2557 = vmatpush1.msra.mxu0 0.0
        %2558 = vmatprep.subr.mxu0 0.0
        %2559 = vmatpush1.msra.mxu0 0.0
        %2560 = vmatprep.subr.mxu0 0.0
        %2561 = vmatpush1.msra.mxu0 0.0
        %2562 = vmatprep.subr.mxu0 0.0
        %2563 = vmatpush1.msra.mxu0 0.0
        %2564 = vmatprep.subr.mxu0 0.0
        %2565 = vmatpush1.msra.mxu0 0.0
        %2566 = vmatprep.subr.mxu0 0.0
        %2567 = vmatpush1.msra.mxu0 0.0
        %2568 = vmatprep.subr.mxu0 0.0
        %2569 = vmatpush1.msra.mxu0 0.0
        %2570 = vmatprep.subr.mxu0 0.0
        %2571 = vmatpush1.msra.mxu0 0.0
        %2572 = vmatprep.subr.mxu0 0.0
        %2573 = vmatpush1.msra.mxu0 0.0
        %2574 = vmatprep.subr.mxu0 0.0
        %2575 = vmatpush1.msra.mxu0 0.0
        %2576 = vmatprep.subr.mxu0 0.0
        %2577 = vmatpush1.msra.mxu0 0.0
        %2578 = vmatprep.subr.mxu0 0.0
        %2579 = vmatpush1.msra.mxu0 0.0
        %2580 = vmatprep.subr.mxu0 0.0
        %2581 = vmatpush1.msra.mxu0 0.0
        %2582 = vmatprep.subr.mxu0 0.0
        %2583 = vmatpush1.msra.mxu0 0.0
        %2584 = vmatprep.subr.mxu0 0.0
        %2585 = vmatpush1.msra.mxu0 0.0
        %2586 = vmatprep.subr.mxu0 0.0
        %2587 = vmatpush1.msra.mxu0 0.0
        %2588 = vmatprep.subr.mxu0 0.0
        %2589 = vmatpush1.msra.mxu0 0.0
        %2590 = vmatprep.subr.mxu0 0.0
        %2591 = vmatpush1.msra.mxu0 0.0
        %2592 = vmatprep.subr.mxu0 0.0
        %2593 = vmatpush1.msra.mxu0 0.0
        %2594 = vmatprep.subr.mxu0 0.0
        %2595 = vmatpush1.msra.mxu0 0.0
        %2596 = vmatprep.mubr.f32.mxu0 0.0
        %2597 = vmatmul.mubr.f32.gmra.mrb[0].mxu0 %v1757
        %v2598 = vpop.f32.mrb[0].mxu0
        %v2599 = vadd.f32 0.0, %v2598
        %v2600 = vpop.f32.mrb[0].mxu0
        %v2601 = vadd.f32 0.0, %v2600
        %2602 = vmatprep.mubr.f32.mxu0 0.0
        %2603 = vmatmul.mubr.f32.gmra.mrb[0].mxu0 %v1760
        %v2604 = vpop.f32.mrb[0].mxu0
        %v2605 = vadd.f32 0.0, %v2604
        %v2606 = vpop.f32.mrb[0].mxu0
        %v2607 = vadd.f32 0.0, %v2606
        %2608 = vdwg.mxu0
        %2609 = vmatprep.subr.mxu0 %v1648
        %2610 = vmatpush1.msra.mxu0 %v1647
        %2611 = vmatprep.subr.mxu0 %v1712
        %2612 = vmatpush1.msra.mxu0 %v1711
        %2613 = vmatprep.subr.mxu0 0.0
        %2614 = vmatpush1.msra.mxu0 0.0
        %2615 = vmatprep.subr.mxu0 0.0
        %2616 = vmatpush1.msra.mxu0 0.0
        %2617 = vmatprep.subr.mxu0 0.0
        %2618 = vmatpush1.msra.mxu0 0.0
        %2619 = vmatprep.subr.mxu0 0.0
        %2620 = vmatpush1.msra.mxu0 0.0
        %2621 = vmatprep.subr.mxu0 0.0
        %2622 = vmatpush1.msra.mxu0 0.0
        %2623 = vmatprep.subr.mxu0 0.0
        %2624 = vmatpush1.msra.mxu0 0.0
        %2625 = vmatprep.subr.mxu0 0.0
        %2626 = vmatpush1.msra.mxu0 0.0
        %2627 = vmatprep.subr.mxu0 0.0
        %2628 = vmatpush1.msra.mxu0 0.0
        %2629 = vmatprep.subr.mxu0 0.0
        %2630 = vmatpush1.msra.mxu0 0.0
        %2631 = vmatprep.subr.mxu0 0.0
        %2632 = vmatpush1.msra.mxu0 0.0
        %2633 = vmatprep.subr.mxu0 0.0
        %2634 = vmatpush1.msra.mxu0 0.0
        %2635 = vmatprep.subr.mxu0 0.0
        %2636 = vmatpush1.msra.mxu0 0.0
        %2637 = vmatprep.subr.mxu0 0.0
        %2638 = vmatpush1.msra.mxu0 0.0
        %2639 = vmatprep.subr.mxu0 0.0
        %2640 = vmatpush1.msra.mxu0 0.0
        %2641 = vmatprep.subr.mxu0 0.0
        %2642 = vmatpush1.msra.mxu0 0.0
        %2643 = vmatprep.subr.mxu0 0.0
        %2644 = vmatpush1.msra.mxu0 0.0
        %2645 = vmatprep.subr.mxu0 0.0
        %2646 = vmatpush1.msra.mxu0 0.0
        %2647 = vmatprep.subr.mxu0 0.0
        %2648 = vmatpush1.msra.mxu0 0.0
        %2649 = vmatprep.subr.mxu0 0.0
        %2650 = vmatpush1.msra.mxu0 0.0
        %2651 = vmatprep.subr.mxu0 0.0
        %2652 = vmatpush1.msra.mxu0 0.0
        %2653 = vmatprep.subr.mxu0 0.0
        %2654 = vmatpush1.msra.mxu0 0.0
        %2655 = vmatprep.subr.mxu0 0.0
        %2656 = vmatpush1.msra.mxu0 0.0
        %2657 = vmatprep.subr.mxu0 0.0
        %2658 = vmatpush1.msra.mxu0 0.0
        %2659 = vmatprep.subr.mxu0 0.0
        %2660 = vmatpush1.msra.mxu0 0.0
        %2661 = vmatprep.subr.mxu0 0.0
        %2662 = vmatpush1.msra.mxu0 0.0
        %2663 = vmatprep.subr.mxu0 0.0
        %2664 = vmatpush1.msra.mxu0 0.0
        %2665 = vmatprep.subr.mxu0 0.0
        %2666 = vmatpush1.msra.mxu0 0.0
        %2667 = vmatprep.subr.mxu0 0.0
        %2668 = vmatpush1.msra.mxu0 0.0
        %2669 = vmatprep.subr.mxu0 0.0
        %2670 = vmatpush1.msra.mxu0 0.0
        %2671 = vmatprep.subr.mxu0 0.0
        %2672 = vmatpush1.msra.mxu0 0.0
        %2673 = vmatprep.mubr.f32.mxu0 0.0
        %2674 = vmatmul.mubr.f32.gmra.mrb[0].mxu0 %v1757
        %v2675 = vpop.f32.mrb[0].mxu0
        %v2676 = vadd.f32 0.0, %v2675
        %v2677 = vpop.f32.mrb[0].mxu0
        %v2678 = vadd.f32 0.0, %v2677
        %2679 = vmatprep.mubr.f32.mxu0 0.0
        %2680 = vmatmul.mubr.f32.gmra.mrb[0].mxu0 %v1760
        %v2681 = vpop.f32.mrb[0].mxu0
        %v2682 = vadd.f32 0.0, %v2681
        %v2683 = vpop.f32.mrb[0].mxu0
        %v2684 = vadd.f32 0.0, %v2683
        %2685 = vdwg.mxu0
        %2686 = vmatprep.subr.mxu0 %v1650
        %2687 = vmatpush1.msra.mxu0 %v1649
        %2688 = vmatprep.subr.mxu0 %v1714
        %2689 = vmatpush1.msra.mxu0 %v1713
        %2690 = vmatprep.subr.mxu0 0.0
        %2691 = vmatpush1.msra.mxu0 0.0
        %2692 = vmatprep.subr.mxu0 0.0
        %2693 = vmatpush1.msra.mxu0 0.0
        %2694 = vmatprep.subr.mxu0 0.0
        %2695 = vmatpush1.msra.mxu0 0.0
        %2696 = vmatprep.subr.mxu0 0.0
        %2697 = vmatpush1.msra.mxu0 0.0
        %2698 = vmatprep.subr.mxu0 0.0
        %2699 = vmatpush1.msra.mxu0 0.0
        %2700 = vmatprep.subr.mxu0 0.0
        %2701 = vmatpush1.msra.mxu0 0.0
        %2702 = vmatprep.subr.mxu0 0.0
        %2703 = vmatpush1.msra.mxu0 0.0
        %2704 = vmatprep.subr.mxu0 0.0
        %2705 = vmatpush1.msra.mxu0 0.0
        %2706 = vmatprep.subr.mxu0 0.0
        %2707 = vmatpush1.msra.mxu0 0.0
        %2708 = vmatprep.subr.mxu0 0.0
        %2709 = vmatpush1.msra.mxu0 0.0
        %2710 = vmatprep.subr.mxu0 0.0
        %2711 = vmatpush1.msra.mxu0 0.0
        %2712 = vmatprep.subr.mxu0 0.0
        %2713 = vmatpush1.msra.mxu0 0.0
        %2714 = vmatprep.subr.mxu0 0.0
        %2715 = vmatpush1.msra.mxu0 0.0
        %2716 = vmatprep.subr.mxu0 0.0
        %2717 = vmatpush1.msra.mxu0 0.0
        %2718 = vmatprep.subr.mxu0 0.0
        %2719 = vmatpush1.msra.mxu0 0.0
        %2720 = vmatprep.subr.mxu0 0.0
        %2721 = vmatpush1.msra.mxu0 0.0
        %2722 = vmatprep.subr.mxu0 0.0
        %2723 = vmatpush1.msra.mxu0 0.0
        %2724 = vmatprep.subr.mxu0 0.0
        %2725 = vmatpush1.msra.mxu0 0.0
        %2726 = vmatprep.subr.mxu0 0.0
        %2727 = vmatpush1.msra.mxu0 0.0
        %2728 = vmatprep.subr.mxu0 0.0
        %2729 = vmatpush1.msra.mxu0 0.0
        %2730 = vmatprep.subr.mxu0 0.0
        %2731 = vmatpush1.msra.mxu0 0.0
        %2732 = vmatprep.subr.mxu0 0.0
        %2733 = vmatpush1.msra.mxu0 0.0
        %2734 = vmatprep.subr.mxu0 0.0
        %2735 = vmatpush1.msra.mxu0 0.0
        %2736 = vmatprep.subr.mxu0 0.0
        %2737 = vmatpush1.msra.mxu0 0.0
        %2738 = vmatprep.subr.mxu0 0.0
        %2739 = vmatpush1.msra.mxu0 0.0
        %2740 = vmatprep.subr.mxu0 0.0
        %2741 = vmatpush1.msra.mxu0 0.0
        %2742 = vmatprep.subr.mxu0 0.0
        %2743 = vmatpush1.msra.mxu0 0.0
        %2744 = vmatprep.subr.mxu0 0.0
        %2745 = vmatpush1.msra.mxu0 0.0
        %2746 = vmatprep.subr.mxu0 0.0
        %2747 = vmatpush1.msra.mxu0 0.0
        %2748 = vmatprep.subr.mxu0 0.0
        %2749 = vmatpush1.msra.mxu0 0.0
        %2750 = vmatprep.mubr.f32.mxu0 0.0
        %2751 = vmatmul.mubr.f32.gmra.mrb[0].mxu0 %v1757
        %v2752 = vpop.f32.mrb[0].mxu0
        %v2753 = vadd.f32 0.0, %v2752
        %v2754 = vpop.f32.mrb[0].mxu0
        %v2755 = vadd.f32 0.0, %v2754
        %2756 = vmatprep.mubr.f32.mxu0 0.0
        %2757 = vmatmul.mubr.f32.gmra.mrb[0].mxu0 %v1760
        %v2758 = vpop.f32.mrb[0].mxu0
        %v2759 = vadd.f32 0.0, %v2758
        %v2760 = vpop.f32.mrb[0].mxu0
        %v2761 = vadd.f32 0.0, %v2760
        %2762 = vdwg.mxu0
        %2763 = vmatprep.subr.mxu0 %v1652
        %2764 = vmatpush1.msra.mxu0 %v1651
        %2765 = vmatprep.subr.mxu0 %v1716
        %2766 = vmatpush1.msra.mxu0 %v1715
        %2767 = vmatprep.subr.mxu0 0.0
        %2768 = vmatpush1.msra.mxu0 0.0
        %2769 = vmatprep.subr.mxu0 0.0
        %2770 = vmatpush1.msra.mxu0 0.0
        %2771 = vmatprep.subr.mxu0 0.0
        %2772 = vmatpush1.msra.mxu0 0.0
        %2773 = vmatprep.subr.mxu0 0.0
        %2774 = vmatpush1.msra.mxu0 0.0
        %2775 = vmatprep.subr.mxu0 0.0
        %2776 = vmatpush1.msra.mxu0 0.0
        %2777 = vmatprep.subr.mxu0 0.0
        %2778 = vmatpush1.msra.mxu0 0.0
        %2779 = vmatprep.subr.mxu0 0.0
        %2780 = vmatpush1.msra.mxu0 0.0
        %2781 = vmatprep.subr.mxu0 0.0
        %2782 = vmatpush1.msra.mxu0 0.0
        %2783 = vmatprep.subr.mxu0 0.0
        %2784 = vmatpush1.msra.mxu0 0.0
        %2785 = vmatprep.subr.mxu0 0.0
        %2786 = vmatpush1.msra.mxu0 0.0
        %2787 = vmatprep.subr.mxu0 0.0
        %2788 = vmatpush1.msra.mxu0 0.0
        %2789 = vmatprep.subr.mxu0 0.0
        %2790 = vmatpush1.msra.mxu0 0.0
        %2791 = vmatprep.subr.mxu0 0.0
        %2792 = vmatpush1.msra.mxu0 0.0
        %2793 = vmatprep.subr.mxu0 0.0
        %2794 = vmatpush1.msra.mxu0 0.0
        %2795 = vmatprep.subr.mxu0 0.0
        %2796 = vmatpush1.msra.mxu0 0.0
        %2797 = vmatprep.subr.mxu0 0.0
        %2798 = vmatpush1.msra.mxu0 0.0
        %2799 = vmatprep.subr.mxu0 0.0
        %2800 = vmatpush1.msra.mxu0 0.0
        %2801 = vmatprep.subr.mxu0 0.0
        %2802 = vmatpush1.msra.mxu0 0.0
        %2803 = vmatprep.subr.mxu0 0.0
        %2804 = vmatpush1.msra.mxu0 0.0
        %2805 = vmatprep.subr.mxu0 0.0
        %2806 = vmatpush1.msra.mxu0 0.0
        %2807 = vmatprep.subr.mxu0 0.0
        %2808 = vmatpush1.msra.mxu0 0.0
        %2809 = vmatprep.subr.mxu0 0.0
        %2810 = vmatpush1.msra.mxu0 0.0
        %2811 = vmatprep.subr.mxu0 0.0
        %2812 = vmatpush1.msra.mxu0 0.0
        %2813 = vmatprep.subr.mxu0 0.0
        %2814 = vmatpush1.msra.mxu0 0.0
        %2815 = vmatprep.subr.mxu0 0.0
        %2816 = vmatpush1.msra.mxu0 0.0
        %2817 = vmatprep.subr.mxu0 0.0
        %2818 = vmatpush1.msra.mxu0 0.0
        %2819 = vmatprep.subr.mxu0 0.0
        %2820 = vmatpush1.msra.mxu0 0.0
        %2821 = vmatprep.subr.mxu0 0.0
        %2822 = vmatpush1.msra.mxu0 0.0
        %2823 = vmatprep.subr.mxu0 0.0
        %2824 = vmatpush1.msra.mxu0 0.0
        %2825 = vmatprep.subr.mxu0 0.0
        %2826 = vmatpush1.msra.mxu0 0.0
        %2827 = vmatprep.mubr.f32.mxu0 0.0
        %2828 = vmatmul.mubr.f32.gmra.mrb[0].mxu0 %v1757
        %v2829 = vpop.f32.mrb[0].mxu0
        %v2830 = vadd.f32 0.0, %v2829
        %v2831 = vpop.f32.mrb[0].mxu0
        %v2832 = vadd.f32 0.0, %v2831
        %2833 = vmatprep.mubr.f32.mxu0 0.0
        %2834 = vmatmul.mubr.f32.gmra.mrb[0].mxu0 %v1760
        %v2835 = vpop.f32.mrb[0].mxu0
        %v2836 = vadd.f32 0.0, %v2835
        %v2837 = vpop.f32.mrb[0].mxu0
        %v2838 = vadd.f32 0.0, %v2837
        %2839 = vdwg.mxu0
        %2840 = vmatprep.subr.mxu0 %v1654
        %2841 = vmatpush1.msra.mxu0 %v1653
        %2842 = vmatprep.subr.mxu0 %v1718
        %2843 = vmatpush1.msra.mxu0 %v1717
        %2844 = vmatprep.subr.mxu0 0.0
        %2845 = vmatpush1.msra.mxu0 0.0
        %2846 = vmatprep.subr.mxu0 0.0
        %2847 = vmatpush1.msra.mxu0 0.0
        %2848 = vmatprep.subr.mxu0 0.0
        %2849 = vmatpush1.msra.mxu0 0.0
        %2850 = vmatprep.subr.mxu0 0.0
        %2851 = vmatpush1.msra.mxu0 0.0
        %2852 = vmatprep.subr.mxu0 0.0
        %2853 = vmatpush1.msra.mxu0 0.0
        %2854 = vmatprep.subr.mxu0 0.0
        %2855 = vmatpush1.msra.mxu0 0.0
        %2856 = vmatprep.subr.mxu0 0.0
        %2857 = vmatpush1.msra.mxu0 0.0
        %2858 = vmatprep.subr.mxu0 0.0
        %2859 = vmatpush1.msra.mxu0 0.0
        %2860 = vmatprep.subr.mxu0 0.0
        %2861 = vmatpush1.msra.mxu0 0.0
        %2862 = vmatprep.subr.mxu0 0.0
        %2863 = vmatpush1.msra.mxu0 0.0
        %2864 = vmatprep.subr.mxu0 0.0
        %2865 = vmatpush1.msra.mxu0 0.0
        %2866 = vmatprep.subr.mxu0 0.0
        %2867 = vmatpush1.msra.mxu0 0.0
        %2868 = vmatprep.subr.mxu0 0.0
        %2869 = vmatpush1.msra.mxu0 0.0
        %2870 = vmatprep.subr.mxu0 0.0
        %2871 = vmatpush1.msra.mxu0 0.0
        %2872 = vmatprep.subr.mxu0 0.0
        %2873 = vmatpush1.msra.mxu0 0.0
        %2874 = vmatprep.subr.mxu0 0.0
        %2875 = vmatpush1.msra.mxu0 0.0
        %2876 = vmatprep.subr.mxu0 0.0
        %2877 = vmatpush1.msra.mxu0 0.0
        %2878 = vmatprep.subr.mxu0 0.0
        %2879 = vmatpush1.msra.mxu0 0.0
        %2880 = vmatprep.subr.mxu0 0.0
        %2881 = vmatpush1.msra.mxu0 0.0
        %2882 = vmatprep.subr.mxu0 0.0
        %2883 = vmatpush1.msra.mxu0 0.0
        %2884 = vmatprep.subr.mxu0 0.0
        %2885 = vmatpush1.msra.mxu0 0.0
        %2886 = vmatprep.subr.mxu0 0.0
        %2887 = vmatpush1.msra.mxu0 0.0
        %2888 = vmatprep.subr.mxu0 0.0
        %2889 = vmatpush1.msra.mxu0 0.0
        %2890 = vmatprep.subr.mxu0 0.0
        %2891 = vmatpush1.msra.mxu0 0.0
        %2892 = vmatprep.subr.mxu0 0.0
        %2893 = vmatpush1.msra.mxu0 0.0
        %2894 = vmatprep.subr.mxu0 0.0
        %2895 = vmatpush1.msra.mxu0 0.0
        %2896 = vmatprep.subr.mxu0 0.0
        %2897 = vmatpush1.msra.mxu0 0.0
        %2898 = vmatprep.subr.mxu0 0.0
        %2899 = vmatpush1.msra.mxu0 0.0
        %2900 = vmatprep.subr.mxu0 0.0
        %2901 = vmatpush1.msra.mxu0 0.0
        %2902 = vmatprep.subr.mxu0 0.0
        %2903 = vmatpush1.msra.mxu0 0.0
        %2904 = vmatprep.mubr.f32.mxu0 0.0
        %2905 = vmatmul.mubr.f32.gmra.mrb[0].mxu0 %v1757
        %v2906 = vpop.f32.mrb[0].mxu0
        %v2907 = vadd.f32 0.0, %v2906
        %v2908 = vpop.f32.mrb[0].mxu0
        %v2909 = vadd.f32 0.0, %v2908
        %2910 = vmatprep.mubr.f32.mxu0 0.0
        %2911 = vmatmul.mubr.f32.gmra.mrb[0].mxu0 %v1760
        %v2912 = vpop.f32.mrb[0].mxu0
        %v2913 = vadd.f32 0.0, %v2912
        %v2914 = vpop.f32.mrb[0].mxu0
        %v2915 = vadd.f32 0.0, %v2914
        %2916 = vdwg.mxu0
        %2917 = vmatprep.subr.mxu0 %v1656
        %2918 = vmatpush1.msra.mxu0 %v1655
        %2919 = vmatprep.subr.mxu0 %v1720
        %2920 = vmatpush1.msra.mxu0 %v1719
        %2921 = vmatprep.subr.mxu0 0.0
        %2922 = vmatpush1.msra.mxu0 0.0
        %2923 = vmatprep.subr.mxu0 0.0
        %2924 = vmatpush1.msra.mxu0 0.0
        %2925 = vmatprep.subr.mxu0 0.0
        %2926 = vmatpush1.msra.mxu0 0.0
        %2927 = vmatprep.subr.mxu0 0.0
        %2928 = vmatpush1.msra.mxu0 0.0
        %2929 = vmatprep.subr.mxu0 0.0
        %2930 = vmatpush1.msra.mxu0 0.0
        %2931 = vmatprep.subr.mxu0 0.0
        %2932 = vmatpush1.msra.mxu0 0.0
        %2933 = vmatprep.subr.mxu0 0.0
        %2934 = vmatpush1.msra.mxu0 0.0
        %2935 = vmatprep.subr.mxu0 0.0
        %2936 = vmatpush1.msra.mxu0 0.0
        %2937 = vmatprep.subr.mxu0 0.0
        %2938 = vmatpush1.msra.mxu0 0.0
        %2939 = vmatprep.subr.mxu0 0.0
        %2940 = vmatpush1.msra.mxu0 0.0
        %2941 = vmatprep.subr.mxu0 0.0
        %2942 = vmatpush1.msra.mxu0 0.0
        %2943 = vmatprep.subr.mxu0 0.0
        %2944 = vmatpush1.msra.mxu0 0.0
        %2945 = vmatprep.subr.mxu0 0.0
        %2946 = vmatpush1.msra.mxu0 0.0
        %2947 = vmatprep.subr.mxu0 0.0
        %2948 = vmatpush1.msra.mxu0 0.0
        %2949 = vmatprep.subr.mxu0 0.0
        %2950 = vmatpush1.msra.mxu0 0.0
        %2951 = vmatprep.subr.mxu0 0.0
        %2952 = vmatpush1.msra.mxu0 0.0
        %2953 = vmatprep.subr.mxu0 0.0
        %2954 = vmatpush1.msra.mxu0 0.0
        %2955 = vmatprep.subr.mxu0 0.0
        %2956 = vmatpush1.msra.mxu0 0.0
        %2957 = vmatprep.subr.mxu0 0.0
        %2958 = vmatpush1.msra.mxu0 0.0
        %2959 = vmatprep.subr.mxu0 0.0
        %2960 = vmatpush1.msra.mxu0 0.0
        %2961 = vmatprep.subr.mxu0 0.0
        %2962 = vmatpush1.msra.mxu0 0.0
        %2963 = vmatprep.subr.mxu0 0.0
        %2964 = vmatpush1.msra.mxu0 0.0
        %2965 = vmatprep.subr.mxu0 0.0
        %2966 = vmatpush1.msra.mxu0 0.0
        %2967 = vmatprep.subr.mxu0 0.0
        %2968 = vmatpush1.msra.mxu0 0.0
        %2969 = vmatprep.subr.mxu0 0.0
        %2970 = vmatpush1.msra.mxu0 0.0
        %2971 = vmatprep.subr.mxu0 0.0
        %2972 = vmatpush1.msra.mxu0 0.0
        %2973 = vmatprep.subr.mxu0 0.0
        %2974 = vmatpush1.msra.mxu0 0.0
        %2975 = vmatprep.subr.mxu0 0.0
        %2976 = vmatpush1.msra.mxu0 0.0
        %2977 = vmatprep.subr.mxu0 0.0
        %2978 = vmatpush1.msra.mxu0 0.0
        %2979 = vmatprep.subr.mxu0 0.0
        %2980 = vmatpush1.msra.mxu0 0.0
        %2981 = vmatprep.mubr.f32.mxu0 0.0
        %2982 = vmatmul.mubr.f32.gmra.mrb[0].mxu0 %v1757
        %v2983 = vpop.f32.mrb[0].mxu0
        %v2984 = vadd.f32 0.0, %v2983
        %v2985 = vpop.f32.mrb[0].mxu0
        %v2986 = vadd.f32 0.0, %v2985
        %2987 = vmatprep.mubr.f32.mxu0 0.0
        %2988 = vmatmul.mubr.f32.gmra.mrb[0].mxu0 %v1760
        %v2989 = vpop.f32.mrb[0].mxu0
        %v2990 = vadd.f32 0.0, %v2989
        %v2991 = vpop.f32.mrb[0].mxu0
        %v2992 = vadd.f32 0.0, %v2991
        %2993 = vdwg.mxu0
        %2994 = vmatprep.subr.mxu0 %v1658
        %2995 = vmatpush1.msra.mxu0 %v1657
        %2996 = vmatprep.subr.mxu0 %v1722
        %2997 = vmatpush1.msra.mxu0 %v1721
        %2998 = vmatprep.subr.mxu0 0.0
        %2999 = vmatpush1.msra.mxu0 0.0
        %3000 = vmatprep.subr.mxu0 0.0
        %3001 = vmatpush1.msra.mxu0 0.0
        %3002 = vmatprep.subr.mxu0 0.0
        %3003 = vmatpush1.msra.mxu0 0.0
        %3004 = vmatprep.subr.mxu0 0.0
        %3005 = vmatpush1.msra.mxu0 0.0
        %3006 = vmatprep.subr.mxu0 0.0
        %3007 = vmatpush1.msra.mxu0 0.0
        %3008 = vmatprep.subr.mxu0 0.0
        %3009 = vmatpush1.msra.mxu0 0.0
        %3010 = vmatprep.subr.mxu0 0.0
        %3011 = vmatpush1.msra.mxu0 0.0
        %3012 = vmatprep.subr.mxu0 0.0
        %3013 = vmatpush1.msra.mxu0 0.0
        %3014 = vmatprep.subr.mxu0 0.0
        %3015 = vmatpush1.msra.mxu0 0.0
        %3016 = vmatprep.subr.mxu0 0.0
        %3017 = vmatpush1.msra.mxu0 0.0
        %3018 = vmatprep.subr.mxu0 0.0
        %3019 = vmatpush1.msra.mxu0 0.0
        %3020 = vmatprep.subr.mxu0 0.0
        %3021 = vmatpush1.msra.mxu0 0.0
        %3022 = vmatprep.subr.mxu0 0.0
        %3023 = vmatpush1.msra.mxu0 0.0
        %3024 = vmatprep.subr.mxu0 0.0
        %3025 = vmatpush1.msra.mxu0 0.0
        %3026 = vmatprep.subr.mxu0 0.0
        %3027 = vmatpush1.msra.mxu0 0.0
        %3028 = vmatprep.subr.mxu0 0.0
        %3029 = vmatpush1.msra.mxu0 0.0
        %3030 = vmatprep.subr.mxu0 0.0
        %3031 = vmatpush1.msra.mxu0 0.0
        %3032 = vmatprep.subr.mxu0 0.0
        %3033 = vmatpush1.msra.mxu0 0.0
        %3034 = vmatprep.subr.mxu0 0.0
        %3035 = vmatpush1.msra.mxu0 0.0
        %3036 = vmatprep.subr.mxu0 0.0
        %3037 = vmatpush1.msra.mxu0 0.0
        %3038 = vmatprep.subr.mxu0 0.0
        %3039 = vmatpush1.msra.mxu0 0.0
        %3040 = vmatprep.subr.mxu0 0.0
        %3041 = vmatpush1.msra.mxu0 0.0
        %3042 = vmatprep.subr.mxu0 0.0
        %3043 = vmatpush1.msra.mxu0 0.0
        %3044 = vmatprep.subr.mxu0 0.0
        %3045 = vmatpush1.msra.mxu0 0.0
        %3046 = vmatprep.subr.mxu0 0.0
        %3047 = vmatpush1.msra.mxu0 0.0
        %3048 = vmatprep.subr.mxu0 0.0
        %3049 = vmatpush1.msra.mxu0 0.0
        %3050 = vmatprep.subr.mxu0 0.0
        %3051 = vmatpush1.msra.mxu0 0.0
        %3052 = vmatprep.subr.mxu0 0.0
        %3053 = vmatpush1.msra.mxu0 0.0
        %3054 = vmatprep.subr.mxu0 0.0
        %3055 = vmatpush1.msra.mxu0 0.0
        %3056 = vmatprep.subr.mxu0 0.0
        %3057 = vmatpush1.msra.mxu0 0.0
        %3058 = vmatprep.mubr.f32.mxu0 0.0
        %3059 = vmatmul.mubr.f32.gmra.mrb[0].mxu0 %v1757
        %v3060 = vpop.f32.mrb[0].mxu0
        %v3061 = vadd.f32 0.0, %v3060
        %v3062 = vpop.f32.mrb[0].mxu0
        %v3063 = vadd.f32 0.0, %v3062
        %3064 = vmatprep.mubr.f32.mxu0 0.0
        %3065 = vmatmul.mubr.f32.gmra.mrb[0].mxu0 %v1760
        %v3066 = vpop.f32.mrb[0].mxu0
        %v3067 = vadd.f32 0.0, %v3066
        %v3068 = vpop.f32.mrb[0].mxu0
        %v3069 = vadd.f32 0.0, %v3068
        %3070 = vdwg.mxu0
        %3071 = vmatprep.subr.mxu0 %v1660
        %3072 = vmatpush1.msra.mxu0 %v1659
        %3073 = vmatprep.subr.mxu0 %v1724
        %3074 = vmatpush1.msra.mxu0 %v1723
        %3075 = vmatprep.subr.mxu0 0.0
        %3076 = vmatpush1.msra.mxu0 0.0
        %3077 = vmatprep.subr.mxu0 0.0
        %3078 = vmatpush1.msra.mxu0 0.0
        %3079 = vmatprep.subr.mxu0 0.0
        %3080 = vmatpush1.msra.mxu0 0.0
        %3081 = vmatprep.subr.mxu0 0.0
        %3082 = vmatpush1.msra.mxu0 0.0
        %3083 = vmatprep.subr.mxu0 0.0
        %3084 = vmatpush1.msra.mxu0 0.0
        %3085 = vmatprep.subr.mxu0 0.0
        %3086 = vmatpush1.msra.mxu0 0.0
        %3087 = vmatprep.subr.mxu0 0.0
        %3088 = vmatpush1.msra.mxu0 0.0
        %3089 = vmatprep.subr.mxu0 0.0
        %3090 = vmatpush1.msra.mxu0 0.0
        %3091 = vmatprep.subr.mxu0 0.0
        %3092 = vmatpush1.msra.mxu0 0.0
        %3093 = vmatprep.subr.mxu0 0.0
        %3094 = vmatpush1.msra.mxu0 0.0
        %3095 = vmatprep.subr.mxu0 0.0
        %3096 = vmatpush1.msra.mxu0 0.0
        %3097 = vmatprep.subr.mxu0 0.0
        %3098 = vmatpush1.msra.mxu0 0.0
        %3099 = vmatprep.subr.mxu0 0.0
        %3100 = vmatpush1.msra.mxu0 0.0
        %3101 = vmatprep.subr.mxu0 0.0
        %3102 = vmatpush1.msra.mxu0 0.0
        %3103 = vmatprep.subr.mxu0 0.0
        %3104 = vmatpush1.msra.mxu0 0.0
        %3105 = vmatprep.subr.mxu0 0.0
        %3106 = vmatpush1.msra.mxu0 0.0
        %3107 = vmatprep.subr.mxu0 0.0
        %3108 = vmatpush1.msra.mxu0 0.0
        %3109 = vmatprep.subr.mxu0 0.0
        %3110 = vmatpush1.msra.mxu0 0.0
        %3111 = vmatprep.subr.mxu0 0.0
        %3112 = vmatpush1.msra.mxu0 0.0
        %3113 = vmatprep.subr.mxu0 0.0
        %3114 = vmatpush1.msra.mxu0 0.0
        %3115 = vmatprep.subr.mxu0 0.0
        %3116 = vmatpush1.msra.mxu0 0.0
        %3117 = vmatprep.subr.mxu0 0.0
        %3118 = vmatpush1.msra.mxu0 0.0
        %3119 = vmatprep.subr.mxu0 0.0
        %3120 = vmatpush1.msra.mxu0 0.0
        %3121 = vmatprep.subr.mxu0 0.0
        %3122 = vmatpush1.msra.mxu0 0.0
        %3123 = vmatprep.subr.mxu0 0.0
        %3124 = vmatpush1.msra.mxu0 0.0
        %3125 = vmatprep.subr.mxu0 0.0
        %3126 = vmatpush1.msra.mxu0 0.0
        %3127 = vmatprep.subr.mxu0 0.0
        %3128 = vmatpush1.msra.mxu0 0.0
        %3129 = vmatprep.subr.mxu0 0.0
        %3130 = vmatpush1.msra.mxu0 0.0
        %3131 = vmatprep.subr.mxu0 0.0
        %3132 = vmatpush1.msra.mxu0 0.0
        %3133 = vmatprep.subr.mxu0 0.0
        %3134 = vmatpush1.msra.mxu0 0.0
        %3135 = vmatprep.mubr.f32.mxu0 0.0
        %3136 = vmatmul.mubr.f32.gmra.mrb[0].mxu0 %v1757
        %v3137 = vpop.f32.mrb[0].mxu0
        %v3138 = vadd.f32 0.0, %v3137
        %v3139 = vpop.f32.mrb[0].mxu0
        %v3140 = vadd.f32 0.0, %v3139
        %3141 = vmatprep.mubr.f32.mxu0 0.0
        %3142 = vmatmul.mubr.f32.gmra.mrb[0].mxu0 %v1760
        %v3143 = vpop.f32.mrb[0].mxu0
        %v3144 = vadd.f32 0.0, %v3143
        %v3145 = vpop.f32.mrb[0].mxu0
        %v3146 = vadd.f32 0.0, %v3145
        %3147 = vdwg.mxu0
        %3148 = vmatprep.subr.mxu0 %v1662
        %3149 = vmatpush1.msra.mxu0 %v1661
        %3150 = vmatprep.subr.mxu0 %v1726
        %3151 = vmatpush1.msra.mxu0 %v1725
        %3152 = vmatprep.subr.mxu0 0.0
        %3153 = vmatpush1.msra.mxu0 0.0
        %3154 = vmatprep.subr.mxu0 0.0
        %3155 = vmatpush1.msra.mxu0 0.0
        %3156 = vmatprep.subr.mxu0 0.0
        %3157 = vmatpush1.msra.mxu0 0.0
        %3158 = vmatprep.subr.mxu0 0.0
        %3159 = vmatpush1.msra.mxu0 0.0
        %3160 = vmatprep.subr.mxu0 0.0
        %3161 = vmatpush1.msra.mxu0 0.0
        %3162 = vmatprep.subr.mxu0 0.0
        %3163 = vmatpush1.msra.mxu0 0.0
        %3164 = vmatprep.subr.mxu0 0.0
        %3165 = vmatpush1.msra.mxu0 0.0
        %3166 = vmatprep.subr.mxu0 0.0
        %3167 = vmatpush1.msra.mxu0 0.0
        %3168 = vmatprep.subr.mxu0 0.0
        %3169 = vmatpush1.msra.mxu0 0.0
        %3170 = vmatprep.subr.mxu0 0.0
        %3171 = vmatpush1.msra.mxu0 0.0
        %3172 = vmatprep.subr.mxu0 0.0
        %3173 = vmatpush1.msra.mxu0 0.0
        %3174 = vmatprep.subr.mxu0 0.0
        %3175 = vmatpush1.msra.mxu0 0.0
        %3176 = vmatprep.subr.mxu0 0.0
        %3177 = vmatpush1.msra.mxu0 0.0
        %3178 = vmatprep.subr.mxu0 0.0
        %3179 = vmatpush1.msra.mxu0 0.0
        %3180 = vmatprep.subr.mxu0 0.0
        %3181 = vmatpush1.msra.mxu0 0.0
        %3182 = vmatprep.subr.mxu0 0.0
        %3183 = vmatpush1.msra.mxu0 0.0
        %3184 = vmatprep.subr.mxu0 0.0
        %3185 = vmatpush1.msra.mxu0 0.0
        %3186 = vmatprep.subr.mxu0 0.0
        %3187 = vmatpush1.msra.mxu0 0.0
        %3188 = vmatprep.subr.mxu0 0.0
        %3189 = vmatpush1.msra.mxu0 0.0
        %3190 = vmatprep.subr.mxu0 0.0
        %3191 = vmatpush1.msra.mxu0 0.0
        %3192 = vmatprep.subr.mxu0 0.0
        %3193 = vmatpush1.msra.mxu0 0.0
        %3194 = vmatprep.subr.mxu0 0.0
        %3195 = vmatpush1.msra.mxu0 0.0
        %3196 = vmatprep.subr.mxu0 0.0
        %3197 = vmatpush1.msra.mxu0 0.0
        %3198 = vmatprep.subr.mxu0 0.0
        %3199 = vmatpush1.msra.mxu0 0.0
        %3200 = vmatprep.subr.mxu0 0.0
        %3201 = vmatpush1.msra.mxu0 0.0
        %3202 = vmatprep.subr.mxu0 0.0
        %3203 = vmatpush1.msra.mxu0 0.0
        %3204 = vmatprep.subr.mxu0 0.0
        %3205 = vmatpush1.msra.mxu0 0.0
        %3206 = vmatprep.subr.mxu0 0.0
        %3207 = vmatpush1.msra.mxu0 0.0
        %3208 = vmatprep.subr.mxu0 0.0
        %3209 = vmatpush1.msra.mxu0 0.0
        %3210 = vmatprep.subr.mxu0 0.0
        %3211 = vmatpush1.msra.mxu0 0.0
        %3212 = vmatprep.mubr.f32.mxu0 0.0
        %3213 = vmatmul.mubr.f32.gmra.mrb[0].mxu0 %v1757
        %v3214 = vpop.f32.mrb[0].mxu0
        %v3215 = vadd.f32 0.0, %v3214
        %v3216 = vpop.f32.mrb[0].mxu0
        %v3217 = vadd.f32 0.0, %v3216
        %3218 = vmatprep.mubr.f32.mxu0 0.0
        %3219 = vmatmul.mubr.f32.gmra.mrb[0].mxu0 %v1760
        %v3220 = vpop.f32.mrb[0].mxu0
        %v3221 = vadd.f32 0.0, %v3220
        %v3222 = vpop.f32.mrb[0].mxu0
        %v3223 = vadd.f32 0.0, %v3222
        %3224 = vdwg.mxu0
        %3225 = vmatprep.subr.mxu0 %v1664
        %3226 = vmatpush1.msra.mxu0 %v1663
        %3227 = vmatprep.subr.mxu0 %v1728
        %3228 = vmatpush1.msra.mxu0 %v1727
        %3229 = vmatprep.subr.mxu0 0.0
        %3230 = vmatpush1.msra.mxu0 0.0
        %3231 = vmatprep.subr.mxu0 0.0
        %3232 = vmatpush1.msra.mxu0 0.0
        %3233 = vmatprep.subr.mxu0 0.0
        %3234 = vmatpush1.msra.mxu0 0.0
        %3235 = vmatprep.subr.mxu0 0.0
        %3236 = vmatpush1.msra.mxu0 0.0
        %3237 = vmatprep.subr.mxu0 0.0
        %3238 = vmatpush1.msra.mxu0 0.0
        %3239 = vmatprep.subr.mxu0 0.0
        %3240 = vmatpush1.msra.mxu0 0.0
        %3241 = vmatprep.subr.mxu0 0.0
        %3242 = vmatpush1.msra.mxu0 0.0
        %3243 = vmatprep.subr.mxu0 0.0
        %3244 = vmatpush1.msra.mxu0 0.0
        %3245 = vmatprep.subr.mxu0 0.0
        %3246 = vmatpush1.msra.mxu0 0.0
        %3247 = vmatprep.subr.mxu0 0.0
        %3248 = vmatpush1.msra.mxu0 0.0
        %3249 = vmatprep.subr.mxu0 0.0
        %3250 = vmatpush1.msra.mxu0 0.0
        %3251 = vmatprep.subr.mxu0 0.0
        %3252 = vmatpush1.msra.mxu0 0.0
        %3253 = vmatprep.subr.mxu0 0.0
        %3254 = vmatpush1.msra.mxu0 0.0
        %3255 = vmatprep.subr.mxu0 0.0
        %3256 = vmatpush1.msra.mxu0 0.0
        %3257 = vmatprep.subr.mxu0 0.0
        %3258 = vmatpush1.msra.mxu0 0.0
        %3259 = vmatprep.subr.mxu0 0.0
        %3260 = vmatpush1.msra.mxu0 0.0
        %3261 = vmatprep.subr.mxu0 0.0
        %3262 = vmatpush1.msra.mxu0 0.0
        %3263 = vmatprep.subr.mxu0 0.0
        %3264 = vmatpush1.msra.mxu0 0.0
        %3265 = vmatprep.subr.mxu0 0.0
        %3266 = vmatpush1.msra.mxu0 0.0
        %3267 = vmatprep.subr.mxu0 0.0
        %3268 = vmatpush1.msra.mxu0 0.0
        %3269 = vmatprep.subr.mxu0 0.0
        %3270 = vmatpush1.msra.mxu0 0.0
        %3271 = vmatprep.subr.mxu0 0.0
        %3272 = vmatpush1.msra.mxu0 0.0
        %3273 = vmatprep.subr.mxu0 0.0
        %3274 = vmatpush1.msra.mxu0 0.0
        %3275 = vmatprep.subr.mxu0 0.0
        %3276 = vmatpush1.msra.mxu0 0.0
        %3277 = vmatprep.subr.mxu0 0.0
        %3278 = vmatpush1.msra.mxu0 0.0
        %3279 = vmatprep.subr.mxu0 0.0
        %3280 = vmatpush1.msra.mxu0 0.0
        %3281 = vmatprep.subr.mxu0 0.0
        %3282 = vmatpush1.msra.mxu0 0.0
        %3283 = vmatprep.subr.mxu0 0.0
        %3284 = vmatpush1.msra.mxu0 0.0
        %3285 = vmatprep.subr.mxu0 0.0
        %3286 = vmatpush1.msra.mxu0 0.0
        %3287 = vmatprep.subr.mxu0 0.0
        %3288 = vmatpush1.msra.mxu0 0.0
        %3289 = vmatprep.mubr.f32.mxu0 0.0
        %3290 = vmatmul.mubr.f32.gmra.mrb[0].mxu0 %v1757
        %v3291 = vpop.f32.mrb[0].mxu0
        %v3292 = vadd.f32 0.0, %v3291
        %v3293 = vpop.f32.mrb[0].mxu0
        %v3294 = vadd.f32 0.0, %v3293
        %3295 = vmatprep.mubr.f32.mxu0 0.0
        %3296 = vmatmul.mubr.f32.gmra.mrb[0].mxu0 %v1760
        %v3297 = vpop.f32.mrb[0].mxu0
        %v3298 = vadd.f32 0.0, %v3297
        %v3299 = vpop.f32.mrb[0].mxu0
        %v3300 = vadd.f32 0.0, %v3299
        %3301 = vdwg.mxu0
        %3302 = vmatprep.subr.mxu0 %v1666
        %3303 = vmatpush1.msra.mxu0 %v1665
        %3304 = vmatprep.subr.mxu0 %v1730
        %3305 = vmatpush1.msra.mxu0 %v1729
        %3306 = vmatprep.subr.mxu0 0.0
        %3307 = vmatpush1.msra.mxu0 0.0
        %3308 = vmatprep.subr.mxu0 0.0
        %3309 = vmatpush1.msra.mxu0 0.0
        %3310 = vmatprep.subr.mxu0 0.0
        %3311 = vmatpush1.msra.mxu0 0.0
        %3312 = vmatprep.subr.mxu0 0.0
        %3313 = vmatpush1.msra.mxu0 0.0
        %3314 = vmatprep.subr.mxu0 0.0
        %3315 = vmatpush1.msra.mxu0 0.0
        %3316 = vmatprep.subr.mxu0 0.0
        %3317 = vmatpush1.msra.mxu0 0.0
        %3318 = vmatprep.subr.mxu0 0.0
        %3319 = vmatpush1.msra.mxu0 0.0
        %3320 = vmatprep.subr.mxu0 0.0
        %3321 = vmatpush1.msra.mxu0 0.0
        %3322 = vmatprep.subr.mxu0 0.0
        %3323 = vmatpush1.msra.mxu0 0.0
        %3324 = vmatprep.subr.mxu0 0.0
        %3325 = vmatpush1.msra.mxu0 0.0
        %3326 = vmatprep.subr.mxu0 0.0
        %3327 = vmatpush1.msra.mxu0 0.0
        %3328 = vmatprep.subr.mxu0 0.0
        %3329 = vmatpush1.msra.mxu0 0.0
        %3330 = vmatprep.subr.mxu0 0.0
        %3331 = vmatpush1.msra.mxu0 0.0
        %3332 = vmatprep.subr.mxu0 0.0
        %3333 = vmatpush1.msra.mxu0 0.0
        %3334 = vmatprep.subr.mxu0 0.0
        %3335 = vmatpush1.msra.mxu0 0.0
        %3336 = vmatprep.subr.mxu0 0.0
        %3337 = vmatpush1.msra.mxu0 0.0
        %3338 = vmatprep.subr.mxu0 0.0
        %3339 = vmatpush1.msra.mxu0 0.0
        %3340 = vmatprep.subr.mxu0 0.0
        %3341 = vmatpush1.msra.mxu0 0.0
        %3342 = vmatprep.subr.mxu0 0.0
        %3343 = vmatpush1.msra.mxu0 0.0
        %3344 = vmatprep.subr.mxu0 0.0
        %3345 = vmatpush1.msra.mxu0 0.0
        %3346 = vmatprep.subr.mxu0 0.0
        %3347 = vmatpush1.msra.mxu0 0.0
        %3348 = vmatprep.subr.mxu0 0.0
        %3349 = vmatpush1.msra.mxu0 0.0
        %3350 = vmatprep.subr.mxu0 0.0
        %3351 = vmatpush1.msra.mxu0 0.0
        %3352 = vmatprep.subr.mxu0 0.0
        %3353 = vmatpush1.msra.mxu0 0.0
        %3354 = vmatprep.subr.mxu0 0.0
        %3355 = vmatpush1.msra.mxu0 0.0
        %3356 = vmatprep.subr.mxu0 0.0
        %3357 = vmatpush1.msra.mxu0 0.0
        %3358 = vmatprep.subr.mxu0 0.0
        %3359 = vmatpush1.msra.mxu0 0.0
        %3360 = vmatprep.subr.mxu0 0.0
        %3361 = vmatpush1.msra.mxu0 0.0
        %3362 = vmatprep.subr.mxu0 0.0
        %3363 = vmatpush1.msra.mxu0 0.0
        %3364 = vmatprep.subr.mxu0 0.0
        %3365 = vmatpush1.msra.mxu0 0.0
        %3366 = vmatprep.mubr.f32.mxu0 0.0
        %3367 = vmatmul.mubr.f32.gmra.mrb[0].mxu0 %v1757
        %v3368 = vpop.f32.mrb[0].mxu0
        %v3369 = vadd.f32 0.0, %v3368
        %v3370 = vpop.f32.mrb[0].mxu0
        %v3371 = vadd.f32 0.0, %v3370
        %3372 = vmatprep.mubr.f32.mxu0 0.0
        %3373 = vmatmul.mubr.f32.gmra.mrb[0].mxu0 %v1760
        %v3374 = vpop.f32.mrb[0].mxu0
        %v3375 = vadd.f32 0.0, %v3374
        %v3376 = vpop.f32.mrb[0].mxu0
        %v3377 = vadd.f32 0.0, %v3376
        %3378 = vdwg.mxu0
        %3379 = vmatprep.subr.mxu0 %v1668
        %3380 = vmatpush1.msra.mxu0 %v1667
        %3381 = vmatprep.subr.mxu0 %v1732
        %3382 = vmatpush1.msra.mxu0 %v1731
        %3383 = vmatprep.subr.mxu0 0.0
        %3384 = vmatpush1.msra.mxu0 0.0
        %3385 = vmatprep.subr.mxu0 0.0
        %3386 = vmatpush1.msra.mxu0 0.0
        %3387 = vmatprep.subr.mxu0 0.0
        %3388 = vmatpush1.msra.mxu0 0.0
        %3389 = vmatprep.subr.mxu0 0.0
        %3390 = vmatpush1.msra.mxu0 0.0
        %3391 = vmatprep.subr.mxu0 0.0
        %3392 = vmatpush1.msra.mxu0 0.0
        %3393 = vmatprep.subr.mxu0 0.0
        %3394 = vmatpush1.msra.mxu0 0.0
        %3395 = vmatprep.subr.mxu0 0.0
        %3396 = vmatpush1.msra.mxu0 0.0
        %3397 = vmatprep.subr.mxu0 0.0
        %3398 = vmatpush1.msra.mxu0 0.0
        %3399 = vmatprep.subr.mxu0 0.0
        %3400 = vmatpush1.msra.mxu0 0.0
        %3401 = vmatprep.subr.mxu0 0.0
        %3402 = vmatpush1.msra.mxu0 0.0
        %3403 = vmatprep.subr.mxu0 0.0
        %3404 = vmatpush1.msra.mxu0 0.0
        %3405 = vmatprep.subr.mxu0 0.0
        %3406 = vmatpush1.msra.mxu0 0.0
        %3407 = vmatprep.subr.mxu0 0.0
        %3408 = vmatpush1.msra.mxu0 0.0
        %3409 = vmatprep.subr.mxu0 0.0
        %3410 = vmatpush1.msra.mxu0 0.0
        %3411 = vmatprep.subr.mxu0 0.0
        %3412 = vmatpush1.msra.mxu0 0.0
        %3413 = vmatprep.subr.mxu0 0.0
        %3414 = vmatpush1.msra.mxu0 0.0
        %3415 = vmatprep.subr.mxu0 0.0
        %3416 = vmatpush1.msra.mxu0 0.0
        %3417 = vmatprep.subr.mxu0 0.0
        %3418 = vmatpush1.msra.mxu0 0.0
        %3419 = vmatprep.subr.mxu0 0.0
        %3420 = vmatpush1.msra.mxu0 0.0
        %3421 = vmatprep.subr.mxu0 0.0
        %3422 = vmatpush1.msra.mxu0 0.0
        %3423 = vmatprep.subr.mxu0 0.0
        %3424 = vmatpush1.msra.mxu0 0.0
        %3425 = vmatprep.subr.mxu0 0.0
        %3426 = vmatpush1.msra.mxu0 0.0
        %3427 = vmatprep.subr.mxu0 0.0
        %3428 = vmatpush1.msra.mxu0 0.0
        %3429 = vmatprep.subr.mxu0 0.0
        %3430 = vmatpush1.msra.mxu0 0.0
        %3431 = vmatprep.subr.mxu0 0.0
        %3432 = vmatpush1.msra.mxu0 0.0
        %3433 = vmatprep.subr.mxu0 0.0
        %3434 = vmatpush1.msra.mxu0 0.0
        %3435 = vmatprep.subr.mxu0 0.0
        %3436 = vmatpush1.msra.mxu0 0.0
        %3437 = vmatprep.subr.mxu0 0.0
        %3438 = vmatpush1.msra.mxu0 0.0
        %3439 = vmatprep.subr.mxu0 0.0
        %3440 = vmatpush1.msra.mxu0 0.0
        %3441 = vmatprep.subr.mxu0 0.0
        %3442 = vmatpush1.msra.mxu0 0.0
        %3443 = vmatprep.mubr.f32.mxu0 0.0
        %3444 = vmatmul.mubr.f32.gmra.mrb[0].mxu0 %v1757
        %v3445 = vpop.f32.mrb[0].mxu0
        %v3446 = vadd.f32 0.0, %v3445
        %v3447 = vpop.f32.mrb[0].mxu0
        %v3448 = vadd.f32 0.0, %v3447
        %3449 = vmatprep.mubr.f32.mxu0 0.0
        %3450 = vmatmul.mubr.f32.gmra.mrb[0].mxu0 %v1760
        %v3451 = vpop.f32.mrb[0].mxu0
        %v3452 = vadd.f32 0.0, %v3451
        %v3453 = vpop.f32.mrb[0].mxu0
        %v3454 = vadd.f32 0.0, %v3453
        %3455 = vdwg.mxu0
        %3456 = vmatprep.subr.mxu0 %v1670
        %3457 = vmatpush1.msra.mxu0 %v1669
        %3458 = vmatprep.subr.mxu0 %v1734
        %3459 = vmatpush1.msra.mxu0 %v1733
        %3460 = vmatprep.subr.mxu0 0.0
        %3461 = vmatpush1.msra.mxu0 0.0
        %3462 = vmatprep.subr.mxu0 0.0
        %3463 = vmatpush1.msra.mxu0 0.0
        %3464 = vmatprep.subr.mxu0 0.0
        %3465 = vmatpush1.msra.mxu0 0.0
        %3466 = vmatprep.subr.mxu0 0.0
        %3467 = vmatpush1.msra.mxu0 0.0
        %3468 = vmatprep.subr.mxu0 0.0
        %3469 = vmatpush1.msra.mxu0 0.0
        %3470 = vmatprep.subr.mxu0 0.0
        %3471 = vmatpush1.msra.mxu0 0.0
        %3472 = vmatprep.subr.mxu0 0.0
        %3473 = vmatpush1.msra.mxu0 0.0
        %3474 = vmatprep.subr.mxu0 0.0
        %3475 = vmatpush1.msra.mxu0 0.0
        %3476 = vmatprep.subr.mxu0 0.0
        %3477 = vmatpush1.msra.mxu0 0.0
        %3478 = vmatprep.subr.mxu0 0.0
        %3479 = vmatpush1.msra.mxu0 0.0
        %3480 = vmatprep.subr.mxu0 0.0
        %3481 = vmatpush1.msra.mxu0 0.0
        %3482 = vmatprep.subr.mxu0 0.0
        %3483 = vmatpush1.msra.mxu0 0.0
        %3484 = vmatprep.subr.mxu0 0.0
        %3485 = vmatpush1.msra.mxu0 0.0
        %3486 = vmatprep.subr.mxu0 0.0
        %3487 = vmatpush1.msra.mxu0 0.0
        %3488 = vmatprep.subr.mxu0 0.0
        %3489 = vmatpush1.msra.mxu0 0.0
        %3490 = vmatprep.subr.mxu0 0.0
        %3491 = vmatpush1.msra.mxu0 0.0
        %3492 = vmatprep.subr.mxu0 0.0
        %3493 = vmatpush1.msra.mxu0 0.0
        %3494 = vmatprep.subr.mxu0 0.0
        %3495 = vmatpush1.msra.mxu0 0.0
        %3496 = vmatprep.subr.mxu0 0.0
        %3497 = vmatpush1.msra.mxu0 0.0
        %3498 = vmatprep.subr.mxu0 0.0
        %3499 = vmatpush1.msra.mxu0 0.0
        %3500 = vmatprep.subr.mxu0 0.0
        %3501 = vmatpush1.msra.mxu0 0.0
        %3502 = vmatprep.subr.mxu0 0.0
        %3503 = vmatpush1.msra.mxu0 0.0
        %3504 = vmatprep.subr.mxu0 0.0
        %3505 = vmatpush1.msra.mxu0 0.0
        %3506 = vmatprep.subr.mxu0 0.0
        %3507 = vmatpush1.msra.mxu0 0.0
        %3508 = vmatprep.subr.mxu0 0.0
        %3509 = vmatpush1.msra.mxu0 0.0
        %3510 = vmatprep.subr.mxu0 0.0
        %3511 = vmatpush1.msra.mxu0 0.0
        %3512 = vmatprep.subr.mxu0 0.0
        %3513 = vmatpush1.msra.mxu0 0.0
        %3514 = vmatprep.subr.mxu0 0.0
        %3515 = vmatpush1.msra.mxu0 0.0
        %3516 = vmatprep.subr.mxu0 0.0
        %3517 = vmatpush1.msra.mxu0 0.0
        %3518 = vmatprep.subr.mxu0 0.0
        %3519 = vmatpush1.msra.mxu0 0.0
        %3520 = vmatprep.mubr.f32.mxu0 0.0
        %3521 = vmatmul.mubr.f32.gmra.mrb[0].mxu0 %v1757
        %v3522 = vpop.f32.mrb[0].mxu0
        %v3523 = vadd.f32 0.0, %v3522
        %v3524 = vpop.f32.mrb[0].mxu0
        %v3525 = vadd.f32 0.0, %v3524
        %3526 = vmatprep.mubr.f32.mxu0 0.0
        %3527 = vmatmul.mubr.f32.gmra.mrb[0].mxu0 %v1760
        %v3528 = vpop.f32.mrb[0].mxu0
        %v3529 = vadd.f32 0.0, %v3528
        %v3530 = vpop.f32.mrb[0].mxu0
        %v3531 = vadd.f32 0.0, %v3530
        %3532 = vdwg.mxu0
        %3533 = vmatprep.subr.mxu0 %v1672
        %3534 = vmatpush1.msra.mxu0 %v1671
        %3535 = vmatprep.subr.mxu0 %v1736
        %3536 = vmatpush1.msra.mxu0 %v1735
        %3537 = vmatprep.subr.mxu0 0.0
        %3538 = vmatpush1.msra.mxu0 0.0
        %3539 = vmatprep.subr.mxu0 0.0
        %3540 = vmatpush1.msra.mxu0 0.0
        %3541 = vmatprep.subr.mxu0 0.0
        %3542 = vmatpush1.msra.mxu0 0.0
        %3543 = vmatprep.subr.mxu0 0.0
        %3544 = vmatpush1.msra.mxu0 0.0
        %3545 = vmatprep.subr.mxu0 0.0
        %3546 = vmatpush1.msra.mxu0 0.0
        %3547 = vmatprep.subr.mxu0 0.0
        %3548 = vmatpush1.msra.mxu0 0.0
        %3549 = vmatprep.subr.mxu0 0.0
        %3550 = vmatpush1.msra.mxu0 0.0
        %3551 = vmatprep.subr.mxu0 0.0
        %3552 = vmatpush1.msra.mxu0 0.0
        %3553 = vmatprep.subr.mxu0 0.0
        %3554 = vmatpush1.msra.mxu0 0.0
        %3555 = vmatprep.subr.mxu0 0.0
        %3556 = vmatpush1.msra.mxu0 0.0
        %3557 = vmatprep.subr.mxu0 0.0
        %3558 = vmatpush1.msra.mxu0 0.0
        %3559 = vmatprep.subr.mxu0 0.0
        %3560 = vmatpush1.msra.mxu0 0.0
        %3561 = vmatprep.subr.mxu0 0.0
        %3562 = vmatpush1.msra.mxu0 0.0
        %3563 = vmatprep.subr.mxu0 0.0
        %3564 = vmatpush1.msra.mxu0 0.0
        %3565 = vmatprep.subr.mxu0 0.0
        %3566 = vmatpush1.msra.mxu0 0.0
        %3567 = vmatprep.subr.mxu0 0.0
        %3568 = vmatpush1.msra.mxu0 0.0
        %3569 = vmatprep.subr.mxu0 0.0
        %3570 = vmatpush1.msra.mxu0 0.0
        %3571 = vmatprep.subr.mxu0 0.0
        %3572 = vmatpush1.msra.mxu0 0.0
        %3573 = vmatprep.subr.mxu0 0.0
        %3574 = vmatpush1.msra.mxu0 0.0
        %3575 = vmatprep.subr.mxu0 0.0
        %3576 = vmatpush1.msra.mxu0 0.0
        %3577 = vmatprep.subr.mxu0 0.0
        %3578 = vmatpush1.msra.mxu0 0.0
        %3579 = vmatprep.subr.mxu0 0.0
        %3580 = vmatpush1.msra.mxu0 0.0
        %3581 = vmatprep.subr.mxu0 0.0
        %3582 = vmatpush1.msra.mxu0 0.0
        %3583 = vmatprep.subr.mxu0 0.0
        %3584 = vmatpush1.msra.mxu0 0.0
        %3585 = vmatprep.subr.mxu0 0.0
        %3586 = vmatpush1.msra.mxu0 0.0
        %3587 = vmatprep.subr.mxu0 0.0
        %3588 = vmatpush1.msra.mxu0 0.0
        %3589 = vmatprep.subr.mxu0 0.0
        %3590 = vmatpush1.msra.mxu0 0.0
        %3591 = vmatprep.subr.mxu0 0.0
        %3592 = vmatpush1.msra.mxu0 0.0
        %3593 = vmatprep.subr.mxu0 0.0
        %3594 = vmatpush1.msra.mxu0 0.0
        %3595 = vmatprep.subr.mxu0 0.0
        %3596 = vmatpush1.msra.mxu0 0.0
        %3597 = vmatprep.mubr.f32.mxu0 0.0
        %3598 = vmatmul.mubr.f32.gmra.mrb[0].mxu0 %v1757
        %v3599 = vpop.f32.mrb[0].mxu0
        %v3600 = vadd.f32 0.0, %v3599
        %v3601 = vpop.f32.mrb[0].mxu0
        %v3602 = vadd.f32 0.0, %v3601
        %3603 = vmatprep.mubr.f32.mxu0 0.0
        %3604 = vmatmul.mubr.f32.gmra.mrb[0].mxu0 %v1760
        %v3605 = vpop.f32.mrb[0].mxu0
        %v3606 = vadd.f32 0.0, %v3605
        %v3607 = vpop.f32.mrb[0].mxu0
        %v3608 = vadd.f32 0.0, %v3607
        %3609 = vdwg.mxu0
        %3610 = vmatprep.subr.mxu0 %v1674
        %3611 = vmatpush1.msra.mxu0 %v1673
        %3612 = vmatprep.subr.mxu0 %v1738
        %3613 = vmatpush1.msra.mxu0 %v1737
        %3614 = vmatprep.subr.mxu0 0.0
        %3615 = vmatpush1.msra.mxu0 0.0
        %3616 = vmatprep.subr.mxu0 0.0
        %3617 = vmatpush1.msra.mxu0 0.0
        %3618 = vmatprep.subr.mxu0 0.0
        %3619 = vmatpush1.msra.mxu0 0.0
        %3620 = vmatprep.subr.mxu0 0.0
        %3621 = vmatpush1.msra.mxu0 0.0
        %3622 = vmatprep.subr.mxu0 0.0
        %3623 = vmatpush1.msra.mxu0 0.0
        %3624 = vmatprep.subr.mxu0 0.0
        %3625 = vmatpush1.msra.mxu0 0.0
        %3626 = vmatprep.subr.mxu0 0.0
        %3627 = vmatpush1.msra.mxu0 0.0
        %3628 = vmatprep.subr.mxu0 0.0
        %3629 = vmatpush1.msra.mxu0 0.0
        %3630 = vmatprep.subr.mxu0 0.0
        %3631 = vmatpush1.msra.mxu0 0.0
        %3632 = vmatprep.subr.mxu0 0.0
        %3633 = vmatpush1.msra.mxu0 0.0
        %3634 = vmatprep.subr.mxu0 0.0
        %3635 = vmatpush1.msra.mxu0 0.0
        %3636 = vmatprep.subr.mxu0 0.0
        %3637 = vmatpush1.msra.mxu0 0.0
        %3638 = vmatprep.subr.mxu0 0.0
        %3639 = vmatpush1.msra.mxu0 0.0
        %3640 = vmatprep.subr.mxu0 0.0
        %3641 = vmatpush1.msra.mxu0 0.0
        %3642 = vmatprep.subr.mxu0 0.0
        %3643 = vmatpush1.msra.mxu0 0.0
        %3644 = vmatprep.subr.mxu0 0.0
        %3645 = vmatpush1.msra.mxu0 0.0
        %3646 = vmatprep.subr.mxu0 0.0
        %3647 = vmatpush1.msra.mxu0 0.0
        %3648 = vmatprep.subr.mxu0 0.0
        %3649 = vmatpush1.msra.mxu0 0.0
        %3650 = vmatprep.subr.mxu0 0.0
        %3651 = vmatpush1.msra.mxu0 0.0
        %3652 = vmatprep.subr.mxu0 0.0
        %3653 = vmatpush1.msra.mxu0 0.0
        %3654 = vmatprep.subr.mxu0 0.0
        %3655 = vmatpush1.msra.mxu0 0.0
        %3656 = vmatprep.subr.mxu0 0.0
        %3657 = vmatpush1.msra.mxu0 0.0
        %3658 = vmatprep.subr.mxu0 0.0
        %3659 = vmatpush1.msra.mxu0 0.0
        %3660 = vmatprep.subr.mxu0 0.0
        %3661 = vmatpush1.msra.mxu0 0.0
        %3662 = vmatprep.subr.mxu0 0.0
        %3663 = vmatpush1.msra.mxu0 0.0
        %3664 = vmatprep.subr.mxu0 0.0
        %3665 = vmatpush1.msra.mxu0 0.0
        %3666 = vmatprep.subr.mxu0 0.0
        %3667 = vmatpush1.msra.mxu0 0.0
        %3668 = vmatprep.subr.mxu0 0.0
        %3669 = vmatpush1.msra.mxu0 0.0
        %3670 = vmatprep.subr.mxu0 0.0
        %3671 = vmatpush1.msra.mxu0 0.0
        %3672 = vmatprep.subr.mxu0 0.0
        %3673 = vmatpush1.msra.mxu0 0.0
        %3674 = vmatprep.mubr.f32.mxu0 0.0
        %3675 = vmatmul.mubr.f32.gmra.mrb[0].mxu0 %v1757
        %v3676 = vpop.f32.mrb[0].mxu0
        %v3677 = vadd.f32 0.0, %v3676
        %v3678 = vpop.f32.mrb[0].mxu0
        %v3679 = vadd.f32 0.0, %v3678
        %3680 = vmatprep.mubr.f32.mxu0 0.0
        %3681 = vmatmul.mubr.f32.gmra.mrb[0].mxu0 %v1760
        %v3682 = vpop.f32.mrb[0].mxu0
        %v3683 = vadd.f32 0.0, %v3682
        %v3684 = vpop.f32.mrb[0].mxu0
        %v3685 = vadd.f32 0.0, %v3684
        %3686 = vdwg.mxu0
        %3687 = vmatprep.subr.mxu0 %v1676
        %3688 = vmatpush1.msra.mxu0 %v1675
        %3689 = vmatprep.subr.mxu0 %v1740
        %3690 = vmatpush1.msra.mxu0 %v1739
        %3691 = vmatprep.subr.mxu0 0.0
        %3692 = vmatpush1.msra.mxu0 0.0
        %3693 = vmatprep.subr.mxu0 0.0
        %3694 = vmatpush1.msra.mxu0 0.0
        %3695 = vmatprep.subr.mxu0 0.0
        %3696 = vmatpush1.msra.mxu0 0.0
        %3697 = vmatprep.subr.mxu0 0.0
        %3698 = vmatpush1.msra.mxu0 0.0
        %3699 = vmatprep.subr.mxu0 0.0
        %3700 = vmatpush1.msra.mxu0 0.0
        %3701 = vmatprep.subr.mxu0 0.0
        %3702 = vmatpush1.msra.mxu0 0.0
        %3703 = vmatprep.subr.mxu0 0.0
        %3704 = vmatpush1.msra.mxu0 0.0
        %3705 = vmatprep.subr.mxu0 0.0
        %3706 = vmatpush1.msra.mxu0 0.0
        %3707 = vmatprep.subr.mxu0 0.0
        %3708 = vmatpush1.msra.mxu0 0.0
        %3709 = vmatprep.subr.mxu0 0.0
        %3710 = vmatpush1.msra.mxu0 0.0
        %3711 = vmatprep.subr.mxu0 0.0
        %3712 = vmatpush1.msra.mxu0 0.0
        %3713 = vmatprep.subr.mxu0 0.0
        %3714 = vmatpush1.msra.mxu0 0.0
        %3715 = vmatprep.subr.mxu0 0.0
        %3716 = vmatpush1.msra.mxu0 0.0
        %3717 = vmatprep.subr.mxu0 0.0
        %3718 = vmatpush1.msra.mxu0 0.0
        %3719 = vmatprep.subr.mxu0 0.0
        %3720 = vmatpush1.msra.mxu0 0.0
        %3721 = vmatprep.subr.mxu0 0.0
        %3722 = vmatpush1.msra.mxu0 0.0
        %3723 = vmatprep.subr.mxu0 0.0
        %3724 = vmatpush1.msra.mxu0 0.0
        %3725 = vmatprep.subr.mxu0 0.0
        %3726 = vmatpush1.msra.mxu0 0.0
        %3727 = vmatprep.subr.mxu0 0.0
        %3728 = vmatpush1.msra.mxu0 0.0
        %3729 = vmatprep.subr.mxu0 0.0
        %3730 = vmatpush1.msra.mxu0 0.0
        %3731 = vmatprep.subr.mxu0 0.0
        %3732 = vmatpush1.msra.mxu0 0.0
        %3733 = vmatprep.subr.mxu0 0.0
        %3734 = vmatpush1.msra.mxu0 0.0
        %3735 = vmatprep.subr.mxu0 0.0
        %3736 = vmatpush1.msra.mxu0 0.0
        %3737 = vmatprep.subr.mxu0 0.0
        %3738 = vmatpush1.msra.mxu0 0.0
        %3739 = vmatprep.subr.mxu0 0.0
        %3740 = vmatpush1.msra.mxu0 0.0
        %3741 = vmatprep.subr.mxu0 0.0
        %3742 = vmatpush1.msra.mxu0 0.0
        %3743 = vmatprep.subr.mxu0 0.0
        %3744 = vmatpush1.msra.mxu0 0.0
        %3745 = vmatprep.subr.mxu0 0.0
        %3746 = vmatpush1.msra.mxu0 0.0
        %3747 = vmatprep.subr.mxu0 0.0
        %3748 = vmatpush1.msra.mxu0 0.0
        %3749 = vmatprep.subr.mxu0 0.0
        %3750 = vmatpush1.msra.mxu0 0.0
        %3751 = vmatprep.mubr.f32.mxu0 0.0
        %3752 = vmatmul.mubr.f32.gmra.mrb[0].mxu0 %v1757
        %v3753 = vpop.f32.mrb[0].mxu0
        %v3754 = vadd.f32 0.0, %v3753
        %v3755 = vpop.f32.mrb[0].mxu0
        %v3756 = vadd.f32 0.0, %v3755
        %3757 = vmatprep.mubr.f32.mxu0 0.0
        %3758 = vmatmul.mubr.f32.gmra.mrb[0].mxu0 %v1760
        %v3759 = vpop.f32.mrb[0].mxu0
        %v3760 = vadd.f32 0.0, %v3759
        %v3761 = vpop.f32.mrb[0].mxu0
        %v3762 = vadd.f32 0.0, %v3761
        %3763 = vdwg.mxu0
        %3764 = vmatprep.subr.mxu0 %v1678
        %3765 = vmatpush1.msra.mxu0 %v1677
        %3766 = vmatprep.subr.mxu0 %v1742
        %3767 = vmatpush1.msra.mxu0 %v1741
        %3768 = vmatprep.subr.mxu0 0.0
        %3769 = vmatpush1.msra.mxu0 0.0
        %3770 = vmatprep.subr.mxu0 0.0
        %3771 = vmatpush1.msra.mxu0 0.0
        %3772 = vmatprep.subr.mxu0 0.0
        %3773 = vmatpush1.msra.mxu0 0.0
        %3774 = vmatprep.subr.mxu0 0.0
        %3775 = vmatpush1.msra.mxu0 0.0
        %3776 = vmatprep.subr.mxu0 0.0
        %3777 = vmatpush1.msra.mxu0 0.0
        %3778 = vmatprep.subr.mxu0 0.0
        %3779 = vmatpush1.msra.mxu0 0.0
        %3780 = vmatprep.subr.mxu0 0.0
        %3781 = vmatpush1.msra.mxu0 0.0
        %3782 = vmatprep.subr.mxu0 0.0
        %3783 = vmatpush1.msra.mxu0 0.0
        %3784 = vmatprep.subr.mxu0 0.0
        %3785 = vmatpush1.msra.mxu0 0.0
        %3786 = vmatprep.subr.mxu0 0.0
        %3787 = vmatpush1.msra.mxu0 0.0
        %3788 = vmatprep.subr.mxu0 0.0
        %3789 = vmatpush1.msra.mxu0 0.0
        %3790 = vmatprep.subr.mxu0 0.0
        %3791 = vmatpush1.msra.mxu0 0.0
        %3792 = vmatprep.subr.mxu0 0.0
        %3793 = vmatpush1.msra.mxu0 0.0
        %3794 = vmatprep.subr.mxu0 0.0
        %3795 = vmatpush1.msra.mxu0 0.0
        %3796 = vmatprep.subr.mxu0 0.0
        %3797 = vmatpush1.msra.mxu0 0.0
        %3798 = vmatprep.subr.mxu0 0.0
        %3799 = vmatpush1.msra.mxu0 0.0
        %3800 = vmatprep.subr.mxu0 0.0
        %3801 = vmatpush1.msra.mxu0 0.0
        %3802 = vmatprep.subr.mxu0 0.0
        %3803 = vmatpush1.msra.mxu0 0.0
        %3804 = vmatprep.subr.mxu0 0.0
        %3805 = vmatpush1.msra.mxu0 0.0
        %3806 = vmatprep.subr.mxu0 0.0
        %3807 = vmatpush1.msra.mxu0 0.0
        %3808 = vmatprep.subr.mxu0 0.0
        %3809 = vmatpush1.msra.mxu0 0.0
        %3810 = vmatprep.subr.mxu0 0.0
        %3811 = vmatpush1.msra.mxu0 0.0
        %3812 = vmatprep.subr.mxu0 0.0
        %3813 = vmatpush1.msra.mxu0 0.0
        %3814 = vmatprep.subr.mxu0 0.0
        %3815 = vmatpush1.msra.mxu0 0.0
        %3816 = vmatprep.subr.mxu0 0.0
        %3817 = vmatpush1.msra.mxu0 0.0
        %3818 = vmatprep.subr.mxu0 0.0
        %3819 = vmatpush1.msra.mxu0 0.0
        %3820 = vmatprep.subr.mxu0 0.0
        %3821 = vmatpush1.msra.mxu0 0.0
        %3822 = vmatprep.subr.mxu0 0.0
        %3823 = vmatpush1.msra.mxu0 0.0
        %3824 = vmatprep.subr.mxu0 0.0
        %3825 = vmatpush1.msra.mxu0 0.0
        %3826 = vmatprep.subr.mxu0 0.0
        %3827 = vmatpush1.msra.mxu0 0.0
        %3828 = vmatprep.mubr.f32.mxu0 0.0
        %3829 = vmatmul.mubr.f32.gmra.mrb[0].mxu0 %v1757
        %v3830 = vpop.f32.mrb[0].mxu0
        %v3831 = vadd.f32 0.0, %v3830
        %v3832 = vpop.f32.mrb[0].mxu0
        %v3833 = vadd.f32 0.0, %v3832
        %3834 = vmatprep.mubr.f32.mxu0 0.0
        %3835 = vmatmul.mubr.f32.gmra.mrb[0].mxu0 %v1760
        %v3836 = vpop.f32.mrb[0].mxu0
        %v3837 = vadd.f32 0.0, %v3836
        %v3838 = vpop.f32.mrb[0].mxu0
        %v3839 = vadd.f32 0.0, %v3838
        %3840 = vdwg.mxu0
        %3841 = vmatprep.subr.mxu0 %v1680
        %3842 = vmatpush1.msra.mxu0 %v1679
        %3843 = vmatprep.subr.mxu0 %v1744
        %3844 = vmatpush1.msra.mxu0 %v1743
        %3845 = vmatprep.subr.mxu0 0.0
        %3846 = vmatpush1.msra.mxu0 0.0
        %3847 = vmatprep.subr.mxu0 0.0
        %3848 = vmatpush1.msra.mxu0 0.0
        %3849 = vmatprep.subr.mxu0 0.0
        %3850 = vmatpush1.msra.mxu0 0.0
        %3851 = vmatprep.subr.mxu0 0.0
        %3852 = vmatpush1.msra.mxu0 0.0
        %3853 = vmatprep.subr.mxu0 0.0
        %3854 = vmatpush1.msra.mxu0 0.0
        %3855 = vmatprep.subr.mxu0 0.0
        %3856 = vmatpush1.msra.mxu0 0.0
        %3857 = vmatprep.subr.mxu0 0.0
        %3858 = vmatpush1.msra.mxu0 0.0
        %3859 = vmatprep.subr.mxu0 0.0
        %3860 = vmatpush1.msra.mxu0 0.0
        %3861 = vmatprep.subr.mxu0 0.0
        %3862 = vmatpush1.msra.mxu0 0.0
        %3863 = vmatprep.subr.mxu0 0.0
        %3864 = vmatpush1.msra.mxu0 0.0
        %3865 = vmatprep.subr.mxu0 0.0
        %3866 = vmatpush1.msra.mxu0 0.0
        %3867 = vmatprep.subr.mxu0 0.0
        %3868 = vmatpush1.msra.mxu0 0.0
        %3869 = vmatprep.subr.mxu0 0.0
        %3870 = vmatpush1.msra.mxu0 0.0
        %3871 = vmatprep.subr.mxu0 0.0
        %3872 = vmatpush1.msra.mxu0 0.0
        %3873 = vmatprep.subr.mxu0 0.0
        %3874 = vmatpush1.msra.mxu0 0.0
        %3875 = vmatprep.subr.mxu0 0.0
        %3876 = vmatpush1.msra.mxu0 0.0
        %3877 = vmatprep.subr.mxu0 0.0
        %3878 = vmatpush1.msra.mxu0 0.0
        %3879 = vmatprep.subr.mxu0 0.0
        %3880 = vmatpush1.msra.mxu0 0.0
        %3881 = vmatprep.subr.mxu0 0.0
        %3882 = vmatpush1.msra.mxu0 0.0
        %3883 = vmatprep.subr.mxu0 0.0
        %3884 = vmatpush1.msra.mxu0 0.0
        %3885 = vmatprep.subr.mxu0 0.0
        %3886 = vmatpush1.msra.mxu0 0.0
        %3887 = vmatprep.subr.mxu0 0.0
        %3888 = vmatpush1.msra.mxu0 0.0
        %3889 = vmatprep.subr.mxu0 0.0
        %3890 = vmatpush1.msra.mxu0 0.0
        %3891 = vmatprep.subr.mxu0 0.0
        %3892 = vmatpush1.msra.mxu0 0.0
        %3893 = vmatprep.subr.mxu0 0.0
        %3894 = vmatpush1.msra.mxu0 0.0
        %3895 = vmatprep.subr.mxu0 0.0
        %3896 = vmatpush1.msra.mxu0 0.0
        %3897 = vmatprep.subr.mxu0 0.0
        %3898 = vmatpush1.msra.mxu0 0.0
        %3899 = vmatprep.subr.mxu0 0.0
        %3900 = vmatpush1.msra.mxu0 0.0
        %3901 = vmatprep.subr.mxu0 0.0
        %3902 = vmatpush1.msra.mxu0 0.0
        %3903 = vmatprep.subr.mxu0 0.0
        %3904 = vmatpush1.msra.mxu0 0.0
        %3905 = vmatprep.mubr.f32.mxu0 0.0
        %3906 = vmatmul.mubr.f32.gmra.mrb[0].mxu0 %v1757
        %v3907 = vpop.f32.mrb[0].mxu0
        %v3908 = vadd.f32 0.0, %v3907
        %v3909 = vpop.f32.mrb[0].mxu0
        %v3910 = vadd.f32 0.0, %v3909
        %3911 = vmatprep.mubr.f32.mxu0 0.0
        %3912 = vmatmul.mubr.f32.gmra.mrb[0].mxu0 %v1760
        %v3913 = vpop.f32.mrb[0].mxu0
        %v3914 = vadd.f32 0.0, %v3913
        %v3915 = vpop.f32.mrb[0].mxu0
        %v3916 = vadd.f32 0.0, %v3915
        %3917 = vdwg.mxu0
        %3918 = vmatprep.subr.mxu0 %v1682
        %3919 = vmatpush1.msra.mxu0 %v1681
        %3920 = vmatprep.subr.mxu0 %v1746
        %3921 = vmatpush1.msra.mxu0 %v1745
        %3922 = vmatprep.subr.mxu0 0.0
        %3923 = vmatpush1.msra.mxu0 0.0
        %3924 = vmatprep.subr.mxu0 0.0
        %3925 = vmatpush1.msra.mxu0 0.0
        %3926 = vmatprep.subr.mxu0 0.0
        %3927 = vmatpush1.msra.mxu0 0.0
        %3928 = vmatprep.subr.mxu0 0.0
        %3929 = vmatpush1.msra.mxu0 0.0
        %3930 = vmatprep.subr.mxu0 0.0
        %3931 = vmatpush1.msra.mxu0 0.0
        %3932 = vmatprep.subr.mxu0 0.0
        %3933 = vmatpush1.msra.mxu0 0.0
        %3934 = vmatprep.subr.mxu0 0.0
        %3935 = vmatpush1.msra.mxu0 0.0
        %3936 = vmatprep.subr.mxu0 0.0
        %3937 = vmatpush1.msra.mxu0 0.0
        %3938 = vmatprep.subr.mxu0 0.0
        %3939 = vmatpush1.msra.mxu0 0.0
        %3940 = vmatprep.subr.mxu0 0.0
        %3941 = vmatpush1.msra.mxu0 0.0
        %3942 = vmatprep.subr.mxu0 0.0
        %3943 = vmatpush1.msra.mxu0 0.0
        %3944 = vmatprep.subr.mxu0 0.0
        %3945 = vmatpush1.msra.mxu0 0.0
        %3946 = vmatprep.subr.mxu0 0.0
        %3947 = vmatpush1.msra.mxu0 0.0
        %3948 = vmatprep.subr.mxu0 0.0
        %3949 = vmatpush1.msra.mxu0 0.0
        %3950 = vmatprep.subr.mxu0 0.0
        %3951 = vmatpush1.msra.mxu0 0.0
        %3952 = vmatprep.subr.mxu0 0.0
        %3953 = vmatpush1.msra.mxu0 0.0
        %3954 = vmatprep.subr.mxu0 0.0
        %3955 = vmatpush1.msra.mxu0 0.0
        %3956 = vmatprep.subr.mxu0 0.0
        %3957 = vmatpush1.msra.mxu0 0.0
        %3958 = vmatprep.subr.mxu0 0.0
        %3959 = vmatpush1.msra.mxu0 0.0
        %3960 = vmatprep.subr.mxu0 0.0
        %3961 = vmatpush1.msra.mxu0 0.0
        %3962 = vmatprep.subr.mxu0 0.0
        %3963 = vmatpush1.msra.mxu0 0.0
        %3964 = vmatprep.subr.mxu0 0.0
        %3965 = vmatpush1.msra.mxu0 0.0
        %3966 = vmatprep.subr.mxu0 0.0
        %3967 = vmatpush1.msra.mxu0 0.0
        %3968 = vmatprep.subr.mxu0 0.0
        %3969 = vmatpush1.msra.mxu0 0.0
        %3970 = vmatprep.subr.mxu0 0.0
        %3971 = vmatpush1.msra.mxu0 0.0
        %3972 = vmatprep.subr.mxu0 0.0
        %3973 = vmatpush1.msra.mxu0 0.0
        %3974 = vmatprep.subr.mxu0 0.0
        %3975 = vmatpush1.msra.mxu0 0.0
        %3976 = vmatprep.subr.mxu0 0.0
        %3977 = vmatpush1.msra.mxu0 0.0
        %3978 = vmatprep.subr.mxu0 0.0
        %3979 = vmatpush1.msra.mxu0 0.0
        %3980 = vmatprep.subr.mxu0 0.0
        %3981 = vmatpush1.msra.mxu0 0.0
        %3982 = vmatprep.mubr.f32.mxu0 0.0
        %3983 = vmatmul.mubr.f32.gmra.mrb[0].mxu0 %v1757
        %v3984 = vpop.f32.mrb[0].mxu0
        %v3985 = vadd.f32 0.0, %v3984
        %v3986 = vpop.f32.mrb[0].mxu0
        %v3987 = vadd.f32 0.0, %v3986
        %3988 = vmatprep.mubr.f32.mxu0 0.0
        %3989 = vmatmul.mubr.f32.gmra.mrb[0].mxu0 %v1760
        %v3990 = vpop.f32.mrb[0].mxu0
        %v3991 = vadd.f32 0.0, %v3990
        %v3992 = vpop.f32.mrb[0].mxu0
        %v3993 = vadd.f32 0.0, %v3992
        %3994 = vdwg.mxu0
        %3995 = vmatprep.subr.mxu0 %v1684
        %3996 = vmatpush1.msra.mxu0 %v1683
        %3997 = vmatprep.subr.mxu0 %v1748
        %3998 = vmatpush1.msra.mxu0 %v1747
        %3999 = vmatprep.subr.mxu0 0.0
        %4000 = vmatpush1.msra.mxu0 0.0
        %4001 = vmatprep.subr.mxu0 0.0
        %4002 = vmatpush1.msra.mxu0 0.0
        %4003 = vmatprep.subr.mxu0 0.0
        %4004 = vmatpush1.msra.mxu0 0.0
        %4005 = vmatprep.subr.mxu0 0.0
        %4006 = vmatpush1.msra.mxu0 0.0
        %4007 = vmatprep.subr.mxu0 0.0
        %4008 = vmatpush1.msra.mxu0 0.0
        %4009 = vmatprep.subr.mxu0 0.0
        %4010 = vmatpush1.msra.mxu0 0.0
        %4011 = vmatprep.subr.mxu0 0.0
        %4012 = vmatpush1.msra.mxu0 0.0
        %4013 = vmatprep.subr.mxu0 0.0
        %4014 = vmatpush1.msra.mxu0 0.0
        %4015 = vmatprep.subr.mxu0 0.0
        %4016 = vmatpush1.msra.mxu0 0.0
        %4017 = vmatprep.subr.mxu0 0.0
        %4018 = vmatpush1.msra.mxu0 0.0
        %4019 = vmatprep.subr.mxu0 0.0
        %4020 = vmatpush1.msra.mxu0 0.0
        %4021 = vmatprep.subr.mxu0 0.0
        %4022 = vmatpush1.msra.mxu0 0.0
        %4023 = vmatprep.subr.mxu0 0.0
        %4024 = vmatpush1.msra.mxu0 0.0
        %4025 = vmatprep.subr.mxu0 0.0
        %4026 = vmatpush1.msra.mxu0 0.0
        %4027 = vmatprep.subr.mxu0 0.0
        %4028 = vmatpush1.msra.mxu0 0.0
        %4029 = vmatprep.subr.mxu0 0.0
        %4030 = vmatpush1.msra.mxu0 0.0
        %4031 = vmatprep.subr.mxu0 0.0
        %4032 = vmatpush1.msra.mxu0 0.0
        %4033 = vmatprep.subr.mxu0 0.0
        %4034 = vmatpush1.msra.mxu0 0.0
        %4035 = vmatprep.subr.mxu0 0.0
        %4036 = vmatpush1.msra.mxu0 0.0
        %4037 = vmatprep.subr.mxu0 0.0
        %4038 = vmatpush1.msra.mxu0 0.0
        %4039 = vmatprep.subr.mxu0 0.0
        %4040 = vmatpush1.msra.mxu0 0.0
        %4041 = vmatprep.subr.mxu0 0.0
        %4042 = vmatpush1.msra.mxu0 0.0
        %4043 = vmatprep.subr.mxu0 0.0
        %4044 = vmatpush1.msra.mxu0 0.0
        %4045 = vmatprep.subr.mxu0 0.0
        %4046 = vmatpush1.msra.mxu0 0.0
        %4047 = vmatprep.subr.mxu0 0.0
        %4048 = vmatpush1.msra.mxu0 0.0
        %4049 = vmatprep.subr.mxu0 0.0
        %4050 = vmatpush1.msra.mxu0 0.0
        %4051 = vmatprep.subr.mxu0 0.0
        %4052 = vmatpush1.msra.mxu0 0.0
        %4053 = vmatprep.subr.mxu0 0.0
        %4054 = vmatpush1.msra.mxu0 0.0
        %4055 = vmatprep.subr.mxu0 0.0
        %4056 = vmatpush1.msra.mxu0 0.0
        %4057 = vmatprep.subr.mxu0 0.0
        %4058 = vmatpush1.msra.mxu0 0.0
        %4059 = vmatprep.mubr.f32.mxu0 0.0
        %4060 = vmatmul.mubr.f32.gmra.mrb[0].mxu0 %v1757
        %v4061 = vpop.f32.mrb[0].mxu0
        %v4062 = vadd.f32 0.0, %v4061
        %v4063 = vpop.f32.mrb[0].mxu0
        %v4064 = vadd.f32 0.0, %v4063
        %4065 = vmatprep.mubr.f32.mxu0 0.0
        %4066 = vmatmul.mubr.f32.gmra.mrb[0].mxu0 %v1760
        %v4067 = vpop.f32.mrb[0].mxu0
        %v4068 = vadd.f32 0.0, %v4067
        %v4069 = vpop.f32.mrb[0].mxu0
        %v4070 = vadd.f32 0.0, %v4069
        %4071 = vdwg.mxu0
        %4072 = vmatprep.subr.mxu0 %v1686
        %4073 = vmatpush1.msra.mxu0 %v1685
        %4074 = vmatprep.subr.mxu0 %v1750
        %4075 = vmatpush1.msra.mxu0 %v1749
        %4076 = vmatprep.subr.mxu0 0.0
        %4077 = vmatpush1.msra.mxu0 0.0
        %4078 = vmatprep.subr.mxu0 0.0
        %4079 = vmatpush1.msra.mxu0 0.0
        %4080 = vmatprep.subr.mxu0 0.0
        %4081 = vmatpush1.msra.mxu0 0.0
        %4082 = vmatprep.subr.mxu0 0.0
        %4083 = vmatpush1.msra.mxu0 0.0
        %4084 = vmatprep.subr.mxu0 0.0
        %4085 = vmatpush1.msra.mxu0 0.0
        %4086 = vmatprep.subr.mxu0 0.0
        %4087 = vmatpush1.msra.mxu0 0.0
        %4088 = vmatprep.subr.mxu0 0.0
        %4089 = vmatpush1.msra.mxu0 0.0
        %4090 = vmatprep.subr.mxu0 0.0
        %4091 = vmatpush1.msra.mxu0 0.0
        %4092 = vmatprep.subr.mxu0 0.0
        %4093 = vmatpush1.msra.mxu0 0.0
        %4094 = vmatprep.subr.mxu0 0.0
        %4095 = vmatpush1.msra.mxu0 0.0
        %4096 = vmatprep.subr.mxu0 0.0
        %4097 = vmatpush1.msra.mxu0 0.0
        %4098 = vmatprep.subr.mxu0 0.0
        %4099 = vmatpush1.msra.mxu0 0.0
        %4100 = vmatprep.subr.mxu0 0.0
        %4101 = vmatpush1.msra.mxu0 0.0
        %4102 = vmatprep.subr.mxu0 0.0
        %4103 = vmatpush1.msra.mxu0 0.0
        %4104 = vmatprep.subr.mxu0 0.0
        %4105 = vmatpush1.msra.mxu0 0.0
        %4106 = vmatprep.subr.mxu0 0.0
        %4107 = vmatpush1.msra.mxu0 0.0
        %4108 = vmatprep.subr.mxu0 0.0
        %4109 = vmatpush1.msra.mxu0 0.0
        %4110 = vmatprep.subr.mxu0 0.0
        %4111 = vmatpush1.msra.mxu0 0.0
        %4112 = vmatprep.subr.mxu0 0.0
        %4113 = vmatpush1.msra.mxu0 0.0
        %4114 = vmatprep.subr.mxu0 0.0
        %4115 = vmatpush1.msra.mxu0 0.0
        %4116 = vmatprep.subr.mxu0 0.0
        %4117 = vmatpush1.msra.mxu0 0.0
        %4118 = vmatprep.subr.mxu0 0.0
        %4119 = vmatpush1.msra.mxu0 0.0
        %4120 = vmatprep.subr.mxu0 0.0
        %4121 = vmatpush1.msra.mxu0 0.0
        %4122 = vmatprep.subr.mxu0 0.0
        %4123 = vmatpush1.msra.mxu0 0.0
        %4124 = vmatprep.subr.mxu0 0.0
        %4125 = vmatpush1.msra.mxu0 0.0
        %4126 = vmatprep.subr.mxu0 0.0
        %4127 = vmatpush1.msra.mxu0 0.0
        %4128 = vmatprep.subr.mxu0 0.0
        %4129 = vmatpush1.msra.mxu0 0.0
        %4130 = vmatprep.subr.mxu0 0.0
        %4131 = vmatpush1.msra.mxu0 0.0
        %4132 = vmatprep.subr.mxu0 0.0
        %4133 = vmatpush1.msra.mxu0 0.0
        %4134 = vmatprep.subr.mxu0 0.0
        %4135 = vmatpush1.msra.mxu0 0.0
        %4136 = vmatprep.mubr.f32.mxu0 0.0
        %4137 = vmatmul.mubr.f32.gmra.mrb[0].mxu0 %v1757
        %v4138 = vpop.f32.mrb[0].mxu0
        %v4139 = vadd.f32 0.0, %v4138
        %v4140 = vpop.f32.mrb[0].mxu0
        %v4141 = vadd.f32 0.0, %v4140
        %4142 = vmatprep.mubr.f32.mxu0 0.0
        %4143 = vmatmul.mubr.f32.gmra.mrb[0].mxu0 %v1760
        %v4144 = vpop.f32.mrb[0].mxu0
        %v4145 = vadd.f32 0.0, %v4144
        %v4146 = vpop.f32.mrb[0].mxu0
        %v4147 = vadd.f32 0.0, %v4146
        %4148 = vdwg.mxu0
        %4149 = vmatprep.subr.mxu0 %v1688
        %4150 = vmatpush1.msra.mxu0 %v1687
        %4151 = vmatprep.subr.mxu0 %v1752
        %4152 = vmatpush1.msra.mxu0 %v1751
        %4153 = vmatprep.subr.mxu0 0.0
        %4154 = vmatpush1.msra.mxu0 0.0
        %4155 = vmatprep.subr.mxu0 0.0
        %4156 = vmatpush1.msra.mxu0 0.0
        %4157 = vmatprep.subr.mxu0 0.0
        %4158 = vmatpush1.msra.mxu0 0.0
        %4159 = vmatprep.subr.mxu0 0.0
        %4160 = vmatpush1.msra.mxu0 0.0
        %4161 = vmatprep.subr.mxu0 0.0
        %4162 = vmatpush1.msra.mxu0 0.0
        %4163 = vmatprep.subr.mxu0 0.0
        %4164 = vmatpush1.msra.mxu0 0.0
        %4165 = vmatprep.subr.mxu0 0.0
        %4166 = vmatpush1.msra.mxu0 0.0
        %4167 = vmatprep.subr.mxu0 0.0
        %4168 = vmatpush1.msra.mxu0 0.0
        %4169 = vmatprep.subr.mxu0 0.0
        %4170 = vmatpush1.msra.mxu0 0.0
        %4171 = vmatprep.subr.mxu0 0.0
        %4172 = vmatpush1.msra.mxu0 0.0
        %4173 = vmatprep.subr.mxu0 0.0
        %4174 = vmatpush1.msra.mxu0 0.0
        %4175 = vmatprep.subr.mxu0 0.0
        %4176 = vmatpush1.msra.mxu0 0.0
        %4177 = vmatprep.subr.mxu0 0.0
        %4178 = vmatpush1.msra.mxu0 0.0
        %4179 = vmatprep.subr.mxu0 0.0
        %4180 = vmatpush1.msra.mxu0 0.0
        %4181 = vmatprep.subr.mxu0 0.0
        %4182 = vmatpush1.msra.mxu0 0.0
        %4183 = vmatprep.subr.mxu0 0.0
        %4184 = vmatpush1.msra.mxu0 0.0
        %4185 = vmatprep.subr.mxu0 0.0
        %4186 = vmatpush1.msra.mxu0 0.0
        %4187 = vmatprep.subr.mxu0 0.0
        %4188 = vmatpush1.msra.mxu0 0.0
        %4189 = vmatprep.subr.mxu0 0.0
        %4190 = vmatpush1.msra.mxu0 0.0
        %4191 = vmatprep.subr.mxu0 0.0
        %4192 = vmatpush1.msra.mxu0 0.0
        %4193 = vmatprep.subr.mxu0 0.0
        %4194 = vmatpush1.msra.mxu0 0.0
        %4195 = vmatprep.subr.mxu0 0.0
        %4196 = vmatpush1.msra.mxu0 0.0
        %4197 = vmatprep.subr.mxu0 0.0
        %4198 = vmatpush1.msra.mxu0 0.0
        %4199 = vmatprep.subr.mxu0 0.0
        %4200 = vmatpush1.msra.mxu0 0.0
        %4201 = vmatprep.subr.mxu0 0.0
        %4202 = vmatpush1.msra.mxu0 0.0
        %4203 = vmatprep.subr.mxu0 0.0
        %4204 = vmatpush1.msra.mxu0 0.0
        %4205 = vmatprep.subr.mxu0 0.0
        %4206 = vmatpush1.msra.mxu0 0.0
        %4207 = vmatprep.subr.mxu0 0.0
        %4208 = vmatpush1.msra.mxu0 0.0
        %4209 = vmatprep.subr.mxu0 0.0
        %4210 = vmatpush1.msra.mxu0 0.0
        %4211 = vmatprep.subr.mxu0 0.0
        %4212 = vmatpush1.msra.mxu0 0.0
        %4213 = vmatprep.mubr.f32.mxu0 0.0
        %4214 = vmatmul.mubr.f32.gmra.mrb[0].mxu0 %v1757
        %v4215 = vpop.f32.mrb[0].mxu0
        %v4216 = vadd.f32 0.0, %v4215
        %v4217 = vpop.f32.mrb[0].mxu0
        %v4218 = vadd.f32 0.0, %v4217
        %4219 = vmatprep.mubr.f32.mxu0 0.0
        %4220 = vmatmul.mubr.f32.gmra.mrb[0].mxu0 %v1760
        %v4221 = vpop.f32.mrb[0].mxu0
        %v4222 = vadd.f32 0.0, %v4221
        %v4223 = vpop.f32.mrb[0].mxu0
        %v4224 = vadd.f32 0.0, %v4223
        %4225 = vdwg.mxu0
        %4226 = vst [vmem:[%s813] sm:$0xff] %v1829
        %4227 = vst [vmem:[%s813 + $0x8] sm:$0xff] %v1831
        %4228 = vst [vmem:[%s813 + $0x10] sm:$0xff] %v1906
        %4229 = vst [vmem:[%s813 + $0x18] sm:$0xff] %v1908
        %4230 = vst [vmem:[%s813 + $0x20] sm:$0xff] %v1983
        %4231 = vst [vmem:[%s813 + $0x28] sm:$0xff] %v1985
        %4232 = vst [vmem:[%s813 + $0x30] sm:$0xff] %v2060
        %4233 = vst [vmem:[%s813 + $0x38] sm:$0xff] %v2062
        %4234 = vst [vmem:[%s813 + $0x40] sm:$0xff] %v2137
        %4235 = vst [vmem:[%s813 + $0x48] sm:$0xff] %v2139
        %4236 = vst [vmem:[%s813 + $0x50] sm:$0xff] %v2214
        %4237 = vst [vmem:[%s813 + $0x58] sm:$0xff] %v2216
        %4238 = vst [vmem:[%s813 + $0x60] sm:$0xff] %v2291
        %4239 = vst [vmem:[%s813 + $0x68] sm:$0xff] %v2293
        %4240 = vst [vmem:[%s813 + $0x70] sm:$0xff] %v2368
        %4241 = vst [vmem:[%s813 + $0x78] sm:$0xff] %v2370
        %4242 = vst [vmem:[%s813 + $0x80] sm:$0xff] %v2445
        %4243 = vst [vmem:[%s813 + $0x88] sm:$0xff] %v2447
        %4244 = vst [vmem:[%s813 + $0x90] sm:$0xff] %v2522
        %4245 = vst [vmem:[%s813 + $0x98] sm:$0xff] %v2524
        %4246 = vst [vmem:[%s813 + $0xa0] sm:$0xff] %v2599
        %4247 = vst [vmem:[%s813 + $0xa8] sm:$0xff] %v2601
        %4248 = vst [vmem:[%s813 + $0xb0] sm:$0xff] %v2676
        %4249 = vst [vmem:[%s813 + $0xb8] sm:$0xff] %v2678
        %4250 = vst [vmem:[%s813 + $0xc0] sm:$0xff] %v2753
        %4251 = vst [vmem:[%s813 + $0xc8] sm:$0xff] %v2755
        %4252 = vst [vmem:[%s813 + $0xd0] sm:$0xff] %v2830
        %4253 = vst [vmem:[%s813 + $0xd8] sm:$0xff] %v2832
        %4254 = vst [vmem:[%s813 + $0xe0] sm:$0xff] %v2907
        %4255 = vst [vmem:[%s813 + $0xe8] sm:$0xff] %v2909
        %4256 = vst [vmem:[%s813 + $0xf0] sm:$0xff] %v2984
        %4257 = vst [vmem:[%s813 + $0xf8] sm:$0xff] %v2986
        %4258 = vst [vmem:[%s813 + $0x100] sm:$0xff] %v3061
        %4259 = vst [vmem:[%s813 + $0x108] sm:$0xff] %v3063
        %4260 = vst [vmem:[%s813 + $0x110] sm:$0xff] %v3138
        %4261 = vst [vmem:[%s813 + $0x118] sm:$0xff] %v3140
        %4262 = vst [vmem:[%s813 + $0x120] sm:$0xff] %v3215
        %4263 = vst [vmem:[%s813 + $0x128] sm:$0xff] %v3217
        %4264 = vst [vmem:[%s813 + $0x130] sm:$0xff] %v3292
        %4265 = vst [vmem:[%s813 + $0x138] sm:$0xff] %v3294
        %4266 = vst [vmem:[%s813 + $0x140] sm:$0xff] %v3369
        %4267 = vst [vmem:[%s813 + $0x148] sm:$0xff] %v3371
        %4268 = vst [vmem:[%s813 + $0x150] sm:$0xff] %v3446
        %4269 = vst [vmem:[%s813 + $0x158] sm:$0xff] %v3448
        %4270 = vst [vmem:[%s813 + $0x160] sm:$0xff] %v3523
        %4271 = vst [vmem:[%s813 + $0x168] sm:$0xff] %v3525
        %4272 = vst [vmem:[%s813 + $0x170] sm:$0xff] %v3600
        %4273 = vst [vmem:[%s813 + $0x178] sm:$0xff] %v3602
        %4274 = vst [vmem:[%s813 + $0x180] sm:$0xff] %v3677
        %4275 = vst [vmem:[%s813 + $0x188] sm:$0xff] %v3679
        %4276 = vst [vmem:[%s813 + $0x190] sm:$0xff] %v3754
        %4277 = vst [vmem:[%s813 + $0x198] sm:$0xff] %v3756
        %4278 = vst [vmem:[%s813 + $0x1a0] sm:$0xff] %v3831
        %4279 = vst [vmem:[%s813 + $0x1a8] sm:$0xff] %v3833
        %4280 = vst [vmem:[%s813 + $0x1b0] sm:$0xff] %v3908
        %4281 = vst [vmem:[%s813 + $0x1b8] sm:$0xff] %v3910
        %4282 = vst [vmem:[%s813 + $0x1c0] sm:$0xff] %v3985
        %4283 = vst [vmem:[%s813 + $0x1c8] sm:$0xff] %v3987
        %4284 = vst [vmem:[%s813 + $0x1d0] sm:$0xff] %v4062
        %4285 = vst [vmem:[%s813 + $0x1d8] sm:$0xff] %v4064
        %4286 = vst [vmem:[%s813 + $0x1e0] sm:$0xff] %v4139
        %4287 = vst [vmem:[%s813 + $0x1e8] sm:$0xff] %v4141
        %4288 = vst [vmem:[%s813 + $0x1f0] sm:$0xff] %v4216
        %4289 = vst [vmem:[%s813 + $0x1f8] sm:$0xff] %v4218
        %4290 = vst [vmem:[%s813 + $0x200] sm:$0xff] %v1835
        %4291 = vst [vmem:[%s813 + $0x208] sm:$0xff] %v1837
        %4292 = vst [vmem:[%s813 + $0x210] sm:$0xff] %v1912
        %4293 = vst [vmem:[%s813 + $0x218] sm:$0xff] %v1914
        %4294 = vst [vmem:[%s813 + $0x220] sm:$0xff] %v1989
        %4295 = vst [vmem:[%s813 + $0x228] sm:$0xff] %v1991
        %4296 = vst [vmem:[%s813 + $0x230] sm:$0xff] %v2066
        %4297 = vst [vmem:[%s813 + $0x238] sm:$0xff] %v2068
        %4298 = vst [vmem:[%s813 + $0x240] sm:$0xff] %v2143
        %4299 = vst [vmem:[%s813 + $0x248] sm:$0xff] %v2145
        %4300 = vst [vmem:[%s813 + $0x250] sm:$0xff] %v2220
        %4301 = vst [vmem:[%s813 + $0x258] sm:$0xff] %v2222
        %4302 = vst [vmem:[%s813 + $0x260] sm:$0xff] %v2297
        %4303 = vst [vmem:[%s813 + $0x268] sm:$0xff] %v2299
        %4304 = vst [vmem:[%s813 + $0x270] sm:$0xff] %v2374
        %4305 = vst [vmem:[%s813 + $0x278] sm:$0xff] %v2376
        %4306 = vst [vmem:[%s813 + $0x280] sm:$0xff] %v2451
        %4307 = vst [vmem:[%s813 + $0x288] sm:$0xff] %v2453
        %4308 = vst [vmem:[%s813 + $0x290] sm:$0xff] %v2528
        %4309 = vst [vmem:[%s813 + $0x298] sm:$0xff] %v2530
        %4310 = vst [vmem:[%s813 + $0x2a0] sm:$0xff] %v2605
        %4311 = vst [vmem:[%s813 + $0x2a8] sm:$0xff] %v2607
        %4312 = vst [vmem:[%s813 + $0x2b0] sm:$0xff] %v2682
        %4313 = vst [vmem:[%s813 + $0x2b8] sm:$0xff] %v2684
        %4314 = vst [vmem:[%s813 + $0x2c0] sm:$0xff] %v2759
        %4315 = vst [vmem:[%s813 + $0x2c8] sm:$0xff] %v2761
        %4316 = vst [vmem:[%s813 + $0x2d0] sm:$0xff] %v2836
        %4317 = vst [vmem:[%s813 + $0x2d8] sm:$0xff] %v2838
        %4318 = vst [vmem:[%s813 + $0x2e0] sm:$0xff] %v2913
        %4319 = vst [vmem:[%s813 + $0x2e8] sm:$0xff] %v2915
        %4320 = vst [vmem:[%s813 + $0x2f0] sm:$0xff] %v2990
        %4321 = vst [vmem:[%s813 + $0x2f8] sm:$0xff] %v2992
        %4322 = vst [vmem:[%s813 + $0x300] sm:$0xff] %v3067
        %4323 = vst [vmem:[%s813 + $0x308] sm:$0xff] %v3069
        %4324 = vst [vmem:[%s813 + $0x310] sm:$0xff] %v3144
        %4325 = vst [vmem:[%s813 + $0x318] sm:$0xff] %v3146
        %4326 = vst [vmem:[%s813 + $0x320] sm:$0xff] %v3221
        %4327 = vst [vmem:[%s813 + $0x328] sm:$0xff] %v3223
        %4328 = vst [vmem:[%s813 + $0x330] sm:$0xff] %v3298
        %4329 = vst [vmem:[%s813 + $0x338] sm:$0xff] %v3300
        %4330 = vst [vmem:[%s813 + $0x340] sm:$0xff] %v3375
        %4331 = vst [vmem:[%s813 + $0x348] sm:$0xff] %v3377
        %4332 = vst [vmem:[%s813 + $0x350] sm:$0xff] %v3452
        %4333 = vst [vmem:[%s813 + $0x358] sm:$0xff] %v3454
        %4334 = vst [vmem:[%s813 + $0x360] sm:$0xff] %v3529
        %4335 = vst [vmem:[%s813 + $0x368] sm:$0xff] %v3531
        %4336 = vst [vmem:[%s813 + $0x370] sm:$0xff] %v3606
        %4337 = vst [vmem:[%s813 + $0x378] sm:$0xff] %v3608
        %4338 = vst [vmem:[%s813 + $0x380] sm:$0xff] %v3683
        %4339 = vst [vmem:[%s813 + $0x388] sm:$0xff] %v3685
        %4340 = vst [vmem:[%s813 + $0x390] sm:$0xff] %v3760
        %4341 = vst [vmem:[%s813 + $0x398] sm:$0xff] %v3762
        %4342 = vst [vmem:[%s813 + $0x3a0] sm:$0xff] %v3837
        %4343 = vst [vmem:[%s813 + $0x3a8] sm:$0xff] %v3839
        %4344 = vst [vmem:[%s813 + $0x3b0] sm:$0xff] %v3914
        %4345 = vst [vmem:[%s813 + $0x3b8] sm:$0xff] %v3916
        %4346 = vst [vmem:[%s813 + $0x3c0] sm:$0xff] %v3991
        %4347 = vst [vmem:[%s813 + $0x3c8] sm:$0xff] %v3993
        %4348 = vst [vmem:[%s813 + $0x3d0] sm:$0xff] %v4068
        %4349 = vst [vmem:[%s813 + $0x3d8] sm:$0xff] %v4070
        %4350 = vst [vmem:[%s813 + $0x3e0] sm:$0xff] %v4145
        %4351 = vst [vmem:[%s813 + $0x3e8] sm:$0xff] %v4147
        %4352 = vst [vmem:[%s813 + $0x3f0] sm:$0xff] %v4222
        %4353 = vst [vmem:[%s813 + $0x3f8] sm:$0xff] %v4224
        %v4354 = vadd.f32 %v1829, %v1831
        %v4355 = vadd.f32 %v4354, %v1906
        %v4356 = vadd.f32 %v4355, %v1908
        %v4357 = vadd.f32 %v4356, %v1983
        %v4358 = vadd.f32 %v4357, %v1985
        %v4359 = vadd.f32 %v4358, %v2060
        %v4360 = vadd.f32 %v4359, %v2062
        %v4361 = vadd.f32 %v4360, %v2137
        %v4362 = vadd.f32 %v4361, %v2139
        %v4363 = vadd.f32 %v4362, %v2214
        %v4364 = vadd.f32 %v4363, %v2216
        %v4365 = vadd.f32 %v4364, %v2291
        %v4366 = vadd.f32 %v4365, %v2293
        %v4367 = vadd.f32 %v4366, %v2368
        %v4368 = vadd.f32 %v4367, %v2370
        %v4369 = vadd.f32 %v4368, %v2445
        %v4370 = vadd.f32 %v4369, %v2447
        %v4371 = vadd.f32 %v4370, %v2522
        %v4372 = vadd.f32 %v4371, %v2524
        %v4373 = vadd.f32 %v4372, %v2599
        %v4374 = vadd.f32 %v4373, %v2601
        %v4375 = vadd.f32 %v4374, %v2676
        %v4376 = vadd.f32 %v4375, %v2678
        %v4377 = vadd.f32 %v4376, %v2753
        %v4378 = vadd.f32 %v4377, %v2755
        %v4379 = vadd.f32 %v4378, %v2830
        %v4380 = vadd.f32 %v4379, %v2832
        %v4381 = vadd.f32 %v4380, %v2907
        %v4382 = vadd.f32 %v4381, %v2909
        %v4383 = vadd.f32 %v4382, %v2984
        %v4384 = vadd.f32 %v4383, %v2986
        %v4385 = vadd.f32 %v4384, %v3061
        %v4386 = vadd.f32 %v4385, %v3063
        %v4387 = vadd.f32 %v4386, %v3138
        %v4388 = vadd.f32 %v4387, %v3140
        %v4389 = vadd.f32 %v4388, %v3215
        %v4390 = vadd.f32 %v4389, %v3217
        %v4391 = vadd.f32 %v4390, %v3292
        %v4392 = vadd.f32 %v4391, %v3294
        %v4393 = vadd.f32 %v4392, %v3369
        %v4394 = vadd.f32 %v4393, %v3371
        %v4395 = vadd.f32 %v4394, %v3446
        %v4396 = vadd.f32 %v4395, %v3448
        %v4397 = vadd.f32 %v4396, %v3523
        %v4398 = vadd.f32 %v4397, %v3525
        %v4399 = vadd.f32 %v4398, %v3600
        %v4400 = vadd.f32 %v4399, %v3602
        %v4401 = vadd.f32 %v4400, %v3677
        %v4402 = vadd.f32 %v4401, %v3679
        %v4403 = vadd.f32 %v4402, %v3754
        %v4404 = vadd.f32 %v4403, %v3756
        %v4405 = vadd.f32 %v4404, %v3831
        %v4406 = vadd.f32 %v4405, %v3833
        %v4407 = vadd.f32 %v4406, %v3908
        %v4408 = vadd.f32 %v4407, %v3910
        %v4409 = vadd.f32 %v4408, %v3985
        %v4410 = vadd.f32 %v4409, %v3987
        %v4411 = vadd.f32 %v4410, %v4062
        %v4412 = vadd.f32 %v4411, %v4064
        %v4413 = vadd.f32 %v4412, %v4139
        %v4414 = vadd.f32 %v4413, %v4141
        %v4415 = vadd.f32 %v4414, %v4216
        %v4416 = vadd.f32 %v4415, %v4218
        %4417 = vadd.xlane.f32.xlu0 %v4416
        %v4418 = vpop.xlane.xlu0 %4417
        %v4419 = vadd.f32 %v1835, %v1837
        %v4420 = vadd.f32 %v4419, %v1912
        %v4421 = vadd.f32 %v4420, %v1914
        %v4422 = vadd.f32 %v4421, %v1989
        %v4423 = vadd.f32 %v4422, %v1991
        %v4424 = vadd.f32 %v4423, %v2066
        %v4425 = vadd.f32 %v4424, %v2068
        %v4426 = vadd.f32 %v4425, %v2143
        %v4427 = vadd.f32 %v4426, %v2145
        %v4428 = vadd.f32 %v4427, %v2220
        %v4429 = vadd.f32 %v4428, %v2222
        %v4430 = vadd.f32 %v4429, %v2297
        %v4431 = vadd.f32 %v4430, %v2299
        %v4432 = vadd.f32 %v4431, %v2374
        %v4433 = vadd.f32 %v4432, %v2376
        %v4434 = vadd.f32 %v4433, %v2451
        %v4435 = vadd.f32 %v4434, %v2453
        %v4436 = vadd.f32 %v4435, %v2528
        %v4437 = vadd.f32 %v4436, %v2530
        %v4438 = vadd.f32 %v4437, %v2605
        %v4439 = vadd.f32 %v4438, %v2607
        %v4440 = vadd.f32 %v4439, %v2682
        %v4441 = vadd.f32 %v4440, %v2684
        %v4442 = vadd.f32 %v4441, %v2759
        %v4443 = vadd.f32 %v4442, %v2761
        %v4444 = vadd.f32 %v4443, %v2836
        %v4445 = vadd.f32 %v4444, %v2838
        %v4446 = vadd.f32 %v4445, %v2913
        %v4447 = vadd.f32 %v4446, %v2915
        %v4448 = vadd.f32 %v4447, %v2990
        %v4449 = vadd.f32 %v4448, %v2992
        %v4450 = vadd.f32 %v4449, %v3067
        %v4451 = vadd.f32 %v4450, %v3069
        %v4452 = vadd.f32 %v4451, %v3144
        %v4453 = vadd.f32 %v4452, %v3146
        %v4454 = vadd.f32 %v4453, %v3221
        %v4455 = vadd.f32 %v4454, %v3223
        %v4456 = vadd.f32 %v4455, %v3298
        %v4457 = vadd.f32 %v4456, %v3300
        %v4458 = vadd.f32 %v4457, %v3375
        %v4459 = vadd.f32 %v4458, %v3377
        %v4460 = vadd.f32 %v4459, %v3452
        %v4461 = vadd.f32 %v4460, %v3454
        %v4462 = vadd.f32 %v4461, %v3529
        %v4463 = vadd.f32 %v4462, %v3531
        %v4464 = vadd.f32 %v4463, %v3606
        %v4465 = vadd.f32 %v4464, %v3608
        %v4466 = vadd.f32 %v4465, %v3683
        %v4467 = vadd.f32 %v4466, %v3685
        %v4468 = vadd.f32 %v4467, %v3760
        %v4469 = vadd.f32 %v4468, %v3762
        %v4470 = vadd.f32 %v4469, %v3837
        %v4471 = vadd.f32 %v4470, %v3839
        %v4472 = vadd.f32 %v4471, %v3914
        %v4473 = vadd.f32 %v4472, %v3916
        %v4474 = vadd.f32 %v4473, %v3991
        %v4475 = vadd.f32 %v4474, %v3993
        %v4476 = vadd.f32 %v4475, %v4068
        %v4477 = vadd.f32 %v4476, %v4070
        %v4478 = vadd.f32 %v4477, %v4145
        %v4479 = vadd.f32 %v4478, %v4147
        %v4480 = vadd.f32 %v4479, %v4222
        %v4481 = vadd.f32 %v4480, %v4224
        %4482 = vadd.xlane.f32.xlu0 %v4481
        %v4483 = vpop.xlane.xlu0 %4482
        %vm4484 = vcmask 7168
        %4485 = vst.msk [vmem:[%s847] sm:$0xff] %vm4484, %v4418
        %4486 = vst.msk [vmem:[%s847 + $0x8] sm:$0xff] %vm4484, %v4483
        %v4487 = vmul.f32 %v1829, %v1829
        %v4488 = vmul.f32 %v1831, %v1831
        %v4489 = vmul.f32 %v1906, %v1906
        %v4490 = vmul.f32 %v1908, %v1908
        %v4491 = vmul.f32 %v1983, %v1983
        %v4492 = vmul.f32 %v1985, %v1985
        %v4493 = vmul.f32 %v2060, %v2060
        %v4494 = vmul.f32 %v2062, %v2062
        %v4495 = vmul.f32 %v2137, %v2137
        %v4496 = vmul.f32 %v2139, %v2139
        %v4497 = vmul.f32 %v2214, %v2214
        %v4498 = vmul.f32 %v2216, %v2216
        %v4499 = vmul.f32 %v2291, %v2291
        %v4500 = vmul.f32 %v2293, %v2293
        %v4501 = vmul.f32 %v2368, %v2368
        %v4502 = vmul.f32 %v2370, %v2370
        %v4503 = vmul.f32 %v2445, %v2445
        %v4504 = vmul.f32 %v2447, %v2447
        %v4505 = vmul.f32 %v2522, %v2522
        %v4506 = vmul.f32 %v2524, %v2524
        %v4507 = vmul.f32 %v2599, %v2599
        %v4508 = vmul.f32 %v2601, %v2601
        %v4509 = vmul.f32 %v2676, %v2676
        %v4510 = vmul.f32 %v2678, %v2678
        %v4511 = vmul.f32 %v2753, %v2753
        %v4512 = vmul.f32 %v2755, %v2755
        %v4513 = vmul.f32 %v2830, %v2830
        %v4514 = vmul.f32 %v2832, %v2832
        %v4515 = vmul.f32 %v2907, %v2907
        %v4516 = vmul.f32 %v2909, %v2909
        %v4517 = vmul.f32 %v2984, %v2984
        %v4518 = vmul.f32 %v2986, %v2986
        %v4519 = vmul.f32 %v3061, %v3061
        %v4520 = vmul.f32 %v3063, %v3063
        %v4521 = vmul.f32 %v3138, %v3138
        %v4522 = vmul.f32 %v3140, %v3140
        %v4523 = vmul.f32 %v3215, %v3215
        %v4524 = vmul.f32 %v3217, %v3217
        %v4525 = vmul.f32 %v3292, %v3292
        %v4526 = vmul.f32 %v3294, %v3294
        %v4527 = vmul.f32 %v3369, %v3369
        %v4528 = vmul.f32 %v3371, %v3371
        %v4529 = vmul.f32 %v3446, %v3446
        %v4530 = vmul.f32 %v3448, %v3448
        %v4531 = vmul.f32 %v3523, %v3523
        %v4532 = vmul.f32 %v3525, %v3525
        %v4533 = vmul.f32 %v3600, %v3600
        %v4534 = vmul.f32 %v3602, %v3602
        %v4535 = vmul.f32 %v3677, %v3677
        %v4536 = vmul.f32 %v3679, %v3679
        %v4537 = vmul.f32 %v3754, %v3754
        %v4538 = vmul.f32 %v3756, %v3756
        %v4539 = vmul.f32 %v3831, %v3831
        %v4540 = vmul.f32 %v3833, %v3833
        %v4541 = vmul.f32 %v3908, %v3908
        %v4542 = vmul.f32 %v3910, %v3910
        %v4543 = vmul.f32 %v3985, %v3985
        %v4544 = vmul.f32 %v3987, %v3987
        %v4545 = vmul.f32 %v4062, %v4062
        %v4546 = vmul.f32 %v4064, %v4064
        %v4547 = vmul.f32 %v4139, %v4139
        %v4548 = vmul.f32 %v4141, %v4141
        %v4549 = vmul.f32 %v4216, %v4216
        %v4550 = vmul.f32 %v4218, %v4218
        %v4551 = vmul.f32 %v1835, %v1835
        %v4552 = vmul.f32 %v1837, %v1837
        %v4553 = vmul.f32 %v1912, %v1912
        %v4554 = vmul.f32 %v1914, %v1914
        %v4555 = vmul.f32 %v1989, %v1989
        %v4556 = vmul.f32 %v1991, %v1991
        %v4557 = vmul.f32 %v2066, %v2066
        %v4558 = vmul.f32 %v2068, %v2068
        %v4559 = vmul.f32 %v2143, %v2143
        %v4560 = vmul.f32 %v2145, %v2145
        %v4561 = vmul.f32 %v2220, %v2220
        %v4562 = vmul.f32 %v2222, %v2222
        %v4563 = vmul.f32 %v2297, %v2297
        %v4564 = vmul.f32 %v2299, %v2299
        %v4565 = vmul.f32 %v2374, %v2374
        %v4566 = vmul.f32 %v2376, %v2376
        %v4567 = vmul.f32 %v2451, %v2451
        %v4568 = vmul.f32 %v2453, %v2453
        %v4569 = vmul.f32 %v2528, %v2528
        %v4570 = vmul.f32 %v2530, %v2530
        %v4571 = vmul.f32 %v2605, %v2605
        %v4572 = vmul.f32 %v2607, %v2607
        %v4573 = vmul.f32 %v2682, %v2682
        %v4574 = vmul.f32 %v2684, %v2684
        %v4575 = vmul.f32 %v2759, %v2759
        %v4576 = vmul.f32 %v2761, %v2761
        %v4577 = vmul.f32 %v2836, %v2836
        %v4578 = vmul.f32 %v2838, %v2838
        %v4579 = vmul.f32 %v2913, %v2913
        %v4580 = vmul.f32 %v2915, %v2915
        %v4581 = vmul.f32 %v2990, %v2990
        %v4582 = vmul.f32 %v2992, %v2992
        %v4583 = vmul.f32 %v3067, %v3067
        %v4584 = vmul.f32 %v3069, %v3069
        %v4585 = vmul.f32 %v3144, %v3144
        %v4586 = vmul.f32 %v3146, %v3146
        %v4587 = vmul.f32 %v3221, %v3221
        %v4588 = vmul.f32 %v3223, %v3223
        %v4589 = vmul.f32 %v3298, %v3298
        %v4590 = vmul.f32 %v3300, %v3300
        %v4591 = vmul.f32 %v3375, %v3375
        %v4592 = vmul.f32 %v3377, %v3377
        %v4593 = vmul.f32 %v3452, %v3452
        %v4594 = vmul.f32 %v3454, %v3454
        %v4595 = vmul.f32 %v3529, %v3529
        %v4596 = vmul.f32 %v3531, %v3531
        %v4597 = vmul.f32 %v3606, %v3606
        %v4598 = vmul.f32 %v3608, %v3608
        %v4599 = vmul.f32 %v3683, %v3683
        %v4600 = vmul.f32 %v3685, %v3685
        %v4601 = vmul.f32 %v3760, %v3760
        %v4602 = vmul.f32 %v3762, %v3762
        %v4603 = vmul.f32 %v3837, %v3837
        %v4604 = vmul.f32 %v3839, %v3839
        %v4605 = vmul.f32 %v3914, %v3914
        %v4606 = vmul.f32 %v3916, %v3916
        %v4607 = vmul.f32 %v3991, %v3991
        %v4608 = vmul.f32 %v3993, %v3993
        %v4609 = vmul.f32 %v4068, %v4068
        %v4610 = vmul.f32 %v4070, %v4070
        %v4611 = vmul.f32 %v4145, %v4145
        %v4612 = vmul.f32 %v4147, %v4147
        %v4613 = vmul.f32 %v4222, %v4222
        %v4614 = vmul.f32 %v4224, %v4224
        %v4615 = vadd.f32 %v4487, %v4488
        %v4616 = vadd.f32 %v4615, %v4489
        %v4617 = vadd.f32 %v4616, %v4490
        %v4618 = vadd.f32 %v4617, %v4491
        %v4619 = vadd.f32 %v4618, %v4492
        %v4620 = vadd.f32 %v4619, %v4493
        %v4621 = vadd.f32 %v4620, %v4494
        %v4622 = vadd.f32 %v4621, %v4495
        %v4623 = vadd.f32 %v4622, %v4496
        %v4624 = vadd.f32 %v4623, %v4497
        %v4625 = vadd.f32 %v4624, %v4498
        %v4626 = vadd.f32 %v4625, %v4499
        %v4627 = vadd.f32 %v4626, %v4500
        %v4628 = vadd.f32 %v4627, %v4501
        %v4629 = vadd.f32 %v4628, %v4502
        %v4630 = vadd.f32 %v4629, %v4503
        %v4631 = vadd.f32 %v4630, %v4504
        %v4632 = vadd.f32 %v4631, %v4505
        %v4633 = vadd.f32 %v4632, %v4506
        %v4634 = vadd.f32 %v4633, %v4507
        %v4635 = vadd.f32 %v4634, %v4508
        %v4636 = vadd.f32 %v4635, %v4509
        %v4637 = vadd.f32 %v4636, %v4510
        %v4638 = vadd.f32 %v4637, %v4511
        %v4639 = vadd.f32 %v4638, %v4512
        %v4640 = vadd.f32 %v4639, %v4513
        %v4641 = vadd.f32 %v4640, %v4514
        %v4642 = vadd.f32 %v4641, %v4515
        %v4643 = vadd.f32 %v4642, %v4516
        %v4644 = vadd.f32 %v4643, %v4517
        %v4645 = vadd.f32 %v4644, %v4518
        %v4646 = vadd.f32 %v4645, %v4519
        %v4647 = vadd.f32 %v4646, %v4520
        %v4648 = vadd.f32 %v4647, %v4521
        %v4649 = vadd.f32 %v4648, %v4522
        %v4650 = vadd.f32 %v4649, %v4523
        %v4651 = vadd.f32 %v4650, %v4524
        %v4652 = vadd.f32 %v4651, %v4525
        %v4653 = vadd.f32 %v4652, %v4526
        %v4654 = vadd.f32 %v4653, %v4527
        %v4655 = vadd.f32 %v4654, %v4528
        %v4656 = vadd.f32 %v4655, %v4529
        %v4657 = vadd.f32 %v4656, %v4530
        %v4658 = vadd.f32 %v4657, %v4531
        %v4659 = vadd.f32 %v4658, %v4532
        %v4660 = vadd.f32 %v4659, %v4533
        %v4661 = vadd.f32 %v4660, %v4534
        %v4662 = vadd.f32 %v4661, %v4535
        %v4663 = vadd.f32 %v4662, %v4536
        %v4664 = vadd.f32 %v4663, %v4537
        %v4665 = vadd.f32 %v4664, %v4538
        %v4666 = vadd.f32 %v4665, %v4539
        %v4667 = vadd.f32 %v4666, %v4540
        %v4668 = vadd.f32 %v4667, %v4541
        %v4669 = vadd.f32 %v4668, %v4542
        %v4670 = vadd.f32 %v4669, %v4543
        %v4671 = vadd.f32 %v4670, %v4544
        %v4672 = vadd.f32 %v4671, %v4545
        %v4673 = vadd.f32 %v4672, %v4546
        %v4674 = vadd.f32 %v4673, %v4547
        %v4675 = vadd.f32 %v4674, %v4548
        %v4676 = vadd.f32 %v4675, %v4549
        %v4677 = vadd.f32 %v4676, %v4550
        %4678 = vadd.xlane.f32.xlu0 %v4677
        %v4679 = vpop.xlane.xlu0 %4678
        %v4680 = vadd.f32 %v4551, %v4552
        %v4681 = vadd.f32 %v4680, %v4553
        %v4682 = vadd.f32 %v4681, %v4554
        %v4683 = vadd.f32 %v4682, %v4555
        %v4684 = vadd.f32 %v4683, %v4556
        %v4685 = vadd.f32 %v4684, %v4557
        %v4686 = vadd.f32 %v4685, %v4558
        %v4687 = vadd.f32 %v4686, %v4559
        %v4688 = vadd.f32 %v4687, %v4560
        %v4689 = vadd.f32 %v4688, %v4561
        %v4690 = vadd.f32 %v4689, %v4562
        %v4691 = vadd.f32 %v4690, %v4563
        %v4692 = vadd.f32 %v4691, %v4564
        %v4693 = vadd.f32 %v4692, %v4565
        %v4694 = vadd.f32 %v4693, %v4566
        %v4695 = vadd.f32 %v4694, %v4567
        %v4696 = vadd.f32 %v4695, %v4568
        %v4697 = vadd.f32 %v4696, %v4569
        %v4698 = vadd.f32 %v4697, %v4570
        %v4699 = vadd.f32 %v4698, %v4571
        %v4700 = vadd.f32 %v4699, %v4572
        %v4701 = vadd.f32 %v4700, %v4573
        %v4702 = vadd.f32 %v4701, %v4574
        %v4703 = vadd.f32 %v4702, %v4575
        %v4704 = vadd.f32 %v4703, %v4576
        %v4705 = vadd.f32 %v4704, %v4577
        %v4706 = vadd.f32 %v4705, %v4578
        %v4707 = vadd.f32 %v4706, %v4579
        %v4708 = vadd.f32 %v4707, %v4580
        %v4709 = vadd.f32 %v4708, %v4581
        %v4710 = vadd.f32 %v4709, %v4582
        %v4711 = vadd.f32 %v4710, %v4583
        %v4712 = vadd.f32 %v4711, %v4584
        %v4713 = vadd.f32 %v4712, %v4585
        %v4714 = vadd.f32 %v4713, %v4586
        %v4715 = vadd.f32 %v4714, %v4587
        %v4716 = vadd.f32 %v4715, %v4588
        %v4717 = vadd.f32 %v4716, %v4589
        %v4718 = vadd.f32 %v4717, %v4590
        %v4719 = vadd.f32 %v4718, %v4591
        %v4720 = vadd.f32 %v4719, %v4592
        %v4721 = vadd.f32 %v4720, %v4593
        %v4722 = vadd.f32 %v4721, %v4594
        %v4723 = vadd.f32 %v4722, %v4595
        %v4724 = vadd.f32 %v4723, %v4596
        %v4725 = vadd.f32 %v4724, %v4597
        %v4726 = vadd.f32 %v4725, %v4598
        %v4727 = vadd.f32 %v4726, %v4599
        %v4728 = vadd.f32 %v4727, %v4600
        %v4729 = vadd.f32 %v4728, %v4601
        %v4730 = vadd.f32 %v4729, %v4602
        %v4731 = vadd.f32 %v4730, %v4603
        %v4732 = vadd.f32 %v4731, %v4604
        %v4733 = vadd.f32 %v4732, %v4605
        %v4734 = vadd.f32 %v4733, %v4606
        %v4735 = vadd.f32 %v4734, %v4607
        %v4736 = vadd.f32 %v4735, %v4608
        %v4737 = vadd.f32 %v4736, %v4609
        %v4738 = vadd.f32 %v4737, %v4610
        %v4739 = vadd.f32 %v4738, %v4611
        %v4740 = vadd.f32 %v4739, %v4612
        %v4741 = vadd.f32 %v4740, %v4613
        %v4742 = vadd.f32 %v4741, %v4614
        %4743 = vadd.xlane.f32.xlu0 %v4742
        %v4744 = vpop.xlane.xlu0 %4743
        %4745 = vst.msk [vmem:[%s856] sm:$0xff] %vm4484, %v4679
        %4746 = vst.msk [vmem:[%s856 + $0x8] sm:$0xff] %vm4484, %v4744
        %s4747 = sand.u32 %s116, 1
        %s4748 = sand.u32 %s116, 1
        %s4749 = smul.addr %s4748, 1024
        %s4750 = scalar_lea.vmem [#allocation4], %s4749
        %p4751 = scmp.lt.s32.totalorder %s21, 1
        %s4752 = scalar_select %p4751, %s21, 1
        %p4753 = scmp.lt.s32.totalorder %s22, 1
        %s4754 = scalar_select %p4753, %s22, 1
        %s4755 = smul.addr %s4754, 2
        %s4756 = smul.addr %s4752, 4
        %s4757 = sadd.s32 %s4755, %s4756
        %s4758 = smul.addr %s4757, 8
        %s4759 = scalar_lea.vmem %s4, %s4758
        %p4760 = scmp.lt.s32.totalorder %s21, 1
        %s4761 = scalar_select %p4760, %s21, 1
        %p4762 = scmp.lt.s32.totalorder %s22, 1
        %s4763 = scalar_select %p4762, %s22, 1
        %s4764 = smul.addr %s4763, 2
        %s4765 = smul.addr %s4761, 4
        %s4766 = sadd.s32 %s4764, %s4765
        %s4767 = smul.addr %s4766, 8
        %s4768 = scalar_lea.vmem %s5, %s4767
        // Predicated region
        $region79: #{dra_forward.2} parent=69 // pred_check
          %p4769 = pneg %p126
        $region80: #{dra_forward.2} parent=69 // pred_check_branch
          %4771 = sbr.rel (%p4769) target = $region82
        $region81: #{dra_forward.2} parent=69 // pred_region
          %s4772 = smul.u32 64, %s22
          %s4773 = smul.addr %s21, 256
          %s4774 = sadd.s32 %s4772, %s4773
          %s4775 = smul.addr %s4774, 8
          %s4776 = scalar_lea.vmem %s3, %s4775
          // Predicated region
          $region83: #{dra_forward.2} parent=81 // pred_check
            _
          $region84: #{dra_forward.2} parent=81 // pred_check_branch
            %4778 = sbr.rel (0) target = $region86
          $region85: #{dra_forward.2} parent=81 // pred_region
            // Predicated region
            $region87: #{dra_forward.2} parent=85 // pred_check
              _
            $region88: #{dra_forward.2} parent=85 // pred_check_branch
              %4780 = sbr.rel (0) target = $region90
            $region89: #{dra_forward.2} parent=85 // pred_region
              loop: start=0, step=1, limit=1
              $region91: #{dra_forward.2} parent=89 // loop_pre_header
                _
              $region92: #{dra_forward.2} parent=89 // loop_header
                %s4782 = sphi 0, %s4786
                %p4783 = scmp.ge.s32.totalorder %s4782, 1
                %s4787 = sphi %s4750, %s4750
                %s4788 = sphi %s4776, %s4776
              $region93: #{dra_forward.2} parent=89 // loop_header_branch
                %4785 = sbr.rel (%p4783) target = $region97
              $region94: #{dra_forward.2} parent=89 // loop_body
                %v4789 = vld [vmem:[%s4787] sm:$0xff]
                %4790 = vst [vmem:[%s4788] sm:$0xff] %v4789
                %v4791 = vld [vmem:[%s4787 + $0x8] sm:$0xff]
                %4792 = vst [vmem:[%s4788 + $0x8] sm:$0xff] %v4791
                %v4793 = vld [vmem:[%s4787 + $0x10] sm:$0xff]
                %4794 = vst [vmem:[%s4788 + $0x10] sm:$0xff] %v4793
                %v4795 = vld [vmem:[%s4787 + $0x18] sm:$0xff]
                %4796 = vst [vmem:[%s4788 + $0x18] sm:$0xff] %v4795
                %v4797 = vld [vmem:[%s4787 + $0x20] sm:$0xff]
                %4798 = vst [vmem:[%s4788 + $0x20] sm:$0xff] %v4797
                %v4799 = vld [vmem:[%s4787 + $0x28] sm:$0xff]
                %4800 = vst [vmem:[%s4788 + $0x28] sm:$0xff] %v4799
                %v4801 = vld [vmem:[%s4787 + $0x30] sm:$0xff]
                %4802 = vst [vmem:[%s4788 + $0x30] sm:$0xff] %v4801
                %v4803 = vld [vmem:[%s4787 + $0x38] sm:$0xff]
                %4804 = vst [vmem:[%s4788 + $0x38] sm:$0xff] %v4803
                %v4805 = vld [vmem:[%s4787 + $0x40] sm:$0xff]
                %4806 = vst [vmem:[%s4788 + $0x40] sm:$0xff] %v4805
                %v4807 = vld [vmem:[%s4787 + $0x48] sm:$0xff]
                %4808 = vst [vmem:[%s4788 + $0x48] sm:$0xff] %v4807
                %v4809 = vld [vmem:[%s4787 + $0x50] sm:$0xff]
                %4810 = vst [vmem:[%s4788 + $0x50] sm:$0xff] %v4809
                %v4811 = vld [vmem:[%s4787 + $0x58] sm:$0xff]
                %4812 = vst [vmem:[%s4788 + $0x58] sm:$0xff] %v4811
                %v4813 = vld [vmem:[%s4787 + $0x60] sm:$0xff]
                %4814 = vst [vmem:[%s4788 + $0x60] sm:$0xff] %v4813
                %v4815 = vld [vmem:[%s4787 + $0x68] sm:$0xff]
                %4816 = vst [vmem:[%s4788 + $0x68] sm:$0xff] %v4815
                %v4817 = vld [vmem:[%s4787 + $0x70] sm:$0xff]
                %4818 = vst [vmem:[%s4788 + $0x70] sm:$0xff] %v4817
                %v4819 = vld [vmem:[%s4787 + $0x78] sm:$0xff]
                %4820 = vst [vmem:[%s4788 + $0x78] sm:$0xff] %v4819
                %v4821 = vld [vmem:[%s4787 + $0x80] sm:$0xff]
                %4822 = vst [vmem:[%s4788 + $0x80] sm:$0xff] %v4821
                %v4823 = vld [vmem:[%s4787 + $0x88] sm:$0xff]
                %4824 = vst [vmem:[%s4788 + $0x88] sm:$0xff] %v4823
                %v4825 = vld [vmem:[%s4787 + $0x90] sm:$0xff]
                %4826 = vst [vmem:[%s4788 + $0x90] sm:$0xff] %v4825
                %v4827 = vld [vmem:[%s4787 + $0x98] sm:$0xff]
                %4828 = vst [vmem:[%s4788 + $0x98] sm:$0xff] %v4827
                %v4829 = vld [vmem:[%s4787 + $0xa0] sm:$0xff]
                %4830 = vst [vmem:[%s4788 + $0xa0] sm:$0xff] %v4829
                %v4831 = vld [vmem:[%s4787 + $0xa8] sm:$0xff]
                %4832 = vst [vmem:[%s4788 + $0xa8] sm:$0xff] %v4831
                %v4833 = vld [vmem:[%s4787 + $0xb0] sm:$0xff]
                %4834 = vst [vmem:[%s4788 + $0xb0] sm:$0xff] %v4833
                %v4835 = vld [vmem:[%s4787 + $0xb8] sm:$0xff]
                %4836 = vst [vmem:[%s4788 + $0xb8] sm:$0xff] %v4835
                %v4837 = vld [vmem:[%s4787 + $0xc0] sm:$0xff]
                %4838 = vst [vmem:[%s4788 + $0xc0] sm:$0xff] %v4837
                %v4839 = vld [vmem:[%s4787 + $0xc8] sm:$0xff]
                %4840 = vst [vmem:[%s4788 + $0xc8] sm:$0xff] %v4839
                %v4841 = vld [vmem:[%s4787 + $0xd0] sm:$0xff]
                %4842 = vst [vmem:[%s4788 + $0xd0] sm:$0xff] %v4841
                %v4843 = vld [vmem:[%s4787 + $0xd8] sm:$0xff]
                %4844 = vst [vmem:[%s4788 + $0xd8] sm:$0xff] %v4843
                %v4845 = vld [vmem:[%s4787 + $0xe0] sm:$0xff]
                %4846 = vst [vmem:[%s4788 + $0xe0] sm:$0xff] %v4845
                %v4847 = vld [vmem:[%s4787 + $0xe8] sm:$0xff]
                %4848 = vst [vmem:[%s4788 + $0xe8] sm:$0xff] %v4847
                %v4849 = vld [vmem:[%s4787 + $0xf0] sm:$0xff]
                %4850 = vst [vmem:[%s4788 + $0xf0] sm:$0xff] %v4849
                %v4851 = vld [vmem:[%s4787 + $0xf8] sm:$0xff]
                %4852 = vst [vmem:[%s4788 + $0xf8] sm:$0xff] %v4851
                %v4853 = vld [vmem:[%s4787 + $0x100] sm:$0xff]
                %4854 = vst [vmem:[%s4788 + $0x100] sm:$0xff] %v4853
                %v4855 = vld [vmem:[%s4787 + $0x108] sm:$0xff]
                %4856 = vst [vmem:[%s4788 + $0x108] sm:$0xff] %v4855
                %v4857 = vld [vmem:[%s4787 + $0x110] sm:$0xff]
                %4858 = vst [vmem:[%s4788 + $0x110] sm:$0xff] %v4857
                %v4859 = vld [vmem:[%s4787 + $0x118] sm:$0xff]
                %4860 = vst [vmem:[%s4788 + $0x118] sm:$0xff] %v4859
                %v4861 = vld [vmem:[%s4787 + $0x120] sm:$0xff]
                %4862 = vst [vmem:[%s4788 + $0x120] sm:$0xff] %v4861
                %v4863 = vld [vmem:[%s4787 + $0x128] sm:$0xff]
                %4864 = vst [vmem:[%s4788 + $0x128] sm:$0xff] %v4863
                %v4865 = vld [vmem:[%s4787 + $0x130] sm:$0xff]
                %4866 = vst [vmem:[%s4788 + $0x130] sm:$0xff] %v4865
                %v4867 = vld [vmem:[%s4787 + $0x138] sm:$0xff]
                %4868 = vst [vmem:[%s4788 + $0x138] sm:$0xff] %v4867
                %v4869 = vld [vmem:[%s4787 + $0x140] sm:$0xff]
                %4870 = vst [vmem:[%s4788 + $0x140] sm:$0xff] %v4869
                %v4871 = vld [vmem:[%s4787 + $0x148] sm:$0xff]
                %4872 = vst [vmem:[%s4788 + $0x148] sm:$0xff] %v4871
                %v4873 = vld [vmem:[%s4787 + $0x150] sm:$0xff]
                %4874 = vst [vmem:[%s4788 + $0x150] sm:$0xff] %v4873
                %v4875 = vld [vmem:[%s4787 + $0x158] sm:$0xff]
                %4876 = vst [vmem:[%s4788 + $0x158] sm:$0xff] %v4875
                %v4877 = vld [vmem:[%s4787 + $0x160] sm:$0xff]
                %4878 = vst [vmem:[%s4788 + $0x160] sm:$0xff] %v4877
                %v4879 = vld [vmem:[%s4787 + $0x168] sm:$0xff]
                %4880 = vst [vmem:[%s4788 + $0x168] sm:$0xff] %v4879
                %v4881 = vld [vmem:[%s4787 + $0x170] sm:$0xff]
                %4882 = vst [vmem:[%s4788 + $0x170] sm:$0xff] %v4881
                %v4883 = vld [vmem:[%s4787 + $0x178] sm:$0xff]
                %4884 = vst [vmem:[%s4788 + $0x178] sm:$0xff] %v4883
                %v4885 = vld [vmem:[%s4787 + $0x180] sm:$0xff]
                %4886 = vst [vmem:[%s4788 + $0x180] sm:$0xff] %v4885
                %v4887 = vld [vmem:[%s4787 + $0x188] sm:$0xff]
                %4888 = vst [vmem:[%s4788 + $0x188] sm:$0xff] %v4887
                %v4889 = vld [vmem:[%s4787 + $0x190] sm:$0xff]
                %4890 = vst [vmem:[%s4788 + $0x190] sm:$0xff] %v4889
                %v4891 = vld [vmem:[%s4787 + $0x198] sm:$0xff]
                %4892 = vst [vmem:[%s4788 + $0x198] sm:$0xff] %v4891
                %v4893 = vld [vmem:[%s4787 + $0x1a0] sm:$0xff]
                %4894 = vst [vmem:[%s4788 + $0x1a0] sm:$0xff] %v4893
                %v4895 = vld [vmem:[%s4787 + $0x1a8] sm:$0xff]
                %4896 = vst [vmem:[%s4788 + $0x1a8] sm:$0xff] %v4895
                %v4897 = vld [vmem:[%s4787 + $0x1b0] sm:$0xff]
                %4898 = vst [vmem:[%s4788 + $0x1b0] sm:$0xff] %v4897
                %v4899 = vld [vmem:[%s4787 + $0x1b8] sm:$0xff]
                %4900 = vst [vmem:[%s4788 + $0x1b8] sm:$0xff] %v4899
                %v4901 = vld [vmem:[%s4787 + $0x1c0] sm:$0xff]
                %4902 = vst [vmem:[%s4788 + $0x1c0] sm:$0xff] %v4901
                %v4903 = vld [vmem:[%s4787 + $0x1c8] sm:$0xff]
                %4904 = vst [vmem:[%s4788 + $0x1c8] sm:$0xff] %v4903
                %v4905 = vld [vmem:[%s4787 + $0x1d0] sm:$0xff]
                %4906 = vst [vmem:[%s4788 + $0x1d0] sm:$0xff] %v4905
                %v4907 = vld [vmem:[%s4787 + $0x1d8] sm:$0xff]
                %4908 = vst [vmem:[%s4788 + $0x1d8] sm:$0xff] %v4907
                %v4909 = vld [vmem:[%s4787 + $0x1e0] sm:$0xff]
                %4910 = vst [vmem:[%s4788 + $0x1e0] sm:$0xff] %v4909
                %v4911 = vld [vmem:[%s4787 + $0x1e8] sm:$0xff]
                %4912 = vst [vmem:[%s4788 + $0x1e8] sm:$0xff] %v4911
                %v4913 = vld [vmem:[%s4787 + $0x1f0] sm:$0xff]
                %4914 = vst [vmem:[%s4788 + $0x1f0] sm:$0xff] %v4913
                %v4915 = vld [vmem:[%s4787 + $0x1f8] sm:$0xff]
                %4916 = vst [vmem:[%s4788 + $0x1f8] sm:$0xff] %v4915
                %v4917 = vld [vmem:[%s4787 + $0x200] sm:$0xff]
                %4918 = vst [vmem:[%s4788 + $0x400] sm:$0xff] %v4917
                %v4919 = vld [vmem:[%s4787 + $0x208] sm:$0xff]
                %4920 = vst [vmem:[%s4788 + $0x408] sm:$0xff] %v4919
                %v4921 = vld [vmem:[%s4787 + $0x210] sm:$0xff]
                %4922 = vst [vmem:[%s4788 + $0x410] sm:$0xff] %v4921
                %v4923 = vld [vmem:[%s4787 + $0x218] sm:$0xff]
                %4924 = vst [vmem:[%s4788 + $0x418] sm:$0xff] %v4923
                %v4925 = vld [vmem:[%s4787 + $0x220] sm:$0xff]
                %4926 = vst [vmem:[%s4788 + $0x420] sm:$0xff] %v4925
                %v4927 = vld [vmem:[%s4787 + $0x228] sm:$0xff]
                %4928 = vst [vmem:[%s4788 + $0x428] sm:$0xff] %v4927
                %v4929 = vld [vmem:[%s4787 + $0x230] sm:$0xff]
                %4930 = vst [vmem:[%s4788 + $0x430] sm:$0xff] %v4929
                %v4931 = vld [vmem:[%s4787 + $0x238] sm:$0xff]
                %4932 = vst [vmem:[%s4788 + $0x438] sm:$0xff] %v4931
                %v4933 = vld [vmem:[%s4787 + $0x240] sm:$0xff]
                %4934 = vst [vmem:[%s4788 + $0x440] sm:$0xff] %v4933
                %v4935 = vld [vmem:[%s4787 + $0x248] sm:$0xff]
                %4936 = vst [vmem:[%s4788 + $0x448] sm:$0xff] %v4935
                %v4937 = vld [vmem:[%s4787 + $0x250] sm:$0xff]
                %4938 = vst [vmem:[%s4788 + $0x450] sm:$0xff] %v4937
                %v4939 = vld [vmem:[%s4787 + $0x258] sm:$0xff]
                %4940 = vst [vmem:[%s4788 + $0x458] sm:$0xff] %v4939
                %v4941 = vld [vmem:[%s4787 + $0x260] sm:$0xff]
                %4942 = vst [vmem:[%s4788 + $0x460] sm:$0xff] %v4941
                %v4943 = vld [vmem:[%s4787 + $0x268] sm:$0xff]
                %4944 = vst [vmem:[%s4788 + $0x468] sm:$0xff] %v4943
                %v4945 = vld [vmem:[%s4787 + $0x270] sm:$0xff]
                %4946 = vst [vmem:[%s4788 + $0x470] sm:$0xff] %v4945
                %v4947 = vld [vmem:[%s4787 + $0x278] sm:$0xff]
                %4948 = vst [vmem:[%s4788 + $0x478] sm:$0xff] %v4947
                %v4949 = vld [vmem:[%s4787 + $0x280] sm:$0xff]
                %4950 = vst [vmem:[%s4788 + $0x480] sm:$0xff] %v4949
                %v4951 = vld [vmem:[%s4787 + $0x288] sm:$0xff]
                %4952 = vst [vmem:[%s4788 + $0x488] sm:$0xff] %v4951
                %v4953 = vld [vmem:[%s4787 + $0x290] sm:$0xff]
                %4954 = vst [vmem:[%s4788 + $0x490] sm:$0xff] %v4953
                %v4955 = vld [vmem:[%s4787 + $0x298] sm:$0xff]
                %4956 = vst [vmem:[%s4788 + $0x498] sm:$0xff] %v4955
                %v4957 = vld [vmem:[%s4787 + $0x2a0] sm:$0xff]
                %4958 = vst [vmem:[%s4788 + $0x4a0] sm:$0xff] %v4957
                %v4959 = vld [vmem:[%s4787 + $0x2a8] sm:$0xff]
                %4960 = vst [vmem:[%s4788 + $0x4a8] sm:$0xff] %v4959
                %v4961 = vld [vmem:[%s4787 + $0x2b0] sm:$0xff]
                %4962 = vst [vmem:[%s4788 + $0x4b0] sm:$0xff] %v4961
                %v4963 = vld [vmem:[%s4787 + $0x2b8] sm:$0xff]
                %4964 = vst [vmem:[%s4788 + $0x4b8] sm:$0xff] %v4963
                %v4965 = vld [vmem:[%s4787 + $0x2c0] sm:$0xff]
                %4966 = vst [vmem:[%s4788 + $0x4c0] sm:$0xff] %v4965
                %v4967 = vld [vmem:[%s4787 + $0x2c8] sm:$0xff]
                %4968 = vst [vmem:[%s4788 + $0x4c8] sm:$0xff] %v4967
                %v4969 = vld [vmem:[%s4787 + $0x2d0] sm:$0xff]
                %4970 = vst [vmem:[%s4788 + $0x4d0] sm:$0xff] %v4969
                %v4971 = vld [vmem:[%s4787 + $0x2d8] sm:$0xff]
                %4972 = vst [vmem:[%s4788 + $0x4d8] sm:$0xff] %v4971
                %v4973 = vld [vmem:[%s4787 + $0x2e0] sm:$0xff]
                %4974 = vst [vmem:[%s4788 + $0x4e0] sm:$0xff] %v4973
                %v4975 = vld [vmem:[%s4787 + $0x2e8] sm:$0xff]
                %4976 = vst [vmem:[%s4788 + $0x4e8] sm:$0xff] %v4975
                %v4977 = vld [vmem:[%s4787 + $0x2f0] sm:$0xff]
                %4978 = vst [vmem:[%s4788 + $0x4f0] sm:$0xff] %v4977
                %v4979 = vld [vmem:[%s4787 + $0x2f8] sm:$0xff]
                %4980 = vst [vmem:[%s4788 + $0x4f8] sm:$0xff] %v4979
                %v4981 = vld [vmem:[%s4787 + $0x300] sm:$0xff]
                %4982 = vst [vmem:[%s4788 + $0x500] sm:$0xff] %v4981
                %v4983 = vld [vmem:[%s4787 + $0x308] sm:$0xff]
                %4984 = vst [vmem:[%s4788 + $0x508] sm:$0xff] %v4983
                %v4985 = vld [vmem:[%s4787 + $0x310] sm:$0xff]
                %4986 = vst [vmem:[%s4788 + $0x510] sm:$0xff] %v4985
                %v4987 = vld [vmem:[%s4787 + $0x318] sm:$0xff]
                %4988 = vst [vmem:[%s4788 + $0x518] sm:$0xff] %v4987
                %v4989 = vld [vmem:[%s4787 + $0x320] sm:$0xff]
                %4990 = vst [vmem:[%s4788 + $0x520] sm:$0xff] %v4989
                %v4991 = vld [vmem:[%s4787 + $0x328] sm:$0xff]
                %4992 = vst [vmem:[%s4788 + $0x528] sm:$0xff] %v4991
                %v4993 = vld [vmem:[%s4787 + $0x330] sm:$0xff]
                %4994 = vst [vmem:[%s4788 + $0x530] sm:$0xff] %v4993
                %v4995 = vld [vmem:[%s4787 + $0x338] sm:$0xff]
                %4996 = vst [vmem:[%s4788 + $0x538] sm:$0xff] %v4995
                %v4997 = vld [vmem:[%s4787 + $0x340] sm:$0xff]
                %4998 = vst [vmem:[%s4788 + $0x540] sm:$0xff] %v4997
                %v4999 = vld [vmem:[%s4787 + $0x348] sm:$0xff]
                %5000 = vst [vmem:[%s4788 + $0x548] sm:$0xff] %v4999
                %v5001 = vld [vmem:[%s4787 + $0x350] sm:$0xff]
                %5002 = vst [vmem:[%s4788 + $0x550] sm:$0xff] %v5001
                %v5003 = vld [vmem:[%s4787 + $0x358] sm:$0xff]
                %5004 = vst [vmem:[%s4788 + $0x558] sm:$0xff] %v5003
                %v5005 = vld [vmem:[%s4787 + $0x360] sm:$0xff]
                %5006 = vst [vmem:[%s4788 + $0x560] sm:$0xff] %v5005
                %v5007 = vld [vmem:[%s4787 + $0x368] sm:$0xff]
                %5008 = vst [vmem:[%s4788 + $0x568] sm:$0xff] %v5007
                %v5009 = vld [vmem:[%s4787 + $0x370] sm:$0xff]
                %5010 = vst [vmem:[%s4788 + $0x570] sm:$0xff] %v5009
                %v5011 = vld [vmem:[%s4787 + $0x378] sm:$0xff]
                %5012 = vst [vmem:[%s4788 + $0x578] sm:$0xff] %v5011
                %v5013 = vld [vmem:[%s4787 + $0x380] sm:$0xff]
                %5014 = vst [vmem:[%s4788 + $0x580] sm:$0xff] %v5013
                %v5015 = vld [vmem:[%s4787 + $0x388] sm:$0xff]
                %5016 = vst [vmem:[%s4788 + $0x588] sm:$0xff] %v5015
                %v5017 = vld [vmem:[%s4787 + $0x390] sm:$0xff]
                %5018 = vst [vmem:[%s4788 + $0x590] sm:$0xff] %v5017
                %v5019 = vld [vmem:[%s4787 + $0x398] sm:$0xff]
                %5020 = vst [vmem:[%s4788 + $0x598] sm:$0xff] %v5019
                %v5021 = vld [vmem:[%s4787 + $0x3a0] sm:$0xff]
                %5022 = vst [vmem:[%s4788 + $0x5a0] sm:$0xff] %v5021
                %v5023 = vld [vmem:[%s4787 + $0x3a8] sm:$0xff]
                %5024 = vst [vmem:[%s4788 + $0x5a8] sm:$0xff] %v5023
                %v5025 = vld [vmem:[%s4787 + $0x3b0] sm:$0xff]
                %5026 = vst [vmem:[%s4788 + $0x5b0] sm:$0xff] %v5025
                %v5027 = vld [vmem:[%s4787 + $0x3b8] sm:$0xff]
                %5028 = vst [vmem:[%s4788 + $0x5b8] sm:$0xff] %v5027
                %v5029 = vld [vmem:[%s4787 + $0x3c0] sm:$0xff]
                %5030 = vst [vmem:[%s4788 + $0x5c0] sm:$0xff] %v5029
                %v5031 = vld [vmem:[%s4787 + $0x3c8] sm:$0xff]
                %5032 = vst [vmem:[%s4788 + $0x5c8] sm:$0xff] %v5031
                %v5033 = vld [vmem:[%s4787 + $0x3d0] sm:$0xff]
                %5034 = vst [vmem:[%s4788 + $0x5d0] sm:$0xff] %v5033
                %v5035 = vld [vmem:[%s4787 + $0x3d8] sm:$0xff]
                %5036 = vst [vmem:[%s4788 + $0x5d8] sm:$0xff] %v5035
                %v5037 = vld [vmem:[%s4787 + $0x3e0] sm:$0xff]
                %5038 = vst [vmem:[%s4788 + $0x5e0] sm:$0xff] %v5037
                %v5039 = vld [vmem:[%s4787 + $0x3e8] sm:$0xff]
                %5040 = vst [vmem:[%s4788 + $0x5e8] sm:$0xff] %v5039
                %v5041 = vld [vmem:[%s4787 + $0x3f0] sm:$0xff]
                %5042 = vst [vmem:[%s4788 + $0x5f0] sm:$0xff] %v5041
                %v5043 = vld [vmem:[%s4787 + $0x3f8] sm:$0xff]
                %5044 = vst [vmem:[%s4788 + $0x5f8] sm:$0xff] %v5043
              $region95: #{dra_forward.2} parent=89 // loop_footer
                %s4786 = sadd.s32 1, %s4782
              $region96: #{dra_forward.2} parent=89 // loop_footer_branch
                %4781 = sbr.rel target = $region92
              $region97: #{dra_forward.2} parent=89 // loop_exit
                _
            $region90: #{dra_forward.2} parent=85 // pred_fallthru
              _
            // Predicated region
            $region98: #{dra_forward.2} parent=85 // pred_check
              _
            $region99: #{dra_forward.2} parent=85 // pred_check_branch
              %5046 = sbr.rel target = $region101
            $region100: #{dra_forward.2} parent=85 // pred_region
              _
            $region101: #{dra_forward.2} parent=85 // pred_fallthru
              _
          $region86: #{dra_forward.2} parent=81 // pred_fallthru
            _
          %5047 = vnop
        $region82: #{dra_forward.2} parent=69 // pred_fallthru
          _
        // Predicated region
        $region102: #{dra_forward.2} parent=69 // pred_check
          %p5048 = pneg %p154
        $region103: #{dra_forward.2} parent=69 // pred_check_branch
          %5050 = sbr.rel (%p5048) target = $region105
        $region104: #{dra_forward.2} parent=69 // pred_region
          _
        $region105: #{dra_forward.2} parent=69 // pred_fallthru
          _
        // Predicated region
        $region106: #{dra_forward.2} parent=69 // pred_check
          %p5051 = pneg %p182
        $region107: #{dra_forward.2} parent=69 // pred_check_branch
          %5053 = sbr.rel (%p5051) target = $region109
        $region108: #{dra_forward.2} parent=69 // pred_region
          _
        $region109: #{dra_forward.2} parent=69 // pred_fallthru
          _
      $region70: #{dra_forward.2} parent=5 // pred_fallthru
        _
      %p5054 = scmp.le.s32.totalorder 2, %s12
      // Predicated region
      $region110: #{dra_forward.2} parent=5 // pred_check
        %p5055 = pneg %p5054
      $region111: #{dra_forward.2} parent=5 // pred_check_branch
        %5057 = sbr.rel (%p5055) target = $region113
      $region112: #{dra_forward.2} parent=5 // pred_region
        %s5058 = ssub.s32 %s12, 2
        // Predicated region
        $region114: #{dra_forward.2} parent=112 // pred_check
          %p5059 = pneg %p132
        $region115: #{dra_forward.2} parent=112 // pred_check_branch
          %5061 = sbr.rel (%p5059) target = $region117
        $region116: #{dra_forward.2} parent=112 // pred_region
          %s5062 = sand.u32 %s117, 1
          %s5063 = sand.u32 %s117, 1
          %s5064 = smul.addr %s5063, 1024
          %s5065 = scalar_lea.vmem [#allocation4], %s5064
        $region117: #{dra_forward.2} parent=112 // pred_fallthru
          _
        // Predicated region
        $region118: #{dra_forward.2} parent=112 // pred_check
          %p5066 = pneg %p160
        $region119: #{dra_forward.2} parent=112 // pred_check_branch
          %5068 = sbr.rel (%p5066) target = $region121
        $region120: #{dra_forward.2} parent=112 // pred_region
          %p5069 = scmp.lt.s32.totalorder %s23, 1
          %s5070 = scalar_select %p5069, %s23, 1
          %p5071 = scmp.lt.s32.totalorder %s24, 1
          %s5072 = scalar_select %p5071, %s24, 1
          %s5073 = smul.addr %s5072, 2
          %s5074 = smul.addr %s5070, 4
          %s5075 = sadd.s32 %s5073, %s5074
          %s5076 = smul.addr %s5075, 8
          %s5077 = scalar_lea.vmem %s4, %s5076
        $region121: #{dra_forward.2} parent=112 // pred_fallthru
          _
        // Predicated region
        $region122: #{dra_forward.2} parent=112 // pred_check
          %p5078 = pneg %p188
        $region123: #{dra_forward.2} parent=112 // pred_check_branch
          %5080 = sbr.rel (%p5078) target = $region125
        $region124: #{dra_forward.2} parent=112 // pred_region
          %p5081 = scmp.lt.s32.totalorder %s23, 1
          %s5082 = scalar_select %p5081, %s23, 1
          %p5083 = scmp.lt.s32.totalorder %s24, 1
          %s5084 = scalar_select %p5083, %s24, 1
          %s5085 = smul.addr %s5084, 2
          %s5086 = smul.addr %s5082, 4
          %s5087 = sadd.s32 %s5085, %s5086
          %s5088 = smul.addr %s5087, 8
          %s5089 = scalar_lea.vmem %s5, %s5088
        $region125: #{dra_forward.2} parent=112 // pred_fallthru
          _
      $region113: #{dra_forward.2} parent=5 // pred_fallthru
        _
    $region6: #{dra_forward.2} parent=1 // loop_footer
      %s16 = sadd.s32 1, %s12
    $region7: #{dra_forward.2} parent=1 // loop_footer_branch
      %11 = sbr.rel target = $region3
    $region8: #{dra_forward.2} parent=1 // loop_exit
      _

// kernel: dra_forward.3
$region0: #{dra_forward.3}
  #allocation0 [shape = 'u32[]', space=smem, size = 0x4, offset = 0x4, fixed_abs, tag = 'smem constant byte address 0x4 - core index']
  #allocation1 [shape = 'u32[144,128]{1,0:T(1,128)}', space=vmem, size = 0x12000, scoped, tag = 'internal scratch']
  %s0 = inlined_call_operand.vmem [shape: f32[2,16,16384], index: 0, kind: input, shape index: {}, may-alias: {0,3}]
  %s1 = inlined_call_operand.vmem [shape: f32[16,1], index: 1, kind: input, shape index: {}]
  %s2 = inlined_call_operand.vmem [shape: f32[16,1], index: 2, kind: input, shape index: {}]
  %s3 = inlined_call_operand.vmem [shape: f32[2,16,16384], index: 3, kind: output, shape index: {}, may-alias: {0,3}]
  %s4 = sld [smem:[#allocation0]]
  $region87: #{dra_forward.3} parent=0
    _
  %s6 = ssub.s32 1, %s4
  %s7 = scalar_select 0, %s6, %s4
  $region1: #{dra_forward.3} parent=0
    #allocation2 [shape = 'u8[1048576]{0}', space=vmem, size = 0x100000, scoped, tag = 'input window, operand 0']
    #allocation3 [shape = 'u8[1048576]{0}', space=vmem, size = 0x100000, scoped, tag = 'output window, operand 0']
    loop: start=0, step=1, limit=6
    $region2: #{dra_forward.3} parent=1 // loop_pre_header
      _
    $region3: #{dra_forward.3} parent=1 // loop_header
      %s9 = sphi 0, %s13
      %p10 = scmp.ge.s32.totalorder %s9, 6
      %s16 = sphi 0, %s28
      %s17 = sphi 0, %s24
      %s18 = sphi 0, %s16
      %s19 = sphi 0, %s17
      %s20 = sphi 0, %s18
      %s21 = sphi 0, %s19
      %s33 = sphi 0, %s35
      %s36 = sphi 0, %s33
      %s37 = sphi 0, %s36
      %s53 = sphi 0, %s37
      %s57 = sphi 0, %s57
      %s59 = sphi 0, %s57
      %s60 = sphi 0, %s59
      %s74 = sphi 0, %s60
      %s78 = sphi 0, %s78
      %s80 = sphi 0, %s78
      %s81 = sphi 0, %s80
      %s95 = sphi 0, %s81
      %s103 = sphi 0, %s105
      %s106 = sphi 0, %s103
      %s107 = sphi 0, %s106
      %s123 = sphi 0, %s107
    $region4: #{dra_forward.3} parent=1 // loop_header_branch
      %12 = sbr.rel (%p10) target = $region8
    $region5: #{dra_forward.3} parent=1 // loop_body
      %s14 = ssub.s32 %s9, 1
      %s15 = ssub.s32 %s9, 2
      %s22 = sadd.s32 1, %s17
      %p23 = scmp.ge.s32.totalorder %s22, 2
      %s24 = scalar_select %p23, 0, %s22
      %s25 = sadd.s32 1, %s16
      %s26 = scalar_select %p23, %s25, %s16
      %p27 = scmp.ge.s32.totalorder %s26, 2
      %s28 = scalar_select %p27, 0, %s26
      %s29 = ssub.s32 %s16, %s28
      %s30 = ssub.s32 %s17, %s24
      %s31 = sor.u32 %s29, %s30
      %p32 = scmp.eq.s32.totalorder %s31, 0
      %s34 = sadd.s32 %s33, 1
      %s35 = scalar_select %p32, %s33, %s34
      %p38 = pneg %p32
      %p39 = scmp.eq.s32.totalorder %s9, 3
      %p40 = por %p38, %p39
      %p41 = scmp.ne.s32.totalorder %s33, %s36
      %p42 = scmp.eq.s32.totalorder %s9, 0
      %p43 = por %p41, %p42
      %p44 = scmp.ne.s32.totalorder %s33, %s36
      %p45 = scmp.eq.s32.totalorder %s14, 3
      %p46 = por %p44, %p45
      %p47 = scmp.ne.s32.totalorder %s36, %s37
      %p48 = scmp.eq.s32.totalorder %s14, 0
      %p49 = por %p47, %p48
      %p50 = scmp.ne.s32.totalorder %s36, %s37
      %p51 = scmp.eq.s32.totalorder %s15, 3
      %p52 = por %p50, %p51
      %p54 = scmp.ne.s32.totalorder %s37, %s53
      %p55 = scmp.eq.s32.totalorder %s15, 0
      %p56 = por %p54, %p55
      %s58 = sadd.s32 %s57, 1
      %p61 = scmp.eq.s32.totalorder %s9, 3
      %p62 = scmp.ne.s32.totalorder %s57, %s59
      %p63 = scmp.eq.s32.totalorder %s9, 0
      %p64 = por %p62, %p63
      %p65 = scmp.ne.s32.totalorder %s57, %s59
      %p66 = scmp.eq.s32.totalorder %s14, 3
      %p67 = por %p65, %p66
      %p68 = scmp.ne.s32.totalorder %s59, %s60
      %p69 = scmp.eq.s32.totalorder %s14, 0
      %p70 = por %p68, %p69
      %p71 = scmp.ne.s32.totalorder %s59, %s60
      %p72 = scmp.eq.s32.totalorder %s15, 3
      %p73 = por %p71, %p72
      %p75 = scmp.ne.s32.totalorder %s60, %s74
      %p76 = scmp.eq.s32.totalorder %s15, 0
      %p77 = por %p75, %p76
      %s79 = sadd.s32 %s78, 1
      %p82 = scmp.eq.s32.totalorder %s9, 3
      %p83 = scmp.ne.s32.totalorder %s78, %s80
      %p84 = scmp.eq.s32.totalorder %s9, 0
      %p85 = por %p83, %p84
      %p86 = scmp.ne.s32.totalorder %s78, %s80
      %p87 = scmp.eq.s32.totalorder %s14, 3
      %p88 = por %p86, %p87
      %p89 = scmp.ne.s32.totalorder %s80, %s81
      %p90 = scmp.eq.s32.totalorder %s14, 0
      %p91 = por %p89, %p90
      %p92 = scmp.ne.s32.totalorder %s80, %s81
      %p93 = scmp.eq.s32.totalorder %s15, 3
      %p94 = por %p92, %p93
      %p96 = scmp.ne.s32.totalorder %s81, %s95
      %p97 = scmp.eq.s32.totalorder %s15, 0
      %p98 = por %p96, %p97
      %s99 = ssub.s32 %s16, %s28
      %s100 = ssub.s32 %s17, %s24
      %s101 = sor.u32 %s99, %s100
      %p102 = scmp.eq.s32.totalorder %s101, 0
      %s104 = sadd.s32 %s103, 1
      %s105 = scalar_select %p102, %s103, %s104
      %p108 = pneg %p102
      %p109 = scmp.eq.s32.totalorder %s9, 3
      %p110 = por %p108, %p109
      %p111 = scmp.ne.s32.totalorder %s103, %s106
      %p112 = scmp.eq.s32.totalorder %s9, 0
      %p113 = por %p111, %p112
      %p114 = scmp.ne.s32.totalorder %s103, %s106
      %p115 = scmp.eq.s32.totalorder %s14, 3
      %p116 = por %p114, %p115
      %p117 = scmp.ne.s32.totalorder %s106, %s107
      %p118 = scmp.eq.s32.totalorder %s14, 0
      %p119 = por %p117, %p118
      %p120 = scmp.ne.s32.totalorder %s106, %s107
      %p121 = scmp.eq.s32.totalorder %s15, 3
      %p122 = por %p120, %p121
      %p124 = scmp.ne.s32.totalorder %s107, %s123
      %p125 = scmp.eq.s32.totalorder %s15, 0
      %p126 = por %p124, %p125
      %p127 = scmp.le.s32.totalorder 1, %s9
      %p128 = scmp.lt.s32.totalorder %s9, 5
      %p129 = pnand %p127, %p128
      %p130 = pneg %p129
      // Predicated region
      $region9: #{dra_forward.3} parent=5 // pred_check
        _
      $region10: #{dra_forward.3} parent=5 // pred_check_branch
        %132 = sbr.rel (%p129) target = $region12
      $region11: #{dra_forward.3} parent=5 // pred_region
        %s133 = ssub.s32 %s9, 1
        // Predicated region
        $region13: #{dra_forward.3} parent=11 // pred_check
          %p134 = pneg %p70
        $region14: #{dra_forward.3} parent=11 // pred_check_branch
          %136 = sbr.rel (%p134) target = $region16
        $region15: #{dra_forward.3} parent=11 // pred_region
          _
        $region16: #{dra_forward.3} parent=11 // pred_fallthru
          _
        // Predicated region
        $region17: #{dra_forward.3} parent=11 // pred_check
          %p137 = pneg %p91
        $region18: #{dra_forward.3} parent=11 // pred_check_branch
          %139 = sbr.rel (%p137) target = $region20
        $region19: #{dra_forward.3} parent=11 // pred_region
          _
        $region20: #{dra_forward.3} parent=11 // pred_fallthru
          _
      $region12: #{dra_forward.3} parent=5 // pred_fallthru
        _
      %p140 = scmp.lt.s32.totalorder %s9, 4
      // Predicated region
      $region21: #{dra_forward.3} parent=5 // pred_check
        %p141 = pneg %p140
      $region22: #{dra_forward.3} parent=5 // pred_check_branch
        %143 = sbr.rel (%p141) target = $region24
      $region23: #{dra_forward.3} parent=5 // pred_region
        // Predicated region
        $region25: #{dra_forward.3} parent=23 // pred_check
          %p144 = pneg %p43
        $region26: #{dra_forward.3} parent=23 // pred_check_branch
          %146 = sbr.rel (%p144) target = $region28
        $region27: #{dra_forward.3} parent=23 // pred_region
          %s147 = sand.u32 %s33, 1
          %s148 = sand.u32 %s33, 1
          %s149 = smul.addr %s148, 1024
          %s150 = scalar_lea.vmem [#allocation2], %s149
          %s151 = smul.u32 64, %s17
          %s152 = smul.addr %s16, 256
          %s153 = sadd.s32 %s151, %s152
          %s154 = smul.addr %s153, 8
          %s155 = scalar_lea.vmem %s0, %s154
          // Predicated region
          $region29: #{dra_forward.3} parent=27 // pred_check
            _
          $region30: #{dra_forward.3} parent=27 // pred_check_branch
            %157 = sbr.rel (0) target = $region32
          $region31: #{dra_forward.3} parent=27 // pred_region
            // Predicated region
            $region33: #{dra_forward.3} parent=31 // pred_check
              _
            $region34: #{dra_forward.3} parent=31 // pred_check_branch
              %159 = sbr.rel (0) target = $region36
            $region35: #{dra_forward.3} parent=31 // pred_region
              loop: start=0, step=1, limit=1
              $region37: #{dra_forward.3} parent=35 // loop_pre_header
                _
              $region38: #{dra_forward.3} parent=35 // loop_header
                %s161 = sphi 0, %s165
                %p162 = scmp.ge.s32.totalorder %s161, 1
                %s166 = sphi %s155, %s155
                %s167 = sphi %s150, %s150
              $region39: #{dra_forward.3} parent=35 // loop_header_branch
                %164 = sbr.rel (%p162) target = $region43
              $region40: #{dra_forward.3} parent=35 // loop_body
                %v168 = vld [vmem:[%s166] sm:$0xff]
                %169 = vst [vmem:[%s167] sm:$0xff] %v168
                %v170 = vld [vmem:[%s166 + $0x8] sm:$0xff]
                %171 = vst [vmem:[%s167 + $0x8] sm:$0xff] %v170
                %v172 = vld [vmem:[%s166 + $0x10] sm:$0xff]
                %173 = vst [vmem:[%s167 + $0x10] sm:$0xff] %v172
                %v174 = vld [vmem:[%s166 + $0x18] sm:$0xff]
                %175 = vst [vmem:[%s167 + $0x18] sm:$0xff] %v174
                %v176 = vld [vmem:[%s166 + $0x20] sm:$0xff]
                %177 = vst [vmem:[%s167 + $0x20] sm:$0xff] %v176
                %v178 = vld [vmem:[%s166 + $0x28] sm:$0xff]
                %179 = vst [vmem:[%s167 + $0x28] sm:$0xff] %v178
                %v180 = vld [vmem:[%s166 + $0x30] sm:$0xff]
                %181 = vst [vmem:[%s167 + $0x30] sm:$0xff] %v180
                %v182 = vld [vmem:[%s166 + $0x38] sm:$0xff]
                %183 = vst [vmem:[%s167 + $0x38] sm:$0xff] %v182
                %v184 = vld [vmem:[%s166 + $0x40] sm:$0xff]
                %185 = vst [vmem:[%s167 + $0x40] sm:$0xff] %v184
                %v186 = vld [vmem:[%s166 + $0x48] sm:$0xff]
                %187 = vst [vmem:[%s167 + $0x48] sm:$0xff] %v186
                %v188 = vld [vmem:[%s166 + $0x50] sm:$0xff]
                %189 = vst [vmem:[%s167 + $0x50] sm:$0xff] %v188
                %v190 = vld [vmem:[%s166 + $0x58] sm:$0xff]
                %191 = vst [vmem:[%s167 + $0x58] sm:$0xff] %v190
                %v192 = vld [vmem:[%s166 + $0x60] sm:$0xff]
                %193 = vst [vmem:[%s167 + $0x60] sm:$0xff] %v192
                %v194 = vld [vmem:[%s166 + $0x68] sm:$0xff]
                %195 = vst [vmem:[%s167 + $0x68] sm:$0xff] %v194
                %v196 = vld [vmem:[%s166 + $0x70] sm:$0xff]
                %197 = vst [vmem:[%s167 + $0x70] sm:$0xff] %v196
                %v198 = vld [vmem:[%s166 + $0x78] sm:$0xff]
                %199 = vst [vmem:[%s167 + $0x78] sm:$0xff] %v198
                %v200 = vld [vmem:[%s166 + $0x80] sm:$0xff]
                %201 = vst [vmem:[%s167 + $0x80] sm:$0xff] %v200
                %v202 = vld [vmem:[%s166 + $0x88] sm:$0xff]
                %203 = vst [vmem:[%s167 + $0x88] sm:$0xff] %v202
                %v204 = vld [vmem:[%s166 + $0x90] sm:$0xff]
                %205 = vst [vmem:[%s167 + $0x90] sm:$0xff] %v204
                %v206 = vld [vmem:[%s166 + $0x98] sm:$0xff]
                %207 = vst [vmem:[%s167 + $0x98] sm:$0xff] %v206
                %v208 = vld [vmem:[%s166 + $0xa0] sm:$0xff]
                %209 = vst [vmem:[%s167 + $0xa0] sm:$0xff] %v208
                %v210 = vld [vmem:[%s166 + $0xa8] sm:$0xff]
                %211 = vst [vmem:[%s167 + $0xa8] sm:$0xff] %v210
                %v212 = vld [vmem:[%s166 + $0xb0] sm:$0xff]
                %213 = vst [vmem:[%s167 + $0xb0] sm:$0xff] %v212
                %v214 = vld [vmem:[%s166 + $0xb8] sm:$0xff]
                %215 = vst [vmem:[%s167 + $0xb8] sm:$0xff] %v214
                %v216 = vld [vmem:[%s166 + $0xc0] sm:$0xff]
                %217 = vst [vmem:[%s167 + $0xc0] sm:$0xff] %v216
                %v218 = vld [vmem:[%s166 + $0xc8] sm:$0xff]
                %219 = vst [vmem:[%s167 + $0xc8] sm:$0xff] %v218
                %v220 = vld [vmem:[%s166 + $0xd0] sm:$0xff]
                %221 = vst [vmem:[%s167 + $0xd0] sm:$0xff] %v220
                %v222 = vld [vmem:[%s166 + $0xd8] sm:$0xff]
                %223 = vst [vmem:[%s167 + $0xd8] sm:$0xff] %v222
                %v224 = vld [vmem:[%s166 + $0xe0] sm:$0xff]
                %225 = vst [vmem:[%s167 + $0xe0] sm:$0xff] %v224
                %v226 = vld [vmem:[%s166 + $0xe8] sm:$0xff]
                %227 = vst [vmem:[%s167 + $0xe8] sm:$0xff] %v226
                %v228 = vld [vmem:[%s166 + $0xf0] sm:$0xff]
                %229 = vst [vmem:[%s167 + $0xf0] sm:$0xff] %v228
                %v230 = vld [vmem:[%s166 + $0xf8] sm:$0xff]
                %231 = vst [vmem:[%s167 + $0xf8] sm:$0xff] %v230
                %v232 = vld [vmem:[%s166 + $0x100] sm:$0xff]
                %233 = vst [vmem:[%s167 + $0x100] sm:$0xff] %v232
                %v234 = vld [vmem:[%s166 + $0x108] sm:$0xff]
                %235 = vst [vmem:[%s167 + $0x108] sm:$0xff] %v234
                %v236 = vld [vmem:[%s166 + $0x110] sm:$0xff]
                %237 = vst [vmem:[%s167 + $0x110] sm:$0xff] %v236
                %v238 = vld [vmem:[%s166 + $0x118] sm:$0xff]
                %239 = vst [vmem:[%s167 + $0x118] sm:$0xff] %v238
                %v240 = vld [vmem:[%s166 + $0x120] sm:$0xff]
                %241 = vst [vmem:[%s167 + $0x120] sm:$0xff] %v240
                %v242 = vld [vmem:[%s166 + $0x128] sm:$0xff]
                %243 = vst [vmem:[%s167 + $0x128] sm:$0xff] %v242
                %v244 = vld [vmem:[%s166 + $0x130] sm:$0xff]
                %245 = vst [vmem:[%s167 + $0x130] sm:$0xff] %v244
                %v246 = vld [vmem:[%s166 + $0x138] sm:$0xff]
                %247 = vst [vmem:[%s167 + $0x138] sm:$0xff] %v246
                %v248 = vld [vmem:[%s166 + $0x140] sm:$0xff]
                %249 = vst [vmem:[%s167 + $0x140] sm:$0xff] %v248
                %v250 = vld [vmem:[%s166 + $0x148] sm:$0xff]
                %251 = vst [vmem:[%s167 + $0x148] sm:$0xff] %v250
                %v252 = vld [vmem:[%s166 + $0x150] sm:$0xff]
                %253 = vst [vmem:[%s167 + $0x150] sm:$0xff] %v252
                %v254 = vld [vmem:[%s166 + $0x158] sm:$0xff]
                %255 = vst [vmem:[%s167 + $0x158] sm:$0xff] %v254
                %v256 = vld [vmem:[%s166 + $0x160] sm:$0xff]
                %257 = vst [vmem:[%s167 + $0x160] sm:$0xff] %v256
                %v258 = vld [vmem:[%s166 + $0x168] sm:$0xff]
                %259 = vst [vmem:[%s167 + $0x168] sm:$0xff] %v258
                %v260 = vld [vmem:[%s166 + $0x170] sm:$0xff]
                %261 = vst [vmem:[%s167 + $0x170] sm:$0xff] %v260
                %v262 = vld [vmem:[%s166 + $0x178] sm:$0xff]
                %263 = vst [vmem:[%s167 + $0x178] sm:$0xff] %v262
                %v264 = vld [vmem:[%s166 + $0x180] sm:$0xff]
                %265 = vst [vmem:[%s167 + $0x180] sm:$0xff] %v264
                %v266 = vld [vmem:[%s166 + $0x188] sm:$0xff]
                %267 = vst [vmem:[%s167 + $0x188] sm:$0xff] %v266
                %v268 = vld [vmem:[%s166 + $0x190] sm:$0xff]
                %269 = vst [vmem:[%s167 + $0x190] sm:$0xff] %v268
                %v270 = vld [vmem:[%s166 + $0x198] sm:$0xff]
                %271 = vst [vmem:[%s167 + $0x198] sm:$0xff] %v270
                %v272 = vld [vmem:[%s166 + $0x1a0] sm:$0xff]
                %273 = vst [vmem:[%s167 + $0x1a0] sm:$0xff] %v272
                %v274 = vld [vmem:[%s166 + $0x1a8] sm:$0xff]
                %275 = vst [vmem:[%s167 + $0x1a8] sm:$0xff] %v274
                %v276 = vld [vmem:[%s166 + $0x1b0] sm:$0xff]
                %277 = vst [vmem:[%s167 + $0x1b0] sm:$0xff] %v276
                %v278 = vld [vmem:[%s166 + $0x1b8] sm:$0xff]
                %279 = vst [vmem:[%s167 + $0x1b8] sm:$0xff] %v278
                %v280 = vld [vmem:[%s166 + $0x1c0] sm:$0xff]
                %281 = vst [vmem:[%s167 + $0x1c0] sm:$0xff] %v280
                %v282 = vld [vmem:[%s166 + $0x1c8] sm:$0xff]
                %283 = vst [vmem:[%s167 + $0x1c8] sm:$0xff] %v282
                %v284 = vld [vmem:[%s166 + $0x1d0] sm:$0xff]
                %285 = vst [vmem:[%s167 + $0x1d0] sm:$0xff] %v284
                %v286 = vld [vmem:[%s166 + $0x1d8] sm:$0xff]
                %287 = vst [vmem:[%s167 + $0x1d8] sm:$0xff] %v286
                %v288 = vld [vmem:[%s166 + $0x1e0] sm:$0xff]
                %289 = vst [vmem:[%s167 + $0x1e0] sm:$0xff] %v288
                %v290 = vld [vmem:[%s166 + $0x1e8] sm:$0xff]
                %291 = vst [vmem:[%s167 + $0x1e8] sm:$0xff] %v290
                %v292 = vld [vmem:[%s166 + $0x1f0] sm:$0xff]
                %293 = vst [vmem:[%s167 + $0x1f0] sm:$0xff] %v292
                %v294 = vld [vmem:[%s166 + $0x1f8] sm:$0xff]
                %295 = vst [vmem:[%s167 + $0x1f8] sm:$0xff] %v294
                %v296 = vld [vmem:[%s166 + $0x400] sm:$0xff]
                %297 = vst [vmem:[%s167 + $0x200] sm:$0xff] %v296
                %v298 = vld [vmem:[%s166 + $0x408] sm:$0xff]
                %299 = vst [vmem:[%s167 + $0x208] sm:$0xff] %v298
                %v300 = vld [vmem:[%s166 + $0x410] sm:$0xff]
                %301 = vst [vmem:[%s167 + $0x210] sm:$0xff] %v300
                %v302 = vld [vmem:[%s166 + $0x418] sm:$0xff]
                %303 = vst [vmem:[%s167 + $0x218] sm:$0xff] %v302
                %v304 = vld [vmem:[%s166 + $0x420] sm:$0xff]
                %305 = vst [vmem:[%s167 + $0x220] sm:$0xff] %v304
                %v306 = vld [vmem:[%s166 + $0x428] sm:$0xff]
                %307 = vst [vmem:[%s167 + $0x228] sm:$0xff] %v306
                %v308 = vld [vmem:[%s166 + $0x430] sm:$0xff]
                %309 = vst [vmem:[%s167 + $0x230] sm:$0xff] %v308
                %v310 = vld [vmem:[%s166 + $0x438] sm:$0xff]
                %311 = vst [vmem:[%s167 + $0x238] sm:$0xff] %v310
                %v312 = vld [vmem:[%s166 + $0x440] sm:$0xff]
                %313 = vst [vmem:[%s167 + $0x240] sm:$0xff] %v312
                %v314 = vld [vmem:[%s166 + $0x448] sm:$0xff]
                %315 = vst [vmem:[%s167 + $0x248] sm:$0xff] %v314
                %v316 = vld [vmem:[%s166 + $0x450] sm:$0xff]
                %317 = vst [vmem:[%s167 + $0x250] sm:$0xff] %v316
                %v318 = vld [vmem:[%s166 + $0x458] sm:$0xff]
                %319 = vst [vmem:[%s167 + $0x258] sm:$0xff] %v318
                %v320 = vld [vmem:[%s166 + $0x460] sm:$0xff]
                %321 = vst [vmem:[%s167 + $0x260] sm:$0xff] %v320
                %v322 = vld [vmem:[%s166 + $0x468] sm:$0xff]
                %323 = vst [vmem:[%s167 + $0x268] sm:$0xff] %v322
                %v324 = vld [vmem:[%s166 + $0x470] sm:$0xff]
                %325 = vst [vmem:[%s167 + $0x270] sm:$0xff] %v324
                %v326 = vld [vmem:[%s166 + $0x478] sm:$0xff]
                %327 = vst [vmem:[%s167 + $0x278] sm:$0xff] %v326
                %v328 = vld [vmem:[%s166 + $0x480] sm:$0xff]
                %329 = vst [vmem:[%s167 + $0x280] sm:$0xff] %v328
                %v330 = vld [vmem:[%s166 + $0x488] sm:$0xff]
                %331 = vst [vmem:[%s167 + $0x288] sm:$0xff] %v330
                %v332 = vld [vmem:[%s166 + $0x490] sm:$0xff]
                %333 = vst [vmem:[%s167 + $0x290] sm:$0xff] %v332
                %v334 = vld [vmem:[%s166 + $0x498] sm:$0xff]
                %335 = vst [vmem:[%s167 + $0x298] sm:$0xff] %v334
                %v336 = vld [vmem:[%s166 + $0x4a0] sm:$0xff]
                %337 = vst [vmem:[%s167 + $0x2a0] sm:$0xff] %v336
                %v338 = vld [vmem:[%s166 + $0x4a8] sm:$0xff]
                %339 = vst [vmem:[%s167 + $0x2a8] sm:$0xff] %v338
                %v340 = vld [vmem:[%s166 + $0x4b0] sm:$0xff]
                %341 = vst [vmem:[%s167 + $0x2b0] sm:$0xff] %v340
                %v342 = vld [vmem:[%s166 + $0x4b8] sm:$0xff]
                %343 = vst [vmem:[%s167 + $0x2b8] sm:$0xff] %v342
                %v344 = vld [vmem:[%s166 + $0x4c0] sm:$0xff]
                %345 = vst [vmem:[%s167 + $0x2c0] sm:$0xff] %v344
                %v346 = vld [vmem:[%s166 + $0x4c8] sm:$0xff]
                %347 = vst [vmem:[%s167 + $0x2c8] sm:$0xff] %v346
                %v348 = vld [vmem:[%s166 + $0x4d0] sm:$0xff]
                %349 = vst [vmem:[%s167 + $0x2d0] sm:$0xff] %v348
                %v350 = vld [vmem:[%s166 + $0x4d8] sm:$0xff]
                %351 = vst [vmem:[%s167 + $0x2d8] sm:$0xff] %v350
                %v352 = vld [vmem:[%s166 + $0x4e0] sm:$0xff]
                %353 = vst [vmem:[%s167 + $0x2e0] sm:$0xff] %v352
                %v354 = vld [vmem:[%s166 + $0x4e8] sm:$0xff]
                %355 = vst [vmem:[%s167 + $0x2e8] sm:$0xff] %v354
                %v356 = vld [vmem:[%s166 + $0x4f0] sm:$0xff]
                %357 = vst [vmem:[%s167 + $0x2f0] sm:$0xff] %v356
                %v358 = vld [vmem:[%s166 + $0x4f8] sm:$0xff]
                %359 = vst [vmem:[%s167 + $0x2f8] sm:$0xff] %v358
                %v360 = vld [vmem:[%s166 + $0x500] sm:$0xff]
                %361 = vst [vmem:[%s167 + $0x300] sm:$0xff] %v360
                %v362 = vld [vmem:[%s166 + $0x508] sm:$0xff]
                %363 = vst [vmem:[%s167 + $0x308] sm:$0xff] %v362
                %v364 = vld [vmem:[%s166 + $0x510] sm:$0xff]
                %365 = vst [vmem:[%s167 + $0x310] sm:$0xff] %v364
                %v366 = vld [vmem:[%s166 + $0x518] sm:$0xff]
                %367 = vst [vmem:[%s167 + $0x318] sm:$0xff] %v366
                %v368 = vld [vmem:[%s166 + $0x520] sm:$0xff]
                %369 = vst [vmem:[%s167 + $0x320] sm:$0xff] %v368
                %v370 = vld [vmem:[%s166 + $0x528] sm:$0xff]
                %371 = vst [vmem:[%s167 + $0x328] sm:$0xff] %v370
                %v372 = vld [vmem:[%s166 + $0x530] sm:$0xff]
                %373 = vst [vmem:[%s167 + $0x330] sm:$0xff] %v372
                %v374 = vld [vmem:[%s166 + $0x538] sm:$0xff]
                %375 = vst [vmem:[%s167 + $0x338] sm:$0xff] %v374
                %v376 = vld [vmem:[%s166 + $0x540] sm:$0xff]
                %377 = vst [vmem:[%s167 + $0x340] sm:$0xff] %v376
                %v378 = vld [vmem:[%s166 + $0x548] sm:$0xff]
                %379 = vst [vmem:[%s167 + $0x348] sm:$0xff] %v378
                %v380 = vld [vmem:[%s166 + $0x550] sm:$0xff]
                %381 = vst [vmem:[%s167 + $0x350] sm:$0xff] %v380
                %v382 = vld [vmem:[%s166 + $0x558] sm:$0xff]
                %383 = vst [vmem:[%s167 + $0x358] sm:$0xff] %v382
                %v384 = vld [vmem:[%s166 + $0x560] sm:$0xff]
                %385 = vst [vmem:[%s167 + $0x360] sm:$0xff] %v384
                %v386 = vld [vmem:[%s166 + $0x568] sm:$0xff]
                %387 = vst [vmem:[%s167 + $0x368] sm:$0xff] %v386
                %v388 = vld [vmem:[%s166 + $0x570] sm:$0xff]
                %389 = vst [vmem:[%s167 + $0x370] sm:$0xff] %v388
                %v390 = vld [vmem:[%s166 + $0x578] sm:$0xff]
                %391 = vst [vmem:[%s167 + $0x378] sm:$0xff] %v390
                %v392 = vld [vmem:[%s166 + $0x580] sm:$0xff]
                %393 = vst [vmem:[%s167 + $0x380] sm:$0xff] %v392
                %v394 = vld [vmem:[%s166 + $0x588] sm:$0xff]
                %395 = vst [vmem:[%s167 + $0x388] sm:$0xff] %v394
                %v396 = vld [vmem:[%s166 + $0x590] sm:$0xff]
                %397 = vst [vmem:[%s167 + $0x390] sm:$0xff] %v396
                %v398 = vld [vmem:[%s166 + $0x598] sm:$0xff]
                %399 = vst [vmem:[%s167 + $0x398] sm:$0xff] %v398
                %v400 = vld [vmem:[%s166 + $0x5a0] sm:$0xff]
                %401 = vst [vmem:[%s167 + $0x3a0] sm:$0xff] %v400
                %v402 = vld [vmem:[%s166 + $0x5a8] sm:$0xff]
                %403 = vst [vmem:[%s167 + $0x3a8] sm:$0xff] %v402
                %v404 = vld [vmem:[%s166 + $0x5b0] sm:$0xff]
                %405 = vst [vmem:[%s167 + $0x3b0] sm:$0xff] %v404
                %v406 = vld [vmem:[%s166 + $0x5b8] sm:$0xff]
                %407 = vst [vmem:[%s167 + $0x3b8] sm:$0xff] %v406
                %v408 = vld [vmem:[%s166 + $0x5c0] sm:$0xff]
                %409 = vst [vmem:[%s167 + $0x3c0] sm:$0xff] %v408
                %v410 = vld [vmem:[%s166 + $0x5c8] sm:$0xff]
                %411 = vst [vmem:[%s167 + $0x3c8] sm:$0xff] %v410
                %v412 = vld [vmem:[%s166 + $0x5d0] sm:$0xff]
                %413 = vst [vmem:[%s167 + $0x3d0] sm:$0xff] %v412
                %v414 = vld [vmem:[%s166 + $0x5d8] sm:$0xff]
                %415 = vst [vmem:[%s167 + $0x3d8] sm:$0xff] %v414
                %v416 = vld [vmem:[%s166 + $0x5e0] sm:$0xff]
                %417 = vst [vmem:[%s167 + $0x3e0] sm:$0xff] %v416
                %v418 = vld [vmem:[%s166 + $0x5e8] sm:$0xff]
                %419 = vst [vmem:[%s167 + $0x3e8] sm:$0xff] %v418
                %v420 = vld [vmem:[%s166 + $0x5f0] sm:$0xff]
                %421 = vst [vmem:[%s167 + $0x3f0] sm:$0xff] %v420
                %v422 = vld [vmem:[%s166 + $0x5f8] sm:$0xff]
                %423 = vst [vmem:[%s167 + $0x3f8] sm:$0xff] %v422
              $region41: #{dra_forward.3} parent=35 // loop_footer
                %s165 = sadd.s32 1, %s161
              $region42: #{dra_forward.3} parent=35 // loop_footer_branch
                %160 = sbr.rel target = $region38
              $region43: #{dra_forward.3} parent=35 // loop_exit
                _
            $region36: #{dra_forward.3} parent=31 // pred_fallthru
              _
            // Predicated region
            $region44: #{dra_forward.3} parent=31 // pred_check
              _
            $region45: #{dra_forward.3} parent=31 // pred_check_branch
              %425 = sbr.rel target = $region47
            $region46: #{dra_forward.3} parent=31 // pred_region
              _
            $region47: #{dra_forward.3} parent=31 // pred_fallthru
              _
          $region32: #{dra_forward.3} parent=27 // pred_fallthru
            _
          %426 = vnop
        $region28: #{dra_forward.3} parent=23 // pred_fallthru
          _
      $region24: #{dra_forward.3} parent=5 // pred_fallthru
        _
      %p427 = scmp.le.s32.totalorder 1, %s9
      %p428 = scmp.lt.s32.totalorder %s9, 5
      %p429 = pnand %p427, %p428
      %p430 = pneg %p429
      // Predicated region
      $region48: #{dra_forward.3} parent=5 // pred_check
        _
      $region49: #{dra_forward.3} parent=5 // pred_check_branch
        %432 = sbr.rel (%p429) target = $region51
      $region50: #{dra_forward.3} parent=5 // pred_region
        %s433 = ssub.s32 %s9, 1
        %s434 = sand.u32 %s36, 1
        %s435 = sand.u32 %s36, 1
        %s436 = smul.addr %s435, 1024
        %s437 = scalar_lea.vmem [#allocation2], %s436
        // Predicated region
        $region52: #{dra_forward.3} parent=50 // pred_check
          %p438 = pneg %p49
        $region53: #{dra_forward.3} parent=50 // pred_check_branch
          %440 = sbr.rel (%p438) target = $region55
        $region54: #{dra_forward.3} parent=50 // pred_region
          _
        $region55: #{dra_forward.3} parent=50 // pred_fallthru
          _
        %s441 = sand.u32 %s36, 1
        %s442 = sand.u32 %s36, 1
        %s443 = smul.addr %s442, 1024
        %s444 = scalar_lea.vmem [#allocation2], %s443
        %p445 = pneg %p49
        %p446 = pneg %p46
        %p447 = pneg %p70
        %p448 = pneg %p67
        %p449 = pneg %p91
        %p450 = pneg %p88
        %p451 = pneg %p119
        %p452 = pneg %p116
        %s453 = sand.u32 %s106, 1
        %s454 = sand.u32 %s106, 1
        %s455 = smul.addr %s454, 1024
        %s456 = scalar_lea.vmem [#allocation3], %s455
        %s457 = smul.u32 64, %s19
        %s458 = smul.u32 64, %s19
        %v459 = vld [vmem:[%s437] sm:$0xff]
        %v460 = vld [vmem:[%s437 + $0x8] sm:$0xff]
        %v461 = vld [vmem:[%s437 + $0x10] sm:$0xff]
        %v462 = vld [vmem:[%s437 + $0x18] sm:$0xff]
        %v463 = vld [vmem:[%s437 + $0x20] sm:$0xff]
        %v464 = vld [vmem:[%s437 + $0x28] sm:$0xff]
        %v465 = vld [vmem:[%s437 + $0x30] sm:$0xff]
        %v466 = vld [vmem:[%s437 + $0x38] sm:$0xff]
        %v467 = vld [vmem:[%s437 + $0x40] sm:$0xff]
        %v468 = vld [vmem:[%s437 + $0x48] sm:$0xff]
        %v469 = vld [vmem:[%s437 + $0x50] sm:$0xff]
        %v470 = vld [vmem:[%s437 + $0x58] sm:$0xff]
        %v471 = vld [vmem:[%s437 + $0x60] sm:$0xff]
        %v472 = vld [vmem:[%s437 + $0x68] sm:$0xff]
        %v473 = vld [vmem:[%s437 + $0x70] sm:$0xff]
        %v474 = vld [vmem:[%s437 + $0x78] sm:$0xff]
        %v475 = vld [vmem:[%s437 + $0x80] sm:$0xff]
        %v476 = vld [vmem:[%s437 + $0x88] sm:$0xff]
        %v477 = vld [vmem:[%s437 + $0x90] sm:$0xff]
        %v478 = vld [vmem:[%s437 + $0x98] sm:$0xff]
        %v479 = vld [vmem:[%s437 + $0xa0] sm:$0xff]
        %v480 = vld [vmem:[%s437 + $0xa8] sm:$0xff]
        %v481 = vld [vmem:[%s437 + $0xb0] sm:$0xff]
        %v482 = vld [vmem:[%s437 + $0xb8] sm:$0xff]
        %v483 = vld [vmem:[%s437 + $0xc0] sm:$0xff]
        %v484 = vld [vmem:[%s437 + $0xc8] sm:$0xff]
        %v485 = vld [vmem:[%s437 + $0xd0] sm:$0xff]
        %v486 = vld [vmem:[%s437 + $0xd8] sm:$0xff]
        %v487 = vld [vmem:[%s437 + $0xe0] sm:$0xff]
        %v488 = vld [vmem:[%s437 + $0xe8] sm:$0xff]
        %v489 = vld [vmem:[%s437 + $0xf0] sm:$0xff]
        %v490 = vld [vmem:[%s437 + $0xf8] sm:$0xff]
        %v491 = vld [vmem:[%s437 + $0x100] sm:$0xff]
        %v492 = vld [vmem:[%s437 + $0x108] sm:$0xff]
        %v493 = vld [vmem:[%s437 + $0x110] sm:$0xff]
        %v494 = vld [vmem:[%s437 + $0x118] sm:$0xff]
        %v495 = vld [vmem:[%s437 + $0x120] sm:$0xff]
        %v496 = vld [vmem:[%s437 + $0x128] sm:$0xff]
        %v497 = vld [vmem:[%s437 + $0x130] sm:$0xff]
        %v498 = vld [vmem:[%s437 + $0x138] sm:$0xff]
        %v499 = vld [vmem:[%s437 + $0x140] sm:$0xff]
        %v500 = vld [vmem:[%s437 + $0x148] sm:$0xff]
        %v501 = vld [vmem:[%s437 + $0x150] sm:$0xff]
        %v502 = vld [vmem:[%s437 + $0x158] sm:$0xff]
        %v503 = vld [vmem:[%s437 + $0x160] sm:$0xff]
        %v504 = vld [vmem:[%s437 + $0x168] sm:$0xff]
        %v505 = vld [vmem:[%s437 + $0x170] sm:$0xff]
        %v506 = vld [vmem:[%s437 + $0x178] sm:$0xff]
        %v507 = vld [vmem:[%s437 + $0x180] sm:$0xff]
        %v508 = vld [vmem:[%s437 + $0x188] sm:$0xff]
        %v509 = vld [vmem:[%s437 + $0x190] sm:$0xff]
        %v510 = vld [vmem:[%s437 + $0x198] sm:$0xff]
        %v511 = vld [vmem:[%s437 + $0x1a0] sm:$0xff]
        %v512 = vld [vmem:[%s437 + $0x1a8] sm:$0xff]
        %v513 = vld [vmem:[%s437 + $0x1b0] sm:$0xff]
        %v514 = vld [vmem:[%s437 + $0x1b8] sm:$0xff]
        %v515 = vld [vmem:[%s437 + $0x1c0] sm:$0xff]
        %v516 = vld [vmem:[%s437 + $0x1c8] sm:$0xff]
        %v517 = vld [vmem:[%s437 + $0x1d0] sm:$0xff]
        %v518 = vld [vmem:[%s437 + $0x1d8] sm:$0xff]
        %v519 = vld [vmem:[%s437 + $0x1e0] sm:$0xff]
        %v520 = vld [vmem:[%s437 + $0x1e8] sm:$0xff]
        %v521 = vld [vmem:[%s437 + $0x1f0] sm:$0xff]
        %v522 = vld [vmem:[%s437 + $0x1f8] sm:$0xff]
        %v523 = vld [vmem:[%s437 + $0x200] sm:$0xff]
        %v524 = vld [vmem:[%s437 + $0x208] sm:$0xff]
        %v525 = vld [vmem:[%s437 + $0x210] sm:$0xff]
        %v526 = vld [vmem:[%s437 + $0x218] sm:$0xff]
        %v527 = vld [vmem:[%s437 + $0x220] sm:$0xff]
        %v528 = vld [vmem:[%s437 + $0x228] sm:$0xff]
        %v529 = vld [vmem:[%s437 + $0x230] sm:$0xff]
        %v530 = vld [vmem:[%s437 + $0x238] sm:$0xff]
        %v531 = vld [vmem:[%s437 + $0x240] sm:$0xff]
        %v532 = vld [vmem:[%s437 + $0x248] sm:$0xff]
        %v533 = vld [vmem:[%s437 + $0x250] sm:$0xff]
        %v534 = vld [vmem:[%s437 + $0x258] sm:$0xff]
        %v535 = vld [vmem:[%s437 + $0x260] sm:$0xff]
        %v536 = vld [vmem:[%s437 + $0x268] sm:$0xff]
        %v537 = vld [vmem:[%s437 + $0x270] sm:$0xff]
        %v538 = vld [vmem:[%s437 + $0x278] sm:$0xff]
        %v539 = vld [vmem:[%s437 + $0x280] sm:$0xff]
        %v540 = vld [vmem:[%s437 + $0x288] sm:$0xff]
        %v541 = vld [vmem:[%s437 + $0x290] sm:$0xff]
        %v542 = vld [vmem:[%s437 + $0x298] sm:$0xff]
        %v543 = vld [vmem:[%s437 + $0x2a0] sm:$0xff]
        %v544 = vld [vmem:[%s437 + $0x2a8] sm:$0xff]
        %v545 = vld [vmem:[%s437 + $0x2b0] sm:$0xff]
        %v546 = vld [vmem:[%s437 + $0x2b8] sm:$0xff]
        %v547 = vld [vmem:[%s437 + $0x2c0] sm:$0xff]
        %v548 = vld [vmem:[%s437 + $0x2c8] sm:$0xff]
        %v549 = vld [vmem:[%s437 + $0x2d0] sm:$0xff]
        %v550 = vld [vmem:[%s437 + $0x2d8] sm:$0xff]
        %v551 = vld [vmem:[%s437 + $0x2e0] sm:$0xff]
        %v552 = vld [vmem:[%s437 + $0x2e8] sm:$0xff]
        %v553 = vld [vmem:[%s437 + $0x2f0] sm:$0xff]
        %v554 = vld [vmem:[%s437 + $0x2f8] sm:$0xff]
        %v555 = vld [vmem:[%s437 + $0x300] sm:$0xff]
        %v556 = vld [vmem:[%s437 + $0x308] sm:$0xff]
        %v557 = vld [vmem:[%s437 + $0x310] sm:$0xff]
        %v558 = vld [vmem:[%s437 + $0x318] sm:$0xff]
        %v559 = vld [vmem:[%s437 + $0x320] sm:$0xff]
        %v560 = vld [vmem:[%s437 + $0x328] sm:$0xff]
        %v561 = vld [vmem:[%s437 + $0x330] sm:$0xff]
        %v562 = vld [vmem:[%s437 + $0x338] sm:$0xff]
        %v563 = vld [vmem:[%s437 + $0x340] sm:$0xff]
        %v564 = vld [vmem:[%s437 + $0x348] sm:$0xff]
        %v565 = vld [vmem:[%s437 + $0x350] sm:$0xff]
        %v566 = vld [vmem:[%s437 + $0x358] sm:$0xff]
        %v567 = vld [vmem:[%s437 + $0x360] sm:$0xff]
        %v568 = vld [vmem:[%s437 + $0x368] sm:$0xff]
        %v569 = vld [vmem:[%s437 + $0x370] sm:$0xff]
        %v570 = vld [vmem:[%s437 + $0x378] sm:$0xff]
        %v571 = vld [vmem:[%s437 + $0x380] sm:$0xff]
        %v572 = vld [vmem:[%s437 + $0x388] sm:$0xff]
        %v573 = vld [vmem:[%s437 + $0x390] sm:$0xff]
        %v574 = vld [vmem:[%s437 + $0x398] sm:$0xff]
        %v575 = vld [vmem:[%s437 + $0x3a0] sm:$0xff]
        %v576 = vld [vmem:[%s437 + $0x3a8] sm:$0xff]
        %v577 = vld [vmem:[%s437 + $0x3b0] sm:$0xff]
        %v578 = vld [vmem:[%s437 + $0x3b8] sm:$0xff]
        %v579 = vld [vmem:[%s437 + $0x3c0] sm:$0xff]
        %v580 = vld [vmem:[%s437 + $0x3c8] sm:$0xff]
        %v581 = vld [vmem:[%s437 + $0x3d0] sm:$0xff]
        %v582 = vld [vmem:[%s437 + $0x3d8] sm:$0xff]
        %v583 = vld [vmem:[%s437 + $0x3e0] sm:$0xff]
        %v584 = vld [vmem:[%s437 + $0x3e8] sm:$0xff]
        %v585 = vld [vmem:[%s437 + $0x3f0] sm:$0xff]
        %v586 = vld [vmem:[%s437 + $0x3f8] sm:$0xff]
        %v587 = vld [vmem:[%s1] sm:$0xff]
        %v588 = vld [vmem:[%s1 + $0x8] sm:$0xff]
        %590 = vset.pattern.permute.xlu0 0
        %591 = vperm.xlu0 %590, %v587
        %v592 = vpop.permute.xlu0 %591
        %595 = vset.pattern.permute.xlu0 0
        %596 = vperm.xlu0 %595, %v588
        %v597 = vpop.permute.xlu0 %596
        %v599 = vmul.f32 %v459, %v592
        %v600 = vmul.f32 %v460, %v592
        %v601 = vmul.f32 %v461, %v592
        %v602 = vmul.f32 %v462, %v592
        %v603 = vmul.f32 %v463, %v592
        %v604 = vmul.f32 %v464, %v592
        %v605 = vmul.f32 %v465, %v592
        %v606 = vmul.f32 %v466, %v592
        %v607 = vmul.f32 %v467, %v592
        %v608 = vmul.f32 %v468, %v592
        %v609 = vmul.f32 %v469, %v592
        %v610 = vmul.f32 %v470, %v592
        %v611 = vmul.f32 %v471, %v592
        %v612 = vmul.f32 %v472, %v592
        %v613 = vmul.f32 %v473, %v592
        %v614 = vmul.f32 %v474, %v592
        %v615 = vmul.f32 %v475, %v592
        %v616 = vmul.f32 %v476, %v592
        %v617 = vmul.f32 %v477, %v592
        %v618 = vmul.f32 %v478, %v592
        %v619 = vmul.f32 %v479, %v592
        %v620 = vmul.f32 %v480, %v592
        %v621 = vmul.f32 %v481, %v592
        %v622 = vmul.f32 %v482, %v592
        %v623 = vmul.f32 %v483, %v592
        %v624 = vmul.f32 %v484, %v592
        %v625 = vmul.f32 %v485, %v592
        %v626 = vmul.f32 %v486, %v592
        %v627 = vmul.f32 %v487, %v592
        %v628 = vmul.f32 %v488, %v592
        %v629 = vmul.f32 %v489, %v592
        %v630 = vmul.f32 %v490, %v592
        %v631 = vmul.f32 %v491, %v592
        %v632 = vmul.f32 %v492, %v592
        %v633 = vmul.f32 %v493, %v592
        %v634 = vmul.f32 %v494, %v592
        %v635 = vmul.f32 %v495, %v592
        %v636 = vmul.f32 %v496, %v592
        %v637 = vmul.f32 %v497, %v592
        %v638 = vmul.f32 %v498, %v592
        %v639 = vmul.f32 %v499, %v592
        %v640 = vmul.f32 %v500, %v592
        %v641 = vmul.f32 %v501, %v592
        %v642 = vmul.f32 %v502, %v592
        %v643 = vmul.f32 %v503, %v592
        %v644 = vmul.f32 %v504, %v592
        %v645 = vmul.f32 %v505, %v592
        %v646 = vmul.f32 %v506, %v592
        %v647 = vmul.f32 %v507, %v592
        %v648 = vmul.f32 %v508, %v592
        %v649 = vmul.f32 %v509, %v592
        %v650 = vmul.f32 %v510, %v592
        %v651 = vmul.f32 %v511, %v592
        %v652 = vmul.f32 %v512, %v592
        %v653 = vmul.f32 %v513, %v592
        %v654 = vmul.f32 %v514, %v592
        %v655 = vmul.f32 %v515, %v592
        %v656 = vmul.f32 %v516, %v592
        %v657 = vmul.f32 %v517, %v592
        %v658 = vmul.f32 %v518, %v592
        %v659 = vmul.f32 %v519, %v592
        %v660 = vmul.f32 %v520, %v592
        %v661 = vmul.f32 %v521, %v592
        %v662 = vmul.f32 %v522, %v592
        %v663 = vmul.f32 %v523, %v597
        %v664 = vmul.f32 %v524, %v597
        %v665 = vmul.f32 %v525, %v597
        %v666 = vmul.f32 %v526, %v597
        %v667 = vmul.f32 %v527, %v597
        %v668 = vmul.f32 %v528, %v597
        %v669 = vmul.f32 %v529, %v597
        %v670 = vmul.f32 %v530, %v597
        %v671 = vmul.f32 %v531, %v597
        %v672 = vmul.f32 %v532, %v597
        %v673 = vmul.f32 %v533, %v597
        %v674 = vmul.f32 %v534, %v597
        %v675 = vmul.f32 %v535, %v597
        %v676 = vmul.f32 %v536, %v597
        %v677 = vmul.f32 %v537, %v597
        %v678 = vmul.f32 %v538, %v597
        %v679 = vmul.f32 %v539, %v597
        %v680 = vmul.f32 %v540, %v597
        %v681 = vmul.f32 %v541, %v597
        %v682 = vmul.f32 %v542, %v597
        %v683 = vmul.f32 %v543, %v597
        %v684 = vmul.f32 %v544, %v597
        %v685 = vmul.f32 %v545, %v597
        %v686 = vmul.f32 %v546, %v597
        %v687 = vmul.f32 %v547, %v597
        %v688 = vmul.f32 %v548, %v597
        %v689 = vmul.f32 %v549, %v597
        %v690 = vmul.f32 %v550, %v597
        %v691 = vmul.f32 %v551, %v597
        %v692 = vmul.f32 %v552, %v597
        %v693 = vmul.f32 %v553, %v597
        %v694 = vmul.f32 %v554, %v597
        %v695 = vmul.f32 %v555, %v597
        %v696 = vmul.f32 %v556, %v597
        %v697 = vmul.f32 %v557, %v597
        %v698 = vmul.f32 %v558, %v597
        %v699 = vmul.f32 %v559, %v597
        %v700 = vmul.f32 %v560, %v597
        %v701 = vmul.f32 %v561, %v597
        %v702 = vmul.f32 %v562, %v597
        %v703 = vmul.f32 %v563, %v597
        %v704 = vmul.f32 %v564, %v597
        %v705 = vmul.f32 %v565, %v597
        %v706 = vmul.f32 %v566, %v597
        %v707 = vmul.f32 %v567, %v597
        %v708 = vmul.f32 %v568, %v597
        %v709 = vmul.f32 %v569, %v597
        %v710 = vmul.f32 %v570, %v597
        %v711 = vmul.f32 %v571, %v597
        %v712 = vmul.f32 %v572, %v597
        %v713 = vmul.f32 %v573, %v597
        %v714 = vmul.f32 %v574, %v597
        %v715 = vmul.f32 %v575, %v597
        %v716 = vmul.f32 %v576, %v597
        %v717 = vmul.f32 %v577, %v597
        %v718 = vmul.f32 %v578, %v597
        %v719 = vmul.f32 %v579, %v597
        %v720 = vmul.f32 %v580, %v597
        %v721 = vmul.f32 %v581, %v597
        %v722 = vmul.f32 %v582, %v597
        %v723 = vmul.f32 %v583, %v597
        %v724 = vmul.f32 %v584, %v597
        %v725 = vmul.f32 %v585, %v597
        %v726 = vmul.f32 %v586, %v597
        %v727 = vld [vmem:[%s2] sm:$0xff]
        %v728 = vld [vmem:[%s2 + $0x8] sm:$0xff]
        %730 = vset.pattern.permute.xlu0 0
        %731 = vperm.xlu0 %730, %v727
        %v732 = vpop.permute.xlu0 %731
        %735 = vset.pattern.permute.xlu0 0
        %736 = vperm.xlu0 %735, %v728
        %v737 = vpop.permute.xlu0 %736
        %v739 = vadd.f32 %v599, %v732
        %v740 = vadd.f32 %v600, %v732
        %v741 = vadd.f32 %v601, %v732
        %v742 = vadd.f32 %v602, %v732
        %v743 = vadd.f32 %v603, %v732
        %v744 = vadd.f32 %v604, %v732
        %v745 = vadd.f32 %v605, %v732
        %v746 = vadd.f32 %v606, %v732
        %v747 = vadd.f32 %v607, %v732
        %v748 = vadd.f32 %v608, %v732
        %v749 = vadd.f32 %v609, %v732
        %v750 = vadd.f32 %v610, %v732
        %v751 = vadd.f32 %v611, %v732
        %v752 = vadd.f32 %v612, %v732
        %v753 = vadd.f32 %v613, %v732
        %v754 = vadd.f32 %v614, %v732
        %v755 = vadd.f32 %v615, %v732
        %v756 = vadd.f32 %v616, %v732
        %v757 = vadd.f32 %v617, %v732
        %v758 = vadd.f32 %v618, %v732
        %v759 = vadd.f32 %v619, %v732
        %v760 = vadd.f32 %v620, %v732
        %v761 = vadd.f32 %v621, %v732
        %v762 = vadd.f32 %v622, %v732
        %v763 = vadd.f32 %v623, %v732
        %v764 = vadd.f32 %v624, %v732
        %v765 = vadd.f32 %v625, %v732
        %v766 = vadd.f32 %v626, %v732
        %v767 = vadd.f32 %v627, %v732
        %v768 = vadd.f32 %v628, %v732
        %v769 = vadd.f32 %v629, %v732
        %v770 = vadd.f32 %v630, %v732
        %v771 = vadd.f32 %v631, %v732
        %v772 = vadd.f32 %v632, %v732
        %v773 = vadd.f32 %v633, %v732
        %v774 = vadd.f32 %v634, %v732
        %v775 = vadd.f32 %v635, %v732
        %v776 = vadd.f32 %v636, %v732
        %v777 = vadd.f32 %v637, %v732
        %v778 = vadd.f32 %v638, %v732
        %v779 = vadd.f32 %v639, %v732
        %v780 = vadd.f32 %v640, %v732
        %v781 = vadd.f32 %v641, %v732
        %v782 = vadd.f32 %v642, %v732
        %v783 = vadd.f32 %v643, %v732
        %v784 = vadd.f32 %v644, %v732
        %v785 = vadd.f32 %v645, %v732
        %v786 = vadd.f32 %v646, %v732
        %v787 = vadd.f32 %v647, %v732
        %v788 = vadd.f32 %v648, %v732
        %v789 = vadd.f32 %v649, %v732
        %v790 = vadd.f32 %v650, %v732
        %v791 = vadd.f32 %v651, %v732
        %v792 = vadd.f32 %v652, %v732
        %v793 = vadd.f32 %v653, %v732
        %v794 = vadd.f32 %v654, %v732
        %v795 = vadd.f32 %v655, %v732
        %v796 = vadd.f32 %v656, %v732
        %v797 = vadd.f32 %v657, %v732
        %v798 = vadd.f32 %v658, %v732
        %v799 = vadd.f32 %v659, %v732
        %v800 = vadd.f32 %v660, %v732
        %v801 = vadd.f32 %v661, %v732
        %v802 = vadd.f32 %v662, %v732
        %v803 = vadd.f32 %v663, %v737
        %v804 = vadd.f32 %v664, %v737
        %v805 = vadd.f32 %v665, %v737
        %v806 = vadd.f32 %v666, %v737
        %v807 = vadd.f32 %v667, %v737
        %v808 = vadd.f32 %v668, %v737
        %v809 = vadd.f32 %v669, %v737
        %v810 = vadd.f32 %v670, %v737
        %v811 = vadd.f32 %v671, %v737
        %v812 = vadd.f32 %v672, %v737
        %v813 = vadd.f32 %v673, %v737
        %v814 = vadd.f32 %v674, %v737
        %v815 = vadd.f32 %v675, %v737
        %v816 = vadd.f32 %v676, %v737
        %v817 = vadd.f32 %v677, %v737
        %v818 = vadd.f32 %v678, %v737
        %v819 = vadd.f32 %v679, %v737
        %v820 = vadd.f32 %v680, %v737
        %v821 = vadd.f32 %v681, %v737
        %v822 = vadd.f32 %v682, %v737
        %v823 = vadd.f32 %v683, %v737
        %v824 = vadd.f32 %v684, %v737
        %v825 = vadd.f32 %v685, %v737
        %v826 = vadd.f32 %v686, %v737
        %v827 = vadd.f32 %v687, %v737
        %v828 = vadd.f32 %v688, %v737
        %v829 = vadd.f32 %v689, %v737
        %v830 = vadd.f32 %v690, %v737
        %v831 = vadd.f32 %v691, %v737
        %v832 = vadd.f32 %v692, %v737
        %v833 = vadd.f32 %v693, %v737
        %v834 = vadd.f32 %v694, %v737
        %v835 = vadd.f32 %v695, %v737
        %v836 = vadd.f32 %v696, %v737
        %v837 = vadd.f32 %v697, %v737
        %v838 = vadd.f32 %v698, %v737
        %v839 = vadd.f32 %v699, %v737
        %v840 = vadd.f32 %v700, %v737
        %v841 = vadd.f32 %v701, %v737
        %v842 = vadd.f32 %v702, %v737
        %v843 = vadd.f32 %v703, %v737
        %v844 = vadd.f32 %v704, %v737
        %v845 = vadd.f32 %v705, %v737
        %v846 = vadd.f32 %v706, %v737
        %v847 = vadd.f32 %v707, %v737
        %v848 = vadd.f32 %v708, %v737
        %v849 = vadd.f32 %v709, %v737
        %v850 = vadd.f32 %v710, %v737
        %v851 = vadd.f32 %v711, %v737
        %v852 = vadd.f32 %v712, %v737
        %v853 = vadd.f32 %v713, %v737
        %v854 = vadd.f32 %v714, %v737
        %v855 = vadd.f32 %v715, %v737
        %v856 = vadd.f32 %v716, %v737
        %v857 = vadd.f32 %v717, %v737
        %v858 = vadd.f32 %v718, %v737
        %v859 = vadd.f32 %v719, %v737
        %v860 = vadd.f32 %v720, %v737
        %v861 = vadd.f32 %v721, %v737
        %v862 = vadd.f32 %v722, %v737
        %v863 = vadd.f32 %v723, %v737
        %v864 = vadd.f32 %v724, %v737
        %v865 = vadd.f32 %v725, %v737
        %v866 = vadd.f32 %v726, %v737
        %v867 = vmul.f32 %v739, 0.5
        %v868 = vmul.f32 %v740, 0.5
        %v869 = vmul.f32 %v741, 0.5
        %v870 = vmul.f32 %v742, 0.5
        %v871 = vmul.f32 %v743, 0.5
        %v872 = vmul.f32 %v744, 0.5
        %v873 = vmul.f32 %v745, 0.5
        %v874 = vmul.f32 %v746, 0.5
        %v875 = vmul.f32 %v747, 0.5
        %v876 = vmul.f32 %v748, 0.5
        %v877 = vmul.f32 %v749, 0.5
        %v878 = vmul.f32 %v750, 0.5
        %v879 = vmul.f32 %v751, 0.5
        %v880 = vmul.f32 %v752, 0.5
        %v881 = vmul.f32 %v753, 0.5
        %v882 = vmul.f32 %v754, 0.5
        %v883 = vmul.f32 %v755, 0.5
        %v884 = vmul.f32 %v756, 0.5
        %v885 = vmul.f32 %v757, 0.5
        %v886 = vmul.f32 %v758, 0.5
        %v887 = vmul.f32 %v759, 0.5
        %v888 = vmul.f32 %v760, 0.5
        %v889 = vmul.f32 %v761, 0.5
        %v890 = vmul.f32 %v762, 0.5
        %v891 = vmul.f32 %v763, 0.5
        %v892 = vmul.f32 %v764, 0.5
        %v893 = vmul.f32 %v765, 0.5
        %v894 = vmul.f32 %v766, 0.5
        %v895 = vmul.f32 %v767, 0.5
        %v896 = vmul.f32 %v768, 0.5
        %v897 = vmul.f32 %v769, 0.5
        %v898 = vmul.f32 %v770, 0.5
        %v899 = vmul.f32 %v771, 0.5
        %v900 = vmul.f32 %v772, 0.5
        %v901 = vmul.f32 %v773, 0.5
        %v902 = vmul.f32 %v774, 0.5
        %v903 = vmul.f32 %v775, 0.5
        %v904 = vmul.f32 %v776, 0.5
        %v905 = vmul.f32 %v777, 0.5
        %v906 = vmul.f32 %v778, 0.5
        %v907 = vmul.f32 %v779, 0.5
        %v908 = vmul.f32 %v780, 0.5
        %v909 = vmul.f32 %v781, 0.5
        %v910 = vmul.f32 %v782, 0.5
        %v911 = vmul.f32 %v783, 0.5
        %v912 = vmul.f32 %v784, 0.5
        %v913 = vmul.f32 %v785, 0.5
        %v914 = vmul.f32 %v786, 0.5
        %v915 = vmul.f32 %v787, 0.5
        %v916 = vmul.f32 %v788, 0.5
        %v917 = vmul.f32 %v789, 0.5
        %v918 = vmul.f32 %v790, 0.5
        %v919 = vmul.f32 %v791, 0.5
        %v920 = vmul.f32 %v792, 0.5
        %v921 = vmul.f32 %v793, 0.5
        %v922 = vmul.f32 %v794, 0.5
        %v923 = vmul.f32 %v795, 0.5
        %v924 = vmul.f32 %v796, 0.5
        %v925 = vmul.f32 %v797, 0.5
        %v926 = vmul.f32 %v798, 0.5
        %v927 = vmul.f32 %v799, 0.5
        %v928 = vmul.f32 %v800, 0.5
        %v929 = vmul.f32 %v801, 0.5
        %v930 = vmul.f32 %v802, 0.5
        %v931 = vmul.f32 %v803, 0.5
        %v932 = vmul.f32 %v804, 0.5
        %v933 = vmul.f32 %v805, 0.5
        %v934 = vmul.f32 %v806, 0.5
        %v935 = vmul.f32 %v807, 0.5
        %v936 = vmul.f32 %v808, 0.5
        %v937 = vmul.f32 %v809, 0.5
        %v938 = vmul.f32 %v810, 0.5
        %v939 = vmul.f32 %v811, 0.5
        %v940 = vmul.f32 %v812, 0.5
        %v941 = vmul.f32 %v813, 0.5
        %v942 = vmul.f32 %v814, 0.5
        %v943 = vmul.f32 %v815, 0.5
        %v944 = vmul.f32 %v816, 0.5
        %v945 = vmul.f32 %v817, 0.5
        %v946 = vmul.f32 %v818, 0.5
        %v947 = vmul.f32 %v819, 0.5
        %v948 = vmul.f32 %v820, 0.5
        %v949 = vmul.f32 %v821, 0.5
        %v950 = vmul.f32 %v822, 0.5
        %v951 = vmul.f32 %v823, 0.5
        %v952 = vmul.f32 %v824, 0.5
        %v953 = vmul.f32 %v825, 0.5
        %v954 = vmul.f32 %v826, 0.5
        %v955 = vmul.f32 %v827, 0.5
        %v956 = vmul.f32 %v828, 0.5
        %v957 = vmul.f32 %v829, 0.5
        %v958 = vmul.f32 %v830, 0.5
        %v959 = vmul.f32 %v831, 0.5
        %v960 = vmul.f32 %v832, 0.5
        %v961 = vmul.f32 %v833, 0.5
        %v962 = vmul.f32 %v834, 0.5
        %v963 = vmul.f32 %v835, 0.5
        %v964 = vmul.f32 %v836, 0.5
        %v965 = vmul.f32 %v837, 0.5
        %v966 = vmul.f32 %v838, 0.5
        %v967 = vmul.f32 %v839, 0.5
        %v968 = vmul.f32 %v840, 0.5
        %v969 = vmul.f32 %v841, 0.5
        %v970 = vmul.f32 %v842, 0.5
        %v971 = vmul.f32 %v843, 0.5
        %v972 = vmul.f32 %v844, 0.5
        %v973 = vmul.f32 %v845, 0.5
        %v974 = vmul.f32 %v846, 0.5
        %v975 = vmul.f32 %v847, 0.5
        %v976 = vmul.f32 %v848, 0.5
        %v977 = vmul.f32 %v849, 0.5
        %v978 = vmul.f32 %v850, 0.5
        %v979 = vmul.f32 %v851, 0.5
        %v980 = vmul.f32 %v852, 0.5
        %v981 = vmul.f32 %v853, 0.5
        %v982 = vmul.f32 %v854, 0.5
        %v983 = vmul.f32 %v855, 0.5
        %v984 = vmul.f32 %v856, 0.5
        %v985 = vmul.f32 %v857, 0.5
        %v986 = vmul.f32 %v858, 0.5
        %v987 = vmul.f32 %v859, 0.5
        %v988 = vmul.f32 %v860, 0.5
        %v989 = vmul.f32 %v861, 0.5
        %v990 = vmul.f32 %v862, 0.5
        %v991 = vmul.f32 %v863, 0.5
        %v992 = vmul.f32 %v864, 0.5
        %v993 = vmul.f32 %v865, 0.5
        %v994 = vmul.f32 %v866, 0.5
        %v995 = vmul.f32 %v739, 0.70710677
        %v996 = vmul.f32 %v740, 0.70710677
        %v997 = vmul.f32 %v741, 0.70710677
        %v998 = vmul.f32 %v742, 0.70710677
        %v999 = vmul.f32 %v743, 0.70710677
        %v1000 = vmul.f32 %v744, 0.70710677
        %v1001 = vmul.f32 %v745, 0.70710677
        %v1002 = vmul.f32 %v746, 0.70710677
        %v1003 = vmul.f32 %v747, 0.70710677
        %v1004 = vmul.f32 %v748, 0.70710677
        %v1005 = vmul.f32 %v749, 0.70710677
        %v1006 = vmul.f32 %v750, 0.70710677
        %v1007 = vmul.f32 %v751, 0.70710677
        %v1008 = vmul.f32 %v752, 0.70710677
        %v1009 = vmul.f32 %v753, 0.70710677
        %v1010 = vmul.f32 %v754, 0.70710677
        %v1011 = vmul.f32 %v755, 0.70710677
        %v1012 = vmul.f32 %v756, 0.70710677
        %v1013 = vmul.f32 %v757, 0.70710677
        %v1014 = vmul.f32 %v758, 0.70710677
        %v1015 = vmul.f32 %v759, 0.70710677
        %v1016 = vmul.f32 %v760, 0.70710677
        %v1017 = vmul.f32 %v761, 0.70710677
        %v1018 = vmul.f32 %v762, 0.70710677
        %v1019 = vmul.f32 %v763, 0.70710677
        %v1020 = vmul.f32 %v764, 0.70710677
        %v1021 = vmul.f32 %v765, 0.70710677
        %v1022 = vmul.f32 %v766, 0.70710677
        %v1023 = vmul.f32 %v767, 0.70710677
        %v1024 = vmul.f32 %v768, 0.70710677
        %v1025 = vmul.f32 %v769, 0.70710677
        %v1026 = vmul.f32 %v770, 0.70710677
        %v1027 = vmul.f32 %v771, 0.70710677
        %v1028 = vmul.f32 %v772, 0.70710677
        %v1029 = vmul.f32 %v773, 0.70710677
        %v1030 = vmul.f32 %v774, 0.70710677
        %v1031 = vmul.f32 %v775, 0.70710677
        %v1032 = vmul.f32 %v776, 0.70710677
        %v1033 = vmul.f32 %v777, 0.70710677
        %v1034 = vmul.f32 %v778, 0.70710677
        %v1035 = vmul.f32 %v779, 0.70710677
        %v1036 = vmul.f32 %v780, 0.70710677
        %v1037 = vmul.f32 %v781, 0.70710677
        %v1038 = vmul.f32 %v782, 0.70710677
        %v1039 = vmul.f32 %v783, 0.70710677
        %v1040 = vmul.f32 %v784, 0.70710677
        %v1041 = vmul.f32 %v785, 0.70710677
        %v1042 = vmul.f32 %v786, 0.70710677
        %v1043 = vmul.f32 %v787, 0.70710677
        %v1044 = vmul.f32 %v788, 0.70710677
        %v1045 = vmul.f32 %v789, 0.70710677
        %v1046 = vmul.f32 %v790, 0.70710677
        %v1047 = vmul.f32 %v791, 0.70710677
        %v1048 = vmul.f32 %v792, 0.70710677
        %v1049 = vmul.f32 %v793, 0.70710677
        %v1050 = vmul.f32 %v794, 0.70710677
        %v1051 = vmul.f32 %v795, 0.70710677
        %v1052 = vmul.f32 %v796, 0.70710677
        %v1053 = vmul.f32 %v797, 0.70710677
        %v1054 = vmul.f32 %v798, 0.70710677
        %v1055 = vmul.f32 %v799, 0.70710677
        %v1056 = vmul.f32 %v800, 0.70710677
        %v1057 = vmul.f32 %v801, 0.70710677
        %v1058 = vmul.f32 %v802, 0.70710677
        %v1059 = vmul.f32 %v803, 0.70710677
        %v1060 = vmul.f32 %v804, 0.70710677
        %v1061 = vmul.f32 %v805, 0.70710677
        %v1062 = vmul.f32 %v806, 0.70710677
        %v1063 = vmul.f32 %v807, 0.70710677
        %v1064 = vmul.f32 %v808, 0.70710677
        %v1065 = vmul.f32 %v809, 0.70710677
        %v1066 = vmul.f32 %v810, 0.70710677
        %v1067 = vmul.f32 %v811, 0.70710677
        %v1068 = vmul.f32 %v812, 0.70710677
        %v1069 = vmul.f32 %v813, 0.70710677
        %v1070 = vmul.f32 %v814, 0.70710677
        %v1071 = vmul.f32 %v815, 0.70710677
        %v1072 = vmul.f32 %v816, 0.70710677
        %v1073 = vmul.f32 %v817, 0.70710677
        %v1074 = vmul.f32 %v818, 0.70710677
        %v1075 = vmul.f32 %v819, 0.70710677
        %v1076 = vmul.f32 %v820, 0.70710677
        %v1077 = vmul.f32 %v821, 0.70710677
        %v1078 = vmul.f32 %v822, 0.70710677
        %v1079 = vmul.f32 %v823, 0.70710677
        %v1080 = vmul.f32 %v824, 0.70710677
        %v1081 = vmul.f32 %v825, 0.70710677
        %v1082 = vmul.f32 %v826, 0.70710677
        %v1083 = vmul.f32 %v827, 0.70710677
        %v1084 = vmul.f32 %v828, 0.70710677
        %v1085 = vmul.f32 %v829, 0.70710677
        %v1086 = vmul.f32 %v830, 0.70710677
        %v1087 = vmul.f32 %v831, 0.70710677
        %v1088 = vmul.f32 %v832, 0.70710677
        %v1089 = vmul.f32 %v833, 0.70710677
        %v1090 = vmul.f32 %v834, 0.70710677
        %v1091 = vmul.f32 %v835, 0.70710677
        %v1092 = vmul.f32 %v836, 0.70710677
        %v1093 = vmul.f32 %v837, 0.70710677
        %v1094 = vmul.f32 %v838, 0.70710677
        %v1095 = vmul.f32 %v839, 0.70710677
        %v1096 = vmul.f32 %v840, 0.70710677
        %v1097 = vmul.f32 %v841, 0.70710677
        %v1098 = vmul.f32 %v842, 0.70710677
        %v1099 = vmul.f32 %v843, 0.70710677
        %v1100 = vmul.f32 %v844, 0.70710677
        %v1101 = vmul.f32 %v845, 0.70710677
        %v1102 = vmul.f32 %v846, 0.70710677
        %v1103 = vmul.f32 %v847, 0.70710677
        %v1104 = vmul.f32 %v848, 0.70710677
        %v1105 = vmul.f32 %v849, 0.70710677
        %v1106 = vmul.f32 %v850, 0.70710677
        %v1107 = vmul.f32 %v851, 0.70710677
        %v1108 = vmul.f32 %v852, 0.70710677
        %v1109 = vmul.f32 %v853, 0.70710677
        %v1110 = vmul.f32 %v854, 0.70710677
        %v1111 = vmul.f32 %v855, 0.70710677
        %v1112 = vmul.f32 %v856, 0.70710677
        %v1113 = vmul.f32 %v857, 0.70710677
        %v1114 = vmul.f32 %v858, 0.70710677
        %v1115 = vmul.f32 %v859, 0.70710677
        %v1116 = vmul.f32 %v860, 0.70710677
        %v1117 = vmul.f32 %v861, 0.70710677
        %v1118 = vmul.f32 %v862, 0.70710677
        %v1119 = vmul.f32 %v863, 0.70710677
        %v1120 = vmul.f32 %v864, 0.70710677
        %v1121 = vmul.f32 %v865, 0.70710677
        %v1122 = vmul.f32 %v866, 0.70710677
        %v1123 = vand.u32 2147483647, %v995
        %v1124 = vand.u32 2147483647, %v996
        %v1125 = vand.u32 2147483647, %v997
        %v1126 = vand.u32 2147483647, %v998
        %v1127 = vand.u32 2147483647, %v999
        %v1128 = vand.u32 2147483647, %v1000
        %v1129 = vand.u32 2147483647, %v1001
        %v1130 = vand.u32 2147483647, %v1002
        %v1131 = vand.u32 2147483647, %v1003
        %v1132 = vand.u32 2147483647, %v1004
        %v1133 = vand.u32 2147483647, %v1005
        %v1134 = vand.u32 2147483647, %v1006
        %v1135 = vand.u32 2147483647, %v1007
        %v1136 = vand.u32 2147483647, %v1008
        %v1137 = vand.u32 2147483647, %v1009
        %v1138 = vand.u32 2147483647, %v1010
        %v1139 = vand.u32 2147483647, %v1011
        %v1140 = vand.u32 2147483647, %v1012
        %v1141 = vand.u32 2147483647, %v1013
        %v1142 = vand.u32 2147483647, %v1014
        %v1143 = vand.u32 2147483647, %v1015
        %v1144 = vand.u32 2147483647, %v1016
        %v1145 = vand.u32 2147483647, %v1017
        %v1146 = vand.u32 2147483647, %v1018
        %v1147 = vand.u32 2147483647, %v1019
        %v1148 = vand.u32 2147483647, %v1020
        %v1149 = vand.u32 2147483647, %v1021
        %v1150 = vand.u32 2147483647, %v1022
        %v1151 = vand.u32 2147483647, %v1023
        %v1152 = vand.u32 2147483647, %v1024
        %v1153 = vand.u32 2147483647, %v1025
        %v1154 = vand.u32 2147483647, %v1026
        %v1155 = vand.u32 2147483647, %v1027
        %v1156 = vand.u32 2147483647, %v1028
        %v1157 = vand.u32 2147483647, %v1029
        %v1158 = vand.u32 2147483647, %v1030
        %v1159 = vand.u32 2147483647, %v1031
        %v1160 = vand.u32 2147483647, %v1032
        %v1161 = vand.u32 2147483647, %v1033
        %v1162 = vand.u32 2147483647, %v1034
        %v1163 = vand.u32 2147483647, %v1035
        %v1164 = vand.u32 2147483647, %v1036
        %v1165 = vand.u32 2147483647, %v1037
        %v1166 = vand.u32 2147483647, %v1038
        %v1167 = vand.u32 2147483647, %v1039
        %v1168 = vand.u32 2147483647, %v1040
        %v1169 = vand.u32 2147483647, %v1041
        %v1170 = vand.u32 2147483647, %v1042
        %v1171 = vand.u32 2147483647, %v1043
        %v1172 = vand.u32 2147483647, %v1044
        %v1173 = vand.u32 2147483647, %v1045
        %v1174 = vand.u32 2147483647, %v1046
        %v1175 = vand.u32 2147483647, %v1047
        %v1176 = vand.u32 2147483647, %v1048
        %v1177 = vand.u32 2147483647, %v1049
        %v1178 = vand.u32 2147483647, %v1050
        %v1179 = vand.u32 2147483647, %v1051
        %v1180 = vand.u32 2147483647, %v1052
        %v1181 = vand.u32 2147483647, %v1053
        %v1182 = vand.u32 2147483647, %v1054
        %v1183 = vand.u32 2147483647, %v1055
        %v1184 = vand.u32 2147483647, %v1056
        %v1185 = vand.u32 2147483647, %v1057
        %v1186 = vand.u32 2147483647, %v1058
        %v1187 = vand.u32 2147483647, %v1059
        %v1188 = vand.u32 2147483647, %v1060
        %v1189 = vand.u32 2147483647, %v1061
        %v1190 = vand.u32 2147483647, %v1062
        %v1191 = vand.u32 2147483647, %v1063
        %v1192 = vand.u32 2147483647, %v1064
        %v1193 = vand.u32 2147483647, %v1065
        %v1194 = vand.u32 2147483647, %v1066
        %v1195 = vand.u32 2147483647, %v1067
        %v1196 = vand.u32 2147483647, %v1068
        %v1197 = vand.u32 2147483647, %v1069
        %v1198 = vand.u32 2147483647, %v1070
        %v1199 = vand.u32 2147483647, %v1071
        %v1200 = vand.u32 2147483647, %v1072
        %v1201 = vand.u32 2147483647, %v1073
        %v1202 = vand.u32 2147483647, %v1074
        %v1203 = vand.u32 2147483647, %v1075
        %v1204 = vand.u32 2147483647, %v1076
        %v1205 = vand.u32 2147483647, %v1077
        %v1206 = vand.u32 2147483647, %v1078
        %v1207 = vand.u32 2147483647, %v1079
        %v1208 = vand.u32 2147483647, %v1080
        %v1209 = vand.u32 2147483647, %v1081
        %v1210 = vand.u32 2147483647, %v1082
        %v1211 = vand.u32 2147483647, %v1083
        %v1212 = vand.u32 2147483647, %v1084
        %v1213 = vand.u32 2147483647, %v1085
        %v1214 = vand.u32 2147483647, %v1086
        %v1215 = vand.u32 2147483647, %v1087
        %v1216 = vand.u32 2147483647, %v1088
        %v1217 = vand.u32 2147483647, %v1089
        %v1218 = vand.u32 2147483647, %v1090
        %v1219 = vand.u32 2147483647, %v1091
        %v1220 = vand.u32 2147483647, %v1092
        %v1221 = vand.u32 2147483647, %v1093
        %v1222 = vand.u32 2147483647, %v1094
        %v1223 = vand.u32 2147483647, %v1095
        %v1224 = vand.u32 2147483647, %v1096
        %v1225 = vand.u32 2147483647, %v1097
        %v1226 = vand.u32 2147483647, %v1098
        %v1227 = vand.u32 2147483647, %v1099
        %v1228 = vand.u32 2147483647, %v1100
        %v1229 = vand.u32 2147483647, %v1101
        %v1230 = vand.u32 2147483647, %v1102
        %v1231 = vand.u32 2147483647, %v1103
        %v1232 = vand.u32 2147483647, %v1104
        %v1233 = vand.u32 2147483647, %v1105
        %v1234 = vand.u32 2147483647, %v1106
        %v1235 = vand.u32 2147483647, %v1107
        %v1236 = vand.u32 2147483647, %v1108
        %v1237 = vand.u32 2147483647, %v1109
        %v1238 = vand.u32 2147483647, %v1110
        %v1239 = vand.u32 2147483647, %v1111
        %v1240 = vand.u32 2147483647, %v1112
        %v1241 = vand.u32 2147483647, %v1113
        %v1242 = vand.u32 2147483647, %v1114
        %v1243 = vand.u32 2147483647, %v1115
        %v1244 = vand.u32 2147483647, %v1116
        %v1245 = vand.u32 2147483647, %v1117
        %v1246 = vand.u32 2147483647, %v1118
        %v1247 = vand.u32 2147483647, %v1119
        %v1248 = vand.u32 2147483647, %v1120
        %v1249 = vand.u32 2147483647, %v1121
        %v1250 = vand.u32 2147483647, %v1122
        %v1251 = vmul.f32 %v1123, 0.3275911
        %v1252 = vmul.f32 %v1124, 0.3275911
        %v1253 = vmul.f32 %v1125, 0.3275911
        %v1254 = vmul.f32 %v1126, 0.3275911
        %v1255 = vmul.f32 %v1127, 0.3275911
        %v1256 = vmul.f32 %v1128, 0.3275911
        %v1257 = vmul.f32 %v1129, 0.3275911
        %v1258 = vmul.f32 %v1130, 0.3275911
        %v1259 = vmul.f32 %v1131, 0.3275911
        %v1260 = vmul.f32 %v1132, 0.3275911
        %v1261 = vmul.f32 %v1133, 0.3275911
        %v1262 = vmul.f32 %v1134, 0.3275911
        %v1263 = vmul.f32 %v1135, 0.3275911
        %v1264 = vmul.f32 %v1136, 0.3275911
        %v1265 = vmul.f32 %v1137, 0.3275911
        %v1266 = vmul.f32 %v1138, 0.3275911
        %v1267 = vmul.f32 %v1139, 0.3275911
        %v1268 = vmul.f32 %v1140, 0.3275911
        %v1269 = vmul.f32 %v1141, 0.3275911
        %v1270 = vmul.f32 %v1142, 0.3275911
        %v1271 = vmul.f32 %v1143, 0.3275911
        %v1272 = vmul.f32 %v1144, 0.3275911
        %v1273 = vmul.f32 %v1145, 0.3275911
        %v1274 = vmul.f32 %v1146, 0.3275911
        %v1275 = vmul.f32 %v1147, 0.3275911
        %v1276 = vmul.f32 %v1148, 0.3275911
        %v1277 = vmul.f32 %v1149, 0.3275911
        %v1278 = vmul.f32 %v1150, 0.3275911
        %v1279 = vmul.f32 %v1151, 0.3275911
        %v1280 = vmul.f32 %v1152, 0.3275911
        %v1281 = vmul.f32 %v1153, 0.3275911
        %v1282 = vmul.f32 %v1154, 0.3275911
        %v1283 = vmul.f32 %v1155, 0.3275911
        %v1284 = vmul.f32 %v1156, 0.3275911
        %v1285 = vmul.f32 %v1157, 0.3275911
        %v1286 = vmul.f32 %v1158, 0.3275911
        %v1287 = vmul.f32 %v1159, 0.3275911
        %v1288 = vmul.f32 %v1160, 0.3275911
        %v1289 = vmul.f32 %v1161, 0.3275911
        %v1290 = vmul.f32 %v1162, 0.3275911
        %v1291 = vmul.f32 %v1163, 0.3275911
        %v1292 = vmul.f32 %v1164, 0.3275911
        %v1293 = vmul.f32 %v1165, 0.3275911
        %v1294 = vmul.f32 %v1166, 0.3275911
        %v1295 = vmul.f32 %v1167, 0.3275911
        %v1296 = vmul.f32 %v1168, 0.3275911
        %v1297 = vmul.f32 %v1169, 0.3275911
        %v1298 = vmul.f32 %v1170, 0.3275911
        %v1299 = vmul.f32 %v1171, 0.3275911
        %v1300 = vmul.f32 %v1172, 0.3275911
        %v1301 = vmul.f32 %v1173, 0.3275911
        %v1302 = vmul.f32 %v1174, 0.3275911
        %v1303 = vmul.f32 %v1175, 0.3275911
        %v1304 = vmul.f32 %v1176, 0.3275911
        %v1305 = vmul.f32 %v1177, 0.3275911
        %v1306 = vmul.f32 %v1178, 0.3275911
        %v1307 = vmul.f32 %v1179, 0.3275911
        %v1308 = vmul.f32 %v1180, 0.3275911
        %v1309 = vmul.f32 %v1181, 0.3275911
        %v1310 = vmul.f32 %v1182, 0.3275911
        %v1311 = vmul.f32 %v1183, 0.3275911
        %v1312 = vmul.f32 %v1184, 0.3275911
        %v1313 = vmul.f32 %v1185, 0.3275911
        %v1314 = vmul.f32 %v1186, 0.3275911
        %v1315 = vmul.f32 %v1187, 0.3275911
        %v1316 = vmul.f32 %v1188, 0.3275911
        %v1317 = vmul.f32 %v1189, 0.3275911
        %v1318 = vmul.f32 %v1190, 0.3275911
        %v1319 = vmul.f32 %v1191, 0.3275911
        %v1320 = vmul.f32 %v1192, 0.3275911
        %v1321 = vmul.f32 %v1193, 0.3275911
        %v1322 = vmul.f32 %v1194, 0.3275911
        %v1323 = vmul.f32 %v1195, 0.3275911
        %v1324 = vmul.f32 %v1196, 0.3275911
        %v1325 = vmul.f32 %v1197, 0.3275911
        %v1326 = vmul.f32 %v1198, 0.3275911
        %v1327 = vmul.f32 %v1199, 0.3275911
        %v1328 = vmul.f32 %v1200, 0.3275911
        %v1329 = vmul.f32 %v1201, 0.3275911
        %v1330 = vmul.f32 %v1202, 0.3275911
        %v1331 = vmul.f32 %v1203, 0.3275911
        %v1332 = vmul.f32 %v1204, 0.3275911
        %v1333 = vmul.f32 %v1205, 0.3275911
        %v1334 = vmul.f32 %v1206, 0.3275911
        %v1335 = vmul.f32 %v1207, 0.3275911
        %v1336 = vmul.f32 %v1208, 0.3275911
        %v1337 = vmul.f32 %v1209, 0.3275911
        %v1338 = vmul.f32 %v1210, 0.3275911
        %v1339 = vmul.f32 %v1211, 0.3275911
        %v1340 = vmul.f32 %v1212, 0.3275911
        %v1341 = vmul.f32 %v1213, 0.3275911
        %v1342 = vmul.f32 %v1214, 0.3275911
        %v1343 = vmul.f32 %v1215, 0.3275911
        %v1344 = vmul.f32 %v1216, 0.3275911
        %v1345 = vmul.f32 %v1217, 0.3275911
        %v1346 = vmul.f32 %v1218, 0.3275911
        %v1347 = vmul.f32 %v1219, 0.3275911
        %v1348 = vmul.f32 %v1220, 0.3275911
        %v1349 = vmul.f32 %v1221, 0.3275911
        %v1350 = vmul.f32 %v1222, 0.3275911
        %v1351 = vmul.f32 %v1223, 0.3275911
        %v1352 = vmul.f32 %v1224, 0.3275911
        %v1353 = vmul.f32 %v1225, 0.3275911
        %v1354 = vmul.f32 %v1226, 0.3275911
        %v1355 = vmul.f32 %v1227, 0.3275911
        %v1356 = vmul.f32 %v1228, 0.3275911
        %v1357 = vmul.f32 %v1229, 0.3275911
        %v1358 = vmul.f32 %v1230, 0.3275911
        %v1359 = vmul.f32 %v1231, 0.3275911
        %v1360 = vmul.f32 %v1232, 0.3275911
        %v1361 = vmul.f32 %v1233, 0.3275911
        %v1362 = vmul.f32 %v1234, 0.3275911
        %v1363 = vmul.f32 %v1235, 0.3275911
        %v1364 = vmul.f32 %v1236, 0.3275911
        %v1365 = vmul.f32 %v1237, 0.3275911
        %v1366 = vmul.f32 %v1238, 0.3275911
        %v1367 = vmul.f32 %v1239, 0.3275911
        %v1368 = vmul.f32 %v1240, 0.3275911
        %v1369 = vmul.f32 %v1241, 0.3275911
        %v1370 = vmul.f32 %v1242, 0.3275911
        %v1371 = vmul.f32 %v1243, 0.3275911
        %v1372 = vmul.f32 %v1244, 0.3275911
        %v1373 = vmul.f32 %v1245, 0.3275911
        %v1374 = vmul.f32 %v1246, 0.3275911
        %v1375 = vmul.f32 %v1247, 0.3275911
        %v1376 = vmul.f32 %v1248, 0.3275911
        %v1377 = vmul.f32 %v1249, 0.3275911
        %v1378 = vmul.f32 %v1250, 0.3275911
        %v1379 = vadd.f32 %v1251, 1.0
        %v1380 = vadd.f32 %v1252, 1.0
        %v1381 = vadd.f32 %v1253, 1.0
        %v1382 = vadd.f32 %v1254, 1.0
        %v1383 = vadd.f32 %v1255, 1.0
        %v1384 = vadd.f32 %v1256, 1.0
        %v1385 = vadd.f32 %v1257, 1.0
        %v1386 = vadd.f32 %v1258, 1.0
        %v1387 = vadd.f32 %v1259, 1.0
        %v1388 = vadd.f32 %v1260, 1.0
        %v1389 = vadd.f32 %v1261, 1.0
        %v1390 = vadd.f32 %v1262, 1.0
        %v1391 = vadd.f32 %v1263, 1.0
        %v1392 = vadd.f32 %v1264, 1.0
        %v1393 = vadd.f32 %v1265, 1.0
        %v1394 = vadd.f32 %v1266, 1.0
        %v1395 = vadd.f32 %v1267, 1.0
        %v1396 = vadd.f32 %v1268, 1.0
        %v1397 = vadd.f32 %v1269, 1.0
        %v1398 = vadd.f32 %v1270, 1.0
        %v1399 = vadd.f32 %v1271, 1.0
        %v1400 = vadd.f32 %v1272, 1.0
        %v1401 = vadd.f32 %v1273, 1.0
        %v1402 = vadd.f32 %v1274, 1.0
        %v1403 = vadd.f32 %v1275, 1.0
        %v1404 = vadd.f32 %v1276, 1.0
        %v1405 = vadd.f32 %v1277, 1.0
        %v1406 = vadd.f32 %v1278, 1.0
        %v1407 = vadd.f32 %v1279, 1.0
        %v1408 = vadd.f32 %v1280, 1.0
        %v1409 = vadd.f32 %v1281, 1.0
        %v1410 = vadd.f32 %v1282, 1.0
        %v1411 = vadd.f32 %v1283, 1.0
        %v1412 = vadd.f32 %v1284, 1.0
        %v1413 = vadd.f32 %v1285, 1.0
        %v1414 = vadd.f32 %v1286, 1.0
        %v1415 = vadd.f32 %v1287, 1.0
        %v1416 = vadd.f32 %v1288, 1.0
        %v1417 = vadd.f32 %v1289, 1.0
        %v1418 = vadd.f32 %v1290, 1.0
        %v1419 = vadd.f32 %v1291, 1.0
        %v1420 = vadd.f32 %v1292, 1.0
        %v1421 = vadd.f32 %v1293, 1.0
        %v1422 = vadd.f32 %v1294, 1.0
        %v1423 = vadd.f32 %v1295, 1.0
        %v1424 = vadd.f32 %v1296, 1.0
        %v1425 = vadd.f32 %v1297, 1.0
        %v1426 = vadd.f32 %v1298, 1.0
        %v1427 = vadd.f32 %v1299, 1.0
        %v1428 = vadd.f32 %v1300, 1.0
        %v1429 = vadd.f32 %v1301, 1.0
        %v1430 = vadd.f32 %v1302, 1.0
        %v1431 = vadd.f32 %v1303, 1.0
        %v1432 = vadd.f32 %v1304, 1.0
        %v1433 = vadd.f32 %v1305, 1.0
        %v1434 = vadd.f32 %v1306, 1.0
        %v1435 = vadd.f32 %v1307, 1.0
        %v1436 = vadd.f32 %v1308, 1.0
        %v1437 = vadd.f32 %v1309, 1.0
        %v1438 = vadd.f32 %v1310, 1.0
        %v1439 = vadd.f32 %v1311, 1.0
        %v1440 = vadd.f32 %v1312, 1.0
        %v1441 = vadd.f32 %v1313, 1.0
        %v1442 = vadd.f32 %v1314, 1.0
        %v1443 = vadd.f32 %v1315, 1.0
        %v1444 = vadd.f32 %v1316, 1.0
        %v1445 = vadd.f32 %v1317, 1.0
        %v1446 = vadd.f32 %v1318, 1.0
        %v1447 = vadd.f32 %v1319, 1.0
        %v1448 = vadd.f32 %v1320, 1.0
        %v1449 = vadd.f32 %v1321, 1.0
        %v1450 = vadd.f32 %v1322, 1.0
        %v1451 = vadd.f32 %v1323, 1.0
        %v1452 = vadd.f32 %v1324, 1.0
        %v1453 = vadd.f32 %v1325, 1.0
        %v1454 = vadd.f32 %v1326, 1.0
        %v1455 = vadd.f32 %v1327, 1.0
        %v1456 = vadd.f32 %v1328, 1.0
        %v1457 = vadd.f32 %v1329, 1.0
        %v1458 = vadd.f32 %v1330, 1.0
        %v1459 = vadd.f32 %v1331, 1.0
        %v1460 = vadd.f32 %v1332, 1.0
        %v1461 = vadd.f32 %v1333, 1.0
        %v1462 = vadd.f32 %v1334, 1.0
        %v1463 = vadd.f32 %v1335, 1.0
        %v1464 = vadd.f32 %v1336, 1.0
        %v1465 = vadd.f32 %v1337, 1.0
        %v1466 = vadd.f32 %v1338, 1.0
        %v1467 = vadd.f32 %v1339, 1.0
        %v1468 = vadd.f32 %v1340, 1.0
        %v1469 = vadd.f32 %v1341, 1.0
        %v1470 = vadd.f32 %v1342, 1.0
        %v1471 = vadd.f32 %v1343, 1.0
        %v1472 = vadd.f32 %v1344, 1.0
        %v1473 = vadd.f32 %v1345, 1.0
        %v1474 = vadd.f32 %v1346, 1.0
        %v1475 = vadd.f32 %v1347, 1.0
        %v1476 = vadd.f32 %v1348, 1.0
        %v1477 = vadd.f32 %v1349, 1.0
        %v1478 = vadd.f32 %v1350, 1.0
        %v1479 = vadd.f32 %v1351, 1.0
        %v1480 = vadd.f32 %v1352, 1.0
        %v1481 = vadd.f32 %v1353, 1.0
        %v1482 = vadd.f32 %v1354, 1.0
        %v1483 = vadd.f32 %v1355, 1.0
        %v1484 = vadd.f32 %v1356, 1.0
        %v1485 = vadd.f32 %v1357, 1.0
        %v1486 = vadd.f32 %v1358, 1.0
        %v1487 = vadd.f32 %v1359, 1.0
        %v1488 = vadd.f32 %v1360, 1.0
        %v1489 = vadd.f32 %v1361, 1.0
        %v1490 = vadd.f32 %v1362, 1.0
        %v1491 = vadd.f32 %v1363, 1.0
        %v1492 = vadd.f32 %v1364, 1.0
        %v1493 = vadd.f32 %v1365, 1.0
        %v1494 = vadd.f32 %v1366, 1.0
        %v1495 = vadd.f32 %v1367, 1.0
        %v1496 = vadd.f32 %v1368, 1.0
        %v1497 = vadd.f32 %v1369, 1.0
        %v1498 = vadd.f32 %v1370, 1.0
        %v1499 = vadd.f32 %v1371, 1.0
        %v1500 = vadd.f32 %v1372, 1.0
        %v1501 = vadd.f32 %v1373, 1.0
        %v1502 = vadd.f32 %v1374, 1.0
        %v1503 = vadd.f32 %v1375, 1.0
        %v1504 = vadd.f32 %v1376, 1.0
        %v1505 = vadd.f32 %v1377, 1.0
        %v1506 = vadd.f32 %v1378, 1.0
        %v1507 = vrcp.pop %v1379
        %v1508 = vmul.f32 1.0, %v1507
        %v1509 = vrcp.pop %v1380
        %v1510 = vmul.f32 1.0, %v1509
        %v1511 = vrcp.pop %v1381
        %v1512 = vmul.f32 1.0, %v1511
        %v1513 = vrcp.pop %v1382
        %v1514 = vmul.f32 1.0, %v1513
        %v1515 = vrcp.pop %v1383
        %v1516 = vmul.f32 1.0, %v1515
        %v1517 = vrcp.pop %v1384
        %v1518 = vmul.f32 1.0, %v1517
        %v1519 = vrcp.pop %v1385
        %v1520 = vmul.f32 1.0, %v1519
        %v1521 = vrcp.pop %v1386
        %v1522 = vmul.f32 1.0, %v1521
        %v1523 = vrcp.pop %v1387
        %v1524 = vmul.f32 1.0, %v1523
        %v1525 = vrcp.pop %v1388
        %v1526 = vmul.f32 1.0, %v1525
        %v1527 = vrcp.pop %v1389
        %v1528 = vmul.f32 1.0, %v1527
        %v1529 = vrcp.pop %v1390
        %v1530 = vmul.f32 1.0, %v1529
        %v1531 = vrcp.pop %v1391
        %v1532 = vmul.f32 1.0, %v1531
        %v1533 = vrcp.pop %v1392
        %v1534 = vmul.f32 1.0, %v1533
        %v1535 = vrcp.pop %v1393
        %v1536 = vmul.f32 1.0, %v1535
        %v1537 = vrcp.pop %v1394
        %v1538 = vmul.f32 1.0, %v1537
        %v1539 = vrcp.pop %v1395
        %v1540 = vmul.f32 1.0, %v1539
        %v1541 = vrcp.pop %v1396
        %v1542 = vmul.f32 1.0, %v1541
        %v1543 = vrcp.pop %v1397
        %v1544 = vmul.f32 1.0, %v1543
        %v1545 = vrcp.pop %v1398
        %v1546 = vmul.f32 1.0, %v1545
        %v1547 = vrcp.pop %v1399
        %v1548 = vmul.f32 1.0, %v1547
        %v1549 = vrcp.pop %v1400
        %v1550 = vmul.f32 1.0, %v1549
        %v1551 = vrcp.pop %v1401
        %v1552 = vmul.f32 1.0, %v1551
        %v1553 = vrcp.pop %v1402
        %v1554 = vmul.f32 1.0, %v1553
        %v1555 = vrcp.pop %v1403
        %v1556 = vmul.f32 1.0, %v1555
        %v1557 = vrcp.pop %v1404
        %v1558 = vmul.f32 1.0, %v1557
        %v1559 = vrcp.pop %v1405
        %v1560 = vmul.f32 1.0, %v1559
        %v1561 = vrcp.pop %v1406
        %v1562 = vmul.f32 1.0, %v1561
        %v1563 = vrcp.pop %v1407
        %v1564 = vmul.f32 1.0, %v1563
        %v1565 = vrcp.pop %v1408
        %v1566 = vmul.f32 1.0, %v1565
        %v1567 = vrcp.pop %v1409
        %v1568 = vmul.f32 1.0, %v1567
        %v1569 = vrcp.pop %v1410
        %v1570 = vmul.f32 1.0, %v1569
        %v1571 = vrcp.pop %v1411
        %v1572 = vmul.f32 1.0, %v1571
        %v1573 = vrcp.pop %v1412
        %v1574 = vmul.f32 1.0, %v1573
        %v1575 = vrcp.pop %v1413
        %v1576 = vmul.f32 1.0, %v1575
        %v1577 = vrcp.pop %v1414
        %v1578 = vmul.f32 1.0, %v1577
        %v1579 = vrcp.pop %v1415
        %v1580 = vmul.f32 1.0, %v1579
        %v1581 = vrcp.pop %v1416
        %v1582 = vmul.f32 1.0, %v1581
        %v1583 = vrcp.pop %v1417
        %v1584 = vmul.f32 1.0, %v1583
        %v1585 = vrcp.pop %v1418
        %v1586 = vmul.f32 1.0, %v1585
        %v1587 = vrcp.pop %v1419
        %v1588 = vmul.f32 1.0, %v1587
        %v1589 = vrcp.pop %v1420
        %v1590 = vmul.f32 1.0, %v1589
        %v1591 = vrcp.pop %v1421
        %v1592 = vmul.f32 1.0, %v1591
        %v1593 = vrcp.pop %v1422
        %v1594 = vmul.f32 1.0, %v1593
        %v1595 = vrcp.pop %v1423
        %v1596 = vmul.f32 1.0, %v1595
        %v1597 = vrcp.pop %v1424
        %v1598 = vmul.f32 1.0, %v1597
        %v1599 = vrcp.pop %v1425
        %v1600 = vmul.f32 1.0, %v1599
        %v1601 = vrcp.pop %v1426
        %v1602 = vmul.f32 1.0, %v1601
        %v1603 = vrcp.pop %v1427
        %v1604 = vmul.f32 1.0, %v1603
        %v1605 = vrcp.pop %v1428
        %v1606 = vmul.f32 1.0, %v1605
        %v1607 = vrcp.pop %v1429
        %v1608 = vmul.f32 1.0, %v1607
        %v1609 = vrcp.pop %v1430
        %v1610 = vmul.f32 1.0, %v1609
        %v1611 = vrcp.pop %v1431
        %v1612 = vmul.f32 1.0, %v1611
        %v1613 = vrcp.pop %v1432
        %v1614 = vmul.f32 1.0, %v1613
        %v1615 = vrcp.pop %v1433
        %v1616 = vmul.f32 1.0, %v1615
        %v1617 = vrcp.pop %v1434
        %v1618 = vmul.f32 1.0, %v1617
        %v1619 = vrcp.pop %v1435
        %v1620 = vmul.f32 1.0, %v1619
        %v1621 = vrcp.pop %v1436
        %v1622 = vmul.f32 1.0, %v1621
        %v1623 = vrcp.pop %v1437
        %v1624 = vmul.f32 1.0, %v1623
        %v1625 = vrcp.pop %v1438
        %v1626 = vmul.f32 1.0, %v1625
        %v1627 = vrcp.pop %v1439
        %v1628 = vmul.f32 1.0, %v1627
        %v1629 = vrcp.pop %v1440
        %v1630 = vmul.f32 1.0, %v1629
        %v1631 = vrcp.pop %v1441
        %v1632 = vmul.f32 1.0, %v1631
        %v1633 = vrcp.pop %v1442
        %v1634 = vmul.f32 1.0, %v1633
        %v1635 = vrcp.pop %v1443
        %v1636 = vmul.f32 1.0, %v1635
        %v1637 = vrcp.pop %v1444
        %v1638 = vmul.f32 1.0, %v1637
        %v1639 = vrcp.pop %v1445
        %v1640 = vmul.f32 1.0, %v1639
        %v1641 = vrcp.pop %v1446
        %v1642 = vmul.f32 1.0, %v1641
        %v1643 = vrcp.pop %v1447
        %v1644 = vmul.f32 1.0, %v1643
        %v1645 = vrcp.pop %v1448
        %v1646 = vmul.f32 1.0, %v1645
        %v1647 = vrcp.pop %v1449
        %v1648 = vmul.f32 1.0, %v1647
        %v1649 = vrcp.pop %v1450
        %v1650 = vmul.f32 1.0, %v1649
        %v1651 = vrcp.pop %v1451
        %v1652 = vmul.f32 1.0, %v1651
        %v1653 = vrcp.pop %v1452
        %v1654 = vmul.f32 1.0, %v1653
        %v1655 = vrcp.pop %v1453
        %v1656 = vmul.f32 1.0, %v1655
        %v1657 = vrcp.pop %v1454
        %v1658 = vmul.f32 1.0, %v1657
        %v1659 = vrcp.pop %v1455
        %v1660 = vmul.f32 1.0, %v1659
        %v1661 = vrcp.pop %v1456
        %v1662 = vmul.f32 1.0, %v1661
        %v1663 = vrcp.pop %v1457
        %v1664 = vmul.f32 1.0, %v1663
        %v1665 = vrcp.pop %v1458
        %v1666 = vmul.f32 1.0, %v1665
        %v1667 = vrcp.pop %v1459
        %v1668 = vmul.f32 1.0, %v1667
        %v1669 = vrcp.pop %v1460
        %v1670 = vmul.f32 1.0, %v1669
        %v1671 = vrcp.pop %v1461
        %v1672 = vmul.f32 1.0, %v1671
        %v1673 = vrcp.pop %v1462
        %v1674 = vmul.f32 1.0, %v1673
        %v1675 = vrcp.pop %v1463
        %v1676 = vmul.f32 1.0, %v1675
        %v1677 = vrcp.pop %v1464
        %v1678 = vmul.f32 1.0, %v1677
        %v1679 = vrcp.pop %v1465
        %v1680 = vmul.f32 1.0, %v1679
        %v1681 = vrcp.pop %v1466
        %v1682 = vmul.f32 1.0, %v1681
        %v1683 = vrcp.pop %v1467
        %v1684 = vmul.f32 1.0, %v1683
        %v1685 = vrcp.pop %v1468
        %v1686 = vmul.f32 1.0, %v1685
        %v1687 = vrcp.pop %v1469
        %v1688 = vmul.f32 1.0, %v1687
        %v1689 = vrcp.pop %v1470
        %v1690 = vmul.f32 1.0, %v1689
        %v1691 = vrcp.pop %v1471
        %v1692 = vmul.f32 1.0, %v1691
        %v1693 = vrcp.pop %v1472
        %v1694 = vmul.f32 1.0, %v1693
        %v1695 = vrcp.pop %v1473
        %v1696 = vmul.f32 1.0, %v1695
        %v1697 = vrcp.pop %v1474
        %v1698 = vmul.f32 1.0, %v1697
        %v1699 = vrcp.pop %v1475
        %v1700 = vmul.f32 1.0, %v1699
        %v1701 = vrcp.pop %v1476
        %v1702 = vmul.f32 1.0, %v1701
        %v1703 = vrcp.pop %v1477
        %v1704 = vmul.f32 1.0, %v1703
        %v1705 = vrcp.pop %v1478
        %v1706 = vmul.f32 1.0, %v1705
        %v1707 = vrcp.pop %v1479
        %v1708 = vmul.f32 1.0, %v1707
        %v1709 = vrcp.pop %v1480
        %v1710 = vmul.f32 1.0, %v1709
        %v1711 = vrcp.pop %v1481
        %v1712 = vmul.f32 1.0, %v1711
        %v1713 = vrcp.pop %v1482
        %v1714 = vmul.f32 1.0, %v1713
        %v1715 = vrcp.pop %v1483
        %v1716 = vmul.f32 1.0, %v1715
        %v1717 = vrcp.pop %v1484
        %v1718 = vmul.f32 1.0, %v1717
        %v1719 = vrcp.pop %v1485
        %v1720 = vmul.f32 1.0, %v1719
        %v1721 = vrcp.pop %v1486
        %v1722 = vmul.f32 1.0, %v1721
        %v1723 = vrcp.pop %v1487
        %v1724 = vmul.f32 1.0, %v1723
        %v1725 = vrcp.pop %v1488
        %v1726 = vmul.f32 1.0, %v1725
        %v1727 = vrcp.pop %v1489
        %v1728 = vmul.f32 1.0, %v1727
        %v1729 = vrcp.pop %v1490
        %v1730 = vmul.f32 1.0, %v1729
        %v1731 = vrcp.pop %v1491
        %v1732 = vmul.f32 1.0, %v1731
        %v1733 = vrcp.pop %v1492
        %v1734 = vmul.f32 1.0, %v1733
        %v1735 = vrcp.pop %v1493
        %v1736 = vmul.f32 1.0, %v1735
        %v1737 = vrcp.pop %v1494
        %v1738 = vmul.f32 1.0, %v1737
        %v1739 = vrcp.pop %v1495
        %v1740 = vmul.f32 1.0, %v1739
        %v1741 = vrcp.pop %v1496
        %v1742 = vmul.f32 1.0, %v1741
        %v1743 = vrcp.pop %v1497
        %v1744 = vmul.f32 1.0, %v1743
        %v1745 = vrcp.pop %v1498
        %v1746 = vmul.f32 1.0, %v1745
        %v1747 = vrcp.pop %v1499
        %v1748 = vmul.f32 1.0, %v1747
        %v1749 = vrcp.pop %v1500
        %v1750 = vmul.f32 1.0, %v1749
        %v1751 = vrcp.pop %v1501
        %v1752 = vmul.f32 1.0, %v1751
        %v1753 = vrcp.pop %v1502
        %v1754 = vmul.f32 1.0, %v1753
        %v1755 = vrcp.pop %v1503
        %v1756 = vmul.f32 1.0, %v1755
        %v1757 = vrcp.pop %v1504
        %v1758 = vmul.f32 1.0, %v1757
        %v1759 = vrcp.pop %v1505
        %v1760 = vmul.f32 1.0, %v1759
        %v1761 = vrcp.pop %v1506
        %v1762 = vmul.f32 1.0, %v1761
        %v1763 = vmul.f32 %v1508, 1.0614054
        %v1764 = vmul.f32 %v1510, 1.0614054
        %v1765 = vmul.f32 %v1512, 1.0614054
        %v1766 = vmul.f32 %v1514, 1.0614054
        %v1767 = vmul.f32 %v1516, 1.0614054
        %v1768 = vmul.f32 %v1518, 1.0614054
        %v1769 = vmul.f32 %v1520, 1.0614054
        %v1770 = vmul.f32 %v1522, 1.0614054
        %v1771 = vmul.f32 %v1524, 1.0614054
        %v1772 = vmul.f32 %v1526, 1.0614054
        %v1773 = vmul.f32 %v1528, 1.0614054
        %v1774 = vmul.f32 %v1530, 1.0614054
        %v1775 = vmul.f32 %v1532, 1.0614054
        %v1776 = vmul.f32 %v1534, 1.0614054
        %v1777 = vmul.f32 %v1536, 1.0614054
        %v1778 = vmul.f32 %v1538, 1.0614054
        %v1779 = vmul.f32 %v1540, 1.0614054
        %v1780 = vmul.f32 %v1542, 1.0614054
        %v1781 = vmul.f32 %v1544, 1.0614054
        %v1782 = vmul.f32 %v1546, 1.0614054
        %v1783 = vmul.f32 %v1548, 1.0614054
        %v1784 = vmul.f32 %v1550, 1.0614054
        %v1785 = vmul.f32 %v1552, 1.0614054
        %v1786 = vmul.f32 %v1554, 1.0614054
        %v1787 = vmul.f32 %v1556, 1.0614054
        %v1788 = vmul.f32 %v1558, 1.0614054
        %v1789 = vmul.f32 %v1560, 1.0614054
        %v1790 = vmul.f32 %v1562, 1.0614054
        %v1791 = vmul.f32 %v1564, 1.0614054
        %v1792 = vmul.f32 %v1566, 1.0614054
        %v1793 = vmul.f32 %v1568, 1.0614054
        %v1794 = vmul.f32 %v1570, 1.0614054
        %v1795 = vmul.f32 %v1572, 1.0614054
        %v1796 = vmul.f32 %v1574, 1.0614054
        %v1797 = vmul.f32 %v1576, 1.0614054
        %v1798 = vmul.f32 %v1578, 1.0614054
        %v1799 = vmul.f32 %v1580, 1.0614054
        %v1800 = vmul.f32 %v1582, 1.0614054
        %v1801 = vmul.f32 %v1584, 1.0614054
        %v1802 = vmul.f32 %v1586, 1.0614054
        %v1803 = vmul.f32 %v1588, 1.0614054
        %v1804 = vmul.f32 %v1590, 1.0614054
        %v1805 = vmul.f32 %v1592, 1.0614054
        %v1806 = vmul.f32 %v1594, 1.0614054
        %v1807 = vmul.f32 %v1596, 1.0614054
        %v1808 = vmul.f32 %v1598, 1.0614054
        %v1809 = vmul.f32 %v1600, 1.0614054
        %v1810 = vmul.f32 %v1602, 1.0614054
        %v1811 = vmul.f32 %v1604, 1.0614054
        %v1812 = vmul.f32 %v1606, 1.0614054
        %v1813 = vmul.f32 %v1608, 1.0614054
        %v1814 = vmul.f32 %v1610, 1.0614054
        %v1815 = vmul.f32 %v1612, 1.0614054
        %v1816 = vmul.f32 %v1614, 1.0614054
        %v1817 = vmul.f32 %v1616, 1.0614054
        %v1818 = vmul.f32 %v1618, 1.0614054
        %v1819 = vmul.f32 %v1620, 1.0614054
        %v1820 = vmul.f32 %v1622, 1.0614054
        %v1821 = vmul.f32 %v1624, 1.0614054
        %v1822 = vmul.f32 %v1626, 1.0614054
        %v1823 = vmul.f32 %v1628, 1.0614054
        %v1824 = vmul.f32 %v1630, 1.0614054
        %v1825 = vmul.f32 %v1632, 1.0614054
        %v1826 = vmul.f32 %v1634, 1.0614054
        %v1827 = vmul.f32 %v1636, 1.0614054
        %v1828 = vmul.f32 %v1638, 1.0614054
        %v1829 = vmul.f32 %v1640, 1.0614054
        %v1830 = vmul.f32 %v1642, 1.0614054
        %v1831 = vmul.f32 %v1644, 1.0614054
        %v1832 = vmul.f32 %v1646, 1.0614054
        %v1833 = vmul.f32 %v1648, 1.0614054
        %v1834 = vmul.f32 %v1650, 1.0614054
        %v1835 = vmul.f32 %v1652, 1.0614054
        %v1836 = vmul.f32 %v1654, 1.0614054
        %v1837 = vmul.f32 %v1656, 1.0614054
        %v1838 = vmul.f32 %v1658, 1.0614054
        %v1839 = vmul.f32 %v1660, 1.0614054
        %v1840 = vmul.f32 %v1662, 1.0614054
        %v1841 = vmul.f32 %v1664, 1.0614054
        %v1842 = vmul.f32 %v1666, 1.0614054
        %v1843 = vmul.f32 %v1668, 1.0614054
        %v1844 = vmul.f32 %v1670, 1.0614054
        %v1845 = vmul.f32 %v1672, 1.0614054
        %v1846 = vmul.f32 %v1674, 1.0614054
        %v1847 = vmul.f32 %v1676, 1.0614054
        %v1848 = vmul.f32 %v1678, 1.0614054
        %v1849 = vmul.f32 %v1680, 1.0614054
        %v1850 = vmul.f32 %v1682, 1.0614054
        %v1851 = vmul.f32 %v1684, 1.0614054
        %v1852 = vmul.f32 %v1686, 1.0614054
        %v1853 = vmul.f32 %v1688, 1.0614054
        %v1854 = vmul.f32 %v1690, 1.0614054
        %v1855 = vmul.f32 %v1692, 1.0614054
        %v1856 = vmul.f32 %v1694, 1.0614054
        %v1857 = vmul.f32 %v1696, 1.0614054
        %v1858 = vmul.f32 %v1698, 1.0614054
        %v1859 = vmul.f32 %v1700, 1.0614054
        %v1860 = vmul.f32 %v1702, 1.0614054
        %v1861 = vmul.f32 %v1704, 1.0614054
        %v1862 = vmul.f32 %v1706, 1.0614054
        %v1863 = vmul.f32 %v1708, 1.0614054
        %v1864 = vmul.f32 %v1710, 1.0614054
        %v1865 = vmul.f32 %v1712, 1.0614054
        %v1866 = vmul.f32 %v1714, 1.0614054
        %v1867 = vmul.f32 %v1716, 1.0614054
        %v1868 = vmul.f32 %v1718, 1.0614054
        %v1869 = vmul.f32 %v1720, 1.0614054
        %v1870 = vmul.f32 %v1722, 1.0614054
        %v1871 = vmul.f32 %v1724, 1.0614054
        %v1872 = vmul.f32 %v1726, 1.0614054
        %v1873 = vmul.f32 %v1728, 1.0614054
        %v1874 = vmul.f32 %v1730, 1.0614054
        %v1875 = vmul.f32 %v1732, 1.0614054
        %v1876 = vmul.f32 %v1734, 1.0614054
        %v1877 = vmul.f32 %v1736, 1.0614054
        %v1878 = vmul.f32 %v1738, 1.0614054
        %v1879 = vmul.f32 %v1740, 1.0614054
        %v1880 = vmul.f32 %v1742, 1.0614054
        %v1881 = vmul.f32 %v1744, 1.0614054
        %v1882 = vmul.f32 %v1746, 1.0614054
        %v1883 = vmul.f32 %v1748, 1.0614054
        %v1884 = vmul.f32 %v1750, 1.0614054
        %v1885 = vmul.f32 %v1752, 1.0614054
        %v1886 = vmul.f32 %v1754, 1.0614054
        %v1887 = vmul.f32 %v1756, 1.0614054
        %v1888 = vmul.f32 %v1758, 1.0614054
        %v1889 = vmul.f32 %v1760, 1.0614054
        %v1890 = vmul.f32 %v1762, 1.0614054
        %v1891 = vadd.f32 %v1763, -1.4531521
        %v1892 = vadd.f32 %v1764, -1.4531521
        %v1893 = vadd.f32 %v1765, -1.4531521
        %v1894 = vadd.f32 %v1766, -1.4531521
        %v1895 = vadd.f32 %v1767, -1.4531521
        %v1896 = vadd.f32 %v1768, -1.4531521
        %v1897 = vadd.f32 %v1769, -1.4531521
        %v1898 = vadd.f32 %v1770, -1.4531521
        %v1899 = vadd.f32 %v1771, -1.4531521
        %v1900 = vadd.f32 %v1772, -1.4531521
        %v1901 = vadd.f32 %v1773, -1.4531521
        %v1902 = vadd.f32 %v1774, -1.4531521
        %v1903 = vadd.f32 %v1775, -1.4531521
        %v1904 = vadd.f32 %v1776, -1.4531521
        %v1905 = vadd.f32 %v1777, -1.4531521
        %v1906 = vadd.f32 %v1778, -1.4531521
        %v1907 = vadd.f32 %v1779, -1.4531521
        %v1908 = vadd.f32 %v1780, -1.4531521
        %v1909 = vadd.f32 %v1781, -1.4531521
        %v1910 = vadd.f32 %v1782, -1.4531521
        %v1911 = vadd.f32 %v1783, -1.4531521
        %v1912 = vadd.f32 %v1784, -1.4531521
        %v1913 = vadd.f32 %v1785, -1.4531521
        %v1914 = vadd.f32 %v1786, -1.4531521
        %v1915 = vadd.f32 %v1787, -1.4531521
        %v1916 = vadd.f32 %v1788, -1.4531521
        %v1917 = vadd.f32 %v1789, -1.4531521
        %v1918 = vadd.f32 %v1790, -1.4531521
        %v1919 = vadd.f32 %v1791, -1.4531521
        %v1920 = vadd.f32 %v1792, -1.4531521
        %v1921 = vadd.f32 %v1793, -1.4531521
        %v1922 = vadd.f32 %v1794, -1.4531521
        %v1923 = vadd.f32 %v1795, -1.4531521
        %v1924 = vadd.f32 %v1796, -1.4531521
        %v1925 = vadd.f32 %v1797, -1.4531521
        %v1926 = vadd.f32 %v1798, -1.4531521
        %v1927 = vadd.f32 %v1799, -1.4531521
        %v1928 = vadd.f32 %v1800, -1.4531521
        %v1929 = vadd.f32 %v1801, -1.4531521
        %v1930 = vadd.f32 %v1802, -1.4531521
        %v1931 = vadd.f32 %v1803, -1.4531521
        %v1932 = vadd.f32 %v1804, -1.4531521
        %v1933 = vadd.f32 %v1805, -1.4531521
        %v1934 = vadd.f32 %v1806, -1.4531521
        %v1935 = vadd.f32 %v1807, -1.4531521
        %v1936 = vadd.f32 %v1808, -1.4531521
        %v1937 = vadd.f32 %v1809, -1.4531521
        %v1938 = vadd.f32 %v1810, -1.4531521
        %v1939 = vadd.f32 %v1811, -1.4531521
        %v1940 = vadd.f32 %v1812, -1.4531521
        %v1941 = vadd.f32 %v1813, -1.4531521
        %v1942 = vadd.f32 %v1814, -1.4531521
        %v1943 = vadd.f32 %v1815, -1.4531521
        %v1944 = vadd.f32 %v1816, -1.4531521
        %v1945 = vadd.f32 %v1817, -1.4531521
        %v1946 = vadd.f32 %v1818, -1.4531521
        %v1947 = vadd.f32 %v1819, -1.4531521
        %v1948 = vadd.f32 %v1820, -1.4531521
        %v1949 = vadd.f32 %v1821, -1.4531521
        %v1950 = vadd.f32 %v1822, -1.4531521
        %v1951 = vadd.f32 %v1823, -1.4531521
        %v1952 = vadd.f32 %v1824, -1.4531521
        %v1953 = vadd.f32 %v1825, -1.4531521
        %v1954 = vadd.f32 %v1826, -1.4531521
        %v1955 = vadd.f32 %v1827, -1.4531521
        %v1956 = vadd.f32 %v1828, -1.4531521
        %v1957 = vadd.f32 %v1829, -1.4531521
        %v1958 = vadd.f32 %v1830, -1.4531521
        %v1959 = vadd.f32 %v1831, -1.4531521
        %v1960 = vadd.f32 %v1832, -1.4531521
        %v1961 = vadd.f32 %v1833, -1.4531521
        %v1962 = vadd.f32 %v1834, -1.4531521
        %v1963 = vadd.f32 %v1835, -1.4531521
        %v1964 = vadd.f32 %v1836, -1.4531521
        %v1965 = vadd.f32 %v1837, -1.4531521
        %v1966 = vadd.f32 %v1838, -1.4531521
        %v1967 = vadd.f32 %v1839, -1.4531521
        %v1968 = vadd.f32 %v1840, -1.4531521
        %v1969 = vadd.f32 %v1841, -1.4531521
        %v1970 = vadd.f32 %v1842, -1.4531521
        %v1971 = vadd.f32 %v1843, -1.4531521
        %v1972 = vadd.f32 %v1844, -1.4531521
        %v1973 = vadd.f32 %v1845, -1.4531521
        %v1974 = vadd.f32 %v1846, -1.4531521
        %v1975 = vadd.f32 %v1847, -1.4531521
        %v1976 = vadd.f32 %v1848, -1.4531521
        %v1977 = vadd.f32 %v1849, -1.4531521
        %v1978 = vadd.f32 %v1850, -1.4531521
        %v1979 = vadd.f32 %v1851, -1.4531521
        %v1980 = vadd.f32 %v1852, -1.4531521
        %v1981 = vadd.f32 %v1853, -1.4531521
        %v1982 = vadd.f32 %v1854, -1.4531521
        %v1983 = vadd.f32 %v1855, -1.4531521
        %v1984 = vadd.f32 %v1856, -1.4531521
        %v1985 = vadd.f32 %v1857, -1.4531521
        %v1986 = vadd.f32 %v1858, -1.4531521
        %v1987 = vadd.f32 %v1859, -1.4531521
        %v1988 = vadd.f32 %v1860, -1.4531521
        %v1989 = vadd.f32 %v1861, -1.4531521
        %v1990 = vadd.f32 %v1862, -1.4531521
        %v1991 = vadd.f32 %v1863, -1.4531521
        %v1992 = vadd.f32 %v1864, -1.4531521
        %v1993 = vadd.f32 %v1865, -1.4531521
        %v1994 = vadd.f32 %v1866, -1.4531521
        %v1995 = vadd.f32 %v1867, -1.4531521
        %v1996 = vadd.f32 %v1868, -1.4531521
        %v1997 = vadd.f32 %v1869, -1.4531521
        %v1998 = vadd.f32 %v1870, -1.4531521
        %v1999 = vadd.f32 %v1871, -1.4531521
        %v2000 = vadd.f32 %v1872, -1.4531521
        %v2001 = vadd.f32 %v1873, -1.4531521
        %v2002 = vadd.f32 %v1874, -1.4531521
        %v2003 = vadd.f32 %v1875, -1.4531521
        %v2004 = vadd.f32 %v1876, -1.4531521
        %v2005 = vadd.f32 %v1877, -1.4531521
        %v2006 = vadd.f32 %v1878, -1.4531521
        %v2007 = vadd.f32 %v1879, -1.4531521
        %v2008 = vadd.f32 %v1880, -1.4531521
        %v2009 = vadd.f32 %v1881, -1.4531521
        %v2010 = vadd.f32 %v1882, -1.4531521
        %v2011 = vadd.f32 %v1883, -1.4531521
        %v2012 = vadd.f32 %v1884, -1.4531521
        %v2013 = vadd.f32 %v1885, -1.4531521
        %v2014 = vadd.f32 %v1886, -1.4531521
        %v2015 = vadd.f32 %v1887, -1.4531521
        %v2016 = vadd.f32 %v1888, -1.4531521
        %v2017 = vadd.f32 %v1889, -1.4531521
        %v2018 = vadd.f32 %v1890, -1.4531521
        %v2019 = vmul.f32 %v1891, %v1508
        %v2020 = vmul.f32 %v1892, %v1510
        %v2021 = vmul.f32 %v1893, %v1512
        %v2022 = vmul.f32 %v1894, %v1514
        %v2023 = vmul.f32 %v1895, %v1516
        %v2024 = vmul.f32 %v1896, %v1518
        %v2025 = vmul.f32 %v1897, %v1520
        %v2026 = vmul.f32 %v1898, %v1522
        %v2027 = vmul.f32 %v1899, %v1524
        %v2028 = vmul.f32 %v1900, %v1526
        %v2029 = vmul.f32 %v1901, %v1528
        %v2030 = vmul.f32 %v1902, %v1530
        %v2031 = vmul.f32 %v1903, %v1532
        %v2032 = vmul.f32 %v1904, %v1534
        %v2033 = vmul.f32 %v1905, %v1536
        %v2034 = vmul.f32 %v1906, %v1538
        %v2035 = vmul.f32 %v1907, %v1540
        %v2036 = vmul.f32 %v1908, %v1542
        %v2037 = vmul.f32 %v1909, %v1544
        %v2038 = vmul.f32 %v1910, %v1546
        %v2039 = vmul.f32 %v1911, %v1548
        %v2040 = vmul.f32 %v1912, %v1550
        %v2041 = vmul.f32 %v1913, %v1552
        %v2042 = vmul.f32 %v1914, %v1554
        %v2043 = vmul.f32 %v1915, %v1556
        %v2044 = vmul.f32 %v1916, %v1558
        %v2045 = vmul.f32 %v1917, %v1560
        %v2046 = vmul.f32 %v1918, %v1562
        %v2047 = vmul.f32 %v1919, %v1564
        %v2048 = vmul.f32 %v1920, %v1566
        %v2049 = vmul.f32 %v1921, %v1568
        %v2050 = vmul.f32 %v1922, %v1570
        %v2051 = vmul.f32 %v1923, %v1572
        %v2052 = vmul.f32 %v1924, %v1574
        %v2053 = vmul.f32 %v1925, %v1576
        %v2054 = vmul.f32 %v1926, %v1578
        %v2055 = vmul.f32 %v1927, %v1580
        %v2056 = vmul.f32 %v1928, %v1582
        %v2057 = vmul.f32 %v1929, %v1584
        %v2058 = vmul.f32 %v1930, %v1586
        %v2059 = vmul.f32 %v1931, %v1588
        %v2060 = vmul.f32 %v1932, %v1590
        %v2061 = vmul.f32 %v1933, %v1592
        %v2062 = vmul.f32 %v1934, %v1594
        %v2063 = vmul.f32 %v1935, %v1596
        %v2064 = vmul.f32 %v1936, %v1598
        %v2065 = vmul.f32 %v1937, %v1600
        %v2066 = vmul.f32 %v1938, %v1602
        %v2067 = vmul.f32 %v1939, %v1604
        %v2068 = vmul.f32 %v1940, %v1606
        %v2069 = vmul.f32 %v1941, %v1608
        %v2070 = vmul.f32 %v1942, %v1610
        %v2071 = vmul.f32 %v1943, %v1612
        %v2072 = vmul.f32 %v1944, %v1614
        %v2073 = vmul.f32 %v1945, %v1616
        %v2074 = vmul.f32 %v1946, %v1618
        %v2075 = vmul.f32 %v1947, %v1620
        %v2076 = vmul.f32 %v1948, %v1622
        %v2077 = vmul.f32 %v1949, %v1624
        %v2078 = vmul.f32 %v1950, %v1626
        %v2079 = vmul.f32 %v1951, %v1628
        %v2080 = vmul.f32 %v1952, %v1630
        %v2081 = vmul.f32 %v1953, %v1632
        %v2082 = vmul.f32 %v1954, %v1634
        %v2083 = vmul.f32 %v1955, %v1636
        %v2084 = vmul.f32 %v1956, %v1638
        %v2085 = vmul.f32 %v1957, %v1640
        %v2086 = vmul.f32 %v1958, %v1642
        %v2087 = vmul.f32 %v1959, %v1644
        %v2088 = vmul.f32 %v1960, %v1646
        %v2089 = vmul.f32 %v1961, %v1648
        %v2090 = vmul.f32 %v1962, %v1650
        %v2091 = vmul.f32 %v1963, %v1652
        %v2092 = vmul.f32 %v1964, %v1654
        %v2093 = vmul.f32 %v1965, %v1656
        %v2094 = vmul.f32 %v1966, %v1658
        %v2095 = vmul.f32 %v1967, %v1660
        %v2096 = vmul.f32 %v1968, %v1662
        %v2097 = vmul.f32 %v1969, %v1664
        %v2098 = vmul.f32 %v1970, %v1666
        %v2099 = vmul.f32 %v1971, %v1668
        %v2100 = vmul.f32 %v1972, %v1670
        %v2101 = vmul.f32 %v1973, %v1672
        %v2102 = vmul.f32 %v1974, %v1674
        %v2103 = vmul.f32 %v1975, %v1676
        %v2104 = vmul.f32 %v1976, %v1678
        %v2105 = vmul.f32 %v1977, %v1680
        %v2106 = vmul.f32 %v1978, %v1682
        %v2107 = vmul.f32 %v1979, %v1684
        %v2108 = vmul.f32 %v1980, %v1686
        %v2109 = vmul.f32 %v1981, %v1688
        %v2110 = vmul.f32 %v1982, %v1690
        %v2111 = vmul.f32 %v1983, %v1692
        %v2112 = vmul.f32 %v1984, %v1694
        %v2113 = vmul.f32 %v1985, %v1696
        %v2114 = vmul.f32 %v1986, %v1698
        %v2115 = vmul.f32 %v1987, %v1700
        %v2116 = vmul.f32 %v1988, %v1702
        %v2117 = vmul.f32 %v1989, %v1704
        %v2118 = vmul.f32 %v1990, %v1706
        %v2119 = vmul.f32 %v1991, %v1708
        %v2120 = vmul.f32 %v1992, %v1710
        %v2121 = vmul.f32 %v1993, %v1712
        %v2122 = vmul.f32 %v1994, %v1714
        %v2123 = vmul.f32 %v1995, %v1716
        %v2124 = vmul.f32 %v1996, %v1718
        %v2125 = vmul.f32 %v1997, %v1720
        %v2126 = vmul.f32 %v1998, %v1722
        %v2127 = vmul.f32 %v1999, %v1724
        %v2128 = vmul.f32 %v2000, %v1726
        %v2129 = vmul.f32 %v2001, %v1728
        %v2130 = vmul.f32 %v2002, %v1730
        %v2131 = vmul.f32 %v2003, %v1732
        %v2132 = vmul.f32 %v2004, %v1734
        %v2133 = vmul.f32 %v2005, %v1736
        %v2134 = vmul.f32 %v2006, %v1738
        %v2135 = vmul.f32 %v2007, %v1740
        %v2136 = vmul.f32 %v2008, %v1742
        %v2137 = vmul.f32 %v2009, %v1744
        %v2138 = vmul.f32 %v2010, %v1746
        %v2139 = vmul.f32 %v2011, %v1748
        %v2140 = vmul.f32 %v2012, %v1750
        %v2141 = vmul.f32 %v2013, %v1752
        %v2142 = vmul.f32 %v2014, %v1754
        %v2143 = vmul.f32 %v2015, %v1756
        %v2144 = vmul.f32 %v2016, %v1758
        %v2145 = vmul.f32 %v2017, %v1760
        %v2146 = vmul.f32 %v2018, %v1762
        %v2147 = vadd.f32 %v2019, 1.4214138
        %v2148 = vadd.f32 %v2020, 1.4214138
        %v2149 = vadd.f32 %v2021, 1.4214138
        %v2150 = vadd.f32 %v2022, 1.4214138
        %v2151 = vadd.f32 %v2023, 1.4214138
        %v2152 = vadd.f32 %v2024, 1.4214138
        %v2153 = vadd.f32 %v2025, 1.4214138
        %v2154 = vadd.f32 %v2026, 1.4214138
        %v2155 = vadd.f32 %v2027, 1.4214138
        %v2156 = vadd.f32 %v2028, 1.4214138
        %v2157 = vadd.f32 %v2029, 1.4214138
        %v2158 = vadd.f32 %v2030, 1.4214138
        %v2159 = vadd.f32 %v2031, 1.4214138
        %v2160 = vadd.f32 %v2032, 1.4214138
        %v2161 = vadd.f32 %v2033, 1.4214138
        %v2162 = vadd.f32 %v2034, 1.4214138
        %v2163 = vadd.f32 %v2035, 1.4214138
        %v2164 = vadd.f32 %v2036, 1.4214138
        %v2165 = vadd.f32 %v2037, 1.4214138
        %v2166 = vadd.f32 %v2038, 1.4214138
        %v2167 = vadd.f32 %v2039, 1.4214138
        %v2168 = vadd.f32 %v2040, 1.4214138
        %v2169 = vadd.f32 %v2041, 1.4214138
        %v2170 = vadd.f32 %v2042, 1.4214138
        %v2171 = vadd.f32 %v2043, 1.4214138
        %v2172 = vadd.f32 %v2044, 1.4214138
        %v2173 = vadd.f32 %v2045, 1.4214138
        %v2174 = vadd.f32 %v2046, 1.4214138
        %v2175 = vadd.f32 %v2047, 1.4214138
        %v2176 = vadd.f32 %v2048, 1.4214138
        %v2177 = vadd.f32 %v2049, 1.4214138
        %v2178 = vadd.f32 %v2050, 1.4214138
        %v2179 = vadd.f32 %v2051, 1.4214138
        %v2180 = vadd.f32 %v2052, 1.4214138
        %v2181 = vadd.f32 %v2053, 1.4214138
        %v2182 = vadd.f32 %v2054, 1.4214138
        %v2183 = vadd.f32 %v2055, 1.4214138
        %v2184 = vadd.f32 %v2056, 1.4214138
        %v2185 = vadd.f32 %v2057, 1.4214138
        %v2186 = vadd.f32 %v2058, 1.4214138
        %v2187 = vadd.f32 %v2059, 1.4214138
        %v2188 = vadd.f32 %v2060, 1.4214138
        %v2189 = vadd.f32 %v2061, 1.4214138
        %v2190 = vadd.f32 %v2062, 1.4214138
        %v2191 = vadd.f32 %v2063, 1.4214138
        %v2192 = vadd.f32 %v2064, 1.4214138
        %v2193 = vadd.f32 %v2065, 1.4214138
        %v2194 = vadd.f32 %v2066, 1.4214138
        %v2195 = vadd.f32 %v2067, 1.4214138
        %v2196 = vadd.f32 %v2068, 1.4214138
        %v2197 = vadd.f32 %v2069, 1.4214138
        %v2198 = vadd.f32 %v2070, 1.4214138
        %v2199 = vadd.f32 %v2071, 1.4214138
        %v2200 = vadd.f32 %v2072, 1.4214138
        %v2201 = vadd.f32 %v2073, 1.4214138
        %v2202 = vadd.f32 %v2074, 1.4214138
        %v2203 = vadd.f32 %v2075, 1.4214138
        %v2204 = vadd.f32 %v2076, 1.4214138
        %v2205 = vadd.f32 %v2077, 1.4214138
        %v2206 = vadd.f32 %v2078, 1.4214138
        %v2207 = vadd.f32 %v2079, 1.4214138
        %v2208 = vadd.f32 %v2080, 1.4214138
        %v2209 = vadd.f32 %v2081, 1.4214138
        %v2210 = vadd.f32 %v2082, 1.4214138
        %v2211 = vadd.f32 %v2083, 1.4214138
        %v2212 = vadd.f32 %v2084, 1.4214138
        %v2213 = vadd.f32 %v2085, 1.4214138
        %v2214 = vadd.f32 %v2086, 1.4214138
        %v2215 = vadd.f32 %v2087, 1.4214138
        %v2216 = vadd.f32 %v2088, 1.4214138
        %v2217 = vadd.f32 %v2089, 1.4214138
        %v2218 = vadd.f32 %v2090, 1.4214138
        %v2219 = vadd.f32 %v2091, 1.4214138
        %v2220 = vadd.f32 %v2092, 1.4214138
        %v2221 = vadd.f32 %v2093, 1.4214138
        %v2222 = vadd.f32 %v2094, 1.4214138
        %v2223 = vadd.f32 %v2095, 1.4214138
        %v2224 = vadd.f32 %v2096, 1.4214138
        %v2225 = vadd.f32 %v2097, 1.4214138
        %v2226 = vadd.f32 %v2098, 1.4214138
        %v2227 = vadd.f32 %v2099, 1.4214138
        %v2228 = vadd.f32 %v2100, 1.4214138
        %v2229 = vadd.f32 %v2101, 1.4214138
        %v2230 = vadd.f32 %v2102, 1.4214138
        %v2231 = vadd.f32 %v2103, 1.4214138
        %v2232 = vadd.f32 %v2104, 1.4214138
        %v2233 = vadd.f32 %v2105, 1.4214138
        %v2234 = vadd.f32 %v2106, 1.4214138
        %v2235 = vadd.f32 %v2107, 1.4214138
        %v2236 = vadd.f32 %v2108, 1.4214138
        %v2237 = vadd.f32 %v2109, 1.4214138
        %v2238 = vadd.f32 %v2110, 1.4214138
        %v2239 = vadd.f32 %v2111, 1.4214138
        %v2240 = vadd.f32 %v2112, 1.4214138
        %v2241 = vadd.f32 %v2113, 1.4214138
        %v2242 = vadd.f32 %v2114, 1.4214138
        %v2243 = vadd.f32 %v2115, 1.4214138
        %v2244 = vadd.f32 %v2116, 1.4214138
        %v2245 = vadd.f32 %v2117, 1.4214138
        %v2246 = vadd.f32 %v2118, 1.4214138
        %v2247 = vadd.f32 %v2119, 1.4214138
        %v2248 = vadd.f32 %v2120, 1.4214138
        %v2249 = vadd.f32 %v2121, 1.4214138
        %v2250 = vadd.f32 %v2122, 1.4214138
        %v2251 = vadd.f32 %v2123, 1.4214138
        %v2252 = vadd.f32 %v2124, 1.4214138
        %v2253 = vadd.f32 %v2125, 1.4214138
        %v2254 = vadd.f32 %v2126, 1.4214138
        %v2255 = vadd.f32 %v2127, 1.4214138
        %v2256 = vadd.f32 %v2128, 1.4214138
        %v2257 = vadd.f32 %v2129, 1.4214138
        %v2258 = vadd.f32 %v2130, 1.4214138
        %v2259 = vadd.f32 %v2131, 1.4214138
        %v2260 = vadd.f32 %v2132, 1.4214138
        %v2261 = vadd.f32 %v2133, 1.4214138
        %v2262 = vadd.f32 %v2134, 1.4214138
        %v2263 = vadd.f32 %v2135, 1.4214138
        %v2264 = vadd.f32 %v2136, 1.4214138
        %v2265 = vadd.f32 %v2137, 1.4214138
        %v2266 = vadd.f32 %v2138, 1.4214138
        %v2267 = vadd.f32 %v2139, 1.4214138
        %v2268 = vadd.f32 %v2140, 1.4214138
        %v2269 = vadd.f32 %v2141, 1.4214138
        %v2270 = vadd.f32 %v2142, 1.4214138
        %v2271 = vadd.f32 %v2143, 1.4214138
        %v2272 = vadd.f32 %v2144, 1.4214138
        %v2273 = vadd.f32 %v2145, 1.4214138
        %v2274 = vadd.f32 %v2146, 1.4214138
        %v2275 = vmul.f32 %v2147, %v1508
        %v2276 = vmul.f32 %v2148, %v1510
        %v2277 = vmul.f32 %v2149, %v1512
        %v2278 = vmul.f32 %v2150, %v1514
        %v2279 = vmul.f32 %v2151, %v1516
        %v2280 = vmul.f32 %v2152, %v1518
        %v2281 = vmul.f32 %v2153, %v1520
        %v2282 = vmul.f32 %v2154, %v1522
        %v2283 = vmul.f32 %v2155, %v1524
        %v2284 = vmul.f32 %v2156, %v1526
        %v2285 = vmul.f32 %v2157, %v1528
        %v2286 = vmul.f32 %v2158, %v1530
        %v2287 = vmul.f32 %v2159, %v1532
        %v2288 = vmul.f32 %v2160, %v1534
        %v2289 = vmul.f32 %v2161, %v1536
        %v2290 = vmul.f32 %v2162, %v1538
        %v2291 = vmul.f32 %v2163, %v1540
        %v2292 = vmul.f32 %v2164, %v1542
        %v2293 = vmul.f32 %v2165, %v1544
        %v2294 = vmul.f32 %v2166, %v1546
        %v2295 = vmul.f32 %v2167, %v1548
        %v2296 = vmul.f32 %v2168, %v1550
        %v2297 = vmul.f32 %v2169, %v1552
        %v2298 = vmul.f32 %v2170, %v1554
        %v2299 = vmul.f32 %v2171, %v1556
        %v2300 = vmul.f32 %v2172, %v1558
        %v2301 = vmul.f32 %v2173, %v1560
        %v2302 = vmul.f32 %v2174, %v1562
        %v2303 = vmul.f32 %v2175, %v1564
        %v2304 = vmul.f32 %v2176, %v1566
        %v2305 = vmul.f32 %v2177, %v1568
        %v2306 = vmul.f32 %v2178, %v1570
        %v2307 = vmul.f32 %v2179, %v1572
        %v2308 = vmul.f32 %v2180, %v1574
        %v2309 = vmul.f32 %v2181, %v1576
        %v2310 = vmul.f32 %v2182, %v1578
        %v2311 = vmul.f32 %v2183, %v1580
        %v2312 = vmul.f32 %v2184, %v1582
        %v2313 = vmul.f32 %v2185, %v1584
        %v2314 = vmul.f32 %v2186, %v1586
        %v2315 = vmul.f32 %v2187, %v1588
        %v2316 = vmul.f32 %v2188, %v1590
        %v2317 = vmul.f32 %v2189, %v1592
        %v2318 = vmul.f32 %v2190, %v1594
        %v2319 = vmul.f32 %v2191, %v1596
        %v2320 = vmul.f32 %v2192, %v1598
        %v2321 = vmul.f32 %v2193, %v1600
        %v2322 = vmul.f32 %v2194, %v1602
        %v2323 = vmul.f32 %v2195, %v1604
        %v2324 = vmul.f32 %v2196, %v1606
        %v2325 = vmul.f32 %v2197, %v1608
        %v2326 = vmul.f32 %v2198, %v1610
        %v2327 = vmul.f32 %v2199, %v1612
        %v2328 = vmul.f32 %v2200, %v1614
        %v2329 = vmul.f32 %v2201, %v1616
        %v2330 = vmul.f32 %v2202, %v1618
        %v2331 = vmul.f32 %v2203, %v1620
        %v2332 = vmul.f32 %v2204, %v1622
        %v2333 = vmul.f32 %v2205, %v1624
        %v2334 = vmul.f32 %v2206, %v1626
        %v2335 = vmul.f32 %v2207, %v1628
        %v2336 = vmul.f32 %v2208, %v1630
        %v2337 = vmul.f32 %v2209, %v1632
        %v2338 = vmul.f32 %v2210, %v1634
        %v2339 = vmul.f32 %v2211, %v1636
        %v2340 = vmul.f32 %v2212, %v1638
        %v2341 = vmul.f32 %v2213, %v1640
        %v2342 = vmul.f32 %v2214, %v1642
        %v2343 = vmul.f32 %v2215, %v1644
        %v2344 = vmul.f32 %v2216, %v1646
        %v2345 = vmul.f32 %v2217, %v1648
        %v2346 = vmul.f32 %v2218, %v1650
        %v2347 = vmul.f32 %v2219, %v1652
        %v2348 = vmul.f32 %v2220, %v1654
        %v2349 = vmul.f32 %v2221, %v1656
        %v2350 = vmul.f32 %v2222, %v1658
        %v2351 = vmul.f32 %v2223, %v1660
        %v2352 = vmul.f32 %v2224, %v1662
        %v2353 = vmul.f32 %v2225, %v1664
        %v2354 = vmul.f32 %v2226, %v1666
        %v2355 = vmul.f32 %v2227, %v1668
        %v2356 = vmul.f32 %v2228, %v1670
        %v2357 = vmul.f32 %v2229, %v1672
        %v2358 = vmul.f32 %v2230, %v1674
        %v2359 = vmul.f32 %v2231, %v1676
        %v2360 = vmul.f32 %v2232, %v1678
        %v2361 = vmul.f32 %v2233, %v1680
        %v2362 = vmul.f32 %v2234, %v1682
        %v2363 = vmul.f32 %v2235, %v1684
        %v2364 = vmul.f32 %v2236, %v1686
        %v2365 = vmul.f32 %v2237, %v1688
        %v2366 = vmul.f32 %v2238, %v1690
        %v2367 = vmul.f32 %v2239, %v1692
        %v2368 = vmul.f32 %v2240, %v1694
        %v2369 = vmul.f32 %v2241, %v1696
        %v2370 = vmul.f32 %v2242, %v1698
        %v2371 = vmul.f32 %v2243, %v1700
        %v2372 = vmul.f32 %v2244, %v1702
        %v2373 = vmul.f32 %v2245, %v1704
        %v2374 = vmul.f32 %v2246, %v1706
        %v2375 = vmul.f32 %v2247, %v1708
        %v2376 = vmul.f32 %v2248, %v1710
        %v2377 = vmul.f32 %v2249, %v1712
        %v2378 = vmul.f32 %v2250, %v1714
        %v2379 = vmul.f32 %v2251, %v1716
        %v2380 = vmul.f32 %v2252, %v1718
        %v2381 = vmul.f32 %v2253, %v1720
        %v2382 = vmul.f32 %v2254, %v1722
        %v2383 = vmul.f32 %v2255, %v1724
        %v2384 = vmul.f32 %v2256, %v1726
        %v2385 = vmul.f32 %v2257, %v1728
        %v2386 = vmul.f32 %v2258, %v1730
        %v2387 = vmul.f32 %v2259, %v1732
        %v2388 = vmul.f32 %v2260, %v1734
        %v2389 = vmul.f32 %v2261, %v1736
        %v2390 = vmul.f32 %v2262, %v1738
        %v2391 = vmul.f32 %v2263, %v1740
        %v2392 = vmul.f32 %v2264, %v1742
        %v2393 = vmul.f32 %v2265, %v1744
        %v2394 = vmul.f32 %v2266, %v1746
        %v2395 = vmul.f32 %v2267, %v1748
        %v2396 = vmul.f32 %v2268, %v1750
        %v2397 = vmul.f32 %v2269, %v1752
        %v2398 = vmul.f32 %v2270, %v1754
        %v2399 = vmul.f32 %v2271, %v1756
        %v2400 = vmul.f32 %v2272, %v1758
        %v2401 = vmul.f32 %v2273, %v1760
        %v2402 = vmul.f32 %v2274, %v1762
        %v2403 = vadd.f32 %v2275, -0.28449672
        %v2404 = vadd.f32 %v2276, -0.28449672
        %v2405 = vadd.f32 %v2277, -0.28449672
        %v2406 = vadd.f32 %v2278, -0.28449672
        %v2407 = vadd.f32 %v2279, -0.28449672
        %v2408 = vadd.f32 %v2280, -0.28449672
        %v2409 = vadd.f32 %v2281, -0.28449672
        %v2410 = vadd.f32 %v2282, -0.28449672
        %v2411 = vadd.f32 %v2283, -0.28449672
        %v2412 = vadd.f32 %v2284, -0.28449672
        %v2413 = vadd.f32 %v2285, -0.28449672
        %v2414 = vadd.f32 %v2286, -0.28449672
        %v2415 = vadd.f32 %v2287, -0.28449672
        %v2416 = vadd.f32 %v2288, -0.28449672
        %v2417 = vadd.f32 %v2289, -0.28449672
        %v2418 = vadd.f32 %v2290, -0.28449672
        %v2419 = vadd.f32 %v2291, -0.28449672
        %v2420 = vadd.f32 %v2292, -0.28449672
        %v2421 = vadd.f32 %v2293, -0.28449672
        %v2422 = vadd.f32 %v2294, -0.28449672
        %v2423 = vadd.f32 %v2295, -0.28449672
        %v2424 = vadd.f32 %v2296, -0.28449672
        %v2425 = vadd.f32 %v2297, -0.28449672
        %v2426 = vadd.f32 %v2298, -0.28449672
        %v2427 = vadd.f32 %v2299, -0.28449672
        %v2428 = vadd.f32 %v2300, -0.28449672
        %v2429 = vadd.f32 %v2301, -0.28449672
        %v2430 = vadd.f32 %v2302, -0.28449672
        %v2431 = vadd.f32 %v2303, -0.28449672
        %v2432 = vadd.f32 %v2304, -0.28449672
        %v2433 = vadd.f32 %v2305, -0.28449672
        %v2434 = vadd.f32 %v2306, -0.28449672
        %v2435 = vadd.f32 %v2307, -0.28449672
        %v2436 = vadd.f32 %v2308, -0.28449672
        %v2437 = vadd.f32 %v2309, -0.28449672
        %v2438 = vadd.f32 %v2310, -0.28449672
        %v2439 = vadd.f32 %v2311, -0.28449672
        %v2440 = vadd.f32 %v2312, -0.28449672
        %v2441 = vadd.f32 %v2313, -0.28449672
        %v2442 = vadd.f32 %v2314, -0.28449672
        %v2443 = vadd.f32 %v2315, -0.28449672
        %v2444 = vadd.f32 %v2316, -0.28449672
        %v2445 = vadd.f32 %v2317, -0.28449672
        %v2446 = vadd.f32 %v2318, -0.28449672
        %v2447 = vadd.f32 %v2319, -0.28449672
        %v2448 = vadd.f32 %v2320, -0.28449672
        %v2449 = vadd.f32 %v2321, -0.28449672
        %v2450 = vadd.f32 %v2322, -0.28449672
        %v2451 = vadd.f32 %v2323, -0.28449672
        %v2452 = vadd.f32 %v2324, -0.28449672
        %v2453 = vadd.f32 %v2325, -0.28449672
        %v2454 = vadd.f32 %v2326, -0.28449672
        %v2455 = vadd.f32 %v2327, -0.28449672
        %v2456 = vadd.f32 %v2328, -0.28449672
        %v2457 = vadd.f32 %v2329, -0.28449672
        %v2458 = vadd.f32 %v2330, -0.28449672
        %v2459 = vadd.f32 %v2331, -0.28449672
        %v2460 = vadd.f32 %v2332, -0.28449672
        %v2461 = vadd.f32 %v2333, -0.28449672
        %v2462 = vadd.f32 %v2334, -0.28449672
        %v2463 = vadd.f32 %v2335, -0.28449672
        %v2464 = vadd.f32 %v2336, -0.28449672
        %v2465 = vadd.f32 %v2337, -0.28449672
        %v2466 = vadd.f32 %v2338, -0.28449672
        %v2467 = vadd.f32 %v2339, -0.28449672
        %v2468 = vadd.f32 %v2340, -0.28449672
        %v2469 = vadd.f32 %v2341, -0.28449672
        %v2470 = vadd.f32 %v2342, -0.28449672
        %v2471 = vadd.f32 %v2343, -0.28449672
        %v2472 = vadd.f32 %v2344, -0.28449672
        %v2473 = vadd.f32 %v2345, -0.28449672
        %v2474 = vadd.f32 %v2346, -0.28449672
        %v2475 = vadd.f32 %v2347, -0.28449672
        %v2476 = vadd.f32 %v2348, -0.28449672
        %v2477 = vadd.f32 %v2349, -0.28449672
        %v2478 = vadd.f32 %v2350, -0.28449672
        %v2479 = vadd.f32 %v2351, -0.28449672
        %v2480 = vadd.f32 %v2352, -0.28449672
        %v2481 = vadd.f32 %v2353, -0.28449672
        %v2482 = vadd.f32 %v2354, -0.28449672
        %v2483 = vadd.f32 %v2355, -0.28449672
        %v2484 = vadd.f32 %v2356, -0.28449672
        %v2485 = vadd.f32 %v2357, -0.28449672
        %v2486 = vadd.f32 %v2358, -0.28449672
        %v2487 = vadd.f32 %v2359, -0.28449672
        %v2488 = vadd.f32 %v2360, -0.28449672
        %v2489 = vadd.f32 %v2361, -0.28449672
        %v2490 = vadd.f32 %v2362, -0.28449672
        %v2491 = vadd.f32 %v2363, -0.28449672
        %v2492 = vadd.f32 %v2364, -0.28449672
        %v2493 = vadd.f32 %v2365, -0.28449672
        %v2494 = vadd.f32 %v2366, -0.28449672
        %v2495 = vadd.f32 %v2367, -0.28449672
        %v2496 = vadd.f32 %v2368, -0.28449672
        %v2497 = vadd.f32 %v2369, -0.28449672
        %v2498 = vadd.f32 %v2370, -0.28449672
        %v2499 = vadd.f32 %v2371, -0.28449672
        %v2500 = vadd.f32 %v2372, -0.28449672
        %v2501 = vadd.f32 %v2373, -0.28449672
        %v2502 = vadd.f32 %v2374, -0.28449672
        %v2503 = vadd.f32 %v2375, -0.28449672
        %v2504 = vadd.f32 %v2376, -0.28449672
        %v2505 = vadd.f32 %v2377, -0.28449672
        %v2506 = vadd.f32 %v2378, -0.28449672
        %v2507 = vadd.f32 %v2379, -0.28449672
        %v2508 = vadd.f32 %v2380, -0.28449672
        %v2509 = vadd.f32 %v2381, -0.28449672
        %v2510 = vadd.f32 %v2382, -0.28449672
        %v2511 = vadd.f32 %v2383, -0.28449672
        %v2512 = vadd.f32 %v2384, -0.28449672
        %v2513 = vadd.f32 %v2385, -0.28449672
        %v2514 = vadd.f32 %v2386, -0.28449672
        %v2515 = vadd.f32 %v2387, -0.28449672
        %v2516 = vadd.f32 %v2388, -0.28449672
        %v2517 = vadd.f32 %v2389, -0.28449672
        %v2518 = vadd.f32 %v2390, -0.28449672
        %v2519 = vadd.f32 %v2391, -0.28449672
        %v2520 = vadd.f32 %v2392, -0.28449672
        %v2521 = vadd.f32 %v2393, -0.28449672
        %v2522 = vadd.f32 %v2394, -0.28449672
        %v2523 = vadd.f32 %v2395, -0.28449672
        %v2524 = vadd.f32 %v2396, -0.28449672
        %v2525 = vadd.f32 %v2397, -0.28449672
        %v2526 = vadd.f32 %v2398, -0.28449672
        %v2527 = vadd.f32 %v2399, -0.28449672
        %v2528 = vadd.f32 %v2400, -0.28449672
        %v2529 = vadd.f32 %v2401, -0.28449672
        %v2530 = vadd.f32 %v2402, -0.28449672
        %v2531 = vmul.f32 %v2403, %v1508
        %v2532 = vmul.f32 %v2404, %v1510
        %v2533 = vmul.f32 %v2405, %v1512
        %v2534 = vmul.f32 %v2406, %v1514
        %v2535 = vmul.f32 %v2407, %v1516
        %v2536 = vmul.f32 %v2408, %v1518
        %v2537 = vmul.f32 %v2409, %v1520
        %v2538 = vmul.f32 %v2410, %v1522
        %v2539 = vmul.f32 %v2411, %v1524
        %v2540 = vmul.f32 %v2412, %v1526
        %v2541 = vmul.f32 %v2413, %v1528
        %v2542 = vmul.f32 %v2414, %v1530
        %v2543 = vmul.f32 %v2415, %v1532
        %v2544 = vmul.f32 %v2416, %v1534
        %v2545 = vmul.f32 %v2417, %v1536
        %v2546 = vmul.f32 %v2418, %v1538
        %v2547 = vmul.f32 %v2419, %v1540
        %v2548 = vmul.f32 %v2420, %v1542
        %v2549 = vmul.f32 %v2421, %v1544
        %v2550 = vmul.f32 %v2422, %v1546
        %v2551 = vmul.f32 %v2423, %v1548
        %v2552 = vmul.f32 %v2424, %v1550
        %v2553 = vmul.f32 %v2425, %v1552
        %v2554 = vmul.f32 %v2426, %v1554
        %v2555 = vmul.f32 %v2427, %v1556
        %v2556 = vmul.f32 %v2428, %v1558
        %v2557 = vmul.f32 %v2429, %v1560
        %v2558 = vmul.f32 %v2430, %v1562
        %v2559 = vmul.f32 %v2431, %v1564
        %v2560 = vmul.f32 %v2432, %v1566
        %v2561 = vmul.f32 %v2433, %v1568
        %v2562 = vmul.f32 %v2434, %v1570
        %v2563 = vmul.f32 %v2435, %v1572
        %v2564 = vmul.f32 %v2436, %v1574
        %v2565 = vmul.f32 %v2437, %v1576
        %v2566 = vmul.f32 %v2438, %v1578
        %v2567 = vmul.f32 %v2439, %v1580
        %v2568 = vmul.f32 %v2440, %v1582
        %v2569 = vmul.f32 %v2441, %v1584
        %v2570 = vmul.f32 %v2442, %v1586
        %v2571 = vmul.f32 %v2443, %v1588
        %v2572 = vmul.f32 %v2444, %v1590
        %v2573 = vmul.f32 %v2445, %v1592
        %v2574 = vmul.f32 %v2446, %v1594
        %v2575 = vmul.f32 %v2447, %v1596
        %v2576 = vmul.f32 %v2448, %v1598
        %v2577 = vmul.f32 %v2449, %v1600
        %v2578 = vmul.f32 %v2450, %v1602
        %v2579 = vmul.f32 %v2451, %v1604
        %v2580 = vmul.f32 %v2452, %v1606
        %v2581 = vmul.f32 %v2453, %v1608
        %v2582 = vmul.f32 %v2454, %v1610
        %v2583 = vmul.f32 %v2455, %v1612
        %v2584 = vmul.f32 %v2456, %v1614
        %v2585 = vmul.f32 %v2457, %v1616
        %v2586 = vmul.f32 %v2458, %v1618
        %v2587 = vmul.f32 %v2459, %v1620
        %v2588 = vmul.f32 %v2460, %v1622
        %v2589 = vmul.f32 %v2461, %v1624
        %v2590 = vmul.f32 %v2462, %v1626
        %v2591 = vmul.f32 %v2463, %v1628
        %v2592 = vmul.f32 %v2464, %v1630
        %v2593 = vmul.f32 %v2465, %v1632
        %v2594 = vmul.f32 %v2466, %v1634
        %v2595 = vmul.f32 %v2467, %v1636
        %v2596 = vmul.f32 %v2468, %v1638
        %v2597 = vmul.f32 %v2469, %v1640
        %v2598 = vmul.f32 %v2470, %v1642
        %v2599 = vmul.f32 %v2471, %v1644
        %v2600 = vmul.f32 %v2472, %v1646
        %v2601 = vmul.f32 %v2473, %v1648
        %v2602 = vmul.f32 %v2474, %v1650
        %v2603 = vmul.f32 %v2475, %v1652
        %v2604 = vmul.f32 %v2476, %v1654
        %v2605 = vmul.f32 %v2477, %v1656
        %v2606 = vmul.f32 %v2478, %v1658
        %v2607 = vmul.f32 %v2479, %v1660
        %v2608 = vmul.f32 %v2480, %v1662
        %v2609 = vmul.f32 %v2481, %v1664
        %v2610 = vmul.f32 %v2482, %v1666
        %v2611 = vmul.f32 %v2483, %v1668
        %v2612 = vmul.f32 %v2484, %v1670
        %v2613 = vmul.f32 %v2485, %v1672
        %v2614 = vmul.f32 %v2486, %v1674
        %v2615 = vmul.f32 %v2487, %v1676
        %v2616 = vmul.f32 %v2488, %v1678
        %v2617 = vmul.f32 %v2489, %v1680
        %v2618 = vmul.f32 %v2490, %v1682
        %v2619 = vmul.f32 %v2491, %v1684
        %v2620 = vmul.f32 %v2492, %v1686
        %v2621 = vmul.f32 %v2493, %v1688
        %v2622 = vmul.f32 %v2494, %v1690
        %v2623 = vmul.f32 %v2495, %v1692
        %v2624 = vmul.f32 %v2496, %v1694
        %v2625 = vmul.f32 %v2497, %v1696
        %v2626 = vmul.f32 %v2498, %v1698
        %v2627 = vmul.f32 %v2499, %v1700
        %v2628 = vmul.f32 %v2500, %v1702
        %v2629 = vmul.f32 %v2501, %v1704
        %v2630 = vmul.f32 %v2502, %v1706
        %v2631 = vmul.f32 %v2503, %v1708
        %v2632 = vmul.f32 %v2504, %v1710
        %v2633 = vmul.f32 %v2505, %v1712
        %v2634 = vmul.f32 %v2506, %v1714
        %v2635 = vmul.f32 %v2507, %v1716
        %v2636 = vmul.f32 %v2508, %v1718
        %v2637 = vmul.f32 %v2509, %v1720
        %v2638 = vmul.f32 %v2510, %v1722
        %v2639 = vmul.f32 %v2511, %v1724
        %v2640 = vmul.f32 %v2512, %v1726
        %v2641 = vmul.f32 %v2513, %v1728
        %v2642 = vmul.f32 %v2514, %v1730
        %v2643 = vmul.f32 %v2515, %v1732
        %v2644 = vmul.f32 %v2516, %v1734
        %v2645 = vmul.f32 %v2517, %v1736
        %v2646 = vmul.f32 %v2518, %v1738
        %v2647 = vmul.f32 %v2519, %v1740
        %v2648 = vmul.f32 %v2520, %v1742
        %v2649 = vmul.f32 %v2521, %v1744
        %v2650 = vmul.f32 %v2522, %v1746
        %v2651 = vmul.f32 %v2523, %v1748
        %v2652 = vmul.f32 %v2524, %v1750
        %v2653 = vmul.f32 %v2525, %v1752
        %v2654 = vmul.f32 %v2526, %v1754
        %v2655 = vmul.f32 %v2527, %v1756
        %v2656 = vmul.f32 %v2528, %v1758
        %v2657 = vmul.f32 %v2529, %v1760
        %v2658 = vmul.f32 %v2530, %v1762
        %v2659 = vadd.f32 %v2531, 0.2548296
        %v2660 = vadd.f32 %v2532, 0.2548296
        %v2661 = vadd.f32 %v2533, 0.2548296
        %v2662 = vadd.f32 %v2534, 0.2548296
        %v2663 = vadd.f32 %v2535, 0.2548296
        %v2664 = vadd.f32 %v2536, 0.2548296
        %v2665 = vadd.f32 %v2537, 0.2548296
        %v2666 = vadd.f32 %v2538, 0.2548296
        %v2667 = vadd.f32 %v2539, 0.2548296
        %v2668 = vadd.f32 %v2540, 0.2548296
        %v2669 = vadd.f32 %v2541, 0.2548296
        %v2670 = vadd.f32 %v2542, 0.2548296
        %v2671 = vadd.f32 %v2543, 0.2548296
        %v2672 = vadd.f32 %v2544, 0.2548296
        %v2673 = vadd.f32 %v2545, 0.2548296
        %v2674 = vadd.f32 %v2546, 0.2548296
        %v2675 = vadd.f32 %v2547, 0.2548296
        %v2676 = vadd.f32 %v2548, 0.2548296
        %v2677 = vadd.f32 %v2549, 0.2548296
        %v2678 = vadd.f32 %v2550, 0.2548296
        %v2679 = vadd.f32 %v2551, 0.2548296
        %v2680 = vadd.f32 %v2552, 0.2548296
        %v2681 = vadd.f32 %v2553, 0.2548296
        %v2682 = vadd.f32 %v2554, 0.2548296
        %v2683 = vadd.f32 %v2555, 0.2548296
        %v2684 = vadd.f32 %v2556, 0.2548296
        %v2685 = vadd.f32 %v2557, 0.2548296
        %v2686 = vadd.f32 %v2558, 0.2548296
        %v2687 = vadd.f32 %v2559, 0.2548296
        %v2688 = vadd.f32 %v2560, 0.2548296
        %v2689 = vadd.f32 %v2561, 0.2548296
        %v2690 = vadd.f32 %v2562, 0.2548296
        %v2691 = vadd.f32 %v2563, 0.2548296
        %v2692 = vadd.f32 %v2564, 0.2548296
        %v2693 = vadd.f32 %v2565, 0.2548296
        %v2694 = vadd.f32 %v2566, 0.2548296
        %v2695 = vadd.f32 %v2567, 0.2548296
        %v2696 = vadd.f32 %v2568, 0.2548296
        %v2697 = vadd.f32 %v2569, 0.2548296
        %v2698 = vadd.f32 %v2570, 0.2548296
        %v2699 = vadd.f32 %v2571, 0.2548296
        %v2700 = vadd.f32 %v2572, 0.2548296
        %v2701 = vadd.f32 %v2573, 0.2548296
        %v2702 = vadd.f32 %v2574, 0.2548296
        %v2703 = vadd.f32 %v2575, 0.2548296
        %v2704 = vadd.f32 %v2576, 0.2548296
        %v2705 = vadd.f32 %v2577, 0.2548296
        %v2706 = vadd.f32 %v2578, 0.2548296
        %v2707 = vadd.f32 %v2579, 0.2548296
        %v2708 = vadd.f32 %v2580, 0.2548296
        %v2709 = vadd.f32 %v2581, 0.2548296
        %v2710 = vadd.f32 %v2582, 0.2548296
        %v2711 = vadd.f32 %v2583, 0.2548296
        %v2712 = vadd.f32 %v2584, 0.2548296
        %v2713 = vadd.f32 %v2585, 0.2548296
        %v2714 = vadd.f32 %v2586, 0.2548296
        %v2715 = vadd.f32 %v2587, 0.2548296
        %v2716 = vadd.f32 %v2588, 0.2548296
        %v2717 = vadd.f32 %v2589, 0.2548296
        %v2718 = vadd.f32 %v2590, 0.2548296
        %v2719 = vadd.f32 %v2591, 0.2548296
        %v2720 = vadd.f32 %v2592, 0.2548296
        %v2721 = vadd.f32 %v2593, 0.2548296
        %v2722 = vadd.f32 %v2594, 0.2548296
        %v2723 = vadd.f32 %v2595, 0.2548296
        %v2724 = vadd.f32 %v2596, 0.2548296
        %v2725 = vadd.f32 %v2597, 0.2548296
        %v2726 = vadd.f32 %v2598, 0.2548296
        %v2727 = vadd.f32 %v2599, 0.2548296
        %v2728 = vadd.f32 %v2600, 0.2548296
        %v2729 = vadd.f32 %v2601, 0.2548296
        %v2730 = vadd.f32 %v2602, 0.2548296
        %v2731 = vadd.f32 %v2603, 0.2548296
        %v2732 = vadd.f32 %v2604, 0.2548296
        %v2733 = vadd.f32 %v2605, 0.2548296
        %v2734 = vadd.f32 %v2606, 0.2548296
        %v2735 = vadd.f32 %v2607, 0.2548296
        %v2736 = vadd.f32 %v2608, 0.2548296
        %v2737 = vadd.f32 %v2609, 0.2548296
        %v2738 = vadd.f32 %v2610, 0.2548296
        %v2739 = vadd.f32 %v2611, 0.2548296
        %v2740 = vadd.f32 %v2612, 0.2548296
        %v2741 = vadd.f32 %v2613, 0.2548296
        %v2742 = vadd.f32 %v2614, 0.2548296
        %v2743 = vadd.f32 %v2615, 0.2548296
        %v2744 = vadd.f32 %v2616, 0.2548296
        %v2745 = vadd.f32 %v2617, 0.2548296
        %v2746 = vadd.f32 %v2618, 0.2548296
        %v2747 = vadd.f32 %v2619, 0.2548296
        %v2748 = vadd.f32 %v2620, 0.2548296
        %v2749 = vadd.f32 %v2621, 0.2548296
        %v2750 = vadd.f32 %v2622, 0.2548296
        %v2751 = vadd.f32 %v2623, 0.2548296
        %v2752 = vadd.f32 %v2624, 0.2548296
        %v2753 = vadd.f32 %v2625, 0.2548296
        %v2754 = vadd.f32 %v2626, 0.2548296
        %v2755 = vadd.f32 %v2627, 0.2548296
        %v2756 = vadd.f32 %v2628, 0.2548296
        %v2757 = vadd.f32 %v2629, 0.2548296
        %v2758 = vadd.f32 %v2630, 0.2548296
        %v2759 = vadd.f32 %v2631, 0.2548296
        %v2760 = vadd.f32 %v2632, 0.2548296
        %v2761 = vadd.f32 %v2633, 0.2548296
        %v2762 = vadd.f32 %v2634, 0.2548296
        %v2763 = vadd.f32 %v2635, 0.2548296
        %v2764 = vadd.f32 %v2636, 0.2548296
        %v2765 = vadd.f32 %v2637, 0.2548296
        %v2766 = vadd.f32 %v2638, 0.2548296
        %v2767 = vadd.f32 %v2639, 0.2548296
        %v2768 = vadd.f32 %v2640, 0.2548296
        %v2769 = vadd.f32 %v2641, 0.2548296
        %v2770 = vadd.f32 %v2642, 0.2548296
        %v2771 = vadd.f32 %v2643, 0.2548296
        %v2772 = vadd.f32 %v2644, 0.2548296
        %v2773 = vadd.f32 %v2645, 0.2548296
        %v2774 = vadd.f32 %v2646, 0.2548296
        %v2775 = vadd.f32 %v2647, 0.2548296
        %v2776 = vadd.f32 %v2648, 0.2548296
        %v2777 = vadd.f32 %v2649, 0.2548296
        %v2778 = vadd.f32 %v2650, 0.2548296
        %v2779 = vadd.f32 %v2651, 0.2548296
        %v2780 = vadd.f32 %v2652, 0.2548296
        %v2781 = vadd.f32 %v2653, 0.2548296
        %v2782 = vadd.f32 %v2654, 0.2548296
        %v2783 = vadd.f32 %v2655, 0.2548296
        %v2784 = vadd.f32 %v2656, 0.2548296
        %v2785 = vadd.f32 %v2657, 0.2548296
        %v2786 = vadd.f32 %v2658, 0.2548296
        %v2787 = vmul.f32 %v2659, %v1508
        %v2788 = vmul.f32 %v2660, %v1510
        %v2789 = vmul.f32 %v2661, %v1512
        %v2790 = vmul.f32 %v2662, %v1514
        %v2791 = vmul.f32 %v2663, %v1516
        %v2792 = vmul.f32 %v2664, %v1518
        %v2793 = vmul.f32 %v2665, %v1520
        %v2794 = vmul.f32 %v2666, %v1522
        %v2795 = vmul.f32 %v2667, %v1524
        %v2796 = vmul.f32 %v2668, %v1526
        %v2797 = vmul.f32 %v2669, %v1528
        %v2798 = vmul.f32 %v2670, %v1530
        %v2799 = vmul.f32 %v2671, %v1532
        %v2800 = vmul.f32 %v2672, %v1534
        %v2801 = vmul.f32 %v2673, %v1536
        %v2802 = vmul.f32 %v2674, %v1538
        %v2803 = vmul.f32 %v2675, %v1540
        %v2804 = vmul.f32 %v2676, %v1542
        %v2805 = vmul.f32 %v2677, %v1544
        %v2806 = vmul.f32 %v2678, %v1546
        %v2807 = vmul.f32 %v2679, %v1548
        %v2808 = vmul.f32 %v2680, %v1550
        %v2809 = vmul.f32 %v2681, %v1552
        %v2810 = vmul.f32 %v2682, %v1554
        %v2811 = vmul.f32 %v2683, %v1556
        %v2812 = vmul.f32 %v2684, %v1558
        %v2813 = vmul.f32 %v2685, %v1560
        %v2814 = vmul.f32 %v2686, %v1562
        %v2815 = vmul.f32 %v2687, %v1564
        %v2816 = vmul.f32 %v2688, %v1566
        %v2817 = vmul.f32 %v2689, %v1568
        %v2818 = vmul.f32 %v2690, %v1570
        %v2819 = vmul.f32 %v2691, %v1572
        %v2820 = vmul.f32 %v2692, %v1574
        %v2821 = vmul.f32 %v2693, %v1576
        %v2822 = vmul.f32 %v2694, %v1578
        %v2823 = vmul.f32 %v2695, %v1580
        %v2824 = vmul.f32 %v2696, %v1582
        %v2825 = vmul.f32 %v2697, %v1584
        %v2826 = vmul.f32 %v2698, %v1586
        %v2827 = vmul.f32 %v2699, %v1588
        %v2828 = vmul.f32 %v2700, %v1590
        %v2829 = vmul.f32 %v2701, %v1592
        %v2830 = vmul.f32 %v2702, %v1594
        %v2831 = vmul.f32 %v2703, %v1596
        %v2832 = vmul.f32 %v2704, %v1598
        %v2833 = vmul.f32 %v2705, %v1600
        %v2834 = vmul.f32 %v2706, %v1602
        %v2835 = vmul.f32 %v2707, %v1604
        %v2836 = vmul.f32 %v2708, %v1606
        %v2837 = vmul.f32 %v2709, %v1608
        %v2838 = vmul.f32 %v2710, %v1610
        %v2839 = vmul.f32 %v2711, %v1612
        %v2840 = vmul.f32 %v2712, %v1614
        %v2841 = vmul.f32 %v2713, %v1616
        %v2842 = vmul.f32 %v2714, %v1618
        %v2843 = vmul.f32 %v2715, %v1620
        %v2844 = vmul.f32 %v2716, %v1622
        %v2845 = vmul.f32 %v2717, %v1624
        %v2846 = vmul.f32 %v2718, %v1626
        %v2847 = vmul.f32 %v2719, %v1628
        %v2848 = vmul.f32 %v2720, %v1630
        %v2849 = vmul.f32 %v2721, %v1632
        %v2850 = vmul.f32 %v2722, %v1634
        %v2851 = vmul.f32 %v2723, %v1636
        %v2852 = vmul.f32 %v2724, %v1638
        %v2853 = vmul.f32 %v2725, %v1640
        %v2854 = vmul.f32 %v2726, %v1642
        %v2855 = vmul.f32 %v2727, %v1644
        %v2856 = vmul.f32 %v2728, %v1646
        %v2857 = vmul.f32 %v2729, %v1648
        %v2858 = vmul.f32 %v2730, %v1650
        %v2859 = vmul.f32 %v2731, %v1652
        %v2860 = vmul.f32 %v2732, %v1654
        %v2861 = vmul.f32 %v2733, %v1656
        %v2862 = vmul.f32 %v2734, %v1658
        %v2863 = vmul.f32 %v2735, %v1660
        %v2864 = vmul.f32 %v2736, %v1662
        %v2865 = vmul.f32 %v2737, %v1664
        %v2866 = vmul.f32 %v2738, %v1666
        %v2867 = vmul.f32 %v2739, %v1668
        %v2868 = vmul.f32 %v2740, %v1670
        %v2869 = vmul.f32 %v2741, %v1672
        %v2870 = vmul.f32 %v2742, %v1674
        %v2871 = vmul.f32 %v2743, %v1676
        %v2872 = vmul.f32 %v2744, %v1678
        %v2873 = vmul.f32 %v2745, %v1680
        %v2874 = vmul.f32 %v2746, %v1682
        %v2875 = vmul.f32 %v2747, %v1684
        %v2876 = vmul.f32 %v2748, %v1686
        %v2877 = vmul.f32 %v2749, %v1688
        %v2878 = vmul.f32 %v2750, %v1690
        %v2879 = vmul.f32 %v2751, %v1692
        %v2880 = vmul.f32 %v2752, %v1694
        %v2881 = vmul.f32 %v2753, %v1696
        %v2882 = vmul.f32 %v2754, %v1698
        %v2883 = vmul.f32 %v2755, %v1700
        %v2884 = vmul.f32 %v2756, %v1702
        %v2885 = vmul.f32 %v2757, %v1704
        %v2886 = vmul.f32 %v2758, %v1706
        %v2887 = vmul.f32 %v2759, %v1708
        %v2888 = vmul.f32 %v2760, %v1710
        %v2889 = vmul.f32 %v2761, %v1712
        %v2890 = vmul.f32 %v2762, %v1714
        %v2891 = vmul.f32 %v2763, %v1716
        %v2892 = vmul.f32 %v2764, %v1718
        %v2893 = vmul.f32 %v2765, %v1720
        %v2894 = vmul.f32 %v2766, %v1722
        %v2895 = vmul.f32 %v2767, %v1724
        %v2896 = vmul.f32 %v2768, %v1726
        %v2897 = vmul.f32 %v2769, %v1728
        %v2898 = vmul.f32 %v2770, %v1730
        %v2899 = vmul.f32 %v2771, %v1732
        %v2900 = vmul.f32 %v2772, %v1734
        %v2901 = vmul.f32 %v2773, %v1736
        %v2902 = vmul.f32 %v2774, %v1738
        %v2903 = vmul.f32 %v2775, %v1740
        %v2904 = vmul.f32 %v2776, %v1742
        %v2905 = vmul.f32 %v2777, %v1744
        %v2906 = vmul.f32 %v2778, %v1746
        %v2907 = vmul.f32 %v2779, %v1748
        %v2908 = vmul.f32 %v2780, %v1750
        %v2909 = vmul.f32 %v2781, %v1752
        %v2910 = vmul.f32 %v2782, %v1754
        %v2911 = vmul.f32 %v2783, %v1756
        %v2912 = vmul.f32 %v2784, %v1758
        %v2913 = vmul.f32 %v2785, %v1760
        %v2914 = vmul.f32 %v2786, %v1762
        %v2915 = vsub.f32 0.0, %v1123
        %v2916 = vsub.f32 0.0, %v1124
        %v2917 = vsub.f32 0.0, %v1125
        %v2918 = vsub.f32 0.0, %v1126
        %v2919 = vsub.f32 0.0, %v1127
        %v2920 = vsub.f32 0.0, %v1128
        %v2921 = vsub.f32 0.0, %v1129
        %v2922 = vsub.f32 0.0, %v1130
        %v2923 = vsub.f32 0.0, %v1131
        %v2924 = vsub.f32 0.0, %v1132
        %v2925 = vsub.f32 0.0, %v1133
        %v2926 = vsub.f32 0.0, %v1134
        %v2927 = vsub.f32 0.0, %v1135
        %v2928 = vsub.f32 0.0, %v1136
        %v2929 = vsub.f32 0.0, %v1137
        %v2930 = vsub.f32 0.0, %v1138
        %v2931 = vsub.f32 0.0, %v1139
        %v2932 = vsub.f32 0.0, %v1140
        %v2933 = vsub.f32 0.0, %v1141
        %v2934 = vsub.f32 0.0, %v1142
        %v2935 = vsub.f32 0.0, %v1143
        %v2936 = vsub.f32 0.0, %v1144
        %v2937 = vsub.f32 0.0, %v1145
        %v2938 = vsub.f32 0.0, %v1146
        %v2939 = vsub.f32 0.0, %v1147
        %v2940 = vsub.f32 0.0, %v1148
        %v2941 = vsub.f32 0.0, %v1149
        %v2942 = vsub.f32 0.0, %v1150
        %v2943 = vsub.f32 0.0, %v1151
        %v2944 = vsub.f32 0.0, %v1152
        %v2945 = vsub.f32 0.0, %v1153
        %v2946 = vsub.f32 0.0, %v1154
        %v2947 = vsub.f32 0.0, %v1155
        %v2948 = vsub.f32 0.0, %v1156
        %v2949 = vsub.f32 0.0, %v1157
        %v2950 = vsub.f32 0.0, %v1158
        %v2951 = vsub.f32 0.0, %v1159
        %v2952 = vsub.f32 0.0, %v1160
        %v2953 = vsub.f32 0.0, %v1161
        %v2954 = vsub.f32 0.0, %v1162
        %v2955 = vsub.f32 0.0, %v1163
        %v2956 = vsub.f32 0.0, %v1164
        %v2957 = vsub.f32 0.0, %v1165
        %v2958 = vsub.f32 0.0, %v1166
        %v2959 = vsub.f32 0.0, %v1167
        %v2960 = vsub.f32 0.0, %v1168
        %v2961 = vsub.f32 0.0, %v1169
        %v2962 = vsub.f32 0.0, %v1170
        %v2963 = vsub.f32 0.0, %v1171
        %v2964 = vsub.f32 0.0, %v1172
        %v2965 = vsub.f32 0.0, %v1173
        %v2966 = vsub.f32 0.0, %v1174
        %v2967 = vsub.f32 0.0, %v1175
        %v2968 = vsub.f32 0.0, %v1176
        %v2969 = vsub.f32 0.0, %v1177
        %v2970 = vsub.f32 0.0, %v1178
        %v2971 = vsub.f32 0.0, %v1179
        %v2972 = vsub.f32 0.0, %v1180
        %v2973 = vsub.f32 0.0, %v1181
        %v2974 = vsub.f32 0.0, %v1182
        %v2975 = vsub.f32 0.0, %v1183
        %v2976 = vsub.f32 0.0, %v1184
        %v2977 = vsub.f32 0.0, %v1185
        %v2978 = vsub.f32 0.0, %v1186
        %v2979 = vsub.f32 0.0, %v1187
        %v2980 = vsub.f32 0.0, %v1188
        %v2981 = vsub.f32 0.0, %v1189
        %v2982 = vsub.f32 0.0, %v1190
        %v2983 = vsub.f32 0.0, %v1191
        %v2984 = vsub.f32 0.0, %v1192
        %v2985 = vsub.f32 0.0, %v1193
        %v2986 = vsub.f32 0.0, %v1194
        %v2987 = vsub.f32 0.0, %v1195
        %v2988 = vsub.f32 0.0, %v1196
        %v2989 = vsub.f32 0.0, %v1197
        %v2990 = vsub.f32 0.0, %v1198
        %v2991 = vsub.f32 0.0, %v1199
        %v2992 = vsub.f32 0.0, %v1200
        %v2993 = vsub.f32 0.0, %v1201
        %v2994 = vsub.f32 0.0, %v1202
        %v2995 = vsub.f32 0.0, %v1203
        %v2996 = vsub.f32 0.0, %v1204
        %v2997 = vsub.f32 0.0, %v1205
        %v2998 = vsub.f32 0.0, %v1206
        %v2999 = vsub.f32 0.0, %v1207
        %v3000 = vsub.f32 0.0, %v1208
        %v3001 = vsub.f32 0.0, %v1209
        %v3002 = vsub.f32 0.0, %v1210
        %v3003 = vsub.f32 0.0, %v1211
        %v3004 = vsub.f32 0.0, %v1212
        %v3005 = vsub.f32 0.0, %v1213
        %v3006 = vsub.f32 0.0, %v1214
        %v3007 = vsub.f32 0.0, %v1215
        %v3008 = vsub.f32 0.0, %v1216
        %v3009 = vsub.f32 0.0, %v1217
        %v3010 = vsub.f32 0.0, %v1218
        %v3011 = vsub.f32 0.0, %v1219
        %v3012 = vsub.f32 0.0, %v1220
        %v3013 = vsub.f32 0.0, %v1221
        %v3014 = vsub.f32 0.0, %v1222
        %v3015 = vsub.f32 0.0, %v1223
        %v3016 = vsub.f32 0.0, %v1224
        %v3017 = vsub.f32 0.0, %v1225
        %v3018 = vsub.f32 0.0, %v1226
        %v3019 = vsub.f32 0.0, %v1227
        %v3020 = vsub.f32 0.0, %v1228
        %v3021 = vsub.f32 0.0, %v1229
        %v3022 = vsub.f32 0.0, %v1230
        %v3023 = vsub.f32 0.0, %v1231
        %v3024 = vsub.f32 0.0, %v1232
        %v3025 = vsub.f32 0.0, %v1233
        %v3026 = vsub.f32 0.0, %v1234
        %v3027 = vsub.f32 0.0, %v1235
        %v3028 = vsub.f32 0.0, %v1236
        %v3029 = vsub.f32 0.0, %v1237
        %v3030 = vsub.f32 0.0, %v1238
        %v3031 = vsub.f32 0.0, %v1239
        %v3032 = vsub.f32 0.0, %v1240
        %v3033 = vsub.f32 0.0, %v1241
        %v3034 = vsub.f32 0.0, %v1242
        %v3035 = vsub.f32 0.0, %v1243
        %v3036 = vsub.f32 0.0, %v1244
        %v3037 = vsub.f32 0.0, %v1245
        %v3038 = vsub.f32 0.0, %v1246
        %v3039 = vsub.f32 0.0, %v1247
        %v3040 = vsub.f32 0.0, %v1248
        %v3041 = vsub.f32 0.0, %v1249
        %v3042 = vsub.f32 0.0, %v1250
        %v3043 = vmul.f32 %v2915, %v1123
        %v3044 = vmul.f32 %v2916, %v1124
        %v3045 = vmul.f32 %v2917, %v1125
        %v3046 = vmul.f32 %v2918, %v1126
        %v3047 = vmul.f32 %v2919, %v1127
        %v3048 = vmul.f32 %v2920, %v1128
        %v3049 = vmul.f32 %v2921, %v1129
        %v3050 = vmul.f32 %v2922, %v1130
        %v3051 = vmul.f32 %v2923, %v1131
        %v3052 = vmul.f32 %v2924, %v1132
        %v3053 = vmul.f32 %v2925, %v1133
        %v3054 = vmul.f32 %v2926, %v1134
        %v3055 = vmul.f32 %v2927, %v1135
        %v3056 = vmul.f32 %v2928, %v1136
        %v3057 = vmul.f32 %v2929, %v1137
        %v3058 = vmul.f32 %v2930, %v1138
        %v3059 = vmul.f32 %v2931, %v1139
        %v3060 = vmul.f32 %v2932, %v1140
        %v3061 = vmul.f32 %v2933, %v1141
        %v3062 = vmul.f32 %v2934, %v1142
        %v3063 = vmul.f32 %v2935, %v1143
        %v3064 = vmul.f32 %v2936, %v1144
        %v3065 = vmul.f32 %v2937, %v1145
        %v3066 = vmul.f32 %v2938, %v1146
        %v3067 = vmul.f32 %v2939, %v1147
        %v3068 = vmul.f32 %v2940, %v1148
        %v3069 = vmul.f32 %v2941, %v1149
        %v3070 = vmul.f32 %v2942, %v1150
        %v3071 = vmul.f32 %v2943, %v1151
        %v3072 = vmul.f32 %v2944, %v1152
        %v3073 = vmul.f32 %v2945, %v1153
        %v3074 = vmul.f32 %v2946, %v1154
        %v3075 = vmul.f32 %v2947, %v1155
        %v3076 = vmul.f32 %v2948, %v1156
        %v3077 = vmul.f32 %v2949, %v1157
        %v3078 = vmul.f32 %v2950, %v1158
        %v3079 = vmul.f32 %v2951, %v1159
        %v3080 = vmul.f32 %v2952, %v1160
        %v3081 = vmul.f32 %v2953, %v1161
        %v3082 = vmul.f32 %v2954, %v1162
        %v3083 = vmul.f32 %v2955, %v1163
        %v3084 = vmul.f32 %v2956, %v1164
        %v3085 = vmul.f32 %v2957, %v1165
        %v3086 = vmul.f32 %v2958, %v1166
        %v3087 = vmul.f32 %v2959, %v1167
        %v3088 = vmul.f32 %v2960, %v1168
        %v3089 = vmul.f32 %v2961, %v1169
        %v3090 = vmul.f32 %v2962, %v1170
        %v3091 = vmul.f32 %v2963, %v1171
        %v3092 = vmul.f32 %v2964, %v1172
        %v3093 = vmul.f32 %v2965, %v1173
        %v3094 = vmul.f32 %v2966, %v1174
        %v3095 = vmul.f32 %v2967, %v1175
        %v3096 = vmul.f32 %v2968, %v1176
        %v3097 = vmul.f32 %v2969, %v1177
        %v3098 = vmul.f32 %v2970, %v1178
        %v3099 = vmul.f32 %v2971, %v1179
        %v3100 = vmul.f32 %v2972, %v1180
        %v3101 = vmul.f32 %v2973, %v1181
        %v3102 = vmul.f32 %v2974, %v1182
        %v3103 = vmul.f32 %v2975, %v1183
        %v3104 = vmul.f32 %v2976, %v1184
        %v3105 = vmul.f32 %v2977, %v1185
        %v3106 = vmul.f32 %v2978, %v1186
        %v3107 = vmul.f32 %v2979, %v1187
        %v3108 = vmul.f32 %v2980, %v1188
        %v3109 = vmul.f32 %v2981, %v1189
        %v3110 = vmul.f32 %v2982, %v1190
        %v3111 = vmul.f32 %v2983, %v1191
        %v3112 = vmul.f32 %v2984, %v1192
        %v3113 = vmul.f32 %v2985, %v1193
        %v3114 = vmul.f32 %v2986, %v1194
        %v3115 = vmul.f32 %v2987, %v1195
        %v3116 = vmul.f32 %v2988, %v1196
        %v3117 = vmul.f32 %v2989, %v1197
        %v3118 = vmul.f32 %v2990, %v1198
        %v3119 = vmul.f32 %v2991, %v1199
        %v3120 = vmul.f32 %v2992, %v1200
        %v3121 = vmul.f32 %v2993, %v1201
        %v3122 = vmul.f32 %v2994, %v1202
        %v3123 = vmul.f32 %v2995, %v1203
        %v3124 = vmul.f32 %v2996, %v1204
        %v3125 = vmul.f32 %v2997, %v1205
        %v3126 = vmul.f32 %v2998, %v1206
        %v3127 = vmul.f32 %v2999, %v1207
        %v3128 = vmul.f32 %v3000, %v1208
        %v3129 = vmul.f32 %v3001, %v1209
        %v3130 = vmul.f32 %v3002, %v1210
        %v3131 = vmul.f32 %v3003, %v1211
        %v3132 = vmul.f32 %v3004, %v1212
        %v3133 = vmul.f32 %v3005, %v1213
        %v3134 = vmul.f32 %v3006, %v1214
        %v3135 = vmul.f32 %v3007, %v1215
        %v3136 = vmul.f32 %v3008, %v1216
        %v3137 = vmul.f32 %v3009, %v1217
        %v3138 = vmul.f32 %v3010, %v1218
        %v3139 = vmul.f32 %v3011, %v1219
        %v3140 = vmul.f32 %v3012, %v1220
        %v3141 = vmul.f32 %v3013, %v1221
        %v3142 = vmul.f32 %v3014, %v1222
        %v3143 = vmul.f32 %v3015, %v1223
        %v3144 = vmul.f32 %v3016, %v1224
        %v3145 = vmul.f32 %v3017, %v1225
        %v3146 = vmul.f32 %v3018, %v1226
        %v3147 = vmul.f32 %v3019, %v1227
        %v3148 = vmul.f32 %v3020, %v1228
        %v3149 = vmul.f32 %v3021, %v1229
        %v3150 = vmul.f32 %v3022, %v1230
        %v3151 = vmul.f32 %v3023, %v1231
        %v3152 = vmul.f32 %v3024, %v1232
        %v3153 = vmul.f32 %v3025, %v1233
        %v3154 = vmul.f32 %v3026, %v1234
        %v3155 = vmul.f32 %v3027, %v1235
        %v3156 = vmul.f32 %v3028, %v1236
        %v3157 = vmul.f32 %v3029, %v1237
        %v3158 = vmul.f32 %v3030, %v1238
        %v3159 = vmul.f32 %v3031, %v1239
        %v3160 = vmul.f32 %v3032, %v1240
        %v3161 = vmul.f32 %v3033, %v1241
        %v3162 = vmul.f32 %v3034, %v1242
        %v3163 = vmul.f32 %v3035, %v1243
        %v3164 = vmul.f32 %v3036, %v1244
        %v3165 = vmul.f32 %v3037, %v1245
        %v3166 = vmul.f32 %v3038, %v1246
        %v3167 = vmul.f32 %v3039, %v1247
        %v3168 = vmul.f32 %v3040, %v1248
        %v3169 = vmul.f32 %v3041, %v1249
        %v3170 = vmul.f32 %v3042, %v1250
        %v3171 = vmul.f32 %v3043, 1.442695
        %v3172 = vpow.pop %v3171
        %v3173 = vmul.f32 %v3044, 1.442695
        %v3174 = vpow.pop %v3173
        %v3175 = vmul.f32 %v3045, 1.442695
        %v3176 = vpow.pop %v3175
        %v3177 = vmul.f32 %v3046, 1.442695
        %v3178 = vpow.pop %v3177
        %v3179 = vmul.f32 %v3047, 1.442695
        %v3180 = vpow.pop %v3179
        %v3181 = vmul.f32 %v3048, 1.442695
        %v3182 = vpow.pop %v3181
        %v3183 = vmul.f32 %v3049, 1.442695
        %v3184 = vpow.pop %v3183
        %v3185 = vmul.f32 %v3050, 1.442695
        %v3186 = vpow.pop %v3185
        %v3187 = vmul.f32 %v3051, 1.442695
        %v3188 = vpow.pop %v3187
        %v3189 = vmul.f32 %v3052, 1.442695
        %v3190 = vpow.pop %v3189
        %v3191 = vmul.f32 %v3053, 1.442695
        %v3192 = vpow.pop %v3191
        %v3193 = vmul.f32 %v3054, 1.442695
        %v3194 = vpow.pop %v3193
        %v3195 = vmul.f32 %v3055, 1.442695
        %v3196 = vpow.pop %v3195
        %v3197 = vmul.f32 %v3056, 1.442695
        %v3198 = vpow.pop %v3197
        %v3199 = vmul.f32 %v3057, 1.442695
        %v3200 = vpow.pop %v3199
        %v3201 = vmul.f32 %v3058, 1.442695
        %v3202 = vpow.pop %v3201
        %v3203 = vmul.f32 %v3059, 1.442695
        %v3204 = vpow.pop %v3203
        %v3205 = vmul.f32 %v3060, 1.442695
        %v3206 = vpow.pop %v3205
        %v3207 = vmul.f32 %v3061, 1.442695
        %v3208 = vpow.pop %v3207
        %v3209 = vmul.f32 %v3062, 1.442695
        %v3210 = vpow.pop %v3209
        %v3211 = vmul.f32 %v3063, 1.442695
        %v3212 = vpow.pop %v3211
        %v3213 = vmul.f32 %v3064, 1.442695
        %v3214 = vpow.pop %v3213
        %v3215 = vmul.f32 %v3065, 1.442695
        %v3216 = vpow.pop %v3215
        %v3217 = vmul.f32 %v3066, 1.442695
        %v3218 = vpow.pop %v3217
        %v3219 = vmul.f32 %v3067, 1.442695
        %v3220 = vpow.pop %v3219
        %v3221 = vmul.f32 %v3068, 1.442695
        %v3222 = vpow.pop %v3221
        %v3223 = vmul.f32 %v3069, 1.442695
        %v3224 = vpow.pop %v3223
        %v3225 = vmul.f32 %v3070, 1.442695
        %v3226 = vpow.pop %v3225
        %v3227 = vmul.f32 %v3071, 1.442695
        %v3228 = vpow.pop %v3227
        %v3229 = vmul.f32 %v3072, 1.442695
        %v3230 = vpow.pop %v3229
        %v3231 = vmul.f32 %v3073, 1.442695
        %v3232 = vpow.pop %v3231
        %v3233 = vmul.f32 %v3074, 1.442695
        %v3234 = vpow.pop %v3233
        %v3235 = vmul.f32 %v3075, 1.442695
        %v3236 = vpow.pop %v3235
        %v3237 = vmul.f32 %v3076, 1.442695
        %v3238 = vpow.pop %v3237
        %v3239 = vmul.f32 %v3077, 1.442695
        %v3240 = vpow.pop %v3239
        %v3241 = vmul.f32 %v3078, 1.442695
        %v3242 = vpow.pop %v3241
        %v3243 = vmul.f32 %v3079, 1.442695
        %v3244 = vpow.pop %v3243
        %v3245 = vmul.f32 %v3080, 1.442695
        %v3246 = vpow.pop %v3245
        %v3247 = vmul.f32 %v3081, 1.442695
        %v3248 = vpow.pop %v3247
        %v3249 = vmul.f32 %v3082, 1.442695
        %v3250 = vpow.pop %v3249
        %v3251 = vmul.f32 %v3083, 1.442695
        %v3252 = vpow.pop %v3251
        %v3253 = vmul.f32 %v3084, 1.442695
        %v3254 = vpow.pop %v3253
        %v3255 = vmul.f32 %v3085, 1.442695
        %v3256 = vpow.pop %v3255
        %v3257 = vmul.f32 %v3086, 1.442695
        %v3258 = vpow.pop %v3257
        %v3259 = vmul.f32 %v3087, 1.442695
        %v3260 = vpow.pop %v3259
        %v3261 = vmul.f32 %v3088, 1.442695
        %v3262 = vpow.pop %v3261
        %v3263 = vmul.f32 %v3089, 1.442695
        %v3264 = vpow.pop %v3263
        %v3265 = vmul.f32 %v3090, 1.442695
        %v3266 = vpow.pop %v3265
        %v3267 = vmul.f32 %v3091, 1.442695
        %v3268 = vpow.pop %v3267
        %v3269 = vmul.f32 %v3092, 1.442695
        %v3270 = vpow.pop %v3269
        %v3271 = vmul.f32 %v3093, 1.442695
        %v3272 = vpow.pop %v3271
        %v3273 = vmul.f32 %v3094, 1.442695
        %v3274 = vpow.pop %v3273
        %v3275 = vmul.f32 %v3095, 1.442695
        %v3276 = vpow.pop %v3275
        %v3277 = vmul.f32 %v3096, 1.442695
        %v3278 = vpow.pop %v3277
        %v3279 = vmul.f32 %v3097, 1.442695
        %v3280 = vpow.pop %v3279
        %v3281 = vmul.f32 %v3098, 1.442695
        %v3282 = vpow.pop %v3281
        %v3283 = vmul.f32 %v3099, 1.442695
        %v3284 = vpow.pop %v3283
        %v3285 = vmul.f32 %v3100, 1.442695
        %v3286 = vpow.pop %v3285
        %v3287 = vmul.f32 %v3101, 1.442695
        %v3288 = vpow.pop %v3287
        %v3289 = vmul.f32 %v3102, 1.442695
        %v3290 = vpow.pop %v3289
        %v3291 = vmul.f32 %v3103, 1.442695
        %v3292 = vpow.pop %v3291
        %v3293 = vmul.f32 %v3104, 1.442695
        %v3294 = vpow.pop %v3293
        %v3295 = vmul.f32 %v3105, 1.442695
        %v3296 = vpow.pop %v3295
        %v3297 = vmul.f32 %v3106, 1.442695
        %v3298 = vpow.pop %v3297
        %v3299 = vmul.f32 %v3107, 1.442695
        %v3300 = vpow.pop %v3299
        %v3301 = vmul.f32 %v3108, 1.442695
        %v3302 = vpow.pop %v3301
        %v3303 = vmul.f32 %v3109, 1.442695
        %v3304 = vpow.pop %v3303
        %v3305 = vmul.f32 %v3110, 1.442695
        %v3306 = vpow.pop %v3305
        %v3307 = vmul.f32 %v3111, 1.442695
        %v3308 = vpow.pop %v3307
        %v3309 = vmul.f32 %v3112, 1.442695
        %v3310 = vpow.pop %v3309
        %v3311 = vmul.f32 %v3113, 1.442695
        %v3312 = vpow.pop %v3311
        %v3313 = vmul.f32 %v3114, 1.442695
        %v3314 = vpow.pop %v3313
        %v3315 = vmul.f32 %v3115, 1.442695
        %v3316 = vpow.pop %v3315
        %v3317 = vmul.f32 %v3116, 1.442695
        %v3318 = vpow.pop %v3317
        %v3319 = vmul.f32 %v3117, 1.442695
        %v3320 = vpow.pop %v3319
        %v3321 = vmul.f32 %v3118, 1.442695
        %v3322 = vpow.pop %v3321
        %v3323 = vmul.f32 %v3119, 1.442695
        %v3324 = vpow.pop %v3323
        %v3325 = vmul.f32 %v3120, 1.442695
        %v3326 = vpow.pop %v3325
        %v3327 = vmul.f32 %v3121, 1.442695
        %v3328 = vpow.pop %v3327
        %v3329 = vmul.f32 %v3122, 1.442695
        %v3330 = vpow.pop %v3329
        %v3331 = vmul.f32 %v3123, 1.442695
        %v3332 = vpow.pop %v3331
        %v3333 = vmul.f32 %v3124, 1.442695
        %v3334 = vpow.pop %v3333
        %v3335 = vmul.f32 %v3125, 1.442695
        %v3336 = vpow.pop %v3335
        %v3337 = vmul.f32 %v3126, 1.442695
        %v3338 = vpow.pop %v3337
        %v3339 = vmul.f32 %v3127, 1.442695
        %v3340 = vpow.pop %v3339
        %v3341 = vmul.f32 %v3128, 1.442695
        %v3342 = vpow.pop %v3341
        %v3343 = vmul.f32 %v3129, 1.442695
        %v3344 = vpow.pop %v3343
        %v3345 = vmul.f32 %v3130, 1.442695
        %v3346 = vpow.pop %v3345
        %v3347 = vmul.f32 %v3131, 1.442695
        %v3348 = vpow.pop %v3347
        %v3349 = vmul.f32 %v3132, 1.442695
        %v3350 = vpow.pop %v3349
        %v3351 = vmul.f32 %v3133, 1.442695
        %v3352 = vpow.pop %v3351
        %v3353 = vmul.f32 %v3134, 1.442695
        %v3354 = vpow.pop %v3353
        %v3355 = vmul.f32 %v3135, 1.442695
        %v3356 = vpow.pop %v3355
        %v3357 = vmul.f32 %v3136, 1.442695
        %v3358 = vpow.pop %v3357
        %v3359 = vmul.f32 %v3137, 1.442695
        %v3360 = vpow.pop %v3359
        %v3361 = vmul.f32 %v3138, 1.442695
        %v3362 = vpow.pop %v3361
        %v3363 = vmul.f32 %v3139, 1.442695
        %v3364 = vpow.pop %v3363
        %v3365 = vmul.f32 %v3140, 1.442695
        %v3366 = vpow.pop %v3365
        %v3367 = vmul.f32 %v3141, 1.442695
        %v3368 = vpow.pop %v3367
        %v3369 = vmul.f32 %v3142, 1.442695
        %v3370 = vpow.pop %v3369
        %v3371 = vmul.f32 %v3143, 1.442695
        %v3372 = vpow.pop %v3371
        %v3373 = vmul.f32 %v3144, 1.442695
        %v3374 = vpow.pop %v3373
        %v3375 = vmul.f32 %v3145, 1.442695
        %v3376 = vpow.pop %v3375
        %v3377 = vmul.f32 %v3146, 1.442695
        %v3378 = vpow.pop %v3377
        %v3379 = vmul.f32 %v3147, 1.442695
        %v3380 = vpow.pop %v3379
        %v3381 = vmul.f32 %v3148, 1.442695
        %v3382 = vpow.pop %v3381
        %v3383 = vmul.f32 %v3149, 1.442695
        %v3384 = vpow.pop %v3383
        %v3385 = vmul.f32 %v3150, 1.442695
        %v3386 = vpow.pop %v3385
        %v3387 = vmul.f32 %v3151, 1.442695
        %v3388 = vpow.pop %v3387
        %v3389 = vmul.f32 %v3152, 1.442695
        %v3390 = vpow.pop %v3389
        %v3391 = vmul.f32 %v3153, 1.442695
        %v3392 = vpow.pop %v3391
        %v3393 = vmul.f32 %v3154, 1.442695
        %v3394 = vpow.pop %v3393
        %v3395 = vmul.f32 %v3155, 1.442695
        %v3396 = vpow.pop %v3395
        %v3397 = vmul.f32 %v3156, 1.442695
        %v3398 = vpow.pop %v3397
        %v3399 = vmul.f32 %v3157, 1.442695
        %v3400 = vpow.pop %v3399
        %v3401 = vmul.f32 %v3158, 1.442695
        %v3402 = vpow.pop %v3401
        %v3403 = vmul.f32 %v3159, 1.442695
        %v3404 = vpow.pop %v3403
        %v3405 = vmul.f32 %v3160, 1.442695
        %v3406 = vpow.pop %v3405
        %v3407 = vmul.f32 %v3161, 1.442695
        %v3408 = vpow.pop %v3407
        %v3409 = vmul.f32 %v3162, 1.442695
        %v3410 = vpow.pop %v3409
        %v3411 = vmul.f32 %v3163, 1.442695
        %v3412 = vpow.pop %v3411
        %v3413 = vmul.f32 %v3164, 1.442695
        %v3414 = vpow.pop %v3413
        %v3415 = vmul.f32 %v3165, 1.442695
        %v3416 = vpow.pop %v3415
        %v3417 = vmul.f32 %v3166, 1.442695
        %v3418 = vpow.pop %v3417
        %v3419 = vmul.f32 %v3167, 1.442695
        %v3420 = vpow.pop %v3419
        %v3421 = vmul.f32 %v3168, 1.442695
        %v3422 = vpow.pop %v3421
        %v3423 = vmul.f32 %v3169, 1.442695
        %v3424 = vpow.pop %v3423
        %v3425 = vmul.f32 %v3170, 1.442695
        %v3426 = vpow.pop %v3425
        %v3427 = vmul.f32 %v2787, %v3172
        %v3428 = vmul.f32 %v2788, %v3174
        %v3429 = vmul.f32 %v2789, %v3176
        %v3430 = vmul.f32 %v2790, %v3178
        %v3431 = vmul.f32 %v2791, %v3180
        %v3432 = vmul.f32 %v2792, %v3182
        %v3433 = vmul.f32 %v2793, %v3184
        %v3434 = vmul.f32 %v2794, %v3186
        %v3435 = vmul.f32 %v2795, %v3188
        %v3436 = vmul.f32 %v2796, %v3190
        %v3437 = vmul.f32 %v2797, %v3192
        %v3438 = vmul.f32 %v2798, %v3194
        %v3439 = vmul.f32 %v2799, %v3196
        %v3440 = vmul.f32 %v2800, %v3198
        %v3441 = vmul.f32 %v2801, %v3200
        %v3442 = vmul.f32 %v2802, %v3202
        %v3443 = vmul.f32 %v2803, %v3204
        %v3444 = vmul.f32 %v2804, %v3206
        %v3445 = vmul.f32 %v2805, %v3208
        %v3446 = vmul.f32 %v2806, %v3210
        %v3447 = vmul.f32 %v2807, %v3212
        %v3448 = vmul.f32 %v2808, %v3214
        %v3449 = vmul.f32 %v2809, %v3216
        %v3450 = vmul.f32 %v2810, %v3218
        %v3451 = vmul.f32 %v2811, %v3220
        %v3452 = vmul.f32 %v2812, %v3222
        %v3453 = vmul.f32 %v2813, %v3224
        %v3454 = vmul.f32 %v2814, %v3226
        %v3455 = vmul.f32 %v2815, %v3228
        %v3456 = vmul.f32 %v2816, %v3230
        %v3457 = vmul.f32 %v2817, %v3232
        %v3458 = vmul.f32 %v2818, %v3234
        %v3459 = vmul.f32 %v2819, %v3236
        %v3460 = vmul.f32 %v2820, %v3238
        %v3461 = vmul.f32 %v2821, %v3240
        %v3462 = vmul.f32 %v2822, %v3242
        %v3463 = vmul.f32 %v2823, %v3244
        %v3464 = vmul.f32 %v2824, %v3246
        %v3465 = vmul.f32 %v2825, %v3248
        %v3466 = vmul.f32 %v2826, %v3250
        %v3467 = vmul.f32 %v2827, %v3252
        %v3468 = vmul.f32 %v2828, %v3254
        %v3469 = vmul.f32 %v2829, %v3256
        %v3470 = vmul.f32 %v2830, %v3258
        %v3471 = vmul.f32 %v2831, %v3260
        %v3472 = vmul.f32 %v2832, %v3262
        %v3473 = vmul.f32 %v2833, %v3264
        %v3474 = vmul.f32 %v2834, %v3266
        %v3475 = vmul.f32 %v2835, %v3268
        %v3476 = vmul.f32 %v2836, %v3270
        %v3477 = vmul.f32 %v2837, %v3272
        %v3478 = vmul.f32 %v2838, %v3274
        %v3479 = vmul.f32 %v2839, %v3276
        %v3480 = vmul.f32 %v2840, %v3278
        %v3481 = vmul.f32 %v2841, %v3280
        %v3482 = vmul.f32 %v2842, %v3282
        %v3483 = vmul.f32 %v2843, %v3284
        %v3484 = vmul.f32 %v2844, %v3286
        %v3485 = vmul.f32 %v2845, %v3288
        %v3486 = vmul.f32 %v2846, %v3290
        %v3487 = vmul.f32 %v2847, %v3292
        %v3488 = vmul.f32 %v2848, %v3294
        %v3489 = vmul.f32 %v2849, %v3296
        %v3490 = vmul.f32 %v2850, %v3298
        %v3491 = vmul.f32 %v2851, %v3300
        %v3492 = vmul.f32 %v2852, %v3302
        %v3493 = vmul.f32 %v2853, %v3304
        %v3494 = vmul.f32 %v2854, %v3306
        %v3495 = vmul.f32 %v2855, %v3308
        %v3496 = vmul.f32 %v2856, %v3310
        %v3497 = vmul.f32 %v2857, %v3312
        %v3498 = vmul.f32 %v2858, %v3314
        %v3499 = vmul.f32 %v2859, %v3316
        %v3500 = vmul.f32 %v2860, %v3318
        %v3501 = vmul.f32 %v2861, %v3320
        %v3502 = vmul.f32 %v2862, %v3322
        %v3503 = vmul.f32 %v2863, %v3324
        %v3504 = vmul.f32 %v2864, %v3326
        %v3505 = vmul.f32 %v2865, %v3328
        %v3506 = vmul.f32 %v2866, %v3330
        %v3507 = vmul.f32 %v2867, %v3332
        %v3508 = vmul.f32 %v2868, %v3334
        %v3509 = vmul.f32 %v2869, %v3336
        %v3510 = vmul.f32 %v2870, %v3338
        %v3511 = vmul.f32 %v2871, %v3340
        %v3512 = vmul.f32 %v2872, %v3342
        %v3513 = vmul.f32 %v2873, %v3344
        %v3514 = vmul.f32 %v2874, %v3346
        %v3515 = vmul.f32 %v2875, %v3348
        %v3516 = vmul.f32 %v2876, %v3350
        %v3517 = vmul.f32 %v2877, %v3352
        %v3518 = vmul.f32 %v2878, %v3354
        %v3519 = vmul.f32 %v2879, %v3356
        %v3520 = vmul.f32 %v2880, %v3358
        %v3521 = vmul.f32 %v2881, %v3360
        %v3522 = vmul.f32 %v2882, %v3362
        %v3523 = vmul.f32 %v2883, %v3364
        %v3524 = vmul.f32 %v2884, %v3366
        %v3525 = vmul.f32 %v2885, %v3368
        %v3526 = vmul.f32 %v2886, %v3370
        %v3527 = vmul.f32 %v2887, %v3372
        %v3528 = vmul.f32 %v2888, %v3374
        %v3529 = vmul.f32 %v2889, %v3376
        %v3530 = vmul.f32 %v2890, %v3378
        %v3531 = vmul.f32 %v2891, %v3380
        %v3532 = vmul.f32 %v2892, %v3382
        %v3533 = vmul.f32 %v2893, %v3384
        %v3534 = vmul.f32 %v2894, %v3386
        %v3535 = vmul.f32 %v2895, %v3388
        %v3536 = vmul.f32 %v2896, %v3390
        %v3537 = vmul.f32 %v2897, %v3392
        %v3538 = vmul.f32 %v2898, %v3394
        %v3539 = vmul.f32 %v2899, %v3396
        %v3540 = vmul.f32 %v2900, %v3398
        %v3541 = vmul.f32 %v2901, %v3400
        %v3542 = vmul.f32 %v2902, %v3402
        %v3543 = vmul.f32 %v2903, %v3404
        %v3544 = vmul.f32 %v2904, %v3406
        %v3545 = vmul.f32 %v2905, %v3408
        %v3546 = vmul.f32 %v2906, %v3410
        %v3547 = vmul.f32 %v2907, %v3412
        %v3548 = vmul.f32 %v2908, %v3414
        %v3549 = vmul.f32 %v2909, %v3416
        %v3550 = vmul.f32 %v2910, %v3418
        %v3551 = vmul.f32 %v2911, %v3420
        %v3552 = vmul.f32 %v2912, %v3422
        %v3553 = vmul.f32 %v2913, %v3424
        %v3554 = vmul.f32 %v2914, %v3426
        %v3555 = vsub.f32 1.0, %v3427
        %v3556 = vsub.f32 1.0, %v3428
        %v3557 = vsub.f32 1.0, %v3429
        %v3558 = vsub.f32 1.0, %v3430
        %v3559 = vsub.f32 1.0, %v3431
        %v3560 = vsub.f32 1.0, %v3432
        %v3561 = vsub.f32 1.0, %v3433
        %v3562 = vsub.f32 1.0, %v3434
        %v3563 = vsub.f32 1.0, %v3435
        %v3564 = vsub.f32 1.0, %v3436
        %v3565 = vsub.f32 1.0, %v3437
        %v3566 = vsub.f32 1.0, %v3438
        %v3567 = vsub.f32 1.0, %v3439
        %v3568 = vsub.f32 1.0, %v3440
        %v3569 = vsub.f32 1.0, %v3441
        %v3570 = vsub.f32 1.0, %v3442
        %v3571 = vsub.f32 1.0, %v3443
        %v3572 = vsub.f32 1.0, %v3444
        %v3573 = vsub.f32 1.0, %v3445
        %v3574 = vsub.f32 1.0, %v3446
        %v3575 = vsub.f32 1.0, %v3447
        %v3576 = vsub.f32 1.0, %v3448
        %v3577 = vsub.f32 1.0, %v3449
        %v3578 = vsub.f32 1.0, %v3450
        %v3579 = vsub.f32 1.0, %v3451
        %v3580 = vsub.f32 1.0, %v3452
        %v3581 = vsub.f32 1.0, %v3453
        %v3582 = vsub.f32 1.0, %v3454
        %v3583 = vsub.f32 1.0, %v3455
        %v3584 = vsub.f32 1.0, %v3456
        %v3585 = vsub.f32 1.0, %v3457
        %v3586 = vsub.f32 1.0, %v3458
        %v3587 = vsub.f32 1.0, %v3459
        %v3588 = vsub.f32 1.0, %v3460
        %v3589 = vsub.f32 1.0, %v3461
        %v3590 = vsub.f32 1.0, %v3462
        %v3591 = vsub.f32 1.0, %v3463
        %v3592 = vsub.f32 1.0, %v3464
        %v3593 = vsub.f32 1.0, %v3465
        %v3594 = vsub.f32 1.0, %v3466
        %v3595 = vsub.f32 1.0, %v3467
        %v3596 = vsub.f32 1.0, %v3468
        %v3597 = vsub.f32 1.0, %v3469
        %v3598 = vsub.f32 1.0, %v3470
        %v3599 = vsub.f32 1.0, %v3471
        %v3600 = vsub.f32 1.0, %v3472
        %v3601 = vsub.f32 1.0, %v3473
        %v3602 = vsub.f32 1.0, %v3474
        %v3603 = vsub.f32 1.0, %v3475
        %v3604 = vsub.f32 1.0, %v3476
        %v3605 = vsub.f32 1.0, %v3477
        %v3606 = vsub.f32 1.0, %v3478
        %v3607 = vsub.f32 1.0, %v3479
        %v3608 = vsub.f32 1.0, %v3480
        %v3609 = vsub.f32 1.0, %v3481
        %v3610 = vsub.f32 1.0, %v3482
        %v3611 = vsub.f32 1.0, %v3483
        %v3612 = vsub.f32 1.0, %v3484
        %v3613 = vsub.f32 1.0, %v3485
        %v3614 = vsub.f32 1.0, %v3486
        %v3615 = vsub.f32 1.0, %v3487
        %v3616 = vsub.f32 1.0, %v3488
        %v3617 = vsub.f32 1.0, %v3489
        %v3618 = vsub.f32 1.0, %v3490
        %v3619 = vsub.f32 1.0, %v3491
        %v3620 = vsub.f32 1.0, %v3492
        %v3621 = vsub.f32 1.0, %v3493
        %v3622 = vsub.f32 1.0, %v3494
        %v3623 = vsub.f32 1.0, %v3495
        %v3624 = vsub.f32 1.0, %v3496
        %v3625 = vsub.f32 1.0, %v3497
        %v3626 = vsub.f32 1.0, %v3498
        %v3627 = vsub.f32 1.0, %v3499
        %v3628 = vsub.f32 1.0, %v3500
        %v3629 = vsub.f32 1.0, %v3501
        %v3630 = vsub.f32 1.0, %v3502
        %v3631 = vsub.f32 1.0, %v3503
        %v3632 = vsub.f32 1.0, %v3504
        %v3633 = vsub.f32 1.0, %v3505
        %v3634 = vsub.f32 1.0, %v3506
        %v3635 = vsub.f32 1.0, %v3507
        %v3636 = vsub.f32 1.0, %v3508
        %v3637 = vsub.f32 1.0, %v3509
        %v3638 = vsub.f32 1.0, %v3510
        %v3639 = vsub.f32 1.0, %v3511
        %v3640 = vsub.f32 1.0, %v3512
        %v3641 = vsub.f32 1.0, %v3513
        %v3642 = vsub.f32 1.0, %v3514
        %v3643 = vsub.f32 1.0, %v3515
        %v3644 = vsub.f32 1.0, %v3516
        %v3645 = vsub.f32 1.0, %v3517
        %v3646 = vsub.f32 1.0, %v3518
        %v3647 = vsub.f32 1.0, %v3519
        %v3648 = vsub.f32 1.0, %v3520
        %v3649 = vsub.f32 1.0, %v3521
        %v3650 = vsub.f32 1.0, %v3522
        %v3651 = vsub.f32 1.0, %v3523
        %v3652 = vsub.f32 1.0, %v3524
        %v3653 = vsub.f32 1.0, %v3525
        %v3654 = vsub.f32 1.0, %v3526
        %v3655 = vsub.f32 1.0, %v3527
        %v3656 = vsub.f32 1.0, %v3528
        %v3657 = vsub.f32 1.0, %v3529
        %v3658 = vsub.f32 1.0, %v3530
        %v3659 = vsub.f32 1.0, %v3531
        %v3660 = vsub.f32 1.0, %v3532
        %v3661 = vsub.f32 1.0, %v3533
        %v3662 = vsub.f32 1.0, %v3534
        %v3663 = vsub.f32 1.0, %v3535
        %v3664 = vsub.f32 1.0, %v3536
        %v3665 = vsub.f32 1.0, %v3537
        %v3666 = vsub.f32 1.0, %v3538
        %v3667 = vsub.f32 1.0, %v3539
        %v3668 = vsub.f32 1.0, %v3540
        %v3669 = vsub.f32 1.0, %v3541
        %v3670 = vsub.f32 1.0, %v3542
        %v3671 = vsub.f32 1.0, %v3543
        %v3672 = vsub.f32 1.0, %v3544
        %v3673 = vsub.f32 1.0, %v3545
        %v3674 = vsub.f32 1.0, %v3546
        %v3675 = vsub.f32 1.0, %v3547
        %v3676 = vsub.f32 1.0, %v3548
        %v3677 = vsub.f32 1.0, %v3549
        %v3678 = vsub.f32 1.0, %v3550
        %v3679 = vsub.f32 1.0, %v3551
        %v3680 = vsub.f32 1.0, %v3552
        %v3681 = vsub.f32 1.0, %v3553
        %v3682 = vsub.f32 1.0, %v3554
        %vm3683 = vcmp.ge.f32.partialorder %v995, 0.0
        %vm3684 = vcmp.ge.f32.partialorder %v996, 0.0
        %vm3685 = vcmp.ge.f32.partialorder %v997, 0.0
        %vm3686 = vcmp.ge.f32.partialorder %v998, 0.0
        %vm3687 = vcmp.ge.f32.partialorder %v999, 0.0
        %vm3688 = vcmp.ge.f32.partialorder %v1000, 0.0
        %vm3689 = vcmp.ge.f32.partialorder %v1001, 0.0
        %vm3690 = vcmp.ge.f32.partialorder %v1002, 0.0
        %vm3691 = vcmp.ge.f32.partialorder %v1003, 0.0
        %vm3692 = vcmp.ge.f32.partialorder %v1004, 0.0
        %vm3693 = vcmp.ge.f32.partialorder %v1005, 0.0
        %vm3694 = vcmp.ge.f32.partialorder %v1006, 0.0
        %vm3695 = vcmp.ge.f32.partialorder %v1007, 0.0
        %vm3696 = vcmp.ge.f32.partialorder %v1008, 0.0
        %vm3697 = vcmp.ge.f32.partialorder %v1009, 0.0
        %vm3698 = vcmp.ge.f32.partialorder %v1010, 0.0
        %vm3699 = vcmp.ge.f32.partialorder %v1011, 0.0
        %vm3700 = vcmp.ge.f32.partialorder %v1012, 0.0
        %vm3701 = vcmp.ge.f32.partialorder %v1013, 0.0
        %vm3702 = vcmp.ge.f32.partialorder %v1014, 0.0
        %vm3703 = vcmp.ge.f32.partialorder %v1015, 0.0
        %vm3704 = vcmp.ge.f32.partialorder %v1016, 0.0
        %vm3705 = vcmp.ge.f32.partialorder %v1017, 0.0
        %vm3706 = vcmp.ge.f32.partialorder %v1018, 0.0
        %vm3707 = vcmp.ge.f32.partialorder %v1019, 0.0
        %vm3708 = vcmp.ge.f32.partialorder %v1020, 0.0
        %vm3709 = vcmp.ge.f32.partialorder %v1021, 0.0
        %vm3710 = vcmp.ge.f32.partialorder %v1022, 0.0
        %vm3711 = vcmp.ge.f32.partialorder %v1023, 0.0
        %vm3712 = vcmp.ge.f32.partialorder %v1024, 0.0
        %vm3713 = vcmp.ge.f32.partialorder %v1025, 0.0
        %vm3714 = vcmp.ge.f32.partialorder %v1026, 0.0
        %vm3715 = vcmp.ge.f32.partialorder %v1027, 0.0
        %vm3716 = vcmp.ge.f32.partialorder %v1028, 0.0
        %vm3717 = vcmp.ge.f32.partialorder %v1029, 0.0
        %vm3718 = vcmp.ge.f32.partialorder %v1030, 0.0
        %vm3719 = vcmp.ge.f32.partialorder %v1031, 0.0
        %vm3720 = vcmp.ge.f32.partialorder %v1032, 0.0
        %vm3721 = vcmp.ge.f32.partialorder %v1033, 0.0
        %vm3722 = vcmp.ge.f32.partialorder %v1034, 0.0
        %vm3723 = vcmp.ge.f32.partialorder %v1035, 0.0
        %vm3724 = vcmp.ge.f32.partialorder %v1036, 0.0
        %vm3725 = vcmp.ge.f32.partialorder %v1037, 0.0
        %vm3726 = vcmp.ge.f32.partialorder %v1038, 0.0
        %vm3727 = vcmp.ge.f32.partialorder %v1039, 0.0
        %vm3728 = vcmp.ge.f32.partialorder %v1040, 0.0
        %vm3729 = vcmp.ge.f32.partialorder %v1041, 0.0
        %vm3730 = vcmp.ge.f32.partialorder %v1042, 0.0
        %vm3731 = vcmp.ge.f32.partialorder %v1043, 0.0
        %vm3732 = vcmp.ge.f32.partialorder %v1044, 0.0
        %vm3733 = vcmp.ge.f32.partialorder %v1045, 0.0
        %vm3734 = vcmp.ge.f32.partialorder %v1046, 0.0
        %vm3735 = vcmp.ge.f32.partialorder %v1047, 0.0
        %vm3736 = vcmp.ge.f32.partialorder %v1048, 0.0
        %vm3737 = vcmp.ge.f32.partialorder %v1049, 0.0
        %vm3738 = vcmp.ge.f32.partialorder %v1050, 0.0
        %vm3739 = vcmp.ge.f32.partialorder %v1051, 0.0
        %vm3740 = vcmp.ge.f32.partialorder %v1052, 0.0
        %vm3741 = vcmp.ge.f32.partialorder %v1053, 0.0
        %vm3742 = vcmp.ge.f32.partialorder %v1054, 0.0
        %vm3743 = vcmp.ge.f32.partialorder %v1055, 0.0
        %vm3744 = vcmp.ge.f32.partialorder %v1056, 0.0
        %vm3745 = vcmp.ge.f32.partialorder %v1057, 0.0
        %vm3746 = vcmp.ge.f32.partialorder %v1058, 0.0
        %vm3747 = vcmp.ge.f32.partialorder %v1059, 0.0
        %vm3748 = vcmp.ge.f32.partialorder %v1060, 0.0
        %vm3749 = vcmp.ge.f32.partialorder %v1061, 0.0
        %vm3750 = vcmp.ge.f32.partialorder %v1062, 0.0
        %vm3751 = vcmp.ge.f32.partialorder %v1063, 0.0
        %vm3752 = vcmp.ge.f32.partialorder %v1064, 0.0
        %vm3753 = vcmp.ge.f32.partialorder %v1065, 0.0
        %vm3754 = vcmp.ge.f32.partialorder %v1066, 0.0
        %vm3755 = vcmp.ge.f32.partialorder %v1067, 0.0
        %vm3756 = vcmp.ge.f32.partialorder %v1068, 0.0
        %vm3757 = vcmp.ge.f32.partialorder %v1069, 0.0
        %vm3758 = vcmp.ge.f32.partialorder %v1070, 0.0
        %vm3759 = vcmp.ge.f32.partialorder %v1071, 0.0
        %vm3760 = vcmp.ge.f32.partialorder %v1072, 0.0
        %vm3761 = vcmp.ge.f32.partialorder %v1073, 0.0
        %vm3762 = vcmp.ge.f32.partialorder %v1074, 0.0
        %vm3763 = vcmp.ge.f32.partialorder %v1075, 0.0
        %vm3764 = vcmp.ge.f32.partialorder %v1076, 0.0
        %vm3765 = vcmp.ge.f32.partialorder %v1077, 0.0
        %vm3766 = vcmp.ge.f32.partialorder %v1078, 0.0
        %vm3767 = vcmp.ge.f32.partialorder %v1079, 0.0
        %vm3768 = vcmp.ge.f32.partialorder %v1080, 0.0
        %vm3769 = vcmp.ge.f32.partialorder %v1081, 0.0
        %vm3770 = vcmp.ge.f32.partialorder %v1082, 0.0
        %vm3771 = vcmp.ge.f32.partialorder %v1083, 0.0
        %vm3772 = vcmp.ge.f32.partialorder %v1084, 0.0
        %vm3773 = vcmp.ge.f32.partialorder %v1085, 0.0
        %vm3774 = vcmp.ge.f32.partialorder %v1086, 0.0
        %vm3775 = vcmp.ge.f32.partialorder %v1087, 0.0
        %vm3776 = vcmp.ge.f32.partialorder %v1088, 0.0
        %vm3777 = vcmp.ge.f32.partialorder %v1089, 0.0
        %vm3778 = vcmp.ge.f32.partialorder %v1090, 0.0
        %vm3779 = vcmp.ge.f32.partialorder %v1091, 0.0
        %vm3780 = vcmp.ge.f32.partialorder %v1092, 0.0
        %vm3781 = vcmp.ge.f32.partialorder %v1093, 0.0
        %vm3782 = vcmp.ge.f32.partialorder %v1094, 0.0
        %vm3783 = vcmp.ge.f32.partialorder %v1095, 0.0
        %vm3784 = vcmp.ge.f32.partialorder %v1096, 0.0
        %vm3785 = vcmp.ge.f32.partialorder %v1097, 0.0
        %vm3786 = vcmp.ge.f32.partialorder %v1098, 0.0
        %vm3787 = vcmp.ge.f32.partialorder %v1099, 0.0
        %vm3788 = vcmp.ge.f32.partialorder %v1100, 0.0
        %vm3789 = vcmp.ge.f32.partialorder %v1101, 0.0
        %vm3790 = vcmp.ge.f32.partialorder %v1102, 0.0
        %vm3791 = vcmp.ge.f32.partialorder %v1103, 0.0
        %vm3792 = vcmp.ge.f32.partialorder %v1104, 0.0
        %vm3793 = vcmp.ge.f32.partialorder %v1105, 0.0
        %vm3794 = vcmp.ge.f32.partialorder %v1106, 0.0
        %vm3795 = vcmp.ge.f32.partialorder %v1107, 0.0
        %vm3796 = vcmp.ge.f32.partialorder %v1108, 0.0
        %vm3797 = vcmp.ge.f32.partialorder %v1109, 0.0
        %vm3798 = vcmp.ge.f32.partialorder %v1110, 0.0
        %vm3799 = vcmp.ge.f32.partialorder %v1111, 0.0
        %vm3800 = vcmp.ge.f32.partialorder %v1112, 0.0
        %vm3801 = vcmp.ge.f32.partialorder %v1113, 0.0
        %vm3802 = vcmp.ge.f32.partialorder %v1114, 0.0
        %vm3803 = vcmp.ge.f32.partialorder %v1115, 0.0
        %vm3804 = vcmp.ge.f32.partialorder %v1116, 0.0
        %vm3805 = vcmp.ge.f32.partialorder %v1117, 0.0
        %vm3806 = vcmp.ge.f32.partialorder %v1118, 0.0
        %vm3807 = vcmp.ge.f32.partialorder %v1119, 0.0
        %vm3808 = vcmp.ge.f32.partialorder %v1120, 0.0
        %vm3809 = vcmp.ge.f32.partialorder %v1121, 0.0
        %vm3810 = vcmp.ge.f32.partialorder %v1122, 0.0
        %v3811 = vsub.f32 0.0, %v3555
        %v3812 = vsub.f32 0.0, %v3556
        %v3813 = vsub.f32 0.0, %v3557
        %v3814 = vsub.f32 0.0, %v3558
        %v3815 = vsub.f32 0.0, %v3559
        %v3816 = vsub.f32 0.0, %v3560
        %v3817 = vsub.f32 0.0, %v3561
        %v3818 = vsub.f32 0.0, %v3562
        %v3819 = vsub.f32 0.0, %v3563
        %v3820 = vsub.f32 0.0, %v3564
        %v3821 = vsub.f32 0.0, %v3565
        %v3822 = vsub.f32 0.0, %v3566
        %v3823 = vsub.f32 0.0, %v3567
        %v3824 = vsub.f32 0.0, %v3568
        %v3825 = vsub.f32 0.0, %v3569
        %v3826 = vsub.f32 0.0, %v3570
        %v3827 = vsub.f32 0.0, %v3571
        %v3828 = vsub.f32 0.0, %v3572
        %v3829 = vsub.f32 0.0, %v3573
        %v3830 = vsub.f32 0.0, %v3574
        %v3831 = vsub.f32 0.0, %v3575
        %v3832 = vsub.f32 0.0, %v3576
        %v3833 = vsub.f32 0.0, %v3577
        %v3834 = vsub.f32 0.0, %v3578
        %v3835 = vsub.f32 0.0, %v3579
        %v3836 = vsub.f32 0.0, %v3580
        %v3837 = vsub.f32 0.0, %v3581
        %v3838 = vsub.f32 0.0, %v3582
        %v3839 = vsub.f32 0.0, %v3583
        %v3840 = vsub.f32 0.0, %v3584
        %v3841 = vsub.f32 0.0, %v3585
        %v3842 = vsub.f32 0.0, %v3586
        %v3843 = vsub.f32 0.0, %v3587
        %v3844 = vsub.f32 0.0, %v3588
        %v3845 = vsub.f32 0.0, %v3589
        %v3846 = vsub.f32 0.0, %v3590
        %v3847 = vsub.f32 0.0, %v3591
        %v3848 = vsub.f32 0.0, %v3592
        %v3849 = vsub.f32 0.0, %v3593
        %v3850 = vsub.f32 0.0, %v3594
        %v3851 = vsub.f32 0.0, %v3595
        %v3852 = vsub.f32 0.0, %v3596
        %v3853 = vsub.f32 0.0, %v3597
        %v3854 = vsub.f32 0.0, %v3598
        %v3855 = vsub.f32 0.0, %v3599
        %v3856 = vsub.f32 0.0, %v3600
        %v3857 = vsub.f32 0.0, %v3601
        %v3858 = vsub.f32 0.0, %v3602
        %v3859 = vsub.f32 0.0, %v3603
        %v3860 = vsub.f32 0.0, %v3604
        %v3861 = vsub.f32 0.0, %v3605
        %v3862 = vsub.f32 0.0, %v3606
        %v3863 = vsub.f32 0.0, %v3607
        %v3864 = vsub.f32 0.0, %v3608
        %v3865 = vsub.f32 0.0, %v3609
        %v3866 = vsub.f32 0.0, %v3610
        %v3867 = vsub.f32 0.0, %v3611
        %v3868 = vsub.f32 0.0, %v3612
        %v3869 = vsub.f32 0.0, %v3613
        %v3870 = vsub.f32 0.0, %v3614
        %v3871 = vsub.f32 0.0, %v3615
        %v3872 = vsub.f32 0.0, %v3616
        %v3873 = vsub.f32 0.0, %v3617
        %v3874 = vsub.f32 0.0, %v3618
        %v3875 = vsub.f32 0.0, %v3619
        %v3876 = vsub.f32 0.0, %v3620
        %v3877 = vsub.f32 0.0, %v3621
        %v3878 = vsub.f32 0.0, %v3622
        %v3879 = vsub.f32 0.0, %v3623
        %v3880 = vsub.f32 0.0, %v3624
        %v3881 = vsub.f32 0.0, %v3625
        %v3882 = vsub.f32 0.0, %v3626
        %v3883 = vsub.f32 0.0, %v3627
        %v3884 = vsub.f32 0.0, %v3628
        %v3885 = vsub.f32 0.0, %v3629
        %v3886 = vsub.f32 0.0, %v3630
        %v3887 = vsub.f32 0.0, %v3631
        %v3888 = vsub.f32 0.0, %v3632
        %v3889 = vsub.f32 0.0, %v3633
        %v3890 = vsub.f32 0.0, %v3634
        %v3891 = vsub.f32 0.0, %v3635
        %v3892 = vsub.f32 0.0, %v3636
        %v3893 = vsub.f32 0.0, %v3637
        %v3894 = vsub.f32 0.0, %v3638
        %v3895 = vsub.f32 0.0, %v3639
        %v3896 = vsub.f32 0.0, %v3640
        %v3897 = vsub.f32 0.0, %v3641
        %v3898 = vsub.f32 0.0, %v3642
        %v3899 = vsub.f32 0.0, %v3643
        %v3900 = vsub.f32 0.0, %v3644
        %v3901 = vsub.f32 0.0, %v3645
        %v3902 = vsub.f32 0.0, %v3646
        %v3903 = vsub.f32 0.0, %v3647
        %v3904 = vsub.f32 0.0, %v3648
        %v3905 = vsub.f32 0.0, %v3649
        %v3906 = vsub.f32 0.0, %v3650
        %v3907 = vsub.f32 0.0, %v3651
        %v3908 = vsub.f32 0.0, %v3652
        %v3909 = vsub.f32 0.0, %v3653
        %v3910 = vsub.f32 0.0, %v3654
        %v3911 = vsub.f32 0.0, %v3655
        %v3912 = vsub.f32 0.0, %v3656
        %v3913 = vsub.f32 0.0, %v3657
        %v3914 = vsub.f32 0.0, %v3658
        %v3915 = vsub.f32 0.0, %v3659
        %v3916 = vsub.f32 0.0, %v3660
        %v3917 = vsub.f32 0.0, %v3661
        %v3918 = vsub.f32 0.0, %v3662
        %v3919 = vsub.f32 0.0, %v3663
        %v3920 = vsub.f32 0.0, %v3664
        %v3921 = vsub.f32 0.0, %v3665
        %v3922 = vsub.f32 0.0, %v3666
        %v3923 = vsub.f32 0.0, %v3667
        %v3924 = vsub.f32 0.0, %v3668
        %v3925 = vsub.f32 0.0, %v3669
        %v3926 = vsub.f32 0.0, %v3670
        %v3927 = vsub.f32 0.0, %v3671
        %v3928 = vsub.f32 0.0, %v3672
        %v3929 = vsub.f32 0.0, %v3673
        %v3930 = vsub.f32 0.0, %v3674
        %v3931 = vsub.f32 0.0, %v3675
        %v3932 = vsub.f32 0.0, %v3676
        %v3933 = vsub.f32 0.0, %v3677
        %v3934 = vsub.f32 0.0, %v3678
        %v3935 = vsub.f32 0.0, %v3679
        %v3936 = vsub.f32 0.0, %v3680
        %v3937 = vsub.f32 0.0, %v3681
        %v3938 = vsub.f32 0.0, %v3682
        %v3939 = vsel %vm3683, %v3555, %v3811
        %v3940 = vsel %vm3684, %v3556, %v3812
        %v3941 = vsel %vm3685, %v3557, %v3813
        %v3942 = vsel %vm3686, %v3558, %v3814
        %v3943 = vsel %vm3687, %v3559, %v3815
        %v3944 = vsel %vm3688, %v3560, %v3816
        %v3945 = vsel %vm3689, %v3561, %v3817
        %v3946 = vsel %vm3690, %v3562, %v3818
        %v3947 = vsel %vm3691, %v3563, %v3819
        %v3948 = vsel %vm3692, %v3564, %v3820
        %v3949 = vsel %vm3693, %v3565, %v3821
        %v3950 = vsel %vm3694, %v3566, %v3822
        %v3951 = vsel %vm3695, %v3567, %v3823
        %v3952 = vsel %vm3696, %v3568, %v3824
        %v3953 = vsel %vm3697, %v3569, %v3825
        %v3954 = vsel %vm3698, %v3570, %v3826
        %v3955 = vsel %vm3699, %v3571, %v3827
        %v3956 = vsel %vm3700, %v3572, %v3828
        %v3957 = vsel %vm3701, %v3573, %v3829
        %v3958 = vsel %vm3702, %v3574, %v3830
        %v3959 = vsel %vm3703, %v3575, %v3831
        %v3960 = vsel %vm3704, %v3576, %v3832
        %v3961 = vsel %vm3705, %v3577, %v3833
        %v3962 = vsel %vm3706, %v3578, %v3834
        %v3963 = vsel %vm3707, %v3579, %v3835
        %v3964 = vsel %vm3708, %v3580, %v3836
        %v3965 = vsel %vm3709, %v3581, %v3837
        %v3966 = vsel %vm3710, %v3582, %v3838
        %v3967 = vsel %vm3711, %v3583, %v3839
        %v3968 = vsel %vm3712, %v3584, %v3840
        %v3969 = vsel %vm3713, %v3585, %v3841
        %v3970 = vsel %vm3714, %v3586, %v3842
        %v3971 = vsel %vm3715, %v3587, %v3843
        %v3972 = vsel %vm3716, %v3588, %v3844
        %v3973 = vsel %vm3717, %v3589, %v3845
        %v3974 = vsel %vm3718, %v3590, %v3846
        %v3975 = vsel %vm3719, %v3591, %v3847
        %v3976 = vsel %vm3720, %v3592, %v3848
        %v3977 = vsel %vm3721, %v3593, %v3849
        %v3978 = vsel %vm3722, %v3594, %v3850
        %v3979 = vsel %vm3723, %v3595, %v3851
        %v3980 = vsel %vm3724, %v3596, %v3852
        %v3981 = vsel %vm3725, %v3597, %v3853
        %v3982 = vsel %vm3726, %v3598, %v3854
        %v3983 = vsel %vm3727, %v3599, %v3855
        %v3984 = vsel %vm3728, %v3600, %v3856
        %v3985 = vsel %vm3729, %v3601, %v3857
        %v3986 = vsel %vm3730, %v3602, %v3858
        %v3987 = vsel %vm3731, %v3603, %v3859
        %v3988 = vsel %vm3732, %v3604, %v3860
        %v3989 = vsel %vm3733, %v3605, %v3861
        %v3990 = vsel %vm3734, %v3606, %v3862
        %v3991 = vsel %vm3735, %v3607, %v3863
        %v3992 = vsel %vm3736, %v3608, %v3864
        %v3993 = vsel %vm3737, %v3609, %v3865
        %v3994 = vsel %vm3738, %v3610, %v3866
        %v3995 = vsel %vm3739, %v3611, %v3867
        %v3996 = vsel %vm3740, %v3612, %v3868
        %v3997 = vsel %vm3741, %v3613, %v3869
        %v3998 = vsel %vm3742, %v3614, %v3870
        %v3999 = vsel %vm3743, %v3615, %v3871
        %v4000 = vsel %vm3744, %v3616, %v3872
        %v4001 = vsel %vm3745, %v3617, %v3873
        %v4002 = vsel %vm3746, %v3618, %v3874
        %v4003 = vsel %vm3747, %v3619, %v3875
        %v4004 = vsel %vm3748, %v3620, %v3876
        %v4005 = vsel %vm3749, %v3621, %v3877
        %v4006 = vsel %vm3750, %v3622, %v3878
        %v4007 = vsel %vm3751, %v3623, %v3879
        %v4008 = vsel %vm3752, %v3624, %v3880
        %v4009 = vsel %vm3753, %v3625, %v3881
        %v4010 = vsel %vm3754, %v3626, %v3882
        %v4011 = vsel %vm3755, %v3627, %v3883
        %v4012 = vsel %vm3756, %v3628, %v3884
        %v4013 = vsel %vm3757, %v3629, %v3885
        %v4014 = vsel %vm3758, %v3630, %v3886
        %v4015 = vsel %vm3759, %v3631, %v3887
        %v4016 = vsel %vm3760, %v3632, %v3888
        %v4017 = vsel %vm3761, %v3633, %v3889
        %v4018 = vsel %vm3762, %v3634, %v3890
        %v4019 = vsel %vm3763, %v3635, %v3891
        %v4020 = vsel %vm3764, %v3636, %v3892
        %v4021 = vsel %vm3765, %v3637, %v3893
        %v4022 = vsel %vm3766, %v3638, %v3894
        %v4023 = vsel %vm3767, %v3639, %v3895
        %v4024 = vsel %vm3768, %v3640, %v3896
        %v4025 = vsel %vm3769, %v3641, %v3897
        %v4026 = vsel %vm3770, %v3642, %v3898
        %v4027 = vsel %vm3771, %v3643, %v3899
        %v4028 = vsel %vm3772, %v3644, %v3900
        %v4029 = vsel %vm3773, %v3645, %v3901
        %v4030 = vsel %vm3774, %v3646, %v3902
        %v4031 = vsel %vm3775, %v3647, %v3903
        %v4032 = vsel %vm3776, %v3648, %v3904
        %v4033 = vsel %vm3777, %v3649, %v3905
        %v4034 = vsel %vm3778, %v3650, %v3906
        %v4035 = vsel %vm3779, %v3651, %v3907
        %v4036 = vsel %vm3780, %v3652, %v3908
        %v4037 = vsel %vm3781, %v3653, %v3909
        %v4038 = vsel %vm3782, %v3654, %v3910
        %v4039 = vsel %vm3783, %v3655, %v3911
        %v4040 = vsel %vm3784, %v3656, %v3912
        %v4041 = vsel %vm3785, %v3657, %v3913
        %v4042 = vsel %vm3786, %v3658, %v3914
        %v4043 = vsel %vm3787, %v3659, %v3915
        %v4044 = vsel %vm3788, %v3660, %v3916
        %v4045 = vsel %vm3789, %v3661, %v3917
        %v4046 = vsel %vm3790, %v3662, %v3918
        %v4047 = vsel %vm3791, %v3663, %v3919
        %v4048 = vsel %vm3792, %v3664, %v3920
        %v4049 = vsel %vm3793, %v3665, %v3921
        %v4050 = vsel %vm3794, %v3666, %v3922
        %v4051 = vsel %vm3795, %v3667, %v3923
        %v4052 = vsel %vm3796, %v3668, %v3924
        %v4053 = vsel %vm3797, %v3669, %v3925
        %v4054 = vsel %vm3798, %v3670, %v3926
        %v4055 = vsel %vm3799, %v3671, %v3927
        %v4056 = vsel %vm3800, %v3672, %v3928
        %v4057 = vsel %vm3801, %v3673, %v3929
        %v4058 = vsel %vm3802, %v3674, %v3930
        %v4059 = vsel %vm3803, %v3675, %v3931
        %v4060 = vsel %vm3804, %v3676, %v3932
        %v4061 = vsel %vm3805, %v3677, %v3933
        %v4062 = vsel %vm3806, %v3678, %v3934
        %v4063 = vsel %vm3807, %v3679, %v3935
        %v4064 = vsel %vm3808, %v3680, %v3936
        %v4065 = vsel %vm3809, %v3681, %v3937
        %v4066 = vsel %vm3810, %v3682, %v3938
        %v4067 = vadd.f32 %v3939, 1.0
        %v4068 = vadd.f32 %v3940, 1.0
        %v4069 = vadd.f32 %v3941, 1.0
        %v4070 = vadd.f32 %v3942, 1.0
        %v4071 = vadd.f32 %v3943, 1.0
        %v4072 = vadd.f32 %v3944, 1.0
        %v4073 = vadd.f32 %v3945, 1.0
        %v4074 = vadd.f32 %v3946, 1.0
        %v4075 = vadd.f32 %v3947, 1.0
        %v4076 = vadd.f32 %v3948, 1.0
        %v4077 = vadd.f32 %v3949, 1.0
        %v4078 = vadd.f32 %v3950, 1.0
        %v4079 = vadd.f32 %v3951, 1.0
        %v4080 = vadd.f32 %v3952, 1.0
        %v4081 = vadd.f32 %v3953, 1.0
        %v4082 = vadd.f32 %v3954, 1.0
        %v4083 = vadd.f32 %v3955, 1.0
        %v4084 = vadd.f32 %v3956, 1.0
        %v4085 = vadd.f32 %v3957, 1.0
        %v4086 = vadd.f32 %v3958, 1.0
        %v4087 = vadd.f32 %v3959, 1.0
        %v4088 = vadd.f32 %v3960, 1.0
        %v4089 = vadd.f32 %v3961, 1.0
        %v4090 = vadd.f32 %v3962, 1.0
        %v4091 = vadd.f32 %v3963, 1.0
        %v4092 = vadd.f32 %v3964, 1.0
        %v4093 = vadd.f32 %v3965, 1.0
        %v4094 = vadd.f32 %v3966, 1.0
        %v4095 = vadd.f32 %v3967, 1.0
        %v4096 = vadd.f32 %v3968, 1.0
        %v4097 = vadd.f32 %v3969, 1.0
        %v4098 = vadd.f32 %v3970, 1.0
        %v4099 = vadd.f32 %v3971, 1.0
        %v4100 = vadd.f32 %v3972, 1.0
        %v4101 = vadd.f32 %v3973, 1.0
        %v4102 = vadd.f32 %v3974, 1.0
        %v4103 = vadd.f32 %v3975, 1.0
        %v4104 = vadd.f32 %v3976, 1.0
        %v4105 = vadd.f32 %v3977, 1.0
        %v4106 = vadd.f32 %v3978, 1.0
        %v4107 = vadd.f32 %v3979, 1.0
        %v4108 = vadd.f32 %v3980, 1.0
        %v4109 = vadd.f32 %v3981, 1.0
        %v4110 = vadd.f32 %v3982, 1.0
        %v4111 = vadd.f32 %v3983, 1.0
        %v4112 = vadd.f32 %v3984, 1.0
        %v4113 = vadd.f32 %v3985, 1.0
        %v4114 = vadd.f32 %v3986, 1.0
        %v4115 = vadd.f32 %v3987, 1.0
        %v4116 = vadd.f32 %v3988, 1.0
        %v4117 = vadd.f32 %v3989, 1.0
        %v4118 = vadd.f32 %v3990, 1.0
        %v4119 = vadd.f32 %v3991, 1.0
        %v4120 = vadd.f32 %v3992, 1.0
        %v4121 = vadd.f32 %v3993, 1.0
        %v4122 = vadd.f32 %v3994, 1.0
        %v4123 = vadd.f32 %v3995, 1.0
        %v4124 = vadd.f32 %v3996, 1.0
        %v4125 = vadd.f32 %v3997, 1.0
        %v4126 = vadd.f32 %v3998, 1.0
        %v4127 = vadd.f32 %v3999, 1.0
        %v4128 = vadd.f32 %v4000, 1.0
        %v4129 = vadd.f32 %v4001, 1.0
        %v4130 = vadd.f32 %v4002, 1.0
        %v4131 = vadd.f32 %v4003, 1.0
        %v4132 = vadd.f32 %v4004, 1.0
        %v4133 = vadd.f32 %v4005, 1.0
        %v4134 = vadd.f32 %v4006, 1.0
        %v4135 = vadd.f32 %v4007, 1.0
        %v4136 = vadd.f32 %v4008, 1.0
        %v4137 = vadd.f32 %v4009, 1.0
        %v4138 = vadd.f32 %v4010, 1.0
        %v4139 = vadd.f32 %v4011, 1.0
        %v4140 = vadd.f32 %v4012, 1.0
        %v4141 = vadd.f32 %v4013, 1.0
        %v4142 = vadd.f32 %v4014, 1.0
        %v4143 = vadd.f32 %v4015, 1.0
        %v4144 = vadd.f32 %v4016, 1.0
        %v4145 = vadd.f32 %v4017, 1.0
        %v4146 = vadd.f32 %v4018, 1.0
        %v4147 = vadd.f32 %v4019, 1.0
        %v4148 = vadd.f32 %v4020, 1.0
        %v4149 = vadd.f32 %v4021, 1.0
        %v4150 = vadd.f32 %v4022, 1.0
        %v4151 = vadd.f32 %v4023, 1.0
        %v4152 = vadd.f32 %v4024, 1.0
        %v4153 = vadd.f32 %v4025, 1.0
        %v4154 = vadd.f32 %v4026, 1.0
        %v4155 = vadd.f32 %v4027, 1.0
        %v4156 = vadd.f32 %v4028, 1.0
        %v4157 = vadd.f32 %v4029, 1.0
        %v4158 = vadd.f32 %v4030, 1.0
        %v4159 = vadd.f32 %v4031, 1.0
        %v4160 = vadd.f32 %v4032, 1.0
        %v4161 = vadd.f32 %v4033, 1.0
        %v4162 = vadd.f32 %v4034, 1.0
        %v4163 = vadd.f32 %v4035, 1.0
        %v4164 = vadd.f32 %v4036, 1.0
        %v4165 = vadd.f32 %v4037, 1.0
        %v4166 = vadd.f32 %v4038, 1.0
        %v4167 = vadd.f32 %v4039, 1.0
        %v4168 = vadd.f32 %v4040, 1.0
        %v4169 = vadd.f32 %v4041, 1.0
        %v4170 = vadd.f32 %v4042, 1.0
        %v4171 = vadd.f32 %v4043, 1.0
        %v4172 = vadd.f32 %v4044, 1.0
        %v4173 = vadd.f32 %v4045, 1.0
        %v4174 = vadd.f32 %v4046, 1.0
        %v4175 = vadd.f32 %v4047, 1.0
        %v4176 = vadd.f32 %v4048, 1.0
        %v4177 = vadd.f32 %v4049, 1.0
        %v4178 = vadd.f32 %v4050, 1.0
        %v4179 = vadd.f32 %v4051, 1.0
        %v4180 = vadd.f32 %v4052, 1.0
        %v4181 = vadd.f32 %v4053, 1.0
        %v4182 = vadd.f32 %v4054, 1.0
        %v4183 = vadd.f32 %v4055, 1.0
        %v4184 = vadd.f32 %v4056, 1.0
        %v4185 = vadd.f32 %v4057, 1.0
        %v4186 = vadd.f32 %v4058, 1.0
        %v4187 = vadd.f32 %v4059, 1.0
        %v4188 = vadd.f32 %v4060, 1.0
        %v4189 = vadd.f32 %v4061, 1.0
        %v4190 = vadd.f32 %v4062, 1.0
        %v4191 = vadd.f32 %v4063, 1.0
        %v4192 = vadd.f32 %v4064, 1.0
        %v4193 = vadd.f32 %v4065, 1.0
        %v4194 = vadd.f32 %v4066, 1.0
        %v4195 = vmul.f32 %v867, %v4067
        %v4196 = vmul.f32 %v868, %v4068
        %v4197 = vmul.f32 %v869, %v4069
        %v4198 = vmul.f32 %v870, %v4070
        %v4199 = vmul.f32 %v871, %v4071
        %v4200 = vmul.f32 %v872, %v4072
        %v4201 = vmul.f32 %v873, %v4073
        %v4202 = vmul.f32 %v874, %v4074
        %v4203 = vmul.f32 %v875, %v4075
        %v4204 = vmul.f32 %v876, %v4076
        %v4205 = vmul.f32 %v877, %v4077
        %v4206 = vmul.f32 %v878, %v4078
        %v4207 = vmul.f32 %v879, %v4079
        %v4208 = vmul.f32 %v880, %v4080
        %v4209 = vmul.f32 %v881, %v4081
        %v4210 = vmul.f32 %v882, %v4082
        %v4211 = vmul.f32 %v883, %v4083
        %v4212 = vmul.f32 %v884, %v4084
        %v4213 = vmul.f32 %v885, %v4085
        %v4214 = vmul.f32 %v886, %v4086
        %v4215 = vmul.f32 %v887, %v4087
        %v4216 = vmul.f32 %v888, %v4088
        %v4217 = vmul.f32 %v889, %v4089
        %v4218 = vmul.f32 %v890, %v4090
        %v4219 = vmul.f32 %v891, %v4091
        %v4220 = vmul.f32 %v892, %v4092
        %v4221 = vmul.f32 %v893, %v4093
        %v4222 = vmul.f32 %v894, %v4094
        %v4223 = vmul.f32 %v895, %v4095
        %v4224 = vmul.f32 %v896, %v4096
        %v4225 = vmul.f32 %v897, %v4097
        %v4226 = vmul.f32 %v898, %v4098
        %v4227 = vmul.f32 %v899, %v4099
        %v4228 = vmul.f32 %v900, %v4100
        %v4229 = vmul.f32 %v901, %v4101
        %v4230 = vmul.f32 %v902, %v4102
        %v4231 = vmul.f32 %v903, %v4103
        %v4232 = vmul.f32 %v904, %v4104
        %v4233 = vmul.f32 %v905, %v4105
        %v4234 = vmul.f32 %v906, %v4106
        %v4235 = vmul.f32 %v907, %v4107
        %v4236 = vmul.f32 %v908, %v4108
        %v4237 = vmul.f32 %v909, %v4109
        %v4238 = vmul.f32 %v910, %v4110
        %v4239 = vmul.f32 %v911, %v4111
        %v4240 = vmul.f32 %v912, %v4112
        %v4241 = vmul.f32 %v913, %v4113
        %v4242 = vmul.f32 %v914, %v4114
        %v4243 = vmul.f32 %v915, %v4115
        %v4244 = vmul.f32 %v916, %v4116
        %v4245 = vmul.f32 %v917, %v4117
        %v4246 = vmul.f32 %v918, %v4118
        %v4247 = vmul.f32 %v919, %v4119
        %v4248 = vmul.f32 %v920, %v4120
        %v4249 = vmul.f32 %v921, %v4121
        %v4250 = vmul.f32 %v922, %v4122
        %v4251 = vmul.f32 %v923, %v4123
        %v4252 = vmul.f32 %v924, %v4124
        %v4253 = vmul.f32 %v925, %v4125
        %v4254 = vmul.f32 %v926, %v4126
        %v4255 = vmul.f32 %v927, %v4127
        %v4256 = vmul.f32 %v928, %v4128
        %v4257 = vmul.f32 %v929, %v4129
        %v4258 = vmul.f32 %v930, %v4130
        %v4259 = vmul.f32 %v931, %v4131
        %v4260 = vmul.f32 %v932, %v4132
        %v4261 = vmul.f32 %v933, %v4133
        %v4262 = vmul.f32 %v934, %v4134
        %v4263 = vmul.f32 %v935, %v4135
        %v4264 = vmul.f32 %v936, %v4136
        %v4265 = vmul.f32 %v937, %v4137
        %v4266 = vmul.f32 %v938, %v4138
        %v4267 = vmul.f32 %v939, %v4139
        %v4268 = vmul.f32 %v940, %v4140
        %v4269 = vmul.f32 %v941, %v4141
        %v4270 = vmul.f32 %v942, %v4142
        %v4271 = vmul.f32 %v943, %v4143
        %v4272 = vmul.f32 %v944, %v4144
        %v4273 = vmul.f32 %v945, %v4145
        %v4274 = vmul.f32 %v946, %v4146
        %v4275 = vmul.f32 %v947, %v4147
        %v4276 = vmul.f32 %v948, %v4148
        %v4277 = vmul.f32 %v949, %v4149
        %v4278 = vmul.f32 %v950, %v4150
        %v4279 = vmul.f32 %v951, %v4151
        %v4280 = vmul.f32 %v952, %v4152
        %v4281 = vmul.f32 %v953, %v4153
        %v4282 = vmul.f32 %v954, %v4154
        %v4283 = vmul.f32 %v955, %v4155
        %v4284 = vmul.f32 %v956, %v4156
        %v4285 = vmul.f32 %v957, %v4157
        %v4286 = vmul.f32 %v958, %v4158
        %v4287 = vmul.f32 %v959, %v4159
        %v4288 = vmul.f32 %v960, %v4160
        %v4289 = vmul.f32 %v961, %v4161
        %v4290 = vmul.f32 %v962, %v4162
        %v4291 = vmul.f32 %v963, %v4163
        %v4292 = vmul.f32 %v964, %v4164
        %v4293 = vmul.f32 %v965, %v4165
        %v4294 = vmul.f32 %v966, %v4166
        %v4295 = vmul.f32 %v967, %v4167
        %v4296 = vmul.f32 %v968, %v4168
        %v4297 = vmul.f32 %v969, %v4169
        %v4298 = vmul.f32 %v970, %v4170
        %v4299 = vmul.f32 %v971, %v4171
        %v4300 = vmul.f32 %v972, %v4172
        %v4301 = vmul.f32 %v973, %v4173
        %v4302 = vmul.f32 %v974, %v4174
        %v4303 = vmul.f32 %v975, %v4175
        %v4304 = vmul.f32 %v976, %v4176
        %v4305 = vmul.f32 %v977, %v4177
        %v4306 = vmul.f32 %v978, %v4178
        %v4307 = vmul.f32 %v979, %v4179
        %v4308 = vmul.f32 %v980, %v4180
        %v4309 = vmul.f32 %v981, %v4181
        %v4310 = vmul.f32 %v982, %v4182
        %v4311 = vmul.f32 %v983, %v4183
        %v4312 = vmul.f32 %v984, %v4184
        %v4313 = vmul.f32 %v985, %v4185
        %v4314 = vmul.f32 %v986, %v4186
        %v4315 = vmul.f32 %v987, %v4187
        %v4316 = vmul.f32 %v988, %v4188
        %v4317 = vmul.f32 %v989, %v4189
        %v4318 = vmul.f32 %v990, %v4190
        %v4319 = vmul.f32 %v991, %v4191
        %v4320 = vmul.f32 %v992, %v4192
        %v4321 = vmul.f32 %v993, %v4193
        %v4322 = vmul.f32 %v994, %v4194
        %4323 = vst [vmem:[%s456] sm:$0xff] %v4195
        %4324 = vst [vmem:[%s456 + $0x8] sm:$0xff] %v4196
        %4325 = vst [vmem:[%s456 + $0x10] sm:$0xff] %v4197
        %4326 = vst [vmem:[%s456 + $0x18] sm:$0xff] %v4198
        %4327 = vst [vmem:[%s456 + $0x20] sm:$0xff] %v4199
        %4328 = vst [vmem:[%s456 + $0x28] sm:$0xff] %v4200
        %4329 = vst [vmem:[%s456 + $0x30] sm:$0xff] %v4201
        %4330 = vst [vmem:[%s456 + $0x38] sm:$0xff] %v4202
        %4331 = vst [vmem:[%s456 + $0x40] sm:$0xff] %v4203
        %4332 = vst [vmem:[%s456 + $0x48] sm:$0xff] %v4204
        %4333 = vst [vmem:[%s456 + $0x50] sm:$0xff] %v4205
        %4334 = vst [vmem:[%s456 + $0x58] sm:$0xff] %v4206
        %4335 = vst [vmem:[%s456 + $0x60] sm:$0xff] %v4207
        %4336 = vst [vmem:[%s456 + $0x68] sm:$0xff] %v4208
        %4337 = vst [vmem:[%s456 + $0x70] sm:$0xff] %v4209
        %4338 = vst [vmem:[%s456 + $0x78] sm:$0xff] %v4210
        %4339 = vst [vmem:[%s456 + $0x80] sm:$0xff] %v4211
        %4340 = vst [vmem:[%s456 + $0x88] sm:$0xff] %v4212
        %4341 = vst [vmem:[%s456 + $0x90] sm:$0xff] %v4213
        %4342 = vst [vmem:[%s456 + $0x98] sm:$0xff] %v4214
        %4343 = vst [vmem:[%s456 + $0xa0] sm:$0xff] %v4215
        %4344 = vst [vmem:[%s456 + $0xa8] sm:$0xff] %v4216
        %4345 = vst [vmem:[%s456 + $0xb0] sm:$0xff] %v4217
        %4346 = vst [vmem:[%s456 + $0xb8] sm:$0xff] %v4218
        %4347 = vst [vmem:[%s456 + $0xc0] sm:$0xff] %v4219
        %4348 = vst [vmem:[%s456 + $0xc8] sm:$0xff] %v4220
        %4349 = vst [vmem:[%s456 + $0xd0] sm:$0xff] %v4221
        %4350 = vst [vmem:[%s456 + $0xd8] sm:$0xff] %v4222
        %4351 = vst [vmem:[%s456 + $0xe0] sm:$0xff] %v4223
        %4352 = vst [vmem:[%s456 + $0xe8] sm:$0xff] %v4224
        %4353 = vst [vmem:[%s456 + $0xf0] sm:$0xff] %v4225
        %4354 = vst [vmem:[%s456 + $0xf8] sm:$0xff] %v4226
        %4355 = vst [vmem:[%s456 + $0x100] sm:$0xff] %v4227
        %4356 = vst [vmem:[%s456 + $0x108] sm:$0xff] %v4228
        %4357 = vst [vmem:[%s456 + $0x110] sm:$0xff] %v4229
        %4358 = vst [vmem:[%s456 + $0x118] sm:$0xff] %v4230
        %4359 = vst [vmem:[%s456 + $0x120] sm:$0xff] %v4231
        %4360 = vst [vmem:[%s456 + $0x128] sm:$0xff] %v4232
        %4361 = vst [vmem:[%s456 + $0x130] sm:$0xff] %v4233
        %4362 = vst [vmem:[%s456 + $0x138] sm:$0xff] %v4234
        %4363 = vst [vmem:[%s456 + $0x140] sm:$0xff] %v4235
        %4364 = vst [vmem:[%s456 + $0x148] sm:$0xff] %v4236
        %4365 = vst [vmem:[%s456 + $0x150] sm:$0xff] %v4237
        %4366 = vst [vmem:[%s456 + $0x158] sm:$0xff] %v4238
        %4367 = vst [vmem:[%s456 + $0x160] sm:$0xff] %v4239
        %4368 = vst [vmem:[%s456 + $0x168] sm:$0xff] %v4240
        %4369 = vst [vmem:[%s456 + $0x170] sm:$0xff] %v4241
        %4370 = vst [vmem:[%s456 + $0x178] sm:$0xff] %v4242
        %4371 = vst [vmem:[%s456 + $0x180] sm:$0xff] %v4243
        %4372 = vst [vmem:[%s456 + $0x188] sm:$0xff] %v4244
        %4373 = vst [vmem:[%s456 + $0x190] sm:$0xff] %v4245
        %4374 = vst [vmem:[%s456 + $0x198] sm:$0xff] %v4246
        %4375 = vst [vmem:[%s456 + $0x1a0] sm:$0xff] %v4247
        %4376 = vst [vmem:[%s456 + $0x1a8] sm:$0xff] %v4248
        %4377 = vst [vmem:[%s456 + $0x1b0] sm:$0xff] %v4249
        %4378 = vst [vmem:[%s456 + $0x1b8] sm:$0xff] %v4250
        %4379 = vst [vmem:[%s456 + $0x1c0] sm:$0xff] %v4251
        %4380 = vst [vmem:[%s456 + $0x1c8] sm:$0xff] %v4252
        %4381 = vst [vmem:[%s456 + $0x1d0] sm:$0xff] %v4253
        %4382 = vst [vmem:[%s456 + $0x1d8] sm:$0xff] %v4254
        %4383 = vst [vmem:[%s456 + $0x1e0] sm:$0xff] %v4255
        %4384 = vst [vmem:[%s456 + $0x1e8] sm:$0xff] %v4256
        %4385 = vst [vmem:[%s456 + $0x1f0] sm:$0xff] %v4257
        %4386 = vst [vmem:[%s456 + $0x1f8] sm:$0xff] %v4258
        %4387 = vst [vmem:[%s456 + $0x200] sm:$0xff] %v4259
        %4388 = vst [vmem:[%s456 + $0x208] sm:$0xff] %v4260
        %4389 = vst [vmem:[%s456 + $0x210] sm:$0xff] %v4261
        %4390 = vst [vmem:[%s456 + $0x218] sm:$0xff] %v4262
        %4391 = vst [vmem:[%s456 + $0x220] sm:$0xff] %v4263
        %4392 = vst [vmem:[%s456 + $0x228] sm:$0xff] %v4264
        %4393 = vst [vmem:[%s456 + $0x230] sm:$0xff] %v4265
        %4394 = vst [vmem:[%s456 + $0x238] sm:$0xff] %v4266
        %4395 = vst [vmem:[%s456 + $0x240] sm:$0xff] %v4267
        %4396 = vst [vmem:[%s456 + $0x248] sm:$0xff] %v4268
        %4397 = vst [vmem:[%s456 + $0x250] sm:$0xff] %v4269
        %4398 = vst [vmem:[%s456 + $0x258] sm:$0xff] %v4270
        %4399 = vst [vmem:[%s456 + $0x260] sm:$0xff] %v4271
        %4400 = vst [vmem:[%s456 + $0x268] sm:$0xff] %v4272
        %4401 = vst [vmem:[%s456 + $0x270] sm:$0xff] %v4273
        %4402 = vst [vmem:[%s456 + $0x278] sm:$0xff] %v4274
        %4403 = vst [vmem:[%s456 + $0x280] sm:$0xff] %v4275
        %4404 = vst [vmem:[%s456 + $0x288] sm:$0xff] %v4276
        %4405 = vst [vmem:[%s456 + $0x290] sm:$0xff] %v4277
        %4406 = vst [vmem:[%s456 + $0x298] sm:$0xff] %v4278
        %4407 = vst [vmem:[%s456 + $0x2a0] sm:$0xff] %v4279
        %4408 = vst [vmem:[%s456 + $0x2a8] sm:$0xff] %v4280
        %4409 = vst [vmem:[%s456 + $0x2b0] sm:$0xff] %v4281
        %4410 = vst [vmem:[%s456 + $0x2b8] sm:$0xff] %v4282
        %4411 = vst [vmem:[%s456 + $0x2c0] sm:$0xff] %v4283
        %4412 = vst [vmem:[%s456 + $0x2c8] sm:$0xff] %v4284
        %4413 = vst [vmem:[%s456 + $0x2d0] sm:$0xff] %v4285
        %4414 = vst [vmem:[%s456 + $0x2d8] sm:$0xff] %v4286
        %4415 = vst [vmem:[%s456 + $0x2e0] sm:$0xff] %v4287
        %4416 = vst [vmem:[%s456 + $0x2e8] sm:$0xff] %v4288
        %4417 = vst [vmem:[%s456 + $0x2f0] sm:$0xff] %v4289
        %4418 = vst [vmem:[%s456 + $0x2f8] sm:$0xff] %v4290
        %4419 = vst [vmem:[%s456 + $0x300] sm:$0xff] %v4291
        %4420 = vst [vmem:[%s456 + $0x308] sm:$0xff] %v4292
        %4421 = vst [vmem:[%s456 + $0x310] sm:$0xff] %v4293
        %4422 = vst [vmem:[%s456 + $0x318] sm:$0xff] %v4294
        %4423 = vst [vmem:[%s456 + $0x320] sm:$0xff] %v4295
        %4424 = vst [vmem:[%s456 + $0x328] sm:$0xff] %v4296
        %4425 = vst [vmem:[%s456 + $0x330] sm:$0xff] %v4297
        %4426 = vst [vmem:[%s456 + $0x338] sm:$0xff] %v4298
        %4427 = vst [vmem:[%s456 + $0x340] sm:$0xff] %v4299
        %4428 = vst [vmem:[%s456 + $0x348] sm:$0xff] %v4300
        %4429 = vst [vmem:[%s456 + $0x350] sm:$0xff] %v4301
        %4430 = vst [vmem:[%s456 + $0x358] sm:$0xff] %v4302
        %4431 = vst [vmem:[%s456 + $0x360] sm:$0xff] %v4303
        %4432 = vst [vmem:[%s456 + $0x368] sm:$0xff] %v4304
        %4433 = vst [vmem:[%s456 + $0x370] sm:$0xff] %v4305
        %4434 = vst [vmem:[%s456 + $0x378] sm:$0xff] %v4306
        %4435 = vst [vmem:[%s456 + $0x380] sm:$0xff] %v4307
        %4436 = vst [vmem:[%s456 + $0x388] sm:$0xff] %v4308
        %4437 = vst [vmem:[%s456 + $0x390] sm:$0xff] %v4309
        %4438 = vst [vmem:[%s456 + $0x398] sm:$0xff] %v4310
        %4439 = vst [vmem:[%s456 + $0x3a0] sm:$0xff] %v4311
        %4440 = vst [vmem:[%s456 + $0x3a8] sm:$0xff] %v4312
        %4441 = vst [vmem:[%s456 + $0x3b0] sm:$0xff] %v4313
        %4442 = vst [vmem:[%s456 + $0x3b8] sm:$0xff] %v4314
        %4443 = vst [vmem:[%s456 + $0x3c0] sm:$0xff] %v4315
        %4444 = vst [vmem:[%s456 + $0x3c8] sm:$0xff] %v4316
        %4445 = vst [vmem:[%s456 + $0x3d0] sm:$0xff] %v4317
        %4446 = vst [vmem:[%s456 + $0x3d8] sm:$0xff] %v4318
        %4447 = vst [vmem:[%s456 + $0x3e0] sm:$0xff] %v4319
        %4448 = vst [vmem:[%s456 + $0x3e8] sm:$0xff] %v4320
        %4449 = vst [vmem:[%s456 + $0x3f0] sm:$0xff] %v4321
        %4450 = vst [vmem:[%s456 + $0x3f8] sm:$0xff] %v4322
        %s4451 = sand.u32 %s106, 1
        %s4452 = sand.u32 %s106, 1
        %s4453 = smul.addr %s4452, 1024
        %s4454 = scalar_lea.vmem [#allocation3], %s4453
        // Predicated region
        $region56: #{dra_forward.3} parent=50 // pred_check
          %p4455 = pneg %p116
        $region57: #{dra_forward.3} parent=50 // pred_check_branch
          %4457 = sbr.rel (%p4455) target = $region59
        $region58: #{dra_forward.3} parent=50 // pred_region
          %s4458 = smul.u32 64, %s19
          %s4459 = smul.addr %s18, 256
          %s4460 = sadd.s32 %s4458, %s4459
          %s4461 = smul.addr %s4460, 8
          %s4462 = scalar_lea.vmem %s3, %s4461
          // Predicated region
          $region60: #{dra_forward.3} parent=58 // pred_check
            _
          $region61: #{dra_forward.3} parent=58 // pred_check_branch
            %4464 = sbr.rel (0) target = $region63
          $region62: #{dra_forward.3} parent=58 // pred_region
            // Predicated region
            $region64: #{dra_forward.3} parent=62 // pred_check
              _
            $region65: #{dra_forward.3} parent=62 // pred_check_branch
              %4466 = sbr.rel (0) target = $region67
            $region66: #{dra_forward.3} parent=62 // pred_region
              loop: start=0, step=1, limit=1
              $region68: #{dra_forward.3} parent=66 // loop_pre_header
                _
              $region69: #{dra_forward.3} parent=66 // loop_header
                %s4468 = sphi 0, %s4472
                %p4469 = scmp.ge.s32.totalorder %s4468, 1
                %s4473 = sphi %s4454, %s4454
                %s4474 = sphi %s4462, %s4462
              $region70: #{dra_forward.3} parent=66 // loop_header_branch
                %4471 = sbr.rel (%p4469) target = $region74
              $region71: #{dra_forward.3} parent=66 // loop_body
                %v4475 = vld [vmem:[%s4473] sm:$0xff]
                %4476 = vst [vmem:[%s4474] sm:$0xff] %v4475
                %v4477 = vld [vmem:[%s4473 + $0x8] sm:$0xff]
                %4478 = vst [vmem:[%s4474 + $0x8] sm:$0xff] %v4477
                %v4479 = vld [vmem:[%s4473 + $0x10] sm:$0xff]
                %4480 = vst [vmem:[%s4474 + $0x10] sm:$0xff] %v4479
                %v4481 = vld [vmem:[%s4473 + $0x18] sm:$0xff]
                %4482 = vst [vmem:[%s4474 + $0x18] sm:$0xff] %v4481
                %v4483 = vld [vmem:[%s4473 + $0x20] sm:$0xff]
                %4484 = vst [vmem:[%s4474 + $0x20] sm:$0xff] %v4483
                %v4485 = vld [vmem:[%s4473 + $0x28] sm:$0xff]
                %4486 = vst [vmem:[%s4474 + $0x28] sm:$0xff] %v4485
                %v4487 = vld [vmem:[%s4473 + $0x30] sm:$0xff]
                %4488 = vst [vmem:[%s4474 + $0x30] sm:$0xff] %v4487
                %v4489 = vld [vmem:[%s4473 + $0x38] sm:$0xff]
                %4490 = vst [vmem:[%s4474 + $0x38] sm:$0xff] %v4489
                %v4491 = vld [vmem:[%s4473 + $0x40] sm:$0xff]
                %4492 = vst [vmem:[%s4474 + $0x40] sm:$0xff] %v4491
                %v4493 = vld [vmem:[%s4473 + $0x48] sm:$0xff]
                %4494 = vst [vmem:[%s4474 + $0x48] sm:$0xff] %v4493
                %v4495 = vld [vmem:[%s4473 + $0x50] sm:$0xff]
                %4496 = vst [vmem:[%s4474 + $0x50] sm:$0xff] %v4495
                %v4497 = vld [vmem:[%s4473 + $0x58] sm:$0xff]
                %4498 = vst [vmem:[%s4474 + $0x58] sm:$0xff] %v4497
                %v4499 = vld [vmem:[%s4473 + $0x60] sm:$0xff]
                %4500 = vst [vmem:[%s4474 + $0x60] sm:$0xff] %v4499
                %v4501 = vld [vmem:[%s4473 + $0x68] sm:$0xff]
                %4502 = vst [vmem:[%s4474 + $0x68] sm:$0xff] %v4501
                %v4503 = vld [vmem:[%s4473 + $0x70] sm:$0xff]
                %4504 = vst [vmem:[%s4474 + $0x70] sm:$0xff] %v4503
                %v4505 = vld [vmem:[%s4473 + $0x78] sm:$0xff]
                %4506 = vst [vmem:[%s4474 + $0x78] sm:$0xff] %v4505
                %v4507 = vld [vmem:[%s4473 + $0x80] sm:$0xff]
                %4508 = vst [vmem:[%s4474 + $0x80] sm:$0xff] %v4507
                %v4509 = vld [vmem:[%s4473 + $0x88] sm:$0xff]
                %4510 = vst [vmem:[%s4474 + $0x88] sm:$0xff] %v4509
                %v4511 = vld [vmem:[%s4473 + $0x90] sm:$0xff]
                %4512 = vst [vmem:[%s4474 + $0x90] sm:$0xff] %v4511
                %v4513 = vld [vmem:[%s4473 + $0x98] sm:$0xff]
                %4514 = vst [vmem:[%s4474 + $0x98] sm:$0xff] %v4513
                %v4515 = vld [vmem:[%s4473 + $0xa0] sm:$0xff]
                %4516 = vst [vmem:[%s4474 + $0xa0] sm:$0xff] %v4515
                %v4517 = vld [vmem:[%s4473 + $0xa8] sm:$0xff]
                %4518 = vst [vmem:[%s4474 + $0xa8] sm:$0xff] %v4517
                %v4519 = vld [vmem:[%s4473 + $0xb0] sm:$0xff]
                %4520 = vst [vmem:[%s4474 + $0xb0] sm:$0xff] %v4519
                %v4521 = vld [vmem:[%s4473 + $0xb8] sm:$0xff]
                %4522 = vst [vmem:[%s4474 + $0xb8] sm:$0xff] %v4521
                %v4523 = vld [vmem:[%s4473 + $0xc0] sm:$0xff]
                %4524 = vst [vmem:[%s4474 + $0xc0] sm:$0xff] %v4523
                %v4525 = vld [vmem:[%s4473 + $0xc8] sm:$0xff]
                %4526 = vst [vmem:[%s4474 + $0xc8] sm:$0xff] %v4525
                %v4527 = vld [vmem:[%s4473 + $0xd0] sm:$0xff]
                %4528 = vst [vmem:[%s4474 + $0xd0] sm:$0xff] %v4527
                %v4529 = vld [vmem:[%s4473 + $0xd8] sm:$0xff]
                %4530 = vst [vmem:[%s4474 + $0xd8] sm:$0xff] %v4529
                %v4531 = vld [vmem:[%s4473 + $0xe0] sm:$0xff]
                %4532 = vst [vmem:[%s4474 + $0xe0] sm:$0xff] %v4531
                %v4533 = vld [vmem:[%s4473 + $0xe8] sm:$0xff]
                %4534 = vst [vmem:[%s4474 + $0xe8] sm:$0xff] %v4533
                %v4535 = vld [vmem:[%s4473 + $0xf0] sm:$0xff]
                %4536 = vst [vmem:[%s4474 + $0xf0] sm:$0xff] %v4535
                %v4537 = vld [vmem:[%s4473 + $0xf8] sm:$0xff]
                %4538 = vst [vmem:[%s4474 + $0xf8] sm:$0xff] %v4537
                %v4539 = vld [vmem:[%s4473 + $0x100] sm:$0xff]
                %4540 = vst [vmem:[%s4474 + $0x100] sm:$0xff] %v4539
                %v4541 = vld [vmem:[%s4473 + $0x108] sm:$0xff]
                %4542 = vst [vmem:[%s4474 + $0x108] sm:$0xff] %v4541
                %v4543 = vld [vmem:[%s4473 + $0x110] sm:$0xff]
                %4544 = vst [vmem:[%s4474 + $0x110] sm:$0xff] %v4543
                %v4545 = vld [vmem:[%s4473 + $0x118] sm:$0xff]
                %4546 = vst [vmem:[%s4474 + $0x118] sm:$0xff] %v4545
                %v4547 = vld [vmem:[%s4473 + $0x120] sm:$0xff]
                %4548 = vst [vmem:[%s4474 + $0x120] sm:$0xff] %v4547
                %v4549 = vld [vmem:[%s4473 + $0x128] sm:$0xff]
                %4550 = vst [vmem:[%s4474 + $0x128] sm:$0xff] %v4549
                %v4551 = vld [vmem:[%s4473 + $0x130] sm:$0xff]
                %4552 = vst [vmem:[%s4474 + $0x130] sm:$0xff] %v4551
                %v4553 = vld [vmem:[%s4473 + $0x138] sm:$0xff]
                %4554 = vst [vmem:[%s4474 + $0x138] sm:$0xff] %v4553
                %v4555 = vld [vmem:[%s4473 + $0x140] sm:$0xff]
                %4556 = vst [vmem:[%s4474 + $0x140] sm:$0xff] %v4555
                %v4557 = vld [vmem:[%s4473 + $0x148] sm:$0xff]
                %4558 = vst [vmem:[%s4474 + $0x148] sm:$0xff] %v4557
                %v4559 = vld [vmem:[%s4473 + $0x150] sm:$0xff]
                %4560 = vst [vmem:[%s4474 + $0x150] sm:$0xff] %v4559
                %v4561 = vld [vmem:[%s4473 + $0x158] sm:$0xff]
                %4562 = vst [vmem:[%s4474 + $0x158] sm:$0xff] %v4561
                %v4563 = vld [vmem:[%s4473 + $0x160] sm:$0xff]
                %4564 = vst [vmem:[%s4474 + $0x160] sm:$0xff] %v4563
                %v4565 = vld [vmem:[%s4473 + $0x168] sm:$0xff]
                %4566 = vst [vmem:[%s4474 + $0x168] sm:$0xff] %v4565
                %v4567 = vld [vmem:[%s4473 + $0x170] sm:$0xff]
                %4568 = vst [vmem:[%s4474 + $0x170] sm:$0xff] %v4567
                %v4569 = vld [vmem:[%s4473 + $0x178] sm:$0xff]
                %4570 = vst [vmem:[%s4474 + $0x178] sm:$0xff] %v4569
                %v4571 = vld [vmem:[%s4473 + $0x180] sm:$0xff]
                %4572 = vst [vmem:[%s4474 + $0x180] sm:$0xff] %v4571
                %v4573 = vld [vmem:[%s4473 + $0x188] sm:$0xff]
                %4574 = vst [vmem:[%s4474 + $0x188] sm:$0xff] %v4573
                %v4575 = vld [vmem:[%s4473 + $0x190] sm:$0xff]
                %4576 = vst [vmem:[%s4474 + $0x190] sm:$0xff] %v4575
                %v4577 = vld [vmem:[%s4473 + $0x198] sm:$0xff]
                %4578 = vst [vmem:[%s4474 + $0x198] sm:$0xff] %v4577
                %v4579 = vld [vmem:[%s4473 + $0x1a0] sm:$0xff]
                %4580 = vst [vmem:[%s4474 + $0x1a0] sm:$0xff] %v4579
                %v4581 = vld [vmem:[%s4473 + $0x1a8] sm:$0xff]
                %4582 = vst [vmem:[%s4474 + $0x1a8] sm:$0xff] %v4581
                %v4583 = vld [vmem:[%s4473 + $0x1b0] sm:$0xff]
                %4584 = vst [vmem:[%s4474 + $0x1b0] sm:$0xff] %v4583
                %v4585 = vld [vmem:[%s4473 + $0x1b8] sm:$0xff]
                %4586 = vst [vmem:[%s4474 + $0x1b8] sm:$0xff] %v4585
                %v4587 = vld [vmem:[%s4473 + $0x1c0] sm:$0xff]
                %4588 = vst [vmem:[%s4474 + $0x1c0] sm:$0xff] %v4587
                %v4589 = vld [vmem:[%s4473 + $0x1c8] sm:$0xff]
                %4590 = vst [vmem:[%s4474 + $0x1c8] sm:$0xff] %v4589
                %v4591 = vld [vmem:[%s4473 + $0x1d0] sm:$0xff]
                %4592 = vst [vmem:[%s4474 + $0x1d0] sm:$0xff] %v4591
                %v4593 = vld [vmem:[%s4473 + $0x1d8] sm:$0xff]
                %4594 = vst [vmem:[%s4474 + $0x1d8] sm:$0xff] %v4593
                %v4595 = vld [vmem:[%s4473 + $0x1e0] sm:$0xff]
                %4596 = vst [vmem:[%s4474 + $0x1e0] sm:$0xff] %v4595
                %v4597 = vld [vmem:[%s4473 + $0x1e8] sm:$0xff]
                %4598 = vst [vmem:[%s4474 + $0x1e8] sm:$0xff] %v4597
                %v4599 = vld [vmem:[%s4473 + $0x1f0] sm:$0xff]
                %4600 = vst [vmem:[%s4474 + $0x1f0] sm:$0xff] %v4599
                %v4601 = vld [vmem:[%s4473 + $0x1f8] sm:$0xff]
                %4602 = vst [vmem:[%s4474 + $0x1f8] sm:$0xff] %v4601
                %v4603 = vld [vmem:[%s4473 + $0x200] sm:$0xff]
                %4604 = vst [vmem:[%s4474 + $0x400] sm:$0xff] %v4603
                %v4605 = vld [vmem:[%s4473 + $0x208] sm:$0xff]
                %4606 = vst [vmem:[%s4474 + $0x408] sm:$0xff] %v4605
                %v4607 = vld [vmem:[%s4473 + $0x210] sm:$0xff]
                %4608 = vst [vmem:[%s4474 + $0x410] sm:$0xff] %v4607
                %v4609 = vld [vmem:[%s4473 + $0x218] sm:$0xff]
                %4610 = vst [vmem:[%s4474 + $0x418] sm:$0xff] %v4609
                %v4611 = vld [vmem:[%s4473 + $0x220] sm:$0xff]
                %4612 = vst [vmem:[%s4474 + $0x420] sm:$0xff] %v4611
                %v4613 = vld [vmem:[%s4473 + $0x228] sm:$0xff]
                %4614 = vst [vmem:[%s4474 + $0x428] sm:$0xff] %v4613
                %v4615 = vld [vmem:[%s4473 + $0x230] sm:$0xff]
                %4616 = vst [vmem:[%s4474 + $0x430] sm:$0xff] %v4615
                %v4617 = vld [vmem:[%s4473 + $0x238] sm:$0xff]
                %4618 = vst [vmem:[%s4474 + $0x438] sm:$0xff] %v4617
                %v4619 = vld [vmem:[%s4473 + $0x240] sm:$0xff]
                %4620 = vst [vmem:[%s4474 + $0x440] sm:$0xff] %v4619
                %v4621 = vld [vmem:[%s4473 + $0x248] sm:$0xff]
                %4622 = vst [vmem:[%s4474 + $0x448] sm:$0xff] %v4621
                %v4623 = vld [vmem:[%s4473 + $0x250] sm:$0xff]
                %4624 = vst [vmem:[%s4474 + $0x450] sm:$0xff] %v4623
                %v4625 = vld [vmem:[%s4473 + $0x258] sm:$0xff]
                %4626 = vst [vmem:[%s4474 + $0x458] sm:$0xff] %v4625
                %v4627 = vld [vmem:[%s4473 + $0x260] sm:$0xff]
                %4628 = vst [vmem:[%s4474 + $0x460] sm:$0xff] %v4627
                %v4629 = vld [vmem:[%s4473 + $0x268] sm:$0xff]
                %4630 = vst [vmem:[%s4474 + $0x468] sm:$0xff] %v4629
                %v4631 = vld [vmem:[%s4473 + $0x270] sm:$0xff]
                %4632 = vst [vmem:[%s4474 + $0x470] sm:$0xff] %v4631
                %v4633 = vld [vmem:[%s4473 + $0x278] sm:$0xff]
                %4634 = vst [vmem:[%s4474 + $0x478] sm:$0xff] %v4633
                %v4635 = vld [vmem:[%s4473 + $0x280] sm:$0xff]
                %4636 = vst [vmem:[%s4474 + $0x480] sm:$0xff] %v4635
                %v4637 = vld [vmem:[%s4473 + $0x288] sm:$0xff]
                %4638 = vst [vmem:[%s4474 + $0x488] sm:$0xff] %v4637
                %v4639 = vld [vmem:[%s4473 + $0x290] sm:$0xff]
                %4640 = vst [vmem:[%s4474 + $0x490] sm:$0xff] %v4639
                %v4641 = vld [vmem:[%s4473 + $0x298] sm:$0xff]
                %4642 = vst [vmem:[%s4474 + $0x498] sm:$0xff] %v4641
                %v4643 = vld [vmem:[%s4473 + $0x2a0] sm:$0xff]
                %4644 = vst [vmem:[%s4474 + $0x4a0] sm:$0xff] %v4643
                %v4645 = vld [vmem:[%s4473 + $0x2a8] sm:$0xff]
                %4646 = vst [vmem:[%s4474 + $0x4a8] sm:$0xff] %v4645
                %v4647 = vld [vmem:[%s4473 + $0x2b0] sm:$0xff]
                %4648 = vst [vmem:[%s4474 + $0x4b0] sm:$0xff] %v4647
                %v4649 = vld [vmem:[%s4473 + $0x2b8] sm:$0xff]
                %4650 = vst [vmem:[%s4474 + $0x4b8] sm:$0xff] %v4649
                %v4651 = vld [vmem:[%s4473 + $0x2c0] sm:$0xff]
                %4652 = vst [vmem:[%s4474 + $0x4c0] sm:$0xff] %v4651
                %v4653 = vld [vmem:[%s4473 + $0x2c8] sm:$0xff]
                %4654 = vst [vmem:[%s4474 + $0x4c8] sm:$0xff] %v4653
                %v4655 = vld [vmem:[%s4473 + $0x2d0] sm:$0xff]
                %4656 = vst [vmem:[%s4474 + $0x4d0] sm:$0xff] %v4655
                %v4657 = vld [vmem:[%s4473 + $0x2d8] sm:$0xff]
                %4658 = vst [vmem:[%s4474 + $0x4d8] sm:$0xff] %v4657
                %v4659 = vld [vmem:[%s4473 + $0x2e0] sm:$0xff]
                %4660 = vst [vmem:[%s4474 + $0x4e0] sm:$0xff] %v4659
                %v4661 = vld [vmem:[%s4473 + $0x2e8] sm:$0xff]
                %4662 = vst [vmem:[%s4474 + $0x4e8] sm:$0xff] %v4661
                %v4663 = vld [vmem:[%s4473 + $0x2f0] sm:$0xff]
                %4664 = vst [vmem:[%s4474 + $0x4f0] sm:$0xff] %v4663
                %v4665 = vld [vmem:[%s4473 + $0x2f8] sm:$0xff]
                %4666 = vst [vmem:[%s4474 + $0x4f8] sm:$0xff] %v4665
                %v4667 = vld [vmem:[%s4473 + $0x300] sm:$0xff]
                %4668 = vst [vmem:[%s4474 + $0x500] sm:$0xff] %v4667
                %v4669 = vld [vmem:[%s4473 + $0x308] sm:$0xff]
                %4670 = vst [vmem:[%s4474 + $0x508] sm:$0xff] %v4669
                %v4671 = vld [vmem:[%s4473 + $0x310] sm:$0xff]
                %4672 = vst [vmem:[%s4474 + $0x510] sm:$0xff] %v4671
                %v4673 = vld [vmem:[%s4473 + $0x318] sm:$0xff]
                %4674 = vst [vmem:[%s4474 + $0x518] sm:$0xff] %v4673
                %v4675 = vld [vmem:[%s4473 + $0x320] sm:$0xff]
                %4676 = vst [vmem:[%s4474 + $0x520] sm:$0xff] %v4675
                %v4677 = vld [vmem:[%s4473 + $0x328] sm:$0xff]
                %4678 = vst [vmem:[%s4474 + $0x528] sm:$0xff] %v4677
                %v4679 = vld [vmem:[%s4473 + $0x330] sm:$0xff]
                %4680 = vst [vmem:[%s4474 + $0x530] sm:$0xff] %v4679
                %v4681 = vld [vmem:[%s4473 + $0x338] sm:$0xff]
                %4682 = vst [vmem:[%s4474 + $0x538] sm:$0xff] %v4681
                %v4683 = vld [vmem:[%s4473 + $0x340] sm:$0xff]
                %4684 = vst [vmem:[%s4474 + $0x540] sm:$0xff] %v4683
                %v4685 = vld [vmem:[%s4473 + $0x348] sm:$0xff]
                %4686 = vst [vmem:[%s4474 + $0x548] sm:$0xff] %v4685
                %v4687 = vld [vmem:[%s4473 + $0x350] sm:$0xff]
                %4688 = vst [vmem:[%s4474 + $0x550] sm:$0xff] %v4687
                %v4689 = vld [vmem:[%s4473 + $0x358] sm:$0xff]
                %4690 = vst [vmem:[%s4474 + $0x558] sm:$0xff] %v4689
                %v4691 = vld [vmem:[%s4473 + $0x360] sm:$0xff]
                %4692 = vst [vmem:[%s4474 + $0x560] sm:$0xff] %v4691
                %v4693 = vld [vmem:[%s4473 + $0x368] sm:$0xff]
                %4694 = vst [vmem:[%s4474 + $0x568] sm:$0xff] %v4693
                %v4695 = vld [vmem:[%s4473 + $0x370] sm:$0xff]
                %4696 = vst [vmem:[%s4474 + $0x570] sm:$0xff] %v4695
                %v4697 = vld [vmem:[%s4473 + $0x378] sm:$0xff]
                %4698 = vst [vmem:[%s4474 + $0x578] sm:$0xff] %v4697
                %v4699 = vld [vmem:[%s4473 + $0x380] sm:$0xff]
                %4700 = vst [vmem:[%s4474 + $0x580] sm:$0xff] %v4699
                %v4701 = vld [vmem:[%s4473 + $0x388] sm:$0xff]
                %4702 = vst [vmem:[%s4474 + $0x588] sm:$0xff] %v4701
                %v4703 = vld [vmem:[%s4473 + $0x390] sm:$0xff]
                %4704 = vst [vmem:[%s4474 + $0x590] sm:$0xff] %v4703
                %v4705 = vld [vmem:[%s4473 + $0x398] sm:$0xff]
                %4706 = vst [vmem:[%s4474 + $0x598] sm:$0xff] %v4705
                %v4707 = vld [vmem:[%s4473 + $0x3a0] sm:$0xff]
                %4708 = vst [vmem:[%s4474 + $0x5a0] sm:$0xff] %v4707
                %v4709 = vld [vmem:[%s4473 + $0x3a8] sm:$0xff]
                %4710 = vst [vmem:[%s4474 + $0x5a8] sm:$0xff] %v4709
                %v4711 = vld [vmem:[%s4473 + $0x3b0] sm:$0xff]
                %4712 = vst [vmem:[%s4474 + $0x5b0] sm:$0xff] %v4711
                %v4713 = vld [vmem:[%s4473 + $0x3b8] sm:$0xff]
                %4714 = vst [vmem:[%s4474 + $0x5b8] sm:$0xff] %v4713
                %v4715 = vld [vmem:[%s4473 + $0x3c0] sm:$0xff]
                %4716 = vst [vmem:[%s4474 + $0x5c0] sm:$0xff] %v4715
                %v4717 = vld [vmem:[%s4473 + $0x3c8] sm:$0xff]
                %4718 = vst [vmem:[%s4474 + $0x5c8] sm:$0xff] %v4717
                %v4719 = vld [vmem:[%s4473 + $0x3d0] sm:$0xff]
                %4720 = vst [vmem:[%s4474 + $0x5d0] sm:$0xff] %v4719
                %v4721 = vld [vmem:[%s4473 + $0x3d8] sm:$0xff]
                %4722 = vst [vmem:[%s4474 + $0x5d8] sm:$0xff] %v4721
                %v4723 = vld [vmem:[%s4473 + $0x3e0] sm:$0xff]
                %4724 = vst [vmem:[%s4474 + $0x5e0] sm:$0xff] %v4723
                %v4725 = vld [vmem:[%s4473 + $0x3e8] sm:$0xff]
                %4726 = vst [vmem:[%s4474 + $0x5e8] sm:$0xff] %v4725
                %v4727 = vld [vmem:[%s4473 + $0x3f0] sm:$0xff]
                %4728 = vst [vmem:[%s4474 + $0x5f0] sm:$0xff] %v4727
                %v4729 = vld [vmem:[%s4473 + $0x3f8] sm:$0xff]
                %4730 = vst [vmem:[%s4474 + $0x5f8] sm:$0xff] %v4729
              $region72: #{dra_forward.3} parent=66 // loop_footer
                %s4472 = sadd.s32 1, %s4468
              $region73: #{dra_forward.3} parent=66 // loop_footer_branch
                %4467 = sbr.rel target = $region69
              $region74: #{dra_forward.3} parent=66 // loop_exit
                _
            $region67: #{dra_forward.3} parent=62 // pred_fallthru
              _
            // Predicated region
            $region75: #{dra_forward.3} parent=62 // pred_check
              _
            $region76: #{dra_forward.3} parent=62 // pred_check_branch
              %4732 = sbr.rel target = $region78
            $region77: #{dra_forward.3} parent=62 // pred_region
              _
            $region78: #{dra_forward.3} parent=62 // pred_fallthru
              _
          $region63: #{dra_forward.3} parent=58 // pred_fallthru
            _
          %4733 = vnop
        $region59: #{dra_forward.3} parent=50 // pred_fallthru
          _
      $region51: #{dra_forward.3} parent=5 // pred_fallthru
        _
      %p4734 = scmp.le.s32.totalorder 2, %s9
      // Predicated region
      $region79: #{dra_forward.3} parent=5 // pred_check
        %p4735 = pneg %p4734
      $region80: #{dra_forward.3} parent=5 // pred_check_branch
        %4737 = sbr.rel (%p4735) target = $region82
      $region81: #{dra_forward.3} parent=5 // pred_region
        %s4738 = ssub.s32 %s9, 2
        // Predicated region
        $region83: #{dra_forward.3} parent=81 // pred_check
          %p4739 = pneg %p122
        $region84: #{dra_forward.3} parent=81 // pred_check_branch
          %4741 = sbr.rel (%p4739) target = $region86
        $region85: #{dra_forward.3} parent=81 // pred_region
          %s4742 = sand.u32 %s107, 1
          %s4743 = sand.u32 %s107, 1
          %s4744 = smul.addr %s4743, 1024
          %s4745 = scalar_lea.vmem [#allocation3], %s4744
        $region86: #{dra_forward.3} parent=81 // pred_fallthru
          _
      $region82: #{dra_forward.3} parent=5 // pred_fallthru
        _
    $region6: #{dra_forward.3} parent=1 // loop_footer
      %s13 = sadd.s32 1, %s9
    $region7: #{dra_forward.3} parent=1 // loop_footer_branch
      %8 = sbr.rel target = $region3
    $region8: #{dra_forward.3} parent=1 // loop_exit
      _

</llo_original>
